<compile_context>
chip_gen: v7x
topology: tpu7x:2x2x1
jax: 0.10.0
libtpu: 0.0.40
codegen_flags: <defaults>
</compile_context>

<pallas_src>
import math
import functools

import jax
import jax.numpy as jnp
from jax.experimental import pallas as pl
from jax.experimental.pallas import tpu as pltpu


_VMEM_LIMIT = 48 * 1024 * 1024   # safe on v5e/v6e (128 MiB) and v7x (64 MiB)


def _rup(x, m):
    return ((x + m - 1) // m) * m


# --------------------------------------------------------------------------
# Tiled matmul with fused bias + PReLU epilogue
# --------------------------------------------------------------------------
def _mm_kernel_single_k(a_ref, b_ref, bias_ref, alpha_ref, o_ref):
    y = jnp.dot(a_ref[...], b_ref[...], preferred_element_type=jnp.float32)
    y = y + bias_ref[...]
    o_ref[...] = jnp.where(y >= 0, y, alpha_ref[...] * y).astype(o_ref.dtype)


def _mm_kernel_multi_k(a_ref, b_ref, bias_ref, alpha_ref, o_ref, acc_ref):
    @pl.when(pl.program_id(2) == 0)
    def _():
        acc_ref[...] = jnp.zeros_like(acc_ref)

    acc_ref[...] += jnp.dot(a_ref[...], b_ref[...],
                            preferred_element_type=jnp.float32)

    @pl.when(pl.program_id(2) == pl.num_programs(2) - 1)
    def _():
        y = acc_ref[...] + bias_ref[...]
        o_ref[...] = jnp.where(y >= 0, y, alpha_ref[...] * y).astype(o_ref.dtype)


def pallas_mm(a, b, bias=None, prelu_alpha=None, out_dtype=jnp.float32):
    """o = prelu(a @ b + bias).  bf16 MXU operands, f32 accumulation.
    Small K / N use full-extent blocks (no padding, no k grid axis)."""
    M, K = a.shape
    N = b.shape[1]

    if bias is None:
        bias = jnp.zeros((N,), jnp.float32)
    if prelu_alpha is None:
        alpha = jnp.ones((N,), jnp.float32)
    else:
        a_vec = jnp.asarray(prelu_alpha, jnp.float32).reshape(-1)
        alpha = jnp.broadcast_to(a_vec, (N,)) if a_vec.shape[0] == 1 else a_vec

    # ---- tile selection: full-extent blocks for small dims (no padding) ----
    if M <= 1024:
        tm = _rup(M, 8)
        Mp = tm
    else:
        tm, Mp = 256, _rup(M, 256)
    if N <= 512:
        tn, Np = N, N
    else:
        tn = 512 if N % 512 == 0 else (256 if N % 256 == 0 else 128)
        Np = _rup(N, tn)
    if K <= 1024:
        tk, Kp = K, K
    else:
        tk, Kp = 512, _rup(K, 512)
    nk = Kp // tk

    a_p = a.astype(jnp.bfloat16)
    if (Mp, Kp) != (M, K):
        a_p = jnp.pad(a_p, ((0, Mp - M), (0, Kp - K)))
    b_p = b.astype(jnp.bfloat16)
    if (Kp, Np) != (K, N):
        b_p = jnp.pad(b_p, ((0, Kp - K), (0, Np - N)))
    bias_p = bias.astype(jnp.float32)
    alpha_p = alpha.astype(jnp.float32)
    if Np != N:
        bias_p = jnp.pad(bias_p, (0, Np - N))
        alpha_p = jnp.pad(alpha_p, (0, Np - N))
    bias_p = bias_p.reshape(1, Np)
    alpha_p = alpha_p.reshape(1, Np)

    if nk == 1:
        out = pl.pallas_call(
            _mm_kernel_single_k,
            out_shape=jax.ShapeDtypeStruct((Mp, Np), out_dtype),
            grid=(Mp // tm, Np // tn),
            in_specs=[pl.BlockSpec((tm, tk), lambda i, j: (i, 0)),
                      pl.BlockSpec((tk, tn), lambda i, j: (0, j)),
                      pl.BlockSpec((1, tn), lambda i, j: (0, j)),
                      pl.BlockSpec((1, tn), lambda i, j: (0, j))],
            out_specs=pl.BlockSpec((tm, tn), lambda i, j: (i, j)),
            compiler_params=pltpu.CompilerParams(
                dimension_semantics=("parallel", "parallel"),
                vmem_limit_bytes=_VMEM_LIMIT),
        )(a_p, b_p, bias_p, alpha_p)
    else:
        out = pl.pallas_call(
            _mm_kernel_multi_k,
            out_shape=jax.ShapeDtypeStruct((Mp, Np), out_dtype),
            grid=(Mp // tm, Np // tn, nk),
            in_specs=[pl.BlockSpec((tm, tk), lambda i, j, k: (i, k)),
                      pl.BlockSpec((tk, tn), lambda i, j, k: (k, j)),
                      pl.BlockSpec((1, tn), lambda i, j, k: (0, j)),
                      pl.BlockSpec((1, tn), lambda i, j, k: (0, j))],
            out_specs=pl.BlockSpec((tm, tn), lambda i, j, k: (i, j)),
            scratch_shapes=[pltpu.VMEM((tm, tn), jnp.float32)],
            compiler_params=pltpu.CompilerParams(
                dimension_semantics=("parallel", "parallel", "arbitrary"),
                vmem_limit_bytes=_VMEM_LIMIT),
        )(a_p, b_p, bias_p, alpha_p)

    if (Mp, Np) != (M, N):
        out = out[:M, :N]
    return out


# --------------------------------------------------------------------------
# Grouped row LayerNorm: x[G, R, W], normalize over W, per-(G, W) affine
# --------------------------------------------------------------------------
def _grouped_ln_kernel(x_ref, g_ref, b_ref, o_ref, *, eps):
    x = x_ref[0].astype(jnp.float32)                        # [tr, W]
    mu = jnp.mean(x, axis=-1, keepdims=True)
    var = jnp.mean(jnp.square(x - mu), axis=-1, keepdims=True)
    y = (x - mu) * jax.lax.rsqrt(var + eps) * g_ref[0] + b_ref[0]
    o_ref[0] = y.astype(o_ref.dtype)


def pallas_grouped_ln(x, gamma, beta, eps, out_dtype=jnp.float32):
    G, R, W = x.shape
    per_row = max(W * 4, 1)
    tr = max(8, min(256, ((8 * 2 ** 20) // per_row) // 8 * 8))
    tr = min(tr, _rup(R, 8))
    Rp = _rup(R, tr)
    xp = x if Rp == R else jnp.pad(x, ((0, 0), (0, Rp - R), (0, 0)))
    g3 = gamma.reshape(G, 1, W).astype(jnp.float32)
    b3 = beta.reshape(G, 1, W).astype(jnp.float32)
    kern = functools.partial(_grouped_ln_kernel, eps=float(eps))
    y = pl.pallas_call(
        kern,
        out_shape=jax.ShapeDtypeStruct((G, Rp, W), out_dtype),
        grid=(G, Rp // tr),
        in_specs=[pl.BlockSpec((1, tr, W), lambda g, r: (g, r, 0)),
                  pl.BlockSpec((1, 1, W), lambda g, r: (g, 0, 0)),
                  pl.BlockSpec((1, 1, W), lambda g, r: (g, 0, 0))],
        out_specs=pl.BlockSpec((1, tr, W), lambda g, r: (g, r, 0)),
        compiler_params=pltpu.CompilerParams(
            dimension_semantics=("parallel", "parallel"),
            vmem_limit_bytes=_VMEM_LIMIT),
    )(xp, g3, b3)
    return y if Rp == R else y[:, :R, :]


# --------------------------------------------------------------------------
# LayerNormalization4D: normalize over C of [B, C, T, F] (lane-dense on T*F)
# --------------------------------------------------------------------------
def _chan_ln_kernel(x_ref, g_ref, b_ref, o_ref, *, eps):
    x = x_ref[0].astype(jnp.float32)                        # [C, tw]
    mu = jnp.mean(x, axis=0, keepdims=True)
    var = jnp.mean(jnp.square(x - mu), axis=0, keepdims=True)
    y = (x - mu) * jax.lax.rsqrt(var + eps) * g_ref[0] + b_ref[0]
    o_ref[0] = y.astype(o_ref.dtype)


def pallas_channel_ln(x, gamma, beta, eps=1e-5, out_dtype=jnp.float32):
    B, C, T, F = x.shape
    W = T * F
    x3 = x.reshape(B, C, W)                                 # free reshape
    tw = None
    for cand in (2048, 1024, 512, 256, 128):
        if W % cand == 0:
            tw = cand
            break
    if tw is not None:
        Wp = W
    elif W <= 8192:
        tw, Wp = W, W
    else:
        tw, Wp = 512, _rup(W, 512)
        x3 = jnp.pad(x3, ((0, 0), (0, 0), (0, Wp - W)))
    g3 = gamma.reshape(1, C, 1).astype(jnp.float32)
    b3 = beta.reshape(1, C, 1).astype(jnp.float32)
    kern = functools.partial(_chan_ln_kernel, eps=float(eps))
    y = pl.pallas_call(
        kern,
        out_shape=jax.ShapeDtypeStruct((B, C, Wp), out_dtype),
        grid=(B, Wp // tw),
        in_specs=[pl.BlockSpec((1, C, tw), lambda bb, w: (bb, 0, w)),
                  pl.BlockSpec((1, C, 1), lambda bb, w: (0, 0, 0)),
                  pl.BlockSpec((1, C, 1), lambda bb, w: (0, 0, 0))],
        out_specs=pl.BlockSpec((1, C, tw), lambda bb, w: (bb, 0, w)),
        compiler_params=pltpu.CompilerParams(
            dimension_semantics=("parallel", "parallel"),
            vmem_limit_bytes=_VMEM_LIMIT),
    )(x3, g3, b3)
    if Wp != W:
        y = y[:, :, :W]
    return y.reshape(B, C, T, F)


# --------------------------------------------------------------------------
# Bidirectional LSTM recurrence kernel.
#   grid = (direction, batch-tile, sequence-chunk)  with the chunk axis
#   streamed through VMEM; hidden/cell state carried in scratch.
#   gx ([Lp, Np, 2*4*Hp], bf16) is the precomputed x @ W_ih + b for both
#   directions; whh is [Hp, 2*4*Hp] bf16.  Output is [Lp, Np, 2*Hp] bf16.
# --------------------------------------------------------------------------
def _lstm_kernel(gx_ref, whh_ref, o_ref, h_scr, c_scr,
                 *, Hp, Lchunk, nLc, L_real):
    d = pl.program_id(0)
    l = pl.program_id(2)

    @pl.when(l == 0)
    def _():
        h_scr[...] = jnp.zeros_like(h_scr)
        c_scr[...] = jnp.zeros_like(c_scr)

    blk = l + d * (nLc - 1 - 2 * l)          # l (fwd) or nLc-1-l (bwd)
    base = blk * Lchunk

    def step(s, carry):
        t = s + d * (Lchunk - 1 - 2 * s)     # s (fwd) or Lchunk-1-s (bwd)
        gates = gx_ref[t].astype(jnp.float32) + jnp.dot(
            h_scr[...].astype(jnp.bfloat16), whh_ref[...],
            preferred_element_type=jnp.float32)
        # gate blocks are Hp(=multiple of 128)-wide -> lane-aligned slices
        i_g = jax.nn.sigmoid(gates[:, 0:Hp])
        f_g = jax.nn.sigmoid(gates[:, Hp:2 * Hp])
        g_g = jnp.tanh(gates[:, 2 * Hp:3 * Hp])
        o_g = jax.nn.sigmoid(gates[:, 3 * Hp:4 * Hp])
        c_new = f_g * c_scr[...] + i_g * g_g
        h_new = o_g * jnp.tanh(c_new)
        valid = (base + t) < L_real          # mask chunk-padding timesteps
        c_scr[...] = jnp.where(valid, c_new, c_scr[...])
        h_scr[...] = jnp.where(valid, h_new, h_scr[...])
        o_ref[t] = h_new.astype(o_ref.dtype)
        return carry

    jax.lax.fori_loop(0, Lchunk, step, 0)


def _pad_gate_cols(w, H, Hp):
    rows = w.shape[0]
    w4 = jnp.pad(w.reshape(rows, 4, H), ((0, 0), (0, 0), (0, Hp - H)))
    return w4.reshape(rows, 4 * Hp)


def _pad_whh(w, H, Hp):
    w4 = jnp.pad(w.reshape(H, 4, H), ((0, Hp - H), (0, 0), (0, Hp - H)))
    return w4.reshape(Hp, 4 * Hp)


def _pad_bias(b, H, Hp):
    return jnp.pad(b.reshape(4, H), ((0, 0), (0, Hp - H))).reshape(4 * Hp)


def bilstm_fused(x_lri, rp, H):
    """Bidirectional single-layer LSTM on time-major input [L, R, I].
    Returns ([Lp, Np, 2*Hp] bf16, L, R, Lp, Np, Hp); forward h lives in
    columns [0:H], backward in [Hp:Hp+H].  Note: PyTorch LSTM has b_ih and
    b_hh; real checkpoints must pre-sum them into the single bias used here."""
    L, R, I = x_lri.shape
    Hp = _rup(H, 128)
    G = 4 * Hp

    tn = min(128, _rup(R, 8))
    Np = _rup(R, tn)
    Lchunk = min(32, L)
    nLc = pl.cdiv(L, Lchunk)
    Lp = nLc * Lchunk

    if (Lp, Np) != (L, R):
        x_lri = jnp.pad(x_lri, ((0, Lp - L), (0, Np - R), (0, 0)))

    # fused fwd+bwd input projection (one big MXU matmul, bf16 output)
    wih = jnp.concatenate([_pad_gate_cols(rp['wih_f'], H, Hp),
                           _pad_gate_cols(rp['wih_b'], H, Hp)], axis=1)
    bias = jnp.concatenate([_pad_bias(rp['b_f'], H, Hp),
                            _pad_bias(rp['b_b'], H, Hp)])
    whh = jnp.concatenate([_pad_whh(rp['whh_f'], H, Hp),
                           _pad_whh(rp['whh_b'], H, Hp)], axis=1)

    gx = pallas_mm(x_lri.reshape(Lp * Np, I), wih, bias=bias,
                   out_dtype=jnp.bfloat16).reshape(Lp, Np, 2 * G)

    kern = functools.partial(_lstm_kernel, Hp=Hp, Lchunk=Lchunk,
                             nLc=nLc, L_real=L)
    out = pl.pallas_call(
        kern,
        out_shape=jax.ShapeDtypeStruct((Lp, Np, 2 * Hp), jnp.bfloat16),
        grid=(2, Np // tn, nLc),
        in_specs=[
            pl.BlockSpec((Lchunk, tn, G),
                         lambda d, n, l: (l + d * (nLc - 1 - 2 * l), n, d)),
            pl.BlockSpec((Hp, G), lambda d, n, l: (0, d)),
        ],
        out_specs=pl.BlockSpec((Lchunk, tn, Hp),
                               lambda d, n, l: (l + d * (nLc - 1 - 2 * l), n, d)),
        scratch_shapes=[pltpu.VMEM((tn, Hp), jnp.float32),
                        pltpu.VMEM((tn, Hp), jnp.float32)],
        compiler_params=pltpu.CompilerParams(
            dimension_semantics=("parallel", "parallel", "arbitrary"),
            vmem_limit_bytes=_VMEM_LIMIT),
    )(gx, whh.astype(jnp.bfloat16))
    return out, L, R, Lp, Np, Hp


# --------------------------------------------------------------------------
# Full-band self attention kernel (one (head*batch) slice per grid step)
# K is pre-transposed to [Bh, Dq, T] so the score matmul needs no transpose.
# --------------------------------------------------------------------------
def _attn_kernel(q_ref, kt_ref, v_ref, o_ref, *, scale):
    q = q_ref[0]                                             # [T, Dq] bf16
    kt = kt_ref[0]                                           # [Dq, T] bf16
    v = v_ref[0]                                             # [T, Dv] bf16
    s = jnp.dot(q, kt, preferred_element_type=jnp.float32) * scale
    m = jnp.max(s, axis=-1, keepdims=True)
    p = jnp.exp(s - m)
    denom = jnp.sum(p, axis=-1, keepdims=True)
    acc = jnp.dot(p.astype(jnp.bfloat16), v, preferred_element_type=jnp.float32)
    o_ref[0] = (acc * pl.reciprocal(denom, approx=True)).astype(o_ref.dtype)


def pallas_attention(q, kt, v, out_dtype=jnp.bfloat16):
    # TODO(synk): for very long T, tile the KV axis flash-style with running
    # max/sum scratch; at TF-GridNet frame counts the full TxT block fits VMEM.
    Bh, T, Dq = q.shape
    Dv = v.shape[-1]
    scale = 1.0 / math.sqrt(float(Dq))
    kern = functools.partial(_attn_kernel, scale=scale)
    return pl.pallas_call(
        kern,
        out_shape=jax.ShapeDtypeStruct((Bh, T, Dv), out_dtype),
        grid=(Bh,),
        in_specs=[pl.BlockSpec((1, T, Dq), lambda bh: (bh, 0, 0)),
                  pl.BlockSpec((1, Dq, T), lambda bh: (bh, 0, 0)),
                  pl.BlockSpec((1, T, Dv), lambda bh: (bh, 0, 0))],
        out_specs=pl.BlockSpec((1, T, Dv), lambda bh: (bh, 0, 0)),
        compiler_params=pltpu.CompilerParams(
            dimension_semantics=("parallel",),
            vmem_limit_bytes=_VMEM_LIMIT),
    )(q.astype(jnp.bfloat16), kt.astype(jnp.bfloat16), v.astype(jnp.bfloat16))


# --------------------------------------------------------------------------
# Glue blocks
# --------------------------------------------------------------------------
def conv3x3(x, w, b, out_dtype=jnp.float32):
    """nn.Conv2d(kernel=3, stride=1, padding=1) via im2col + tiled matmul.
    TODO(synk): could be a halo'd shifted-accumulate Pallas kernel to avoid
    the 9x im2col HBM traffic; im2col (in bf16) kept for simplicity."""
    B, Cin, Hh, Ww = x.shape
    Cout = w.shape[0]
    xp = jnp.pad(x.astype(jnp.bfloat16), ((0, 0), (0, 0), (1, 1), (1, 1)))
    patches = [xp[:, :, ky:ky + Hh, kx:kx + Ww]
               for ky in range(3) for kx in range(3)]
    pat = jnp.stack(patches, axis=2)                         # [B, Cin, 9, H, W]
    pat = jnp.transpose(pat, (0, 3, 4, 1, 2)).reshape(B * Hh * Ww, Cin * 9)
    wmat = w.reshape(Cout, Cin * 9).T
    y = pallas_mm(pat, wmat, bias=b, out_dtype=out_dtype)
    return jnp.transpose(y.reshape(B, Hh, Ww, Cout), (0, 3, 1, 2))


def group_norm1(x, gamma, beta, eps=1e-8):
    """nn.GroupNorm(num_groups=1): normalize over (C,T,F) per batch element."""
    B, C, T, F = x.shape
    W = C * T * F
    if W * 4 > 8 * 2 ** 20:
        # TODO(synk): two-pass Pallas reduction kernel for very large rows.
        mu = jnp.mean(x, axis=(1, 2, 3), keepdims=True)
        var = jnp.mean(jnp.square(x - mu), axis=(1, 2, 3), keepdims=True)
        return ((x - mu) * jax.lax.rsqrt(var + eps)
                * gamma[None, :, None, None] + beta[None, :, None, None])
    rows = x.reshape(1, B, W)
    gg = jnp.broadcast_to(gamma[:, None, None], (C, T, F)).reshape(1, -1)
    bb = jnp.broadcast_to(beta[:, None, None], (C, T, F)).reshape(1, -1)
    return pallas_grouped_ln(rows, gg, bb, eps).reshape(B, C, T, F)


def _rnn_path(z, rnn_p, lin_w, lin_b, ks, hs, H):
    """One intra/inter branch: unfold -> BiLSTM -> ConvTranspose1d.
    z: [R, C, Len] (bf16) -> [R, C, Len] (f32)."""
    R, C, Len = z.shape
    L = (Len - ks) // hs + 1
    widx = (jnp.arange(L) * hs)[:, None] + jnp.arange(ks)[None, :]
    zu = z[:, :, widx]                                       # [R, C, L, ks]
    zu = jnp.transpose(zu, (2, 0, 1, 3)).reshape(L, R, C * ks)   # time-major

    hpad, L_, R_, Lp, Np, Hp = bilstm_fused(zu, rnn_p, H)    # [Lp, Np, 2Hp] bf16

    # ConvTranspose1d weight mapped onto the padded [2*Hp] feature layout
    wmat = lin_w.reshape(2 * H, C * ks)
    w_p = jnp.zeros((2 * Hp, C * ks), jnp.float32)
    w_p = w_p.at[:H].set(wmat[:H])
    w_p = w_p.at[Hp:Hp + H].set(wmat[H:])

    if ks == hs:
        # non-overlapping transposed conv == reshape; bias fused in the matmul
        contrib = pallas_mm(hpad.reshape(Lp * Np, 2 * Hp), w_p,
                            bias=jnp.repeat(lin_b, ks))
        contrib = contrib.reshape(Lp, Np, C, ks)[:L, :R]
        y = jnp.transpose(contrib, (1, 2, 0, 3)).reshape(R, C, L * ks)
    else:
        # TODO(synk): general stride!=kernel overlap-add kept in plain JAX.
        contrib = pallas_mm(hpad.reshape(Lp * Np, 2 * Hp), w_p)
        contrib = contrib.reshape(Lp, Np, C, ks)[:L, :R]
        y = jnp.zeros((R, C, Len), jnp.float32)
        for k in range(ks):
            y = y.at[:, :, k:k + (L - 1) * hs + 1:hs].add(
                jnp.transpose(contrib[:, :, :, k], (1, 2, 0)))
        y = y + lin_b[None, :, None]
    return y


def attention_module(inter, bp, cfg):
    B, C, oT, oF = inter.shape                               # oF == n_freqs
    nH = cfg['n_head']
    E = cfg['E']
    Dv = C // nH
    heads = bp['heads']
    eps = 1e-5

    feat = jnp.transpose(inter, (0, 2, 3, 1)).reshape(B * oT * oF, C)

    # ---- fused per-head Q/K/V 1x1 convs: one lane-dense matmul, bf16 out ----
    W = jnp.concatenate(
        [h['qw'] for h in heads] + [h['kw'] for h in heads] +
        [h['vw'] for h in heads], axis=1)
    bias = jnp.concatenate(
        [h['qb'] for h in heads] + [h['kb'] for h in heads] +
        [h['vb'] for h in heads])
    alpha = jnp.concatenate(
        [jnp.broadcast_to(h['qa'], (E,)) for h in heads] +
        [jnp.broadcast_to(h['ka'], (E,)) for h in heads] +
        [jnp.broadcast_to(h['va'], (Dv,)) for h in heads])
    y = pallas_mm(feat, W, bias=bias, prelu_alpha=alpha,
                  out_dtype=jnp.bfloat16)                    # [B*oT*oF, Ntot]
    y = y.reshape(B, oT, oF, W.shape[1])

    def _split_norm(block, width, gammas, betas, out_T_last=False):
        z = block.reshape(B, oT, oF, nH, width)
        z = jnp.transpose(z, (3, 0, 1, 4, 2)).reshape(nH, B * oT, width * oF)
        g = jnp.stack([jnp.reshape(g_, (-1,)) for g_ in gammas])
        b_ = jnp.stack([jnp.reshape(b__, (-1,)) for b__ in betas])
        z = pallas_grouped_ln(z, g, b_, eps, out_dtype=jnp.bfloat16)
        z = z.reshape(nH * B, oT, width * oF)
        if out_T_last:
            z = jnp.swapaxes(z, 1, 2)                        # [nH*B, D, oT]
        return z

    Qn = _split_norm(y[..., :nH * E], E,
                     [h['qg'] for h in heads], [h['qbe'] for h in heads])
    Kt = _split_norm(y[..., nH * E:2 * nH * E], E,
                     [h['kg'] for h in heads], [h['kbe'] for h in heads],
                     out_T_last=True)
    Vn = _split_norm(y[..., 2 * nH * E:], Dv,
                     [h['vg'] for h in heads], [h['vbe'] for h in heads])

    Vo = pallas_attention(Qn, Kt, Vn)                        # [nH*B, oT, Dv*oF]
    Vo = Vo.reshape(nH, B, oT, Dv, oF)
    merged = jnp.transpose(Vo, (1, 0, 3, 2, 4)).reshape(B, C, oT, oF)

    pr = bp['proj']
    feat2 = jnp.transpose(merged, (0, 2, 3, 1)).reshape(B * oT * oF, C)
    alpha_p = jnp.broadcast_to(pr['a'], (C,))
    yp = pallas_mm(feat2, pr['w'], bias=pr['b'], prelu_alpha=alpha_p,
                   out_dtype=jnp.bfloat16)
    yp = yp.reshape(B, oT, oF, C)
    yp = jnp.transpose(yp, (0, 1, 3, 2)).reshape(1, B * oT, C * oF)
    yp = pallas_grouped_ln(yp, pr['g'].reshape(1, -1), pr['be'].reshape(1, -1),
                           eps)
    yp = yp.reshape(B, oT, C, oF)
    proj = jnp.transpose(yp, (0, 2, 1, 3))
    return proj + inter


def gridnet_block(x, bp, cfg):
    B, C, old_T, old_Q = x.shape
    ks, hs, H = cfg['ks'], cfg['hs'], cfg['hidden']
    T = math.ceil((old_T - ks) / hs) * hs + ks
    Q = math.ceil((old_Q - ks) / hs) * hs + ks
    xpad = jnp.pad(x, ((0, 0), (0, 0), (0, T - old_T), (0, Q - old_Q)))

    # ---------------- intra (frequency) path ----------------
    input_ = xpad
    z = pallas_channel_ln(input_, bp['intra_norm_g'], bp['intra_norm_b'],
                          out_dtype=jnp.bfloat16)
    z = jnp.swapaxes(z, 1, 2).reshape(B * T, C, Q)
    y = _rnn_path(z, bp['intra_rnn'], bp['intra_lin_w'], bp['intra_lin_b'],
                  ks, hs, H)
    y = jnp.swapaxes(y.reshape(B, T, C, Q), 1, 2)
    intra = y + input_

    # ---------------- inter (time) path ----------------
    input_ = intra
    z = pallas_channel_ln(input_, bp['inter_norm_g'], bp['inter_norm_b'],
                          out_dtype=jnp.bfloat16)
    z = jnp.transpose(z, (0, 3, 1, 2)).reshape(B * Q, C, T)
    y = _rnn_path(z, bp['inter_rnn'], bp['inter_lin_w'], bp['inter_lin_b'],
                  ks, hs, H)
    y = jnp.transpose(y.reshape(B, Q, C, T), (0, 2, 3, 1))
    inter = y + input_
    inter = inter[:, :, :old_T, :old_Q]

    # ---------------- full-band self attention ----------------
    return attention_module(inter, bp, cfg)


# --------------------------------------------------------------------------
# STFT / ISTFT glue (torch.stft / torch.istft semantics, center=True)
# TODO(synk): FFT + overlap-add framing have no clean Pallas equivalent.
# --------------------------------------------------------------------------
def stft_enc(wav, n_fft, hop, window):
    pad = n_fft // 2
    xp = jnp.pad(wav, ((0, 0), (pad, pad)), mode='reflect')
    n_frames = 1 + (xp.shape[-1] - n_fft) // hop
    idx = jnp.arange(n_frames)[:, None] * hop + jnp.arange(n_fft)[None, :]
    frames = xp[:, idx] * window[None, None, :]              # [B, T, n_fft]
    spec = jnp.fft.rfft(frames, axis=-1)                     # [B, T, F]
    spec = jnp.swapaxes(spec, 1, 2)                          # [B, F, T]
    return jnp.stack([spec.real, spec.imag], axis=-1)        # [B, F, T, 2]


def istft_dec(spec_real, spec_imag, n_fft, hop, window):
    spec = (spec_real + 1j * spec_imag).astype(jnp.complex64)    # [B, F, T]
    frames = jnp.fft.irfft(jnp.swapaxes(spec, 1, 2), n=n_fft, axis=-1)
    frames = frames * window[None, None, :]
    B, T, _ = frames.shape
    out_len = n_fft + hop * (T - 1)
    idx = (jnp.arange(T) * hop)[:, None] + jnp.arange(n_fft)[None, :]
    y = jnp.zeros((B, out_len), jnp.float32).at[:, idx].add(
        frames.astype(jnp.float32))
    wsum = jnp.zeros((out_len,), jnp.float32).at[idx].add(
        jnp.broadcast_to(window * window, (T, n_fft)))
    y = y / jnp.maximum(wsum, 1e-11)[None, :]
    pad = n_fft // 2
    return y[:, pad:pad + hop * (T - 1)]


# --------------------------------------------------------------------------
# Full model forward
# --------------------------------------------------------------------------
def tf_gridnet_forward(params, wav, cfg):
    n_fft, hop = cfg['n_fft'], cfg['hop']
    n = jnp.arange(n_fft)
    # torch.hann_window(n_fft).pow(0.5), periodic
    window = jnp.sqrt(0.5 * (1.0 - jnp.cos(2.0 * jnp.pi * n / n_fft))
                      ).astype(jnp.float32)
    B, n_samples = wav.shape

    x = stft_enc(wav, n_fft, hop, window)                    # [B, F, T, 2]
    x = jnp.transpose(x, (0, 3, 2, 1)).astype(jnp.float32)   # [B, 2, T, F]
    x = conv3x3(x, params['conv_w'], params['conv_b'])       # [B, C, T, F]
    x = group_norm1(x, params['gln_g'], params['gln_b'], eps=1e-8)
    for bp in params['blocks']:
        x = gridnet_block(x, bp, cfg)
    # ConvTranspose2d(stride=1, pad=1) == conv with flipped, transposed kernel
    w_eq = jnp.transpose(params['deconv_w'][:, :, ::-1, ::-1], (1, 0, 2, 3))
    x = conv3x3(x, w_eq, params['deconv_b'])                 # [B, 4, T, F]
    x = jnp.transpose(x, (0, 3, 2, 1))                       # [B, F, T, 4]

    p1 = istft_dec(x[..., 0], x[..., 1], n_fft, hop, window)
    p2 = istft_dec(x[..., 2], x[..., 3], n_fft, hop, window)
    p1 = jnp.pad(p1, ((0, 0), (0, n_samples - p1.shape[-1])))
    p2 = jnp.pad(p2, ((0, 0), (0, n_samples - p2.shape[-1])))
    return jnp.stack([p1, p2], axis=1)                       # [B, 2, n_samples]


# --------------------------------------------------------------------------
# Deterministic synthetic parameter init (shapes per the PyTorch __init__)
# --------------------------------------------------------------------------
def init_params(key, cfg):
    C = cfg['emb_dim']
    H = cfg['hidden']
    ks = cfg['ks']
    nH = cfg['n_head']
    E = cfg['E']
    nfreq = cfg['n_freqs']
    I = C * ks
    Dv = C // nH

    keys = jax.random.split(key, 8 + cfg['num_blks'])

    def nrm(k, shape, s=0.1):
        return jax.random.normal(k, shape, jnp.float32) * s

    params = {
        'conv_w': nrm(keys[0], (C, 2, 3, 3)),
        'conv_b': jnp.zeros((C,), jnp.float32),
        'gln_g': jnp.ones((C,), jnp.float32),
        'gln_b': jnp.zeros((C,), jnp.float32),
        'deconv_w': nrm(keys[1], (C, 4, 3, 3)),
        'deconv_b': jnp.zeros((4,), jnp.float32),
    }

    blocks = []
    for i in range(cfg['num_blks']):
        bk = jax.random.split(keys[8 + i], 32)
        it = iter(range(32))

        def w(shape, s=0.1):
            return jax.random.normal(bk[next(it)], shape, jnp.float32) * s

        bp = {
            'intra_norm_g': jnp.ones((C,), jnp.float32),
            'intra_norm_b': jnp.zeros((C,), jnp.float32),
            'inter_norm_g': jnp.ones((C,), jnp.float32),
            'inter_norm_b': jnp.zeros((C,), jnp.float32),
            'intra_rnn': {
                'wih_f': w((I, 4 * H)), 'whh_f': w((H, 4 * H)),
                'b_f': jnp.zeros((4 * H,), jnp.float32),
                'wih_b': w((I, 4 * H)), 'whh_b': w((H, 4 * H)),
                'b_b': jnp.zeros((4 * H,), jnp.float32)},
            'inter_rnn': {
                'wih_f': w((I, 4 * H)), 'whh_f': w((H, 4 * H)),
                'b_f': jnp.zeros((4 * H,), jnp.float32),
                'wih_b': w((I, 4 * H)), 'whh_b': w((H, 4 * H)),
                'b_b': jnp.zeros((4 * H,), jnp.float32)},
            'intra_lin_w': w((2 * H, C, ks)),
            'intra_lin_b': jnp.zeros((C,), jnp.float32),
            'inter_lin_w': w((2 * H, C, ks)),
            'inter_lin_b': jnp.zeros((C,), jnp.float32),
        }
        heads = []
        for _ in range(nH):
            heads.append({
                'qw': w((C, E)), 'qb': jnp.zeros((E,), jnp.float32),
                'qa': jnp.asarray(0.25, jnp.float32),
                'qg': jnp.ones((E, nfreq), jnp.float32),
                'qbe': jnp.zeros((E, nfreq), jnp.float32),
                'kw': w((C, E)), 'kb': jnp.zeros((E,), jnp.float32),
                'ka': jnp.asarray(0.25, jnp.float32),
                'kg': jnp.ones((E, nfreq), jnp.float32),
                'kbe': jnp.zeros((E, nfreq), jnp.float32),
                'vw': w((C, Dv)), 'vb': jnp.zeros((Dv,), jnp.float32),
                'va': jnp.asarray(0.25, jnp.float32),
                'vg': jnp.ones((Dv, nfreq), jnp.float32),
                'vbe': jnp.zeros((Dv, nfreq), jnp.float32)})
        bp['heads'] = heads
        bp['proj'] = {'w': w((C, C)), 'b': jnp.zeros((C,), jnp.float32),
                      'a': jnp.asarray(0.25, jnp.float32),
                      'g': jnp.ones((C, nfreq), jnp.float32),
                      'be': jnp.zeros((C, nfreq), jnp.float32)}
        blocks.append(bp)
    params['blocks'] = blocks
    return params


# --------------------------------------------------------------------------
if __name__ == "__main__":
    # Small but structurally faithful configuration:
    #   n_fft=32 -> 17 freq bins, 256 samples / hop 16 -> 17 frames,
    #   emb_dim=8, hidden=8, kernel/stride=4, 4 heads, approx_qk_dim=32 -> E=2
    cfg = dict(n_fft=32, hop=16, emb_dim=8, hidden=8, ks=4, hs=4,
               n_head=4, num_blks=2)
    cfg['n_freqs'] = cfg['n_fft'] // 2 + 1
    cfg['E'] = math.ceil(32 / cfg['n_freqs'])

    key = jax.random.PRNGKey(0)
    pkey, xkey = jax.random.split(key)
    params = init_params(pkey, cfg)

    B, n_samples = 2, 256
    wav = jax.random.normal(xkey, (B, n_samples), jnp.float32)

    fwd = jax.jit(functools.partial(tf_gridnet_forward, cfg=cfg))
    out = fwd(params, wav)
    out = jax.block_until_ready(out)

    assert out.shape == (B, 2, n_samples), out.shape
    assert bool(jnp.all(jnp.isfinite(out)))
    print("KERNEL_OK")
</pallas_src>

<mosaic_0001>
module attributes {stable_mosaic.version = 11 : i64} {
  func.func private @main(%arg0: i32) attributes {dimension_semantics = [#tpu.dimension_semantics<core_parallel>], iteration_bounds = array<i64: 2>, tpu.core_type = #tpu.core_type<sc_scalar_subcore>, window_params = []} {
    return
  }
}

module attributes {stable_mosaic.version = 11 : i64} {
  func.func private @main(%arg0: i32) attributes {dimension_semantics = [#tpu.dimension_semantics<core_parallel>], iteration_bounds = array<i64: 2>, tpu.core_type = #tpu.core_type<sc_scalar_subcore>, window_params = []} {
    return
  }
}

module attributes {stable_mosaic.version = 11 : i64} {
  func.func @_mm_kernel_single_k(%arg0: i32, %arg1: i32, %arg2: memref<584x18xbf16, #tpu.memory_space<vmem>>, %arg3: memref<18x8xbf16, #tpu.memory_space<vmem>>, %arg4: memref<1x8xf32, #tpu.memory_space<vmem>>, %arg5: memref<1x8xf32, #tpu.memory_space<vmem>>, %arg6: memref<584x8xf32, #tpu.memory_space<vmem>>) attributes {dimension_semantics = [#tpu.dimension_semantics<parallel>, #tpu.dimension_semantics<parallel>], iteration_bounds = array<i64: 1, 1>, scalar_prefetch = 0 : i64, scratch_operands = 0 : i64, tpu.core_type = #tpu.core_type<tc>, window_params = [{transform_indices = @transform_0, window_bounds = array<i64: 584, 18>}, {transform_indices = @transform_1, window_bounds = array<i64: 18, 8>}, {transform_indices = @transform_2, window_bounds = array<i64: 1, 8>}, {transform_indices = @transform_3, window_bounds = array<i64: 1, 8>}, {transform_indices = @transform_4, window_bounds = array<i64: 584, 8>}]} {
    %c0 = arith.constant 0 : index
    %c0_0 = arith.constant 0 : index
    %0 = vector.load %arg2[%c0, %c0_0] : memref<584x18xbf16, #tpu.memory_space<vmem>>, vector<584x18xbf16>
    %c0_1 = arith.constant 0 : index
    %c0_2 = arith.constant 0 : index
    %1 = vector.load %arg3[%c0_1, %c0_2] : memref<18x8xbf16, #tpu.memory_space<vmem>>, vector<18x8xbf16>
    %cst = arith.constant dense<0.000000e+00> : vector<584x8xf32>
    %2 = tpu.matmul %0, %1, %cst {dimension_numbers = #tpu.dot_dimension_numbers<[1], [0], [0], [1], [0, 0, 1, 1], [], []>} : vector<584x18xbf16>, vector<18x8xbf16>, vector<584x8xf32> -> vector<584x8xf32>
    %c0_3 = arith.constant 0 : index
    %c0_4 = arith.constant 0 : index
    %3 = vector.load %arg4[%c0_3, %c0_4] : memref<1x8xf32, #tpu.memory_space<vmem>>, vector<1x8xf32>
    %4 = vector.broadcast %3 : vector<1x8xf32> to vector<584x8xf32>
    %5 = arith.addf %2, %4 : vector<584x8xf32>
    %cst_5 = arith.constant 0.000000e+00 : f32
    %6 = vector.broadcast %cst_5 : f32 to vector<584x8xf32>
    %7 = arith.cmpf oge, %5, %6 : vector<584x8xf32>
    %c0_6 = arith.constant 0 : index
    %c0_7 = arith.constant 0 : index
    %8 = vector.load %arg5[%c0_6, %c0_7] : memref<1x8xf32, #tpu.memory_space<vmem>>, vector<1x8xf32>
    %9 = vector.broadcast %8 : vector<1x8xf32> to vector<584x8xf32>
    %10 = arith.mulf %9, %5 : vector<584x8xf32>
    %11 = arith.select %7, %5, %10 : vector<584x8xi1>, vector<584x8xf32>
    %c0_8 = arith.constant 0 : index
    %c0_9 = arith.constant 0 : index
    %12 = vector.load %arg6[%c0_8, %c0_9] : memref<584x8xf32, #tpu.memory_space<vmem>>, vector<584x8xf32>
    tpu.vector_store %arg6[%c0_8, %c0_9], %11 {strides = array<i32>} : memref<584x8xf32, #tpu.memory_space<vmem>>, vector<584x8xf32>,
    return
  }
  func.func @transform_0(%arg0: i32, %arg1: i32) -> (i32, i32) {
    %c0_i32 = arith.constant 0 : i32
    %c0_i32_0 = arith.constant 0 : i32
    return %arg0, %c0_i32 : i32, i32
  }
  func.func @transform_1(%arg0: i32, %arg1: i32) -> (i32, i32) {
    %c0_i32 = arith.constant 0 : i32
    %c0_i32_0 = arith.constant 0 : i32
    return %c0_i32, %arg1 : i32, i32
  }
  func.func @transform_2(%arg0: i32, %arg1: i32) -> (i32, i32) {
    %c0_i32 = arith.constant 0 : i32
    %c0_i32_0 = arith.constant 0 : i32
    return %c0_i32, %arg1 : i32, i32
  }
  func.func @transform_3(%arg0: i32, %arg1: i32) -> (i32, i32) {
    %c0_i32 = arith.constant 0 : i32
    %c0_i32_0 = arith.constant 0 : i32
    return %c0_i32, %arg1 : i32, i32
  }
  func.func @transform_4(%arg0: i32, %arg1: i32) -> (i32, i32) {
    %c0_i32 = arith.constant 0 : i32
    return %arg0, %arg1 : i32, i32
  }
}

module attributes {stable_mosaic.version = 11 : i64} {
  func.func @_grouped_ln_kernel(%arg0: i32, %arg1: i32, %arg2: memref<1x8x2312xf32, #tpu.memory_space<vmem>>, %arg3: memref<1x1x2312xf32, #tpu.memory_space<vmem>>, %arg4: memref<1x1x2312xf32, #tpu.memory_space<vmem>>, %arg5: memref<1x8x2312xf32, #tpu.memory_space<vmem>>) attributes {dimension_semantics = [#tpu.dimension_semantics<parallel>, #tpu.dimension_semantics<parallel>], iteration_bounds = array<i64: 1, 1>, scalar_prefetch = 0 : i64, scratch_operands = 0 : i64, tpu.core_type = #tpu.core_type<tc>, window_params = [{transform_indices = @transform_0, window_bounds = array<i64: 1, 8, 2312>}, {transform_indices = @transform_1, window_bounds = array<i64: 1, 1, 2312>}, {transform_indices = @transform_2, window_bounds = array<i64: 1, 1, 2312>}, {transform_indices = @transform_3, window_bounds = array<i64: 1, 8, 2312>}]} {
    %c0 = arith.constant 0 : index
    %c0_0 = arith.constant 0 : index
    %c0_1 = arith.constant 0 : index
    %0 = vector.load %arg2[%c0, %c0_0, %c0_1] : memref<1x8x2312xf32, #tpu.memory_space<vmem>>, vector<1x8x2312xf32>
    %1 = vector.shape_cast %0 : vector<1x8x2312xf32> to vector<8x2312xf32>
    %cst = arith.constant dense<0.000000e+00> : vector<8xf32>
    %2 = vector.multi_reduction <add>, %1, %cst [1] : vector<8x2312xf32> to vector<8xf32>
    %3 = vector.shape_cast %2 : vector<8xf32> to vector<8x1xf32>
    %cst_2 = arith.constant 2.312000e+03 : f32
    %4 = vector.broadcast %cst_2 : f32 to vector<8x1xf32>
    %5 = arith.divf %3, %4 : vector<8x1xf32>
    %6 = vector.broadcast %5 : vector<8x1xf32> to vector<8x2312xf32>
    %7 = arith.subf %1, %6 : vector<8x2312xf32>
    %8 = arith.mulf %7, %7 : vector<8x2312xf32>
    %cst_3 = arith.constant dense<0.000000e+00> : vector<8xf32>
    %9 = vector.multi_reduction <add>, %8, %cst_3 [1] : vector<8x2312xf32> to vector<8xf32>
    %10 = vector.shape_cast %9 : vector<8xf32> to vector<8x1xf32>
    %cst_4 = arith.constant 2.312000e+03 : f32
    %11 = vector.broadcast %cst_4 : f32 to vector<8x1xf32>
    %12 = arith.divf %10, %11 : vector<8x1xf32>
    %13 = vector.broadcast %5 : vector<8x1xf32> to vector<8x2312xf32>
    %14 = arith.subf %1, %13 : vector<8x2312xf32>
    %cst_5 = arith.constant 9.99999993E-9 : f32
    %15 = vector.broadcast %cst_5 : f32 to vector<8x1xf32>
    %16 = arith.addf %12, %15 : vector<8x1xf32>
    %17 = math.rsqrt %16 : vector<8x1xf32>
    %18 = vector.broadcast %17 : vector<8x1xf32> to vector<8x2312xf32>
    %19 = arith.mulf %14, %18 : vector<8x2312xf32>
    %c0_6 = arith.constant 0 : index
    %c0_7 = arith.constant 0 : index
    %c0_8 = arith.constant 0 : index
    %20 = vector.load %arg3[%c0_6, %c0_7, %c0_8] : memref<1x1x2312xf32, #tpu.memory_space<vmem>>, vector<1x1x2312xf32>
    %21 = vector.shape_cast %20 : vector<1x1x2312xf32> to vector<1x2312xf32>
    %22 = vector.broadcast %21 : vector<1x2312xf32> to vector<8x2312xf32>
    %23 = arith.mulf %19, %22 : vector<8x2312xf32>
    %c0_9 = arith.constant 0 : index
    %c0_10 = arith.constant 0 : index
    %c0_11 = arith.constant 0 : index
    %24 = vector.load %arg4[%c0_9, %c0_10, %c0_11] : memref<1x1x2312xf32, #tpu.memory_space<vmem>>, vector<1x1x2312xf32>
    %25 = vector.shape_cast %24 : vector<1x1x2312xf32> to vector<1x2312xf32>
    %26 = vector.broadcast %25 : vector<1x2312xf32> to vector<8x2312xf32>
    %27 = arith.addf %23, %26 : vector<8x2312xf32>
    %c0_12 = arith.constant 0 : index
    %c0_13 = arith.constant 0 : index
    %c0_14 = arith.constant 0 : index
    %28 = vector.load %arg5[%c0_12, %c0_13, %c0_14] : memref<1x8x2312xf32, #tpu.memory_space<vmem>>, vector<1x8x2312xf32>
    %29 = vector.shape_cast %28 : vector<1x8x2312xf32> to vector<8x2312xf32>
    %30 = vector.shape_cast %27 : vector<8x2312xf32> to vector<1x8x2312xf32>
    tpu.vector_store %arg5[%c0_12, %c0_13, %c0_14], %30 {strides = array<i32>} : memref<1x8x2312xf32, #tpu.memory_space<vmem>>, vector<1x8x2312xf32>,
    return
  }
  func.func @transform_0(%arg0: i32, %arg1: i32) -> (i32, i32, i32) {
    %c0_i32 = arith.constant 0 : i32
    %c0_i32_0 = arith.constant 0 : i32
    return %arg0, %arg1, %c0_i32 : i32, i32, i32
  }
  func.func @transform_1(%arg0: i32, %arg1: i32) -> (i32, i32, i32) {
    %c0_i32 = arith.constant 0 : i32
    %c0_i32_0 = arith.constant 0 : i32
    %c0_i32_1 = arith.constant 0 : i32
    return %arg0, %c0_i32, %c0_i32_0 : i32, i32, i32
  }
  func.func @transform_2(%arg0: i32, %arg1: i32) -> (i32, i32, i32) {
    %c0_i32 = arith.constant 0 : i32
    %c0_i32_0 = arith.constant 0 : i32
    %c0_i32_1 = arith.constant 0 : i32
    return %arg0, %c0_i32, %c0_i32_0 : i32, i32, i32
  }
  func.func @transform_3(%arg0: i32, %arg1: i32) -> (i32, i32, i32) {
    %c0_i32 = arith.constant 0 : i32
    %c0_i32_0 = arith.constant 0 : i32
    return %arg0, %arg1, %c0_i32 : i32, i32, i32
  }
}

module attributes {stable_mosaic.version = 11 : i64} {
  func.func @_chan_ln_kernel(%arg0: i32, %arg1: i32, %arg2: memref<1x8x400xf32, #tpu.memory_space<vmem>>, %arg3: memref<1x8x1xf32, #tpu.memory_space<vmem>>, %arg4: memref<1x8x1xf32, #tpu.memory_space<vmem>>, %arg5: memref<1x8x400xbf16, #tpu.memory_space<vmem>>) attributes {dimension_semantics = [#tpu.dimension_semantics<parallel>, #tpu.dimension_semantics<parallel>], iteration_bounds = array<i64: 2, 1>, scalar_prefetch = 0 : i64, scratch_operands = 0 : i64, tpu.core_type = #tpu.core_type<tc>, window_params = [{transform_indices = @transform_0, window_bounds = array<i64: 1, 8, 400>}, {pipeline_mode = #tpu.pipeline_mode<synchronous>, transform_indices = @transform_1, window_bounds = array<i64: 1, 8, 1>}, {pipeline_mode = #tpu.pipeline_mode<synchronous>, transform_indices = @transform_2, window_bounds = array<i64: 1, 8, 1>}, {transform_indices = @transform_3, window_bounds = array<i64: 1, 8, 400>}]} {
    %c0 = arith.constant 0 : index
    %c0_0 = arith.constant 0 : index
    %c0_1 = arith.constant 0 : index
    %0 = vector.load %arg2[%c0, %c0_0, %c0_1] : memref<1x8x400xf32, #tpu.memory_space<vmem>>, vector<1x8x400xf32>
    %1 = vector.shape_cast %0 : vector<1x8x400xf32> to vector<8x400xf32>
    %cst = arith.constant dense<0.000000e+00> : vector<400xf32>
    %2 = vector.multi_reduction <add>, %1, %cst [0] : vector<8x400xf32> to vector<400xf32>
    %3 = vector.shape_cast %2 : vector<400xf32> to vector<1x400xf32>
    %cst_2 = arith.constant 8.000000e+00 : f32
    %4 = vector.broadcast %cst_2 : f32 to vector<1x400xf32>
    %5 = arith.divf %3, %4 : vector<1x400xf32>
    %6 = vector.broadcast %5 : vector<1x400xf32> to vector<8x400xf32>
    %7 = arith.subf %1, %6 : vector<8x400xf32>
    %8 = arith.mulf %7, %7 : vector<8x400xf32>
    %cst_3 = arith.constant dense<0.000000e+00> : vector<400xf32>
    %9 = vector.multi_reduction <add>, %8, %cst_3 [0] : vector<8x400xf32> to vector<400xf32>
    %10 = vector.shape_cast %9 : vector<400xf32> to vector<1x400xf32>
    %cst_4 = arith.constant 8.000000e+00 : f32
    %11 = vector.broadcast %cst_4 : f32 to vector<1x400xf32>
    %12 = arith.divf %10, %11 : vector<1x400xf32>
    %13 = vector.broadcast %5 : vector<1x400xf32> to vector<8x400xf32>
    %14 = arith.subf %1, %13 : vector<8x400xf32>
    %cst_5 = arith.constant 9.99999974E-6 : f32
    %15 = vector.broadcast %cst_5 : f32 to vector<1x400xf32>
    %16 = arith.addf %12, %15 : vector<1x400xf32>
    %17 = math.rsqrt %16 : vector<1x400xf32>
    %18 = vector.broadcast %17 : vector<1x400xf32> to vector<8x400xf32>
    %19 = arith.mulf %14, %18 : vector<8x400xf32>
    %c0_6 = arith.constant 0 : index
    %c0_7 = arith.constant 0 : index
    %c0_8 = arith.constant 0 : index
    %20 = vector.load %arg3[%c0_6, %c0_7, %c0_8] : memref<1x8x1xf32, #tpu.memory_space<vmem>>, vector<1x8x1xf32>
    %21 = vector.shape_cast %20 : vector<1x8x1xf32> to vector<8x1xf32>
    %22 = vector.broadcast %21 : vector<8x1xf32> to vector<8x400xf32>
    %23 = arith.mulf %19, %22 : vector<8x400xf32>
    %c0_9 = arith.constant 0 : index
    %c0_10 = arith.constant 0 : index
    %c0_11 = arith.constant 0 : index
    %24 = vector.load %arg4[%c0_9, %c0_10, %c0_11] : memref<1x8x1xf32, #tpu.memory_space<vmem>>, vector<1x8x1xf32>
    %25 = vector.shape_cast %24 : vector<1x8x1xf32> to vector<8x1xf32>
    %26 = vector.broadcast %25 : vector<8x1xf32> to vector<8x400xf32>
    %27 = arith.addf %23, %26 : vector<8x400xf32>
    %28 = arith.truncf %27 : vector<8x400xf32> to vector<8x400xbf16>
    %c0_12 = arith.constant 0 : index
    %c0_13 = arith.constant 0 : index
    %c0_14 = arith.constant 0 : index
    %29 = vector.load %arg5[%c0_12, %c0_13, %c0_14] : memref<1x8x400xbf16, #tpu.memory_space<vmem>>, vector<1x8x400xbf16>
    %30 = vector.shape_cast %29 : vector<1x8x400xbf16> to vector<8x400xbf16>
    %31 = vector.shape_cast %28 : vector<8x400xbf16> to vector<1x8x400xbf16>
    tpu.vector_store %arg5[%c0_12, %c0_13, %c0_14], %31 {strides = array<i32>} : memref<1x8x400xbf16, #tpu.memory_space<vmem>>, vector<1x8x400xbf16>,
    return
  }
  func.func @transform_0(%arg0: i32, %arg1: i32) -> (i32, i32, i32) {
    %c0_i32 = arith.constant 0 : i32
    %c0_i32_0 = arith.constant 0 : i32
    return %arg0, %c0_i32, %arg1 : i32, i32, i32
  }
  func.func @transform_1(%arg0: i32, %arg1: i32) -> (i32, i32, i32) {
    %c0_i32 = arith.constant 0 : i32
    %c0_i32_0 = arith.constant 0 : i32
    %c0_i32_1 = arith.constant 0 : i32
    %c0_i32_2 = arith.constant 0 : i32
    return %c0_i32, %c0_i32_0, %c0_i32_1 : i32, i32, i32
  }
  func.func @transform_2(%arg0: i32, %arg1: i32) -> (i32, i32, i32) {
    %c0_i32 = arith.constant 0 : i32
    %c0_i32_0 = arith.constant 0 : i32
    %c0_i32_1 = arith.constant 0 : i32
    %c0_i32_2 = arith.constant 0 : i32
    return %c0_i32, %c0_i32_0, %c0_i32_1 : i32, i32, i32
  }
  func.func @transform_3(%arg0: i32, %arg1: i32) -> (i32, i32, i32) {
    %c0_i32 = arith.constant 0 : i32
    %c0_i32_0 = arith.constant 0 : i32
    return %arg0, %c0_i32, %arg1 : i32, i32, i32
  }
}

module attributes {stable_mosaic.version = 11 : i64} {
  func.func @_lstm_kernel(%arg0: i32, %arg1: i32, %arg2: i32, %arg3: memref<5x40x512xbf16, #tpu.memory_space<vmem>>, %arg4: memref<128x512xbf16, #tpu.memory_space<vmem>>, %arg5: memref<5x40x128xbf16, #tpu.memory_space<vmem>>, %arg6: memref<40x128xf32, #tpu.memory_space<vmem>>, %arg7: memref<40x128xf32, #tpu.memory_space<vmem>>) attributes {dimension_semantics = [#tpu.dimension_semantics<parallel>, #tpu.dimension_semantics<parallel>, #tpu.dimension_semantics<arbitrary>], iteration_bounds = array<i64: 2, 1, 1>, scalar_prefetch = 0 : i64, scratch_operands = 2 : i64, tpu.core_type = #tpu.core_type<tc>, window_params = [{transform_indices = @transform_0, window_bounds = array<i64: 5, 40, 512>}, {transform_indices = @transform_1, window_bounds = array<i64: 128, 512>}, {transform_indices = @transform_2, window_bounds = array<i64: 5, 40, 128>}]} {
    %c0_i32 = arith.constant 0 : i32
    %0 = arith.cmpi eq, %arg2, %c0_i32 : i32
    %1 = arith.extui %0 : i1 to i32
    %c0_i32_0 = arith.constant 0 : i32
    %2 = arith.cmpi ne, %1, %c0_i32_0 : i32
    scf.if %2 {
      %cst = arith.constant 0.000000e+00 : f32
      %9 = vector.broadcast %cst : f32 to vector<40x128xf32>
      %c0 = arith.constant 0 : index
      %c0_5 = arith.constant 0 : index
      %10 = vector.load %arg6[%c0, %c0_5] : memref<40x128xf32, #tpu.memory_space<vmem>>, vector<40x128xf32>
      tpu.vector_store %arg6[%c0, %c0_5], %9 {strides = array<i32>} : memref<40x128xf32, #tpu.memory_space<vmem>>, vector<40x128xf32>,
      %cst_6 = arith.constant 0.000000e+00 : f32
      %11 = vector.broadcast %cst_6 : f32 to vector<40x128xf32>
      %c0_7 = arith.constant 0 : index
      %c0_8 = arith.constant 0 : index
      %12 = vector.load %arg7[%c0_7, %c0_8] : memref<40x128xf32, #tpu.memory_space<vmem>>, vector<40x128xf32>
      tpu.vector_store %arg7[%c0_7, %c0_8], %11 {strides = array<i32>} : memref<40x128xf32, #tpu.memory_space<vmem>>, vector<40x128xf32>,
    } else {
    }
    %c2_i32 = arith.constant 2 : i32
    %3 = arith.muli %c2_i32, %arg2 : i32
    %c0_i32_1 = arith.constant 0 : i32
    %4 = arith.subi %c0_i32_1, %3 : i32
    %5 = arith.muli %arg0, %4 : i32
    %6 = arith.addi %arg2, %5 : i32
    %c5_i32 = arith.constant 5 : i32
    %7 = arith.muli %6, %c5_i32 : i32
    %c0_i32_2 = arith.constant 0 : i32
    %c5_i32_3 = arith.constant 5 : i32
    %8 = arith.addi %c0_i32_2, %c5_i32_3 : i32
    %c1_i32 = arith.constant 1 : i32
    scf.for %arg8 = %c0_i32_2 to %8 step %c1_i32  : i32 {
      %c2_i32_5 = arith.constant 2 : i32
      %9 = arith.muli %c2_i32_5, %arg8 : i32
      %c4_i32 = arith.constant 4 : i32
      %10 = arith.subi %c4_i32, %9 : i32
      %11 = arith.muli %arg0, %10 : i32
      %12 = arith.addi %arg8, %11 : i32
      %13 = arith.index_cast %12 : i32 to index
      %c0 = arith.constant 0 : index
      %c0_6 = arith.constant 0 : index
      %14 = vector.load %arg3[%13, %c0, %c0_6] : memref<5x40x512xbf16, #tpu.memory_space<vmem>>, vector<1x40x512xbf16>
      %15 = vector.shape_cast %14 : vector<1x40x512xbf16> to vector<40x512xbf16>
      %16 = arith.extf %15 : vector<40x512xbf16> to vector<40x512xf32>
      %c0_7 = arith.constant 0 : index
      %c0_8 = arith.constant 0 : index
      %17 = vector.load %arg6[%c0_7, %c0_8] : memref<40x128xf32, #tpu.memory_space<vmem>>, vector<40x128xf32>
      %18 = arith.truncf %17 : vector<40x128xf32> to vector<40x128xbf16>
      %c0_9 = arith.constant 0 : index
      %c0_10 = arith.constant 0 : index
      %19 = vector.load %arg4[%c0_9, %c0_10] : memref<128x512xbf16, #tpu.memory_space<vmem>>, vector<128x512xbf16>
      %cst = arith.constant dense<0.000000e+00> : vector<40x512xf32>
      %20 = tpu.matmul %18, %19, %cst {dimension_numbers = #tpu.dot_dimension_numbers<[1], [0], [0], [1], [0, 0, 1, 1], [], []>} : vector<40x128xbf16>, vector<128x512xbf16>, vector<40x512xf32> -> vector<40x512xf32>
      %21 = arith.addf %16, %20 : vector<40x512xf32>
      %22 = vector.extract_strided_slice %21 {offsets = [0, 0], sizes = [40, 128], strides = [1, 1]} : vector<40x512xf32> to vector<40x128xf32>
      %23 = arith.negf %22 : vector<40x128xf32>
      %24 = math.exp %23 : vector<40x128xf32>
      %cst_11 = arith.constant 1.000000e+00 : f32
      %25 = vector.broadcast %cst_11 : f32 to vector<40x128xf32>
      %26 = arith.addf %25, %24 : vector<40x128xf32>
      %27 = arith.divf %25, %26 : vector<40x128xf32>
      %28 = vector.extract_strided_slice %21 {offsets = [0, 128], sizes = [40, 128], strides = [1, 1]} : vector<40x512xf32> to vector<40x128xf32>
      %29 = arith.negf %28 : vector<40x128xf32>
      %30 = math.exp %29 : vector<40x128xf32>
      %cst_12 = arith.constant 1.000000e+00 : f32
      %31 = vector.broadcast %cst_12 : f32 to vector<40x128xf32>
      %32 = arith.addf %31, %30 : vector<40x128xf32>
      %33 = arith.divf %31, %32 : vector<40x128xf32>
      %34 = vector.extract_strided_slice %21 {offsets = [0, 256], sizes = [40, 128], strides = [1, 1]} : vector<40x512xf32> to vector<40x128xf32>
      %35 = math.tanh %34 : vector<40x128xf32>
      %36 = vector.extract_strided_slice %21 {offsets = [0, 384], sizes = [40, 128], strides = [1, 1]} : vector<40x512xf32> to vector<40x128xf32>
      %37 = arith.negf %36 : vector<40x128xf32>
      %38 = math.exp %37 : vector<40x128xf32>
      %cst_13 = arith.constant 1.000000e+00 : f32
      %39 = vector.broadcast %cst_13 : f32 to vector<40x128xf32>
      %40 = arith.addf %39, %38 : vector<40x128xf32>
      %41 = arith.divf %39, %40 : vector<40x128xf32>
      %c0_14 = arith.constant 0 : index
      %c0_15 = arith.constant 0 : index
      %42 = vector.load %arg7[%c0_14, %c0_15] : memref<40x128xf32, #tpu.memory_space<vmem>>, vector<40x128xf32>
      %43 = arith.mulf %33, %42 : vector<40x128xf32>
      %44 = arith.mulf %27, %35 : vector<40x128xf32>
      %45 = arith.addf %43, %44 : vector<40x128xf32>
      %46 = math.tanh %45 : vector<40x128xf32>
      %47 = arith.mulf %41, %46 : vector<40x128xf32>
      %48 = arith.addi %7, %12 : i32
      %c5_i32_16 = arith.constant 5 : i32
      %49 = arith.cmpi slt, %48, %c5_i32_16 : i32
      %c0_17 = arith.constant 0 : index
      %c0_18 = arith.constant 0 : index
      %50 = vector.load %arg7[%c0_17, %c0_18] : memref<40x128xf32, #tpu.memory_space<vmem>>, vector<40x128xf32>
      %51 = arith.select %49, %45, %50 : vector<40x128xf32>
      %c0_19 = arith.constant 0 : index
      %c0_20 = arith.constant 0 : index
      %52 = vector.load %arg7[%c0_19, %c0_20] : memref<40x128xf32, #tpu.memory_space<vmem>>, vector<40x128xf32>
      tpu.vector_store %arg7[%c0_19, %c0_20], %51 {strides = array<i32>} : memref<40x128xf32, #tpu.memory_space<vmem>>, vector<40x128xf32>,
      %c0_21 = arith.constant 0 : index
      %c0_22 = arith.constant 0 : index
      %53 = vector.load %arg6[%c0_21, %c0_22] : memref<40x128xf32, #tpu.memory_space<vmem>>, vector<40x128xf32>
      %54 = arith.select %49, %47, %53 : vector<40x128xf32>
      %c0_23 = arith.constant 0 : index
      %c0_24 = arith.constant 0 : index
      %55 = vector.load %arg6[%c0_23, %c0_24] : memref<40x128xf32, #tpu.memory_space<vmem>>, vector<40x128xf32>
      tpu.vector_store %arg6[%c0_23, %c0_24], %54 {strides = array<i32>} : memref<40x128xf32, #tpu.memory_space<vmem>>, vector<40x128xf32>,
      %56 = arith.truncf %47 : vector<40x128xf32> to vector<40x128xbf16>
      %57 = arith.index_cast %12 : i32 to index
      %c0_25 = arith.constant 0 : index
      %c0_26 = arith.constant 0 : index
      %58 = vector.load %arg5[%57, %c0_25, %c0_26] : memref<5x40x128xbf16, #tpu.memory_space<vmem>>, vector<1x40x128xbf16>
      %59 = vector.shape_cast %58 : vector<1x40x128xbf16> to vector<40x128xbf16>
      %60 = vector.shape_cast %56 : vector<40x128xbf16> to vector<1x40x128xbf16>
      tpu.vector_store %arg5[%57, %c0_25, %c0_26], %60 {strides = array<i32>} : memref<5x40x128xbf16, #tpu.memory_space<vmem>>, vector<1x40x128xbf16>,
    }
    %c5_i32_4 = arith.constant 5 : i32
    return
  }
  func.func @transform_0(%arg0: i32, %arg1: i32, %arg2: i32) -> (i32, i32, i32) {
    %c2_i32 = arith.constant 2 : i32
    %0 = arith.muli %c2_i32, %arg2 : i32
    %c0_i32 = arith.constant 0 : i32
    %1 = arith.subi %c0_i32, %0 : i32
    %2 = arith.muli %arg0, %1 : i32
    %3 = arith.addi %arg2, %2 : i32
    %c0_i32_0 = arith.constant 0 : i32
    return %3, %arg1, %arg0 : i32, i32, i32
  }
  func.func @transform_1(%arg0: i32, %arg1: i32, %arg2: i32) -> (i32, i32) {
    %c0_i32 = arith.constant 0 : i32
    %c0_i32_0 = arith.constant 0 : i32
    return %c0_i32, %arg0 : i32, i32
  }
  func.func @transform_2(%arg0: i32, %arg1: i32, %arg2: i32) -> (i32, i32, i32) {
    %c2_i32 = arith.constant 2 : i32
    %0 = arith.muli %c2_i32, %arg2 : i32
    %c0_i32 = arith.constant 0 : i32
    %1 = arith.subi %c0_i32, %0 : i32
    %2 = arith.muli %arg0, %1 : i32
    %3 = arith.addi %arg2, %2 : i32
    %c0_i32_0 = arith.constant 0 : i32
    return %3, %arg1, %arg0 : i32, i32, i32
  }
}

module attributes {stable_mosaic.version = 11 : i64} {
  func.func @_mm_kernel_single_k(%arg0: i32, %arg1: i32, %arg2: memref<200x32xbf16, #tpu.memory_space<vmem>>, %arg3: memref<32x512xbf16, #tpu.memory_space<vmem>>, %arg4: memref<1x512xf32, #tpu.memory_space<vmem>>, %arg5: memref<1x512xf32, #tpu.memory_space<vmem>>, %arg6: memref<200x512xbf16, #tpu.memory_space<vmem>>) attributes {dimension_semantics = [#tpu.dimension_semantics<parallel>, #tpu.dimension_semantics<parallel>], iteration_bounds = array<i64: 1, 2>, scalar_prefetch = 0 : i64, scratch_operands = 0 : i64, tpu.core_type = #tpu.core_type<tc>, window_params = [{transform_indices = @transform_0, window_bounds = array<i64: 200, 32>}, {transform_indices = @transform_1, window_bounds = array<i64: 32, 512>}, {transform_indices = @transform_2, window_bounds = array<i64: 1, 512>}, {transform_indices = @transform_3, window_bounds = array<i64: 1, 512>}, {transform_indices = @transform_4, window_bounds = array<i64: 200, 512>}]} {
    %c0 = arith.constant 0 : index
    %c0_0 = arith.constant 0 : index
    %0 = vector.load %arg2[%c0, %c0_0] : memref<200x32xbf16, #tpu.memory_space<vmem>>, vector<200x32xbf16>
    %c0_1 = arith.constant 0 : index
    %c0_2 = arith.constant 0 : index
    %1 = vector.load %arg3[%c0_1, %c0_2] : memref<32x512xbf16, #tpu.memory_space<vmem>>, vector<32x512xbf16>
    %cst = arith.constant dense<0.000000e+00> : vector<200x512xf32>
    %2 = tpu.matmul %0, %1, %cst {dimension_numbers = #tpu.dot_dimension_numbers<[1], [0], [0], [1], [0, 0, 1, 1], [], []>} : vector<200x32xbf16>, vector<32x512xbf16>, vector<200x512xf32> -> vector<200x512xf32>
    %c0_3 = arith.constant 0 : index
    %c0_4 = arith.constant 0 : index
    %3 = vector.load %arg4[%c0_3, %c0_4] : memref<1x512xf32, #tpu.memory_space<vmem>>, vector<1x512xf32>
    %4 = vector.broadcast %3 : vector<1x512xf32> to vector<200x512xf32>
    %5 = arith.addf %2, %4 : vector<200x512xf32>
    %cst_5 = arith.constant 0.000000e+00 : f32
    %6 = vector.broadcast %cst_5 : f32 to vector<200x512xf32>
    %7 = arith.cmpf oge, %5, %6 : vector<200x512xf32>
    %c0_6 = arith.constant 0 : index
    %c0_7 = arith.constant 0 : index
    %8 = vector.load %arg5[%c0_6, %c0_7] : memref<1x512xf32, #tpu.memory_space<vmem>>, vector<1x512xf32>
    %9 = vector.broadcast %8 : vector<1x512xf32> to vector<200x512xf32>
    %10 = arith.mulf %9, %5 : vector<200x512xf32>
    %11 = arith.select %7, %5, %10 : vector<200x512xi1>, vector<200x512xf32>
    %12 = arith.truncf %11 : vector<200x512xf32> to vector<200x512xbf16>
    %c0_8 = arith.constant 0 : index
    %c0_9 = arith.constant 0 : index
    %13 = vector.load %arg6[%c0_8, %c0_9] : memref<200x512xbf16, #tpu.memory_space<vmem>>, vector<200x512xbf16>
    tpu.vector_store %arg6[%c0_8, %c0_9], %12 {strides = array<i32>} : memref<200x512xbf16, #tpu.memory_space<vmem>>, vector<200x512xbf16>,
    return
  }
  func.func @transform_0(%arg0: i32, %arg1: i32) -> (i32, i32) {
    %c0_i32 = arith.constant 0 : i32
    %c0_i32_0 = arith.constant 0 : i32
    return %arg0, %c0_i32 : i32, i32
  }
  func.func @transform_1(%arg0: i32, %arg1: i32) -> (i32, i32) {
    %c0_i32 = arith.constant 0 : i32
    %c0_i32_0 = arith.constant 0 : i32
    return %c0_i32, %arg1 : i32, i32
  }
  func.func @transform_2(%arg0: i32, %arg1: i32) -> (i32, i32) {
    %c0_i32 = arith.constant 0 : i32
    %c0_i32_0 = arith.constant 0 : i32
    return %c0_i32, %arg1 : i32, i32
  }
  func.func @transform_3(%arg0: i32, %arg1: i32) -> (i32, i32) {
    %c0_i32 = arith.constant 0 : i32
    %c0_i32_0 = arith.constant 0 : i32
    return %c0_i32, %arg1 : i32, i32
  }
  func.func @transform_4(%arg0: i32, %arg1: i32) -> (i32, i32) {
    %c0_i32 = arith.constant 0 : i32
    return %arg0, %arg1 : i32, i32
  }
}

module attributes {stable_mosaic.version = 11 : i64} {
  func.func @_mm_kernel_single_k(%arg0: i32, %arg1: i32, %arg2: memref<200x256xbf16, #tpu.memory_space<vmem>>, %arg3: memref<256x32xbf16, #tpu.memory_space<vmem>>, %arg4: memref<1x32xf32, #tpu.memory_space<vmem>>, %arg5: memref<1x32xf32, #tpu.memory_space<vmem>>, %arg6: memref<200x32xf32, #tpu.memory_space<vmem>>) attributes {dimension_semantics = [#tpu.dimension_semantics<parallel>, #tpu.dimension_semantics<parallel>], iteration_bounds = array<i64: 1, 1>, scalar_prefetch = 0 : i64, scratch_operands = 0 : i64, tpu.core_type = #tpu.core_type<tc>, window_params = [{transform_indices = @transform_0, window_bounds = array<i64: 200, 256>}, {transform_indices = @transform_1, window_bounds = array<i64: 256, 32>}, {transform_indices = @transform_2, window_bounds = array<i64: 1, 32>}, {transform_indices = @transform_3, window_bounds = array<i64: 1, 32>}, {transform_indices = @transform_4, window_bounds = array<i64: 200, 32>}]} {
    %c0 = arith.constant 0 : index
    %c0_0 = arith.constant 0 : index
    %0 = vector.load %arg2[%c0, %c0_0] : memref<200x256xbf16, #tpu.memory_space<vmem>>, vector<200x256xbf16>
    %c0_1 = arith.constant 0 : index
    %c0_2 = arith.constant 0 : index
    %1 = vector.load %arg3[%c0_1, %c0_2] : memref<256x32xbf16, #tpu.memory_space<vmem>>, vector<256x32xbf16>
    %cst = arith.constant dense<0.000000e+00> : vector<200x32xf32>
    %2 = tpu.matmul %0, %1, %cst {dimension_numbers = #tpu.dot_dimension_numbers<[1], [0], [0], [1], [0, 0, 1, 1], [], []>} : vector<200x256xbf16>, vector<256x32xbf16>, vector<200x32xf32> -> vector<200x32xf32>
    %c0_3 = arith.constant 0 : index
    %c0_4 = arith.constant 0 : index
    %3 = vector.load %arg4[%c0_3, %c0_4] : memref<1x32xf32, #tpu.memory_space<vmem>>, vector<1x32xf32>
    %4 = vector.broadcast %3 : vector<1x32xf32> to vector<200x32xf32>
    %5 = arith.addf %2, %4 : vector<200x32xf32>
    %cst_5 = arith.constant 0.000000e+00 : f32
    %6 = vector.broadcast %cst_5 : f32 to vector<200x32xf32>
    %7 = arith.cmpf oge, %5, %6 : vector<200x32xf32>
    %c0_6 = arith.constant 0 : index
    %c0_7 = arith.constant 0 : index
    %8 = vector.load %arg5[%c0_6, %c0_7] : memref<1x32xf32, #tpu.memory_space<vmem>>, vector<1x32xf32>
    %9 = vector.broadcast %8 : vector<1x32xf32> to vector<200x32xf32>
    %10 = arith.mulf %9, %5 : vector<200x32xf32>
    %11 = arith.select %7, %5, %10 : vector<200x32xi1>, vector<200x32xf32>
    %c0_8 = arith.constant 0 : index
    %c0_9 = arith.constant 0 : index
    %12 = vector.load %arg6[%c0_8, %c0_9] : memref<200x32xf32, #tpu.memory_space<vmem>>, vector<200x32xf32>
    tpu.vector_store %arg6[%c0_8, %c0_9], %11 {strides = array<i32>} : memref<200x32xf32, #tpu.memory_space<vmem>>, vector<200x32xf32>,
    return
  }
  func.func @transform_0(%arg0: i32, %arg1: i32) -> (i32, i32) {
    %c0_i32 = arith.constant 0 : i32
    %c0_i32_0 = arith.constant 0 : i32
    return %arg0, %c0_i32 : i32, i32
  }
  func.func @transform_1(%arg0: i32, %arg1: i32) -> (i32, i32) {
    %c0_i32 = arith.constant 0 : i32
    %c0_i32_0 = arith.constant 0 : i32
    return %c0_i32, %arg1 : i32, i32
  }
  func.func @transform_2(%arg0: i32, %arg1: i32) -> (i32, i32) {
    %c0_i32 = arith.constant 0 : i32
    %c0_i32_0 = arith.constant 0 : i32
    return %c0_i32, %arg1 : i32, i32
  }
  func.func @transform_3(%arg0: i32, %arg1: i32) -> (i32, i32) {
    %c0_i32 = arith.constant 0 : i32
    %c0_i32_0 = arith.constant 0 : i32
    return %c0_i32, %arg1 : i32, i32
  }
  func.func @transform_4(%arg0: i32, %arg1: i32) -> (i32, i32) {
    %c0_i32 = arith.constant 0 : i32
    return %arg0, %arg1 : i32, i32
  }
}

module attributes {stable_mosaic.version = 11 : i64} {
  func.func @_mm_kernel_single_k(%arg0: i32, %arg1: i32, %arg2: memref<584x8xbf16, #tpu.memory_space<vmem>>, %arg3: memref<8x24xbf16, #tpu.memory_space<vmem>>, %arg4: memref<1x24xf32, #tpu.memory_space<vmem>>, %arg5: memref<1x24xf32, #tpu.memory_space<vmem>>, %arg6: memref<584x24xbf16, #tpu.memory_space<vmem>>) attributes {dimension_semantics = [#tpu.dimension_semantics<parallel>, #tpu.dimension_semantics<parallel>], iteration_bounds = array<i64: 1, 1>, scalar_prefetch = 0 : i64, scratch_operands = 0 : i64, tpu.core_type = #tpu.core_type<tc>, window_params = [{transform_indices = @transform_0, window_bounds = array<i64: 584, 8>}, {transform_indices = @transform_1, window_bounds = array<i64: 8, 24>}, {transform_indices = @transform_2, window_bounds = array<i64: 1, 24>}, {transform_indices = @transform_3, window_bounds = array<i64: 1, 24>}, {transform_indices = @transform_4, window_bounds = array<i64: 584, 24>}]} {
    %c0 = arith.constant 0 : index
    %c0_0 = arith.constant 0 : index
    %0 = vector.load %arg2[%c0, %c0_0] : memref<584x8xbf16, #tpu.memory_space<vmem>>, vector<584x8xbf16>
    %c0_1 = arith.constant 0 : index
    %c0_2 = arith.constant 0 : index
    %1 = vector.load %arg3[%c0_1, %c0_2] : memref<8x24xbf16, #tpu.memory_space<vmem>>, vector<8x24xbf16>
    %cst = arith.constant dense<0.000000e+00> : vector<584x24xf32>
    %2 = tpu.matmul %0, %1, %cst {dimension_numbers = #tpu.dot_dimension_numbers<[1], [0], [0], [1], [0, 0, 1, 1], [], []>} : vector<584x8xbf16>, vector<8x24xbf16>, vector<584x24xf32> -> vector<584x24xf32>
    %c0_3 = arith.constant 0 : index
    %c0_4 = arith.constant 0 : index
    %3 = vector.load %arg4[%c0_3, %c0_4] : memref<1x24xf32, #tpu.memory_space<vmem>>, vector<1x24xf32>
    %4 = vector.broadcast %3 : vector<1x24xf32> to vector<584x24xf32>
    %5 = arith.addf %2, %4 : vector<584x24xf32>
    %cst_5 = arith.constant 0.000000e+00 : f32
    %6 = vector.broadcast %cst_5 : f32 to vector<584x24xf32>
    %7 = arith.cmpf oge, %5, %6 : vector<584x24xf32>
    %c0_6 = arith.constant 0 : index
    %c0_7 = arith.constant 0 : index
    %8 = vector.load %arg5[%c0_6, %c0_7] : memref<1x24xf32, #tpu.memory_space<vmem>>, vector<1x24xf32>
    %9 = vector.broadcast %8 : vector<1x24xf32> to vector<584x24xf32>
    %10 = arith.mulf %9, %5 : vector<584x24xf32>
    %11 = arith.select %7, %5, %10 : vector<584x24xi1>, vector<584x24xf32>
    %12 = arith.truncf %11 : vector<584x24xf32> to vector<584x24xbf16>
    %c0_8 = arith.constant 0 : index
    %c0_9 = arith.constant 0 : index
    %13 = vector.load %arg6[%c0_8, %c0_9] : memref<584x24xbf16, #tpu.memory_space<vmem>>, vector<584x24xbf16>
    tpu.vector_store %arg6[%c0_8, %c0_9], %12 {strides = array<i32>} : memref<584x24xbf16, #tpu.memory_space<vmem>>, vector<584x24xbf16>,
    return
  }
  func.func @transform_0(%arg0: i32, %arg1: i32) -> (i32, i32) {
    %c0_i32 = arith.constant 0 : i32
    %c0_i32_0 = arith.constant 0 : i32
    return %arg0, %c0_i32 : i32, i32
  }
  func.func @transform_1(%arg0: i32, %arg1: i32) -> (i32, i32) {
    %c0_i32 = arith.constant 0 : i32
    %c0_i32_0 = arith.constant 0 : i32
    return %c0_i32, %arg1 : i32, i32
  }
  func.func @transform_2(%arg0: i32, %arg1: i32) -> (i32, i32) {
    %c0_i32 = arith.constant 0 : i32
    %c0_i32_0 = arith.constant 0 : i32
    return %c0_i32, %arg1 : i32, i32
  }
  func.func @transform_3(%arg0: i32, %arg1: i32) -> (i32, i32) {
    %c0_i32 = arith.constant 0 : i32
    %c0_i32_0 = arith.constant 0 : i32
    return %c0_i32, %arg1 : i32, i32
  }
  func.func @transform_4(%arg0: i32, %arg1: i32) -> (i32, i32) {
    %c0_i32 = arith.constant 0 : i32
    return %arg0, %arg1 : i32, i32
  }
}

module attributes {stable_mosaic.version = 11 : i64} {
  func.func @_grouped_ln_kernel(%arg0: i32, %arg1: i32, %arg2: memref<1x40x34xbf16, #tpu.memory_space<vmem>>, %arg3: memref<1x1x34xf32, #tpu.memory_space<vmem>>, %arg4: memref<1x1x34xf32, #tpu.memory_space<vmem>>, %arg5: memref<1x40x34xbf16, #tpu.memory_space<vmem>>) attributes {dimension_semantics = [#tpu.dimension_semantics<parallel>, #tpu.dimension_semantics<parallel>], iteration_bounds = array<i64: 4, 1>, scalar_prefetch = 0 : i64, scratch_operands = 0 : i64, tpu.core_type = #tpu.core_type<tc>, window_params = [{transform_indices = @transform_0, window_bounds = array<i64: 1, 40, 34>}, {transform_indices = @transform_1, window_bounds = array<i64: 1, 1, 34>}, {transform_indices = @transform_2, window_bounds = array<i64: 1, 1, 34>}, {transform_indices = @transform_3, window_bounds = array<i64: 1, 40, 34>}]} {
    %c0 = arith.constant 0 : index
    %c0_0 = arith.constant 0 : index
    %c0_1 = arith.constant 0 : index
    %0 = vector.load %arg2[%c0, %c0_0, %c0_1] : memref<1x40x34xbf16, #tpu.memory_space<vmem>>, vector<1x40x34xbf16>
    %1 = vector.shape_cast %0 : vector<1x40x34xbf16> to vector<40x34xbf16>
    %2 = arith.extf %1 : vector<40x34xbf16> to vector<40x34xf32>
    %cst = arith.constant dense<0.000000e+00> : vector<40xf32>
    %3 = vector.multi_reduction <add>, %2, %cst [1] : vector<40x34xf32> to vector<40xf32>
    %4 = vector.shape_cast %3 : vector<40xf32> to vector<40x1xf32>
    %cst_2 = arith.constant 3.400000e+01 : f32
    %5 = vector.broadcast %cst_2 : f32 to vector<40x1xf32>
    %6 = arith.divf %4, %5 : vector<40x1xf32>
    %7 = vector.broadcast %6 : vector<40x1xf32> to vector<40x34xf32>
    %8 = arith.subf %2, %7 : vector<40x34xf32>
    %9 = arith.mulf %8, %8 : vector<40x34xf32>
    %cst_3 = arith.constant dense<0.000000e+00> : vector<40xf32>
    %10 = vector.multi_reduction <add>, %9, %cst_3 [1] : vector<40x34xf32> to vector<40xf32>
    %11 = vector.shape_cast %10 : vector<40xf32> to vector<40x1xf32>
    %cst_4 = arith.constant 3.400000e+01 : f32
    %12 = vector.broadcast %cst_4 : f32 to vector<40x1xf32>
    %13 = arith.divf %11, %12 : vector<40x1xf32>
    %14 = vector.broadcast %6 : vector<40x1xf32> to vector<40x34xf32>
    %15 = arith.subf %2, %14 : vector<40x34xf32>
    %cst_5 = arith.constant 9.99999974E-6 : f32
    %16 = vector.broadcast %cst_5 : f32 to vector<40x1xf32>
    %17 = arith.addf %13, %16 : vector<40x1xf32>
    %18 = math.rsqrt %17 : vector<40x1xf32>
    %19 = vector.broadcast %18 : vector<40x1xf32> to vector<40x34xf32>
    %20 = arith.mulf %15, %19 : vector<40x34xf32>
    %c0_6 = arith.constant 0 : index
    %c0_7 = arith.constant 0 : index
    %c0_8 = arith.constant 0 : index
    %21 = vector.load %arg3[%c0_6, %c0_7, %c0_8] : memref<1x1x34xf32, #tpu.memory_space<vmem>>, vector<1x1x34xf32>
    %22 = vector.shape_cast %21 : vector<1x1x34xf32> to vector<1x34xf32>
    %23 = vector.broadcast %22 : vector<1x34xf32> to vector<40x34xf32>
    %24 = arith.mulf %20, %23 : vector<40x34xf32>
    %c0_9 = arith.constant 0 : index
    %c0_10 = arith.constant 0 : index
    %c0_11 = arith.constant 0 : index
    %25 = vector.load %arg4[%c0_9, %c0_10, %c0_11] : memref<1x1x34xf32, #tpu.memory_space<vmem>>, vector<1x1x34xf32>
    %26 = vector.shape_cast %25 : vector<1x1x34xf32> to vector<1x34xf32>
    %27 = vector.broadcast %26 : vector<1x34xf32> to vector<40x34xf32>
    %28 = arith.addf %24, %27 : vector<40x34xf32>
    %29 = arith.truncf %28 : vector<40x34xf32> to vector<40x34xbf16>
    %c0_12 = arith.constant 0 : index
    %c0_13 = arith.constant 0 : index
    %c0_14 = arith.constant 0 : index
    %30 = vector.load %arg5[%c0_12, %c0_13, %c0_14] : memref<1x40x34xbf16, #tpu.memory_space<vmem>>, vector<1x40x34xbf16>
    %31 = vector.shape_cast %30 : vector<1x40x34xbf16> to vector<40x34xbf16>
    %32 = vector.shape_cast %29 : vector<40x34xbf16> to vector<1x40x34xbf16>
    tpu.vector_store %arg5[%c0_12, %c0_13, %c0_14], %32 {strides = array<i32>} : memref<1x40x34xbf16, #tpu.memory_space<vmem>>, vector<1x40x34xbf16>,
    return
  }
  func.func @transform_0(%arg0: i32, %arg1: i32) -> (i32, i32, i32) {
    %c0_i32 = arith.constant 0 : i32
    %c0_i32_0 = arith.constant 0 : i32
    return %arg0, %arg1, %c0_i32 : i32, i32, i32
  }
  func.func @transform_1(%arg0: i32, %arg1: i32) -> (i32, i32, i32) {
    %c0_i32 = arith.constant 0 : i32
    %c0_i32_0 = arith.constant 0 : i32
    %c0_i32_1 = arith.constant 0 : i32
    return %arg0, %c0_i32, %c0_i32_0 : i32, i32, i32
  }
  func.func @transform_2(%arg0: i32, %arg1: i32) -> (i32, i32, i32) {
    %c0_i32 = arith.constant 0 : i32
    %c0_i32_0 = arith.constant 0 : i32
    %c0_i32_1 = arith.constant 0 : i32
    return %arg0, %c0_i32, %c0_i32_0 : i32, i32, i32
  }
  func.func @transform_3(%arg0: i32, %arg1: i32) -> (i32, i32, i32) {
    %c0_i32 = arith.constant 0 : i32
    %c0_i32_0 = arith.constant 0 : i32
    return %arg0, %arg1, %c0_i32 : i32, i32, i32
  }
}

module attributes {stable_mosaic.version = 11 : i64} {
  func.func @_attn_kernel(%arg0: i32, %arg1: memref<1x17x34xbf16, #tpu.memory_space<vmem>>, %arg2: memref<1x34x17xbf16, #tpu.memory_space<vmem>>, %arg3: memref<1x17x34xbf16, #tpu.memory_space<vmem>>, %arg4: memref<1x17x34xbf16, #tpu.memory_space<vmem>>) attributes {dimension_semantics = [#tpu.dimension_semantics<parallel>], iteration_bounds = array<i64: 8>, scalar_prefetch = 0 : i64, scratch_operands = 0 : i64, tpu.core_type = #tpu.core_type<tc>, window_params = [{transform_indices = @transform_0, window_bounds = array<i64: 1, 17, 34>}, {transform_indices = @transform_1, window_bounds = array<i64: 1, 34, 17>}, {transform_indices = @transform_2, window_bounds = array<i64: 1, 17, 34>}, {transform_indices = @transform_3, window_bounds = array<i64: 1, 17, 34>}]} {
    %c0 = arith.constant 0 : index
    %c0_0 = arith.constant 0 : index
    %c0_1 = arith.constant 0 : index
    %0 = vector.load %arg1[%c0, %c0_0, %c0_1] : memref<1x17x34xbf16, #tpu.memory_space<vmem>>, vector<1x17x34xbf16>
    %1 = vector.shape_cast %0 : vector<1x17x34xbf16> to vector<17x34xbf16>
    %c0_2 = arith.constant 0 : index
    %c0_3 = arith.constant 0 : index
    %c0_4 = arith.constant 0 : index
    %2 = vector.load %arg2[%c0_2, %c0_3, %c0_4] : memref<1x34x17xbf16, #tpu.memory_space<vmem>>, vector<1x34x17xbf16>
    %3 = vector.shape_cast %2 : vector<1x34x17xbf16> to vector<34x17xbf16>
    %c0_5 = arith.constant 0 : index
    %c0_6 = arith.constant 0 : index
    %c0_7 = arith.constant 0 : index
    %4 = vector.load %arg3[%c0_5, %c0_6, %c0_7] : memref<1x17x34xbf16, #tpu.memory_space<vmem>>, vector<1x17x34xbf16>
    %5 = vector.shape_cast %4 : vector<1x17x34xbf16> to vector<17x34xbf16>
    %cst = arith.constant dense<0.000000e+00> : vector<17x17xf32>
    %6 = tpu.matmul %1, %3, %cst {dimension_numbers = #tpu.dot_dimension_numbers<[1], [0], [0], [1], [0, 0, 1, 1], [], []>} : vector<17x34xbf16>, vector<34x17xbf16>, vector<17x17xf32> -> vector<17x17xf32>
    %cst_8 = arith.constant 0.171498582 : f32
    %7 = vector.broadcast %cst_8 : f32 to vector<17x17xf32>
    %8 = arith.mulf %6, %7 : vector<17x17xf32>
    %cst_9 = arith.constant dense<0xFF800000> : vector<17xf32>
    %9 = vector.multi_reduction <maximumf>, %8, %cst_9 [1] : vector<17x17xf32> to vector<17xf32>
    %10 = vector.shape_cast %9 : vector<17xf32> to vector<17x1xf32>
    %11 = vector.broadcast %10 : vector<17x1xf32> to vector<17x17xf32>
    %12 = arith.subf %8, %11 : vector<17x17xf32>
    %13 = math.exp %12 : vector<17x17xf32>
    %cst_10 = arith.constant dense<0.000000e+00> : vector<17xf32>
    %14 = vector.multi_reduction <add>, %13, %cst_10 [1] : vector<17x17xf32> to vector<17xf32>
    %15 = vector.shape_cast %14 : vector<17xf32> to vector<17x1xf32>
    %16 = arith.truncf %13 : vector<17x17xf32> to vector<17x17xbf16>
    %cst_11 = arith.constant dense<0.000000e+00> : vector<17x34xf32>
    %17 = tpu.matmul %16, %5, %cst_11 {dimension_numbers = #tpu.dot_dimension_numbers<[1], [0], [0], [1], [0, 0, 1, 1], [], []>} : vector<17x17xbf16>, vector<17x34xbf16>, vector<17x34xf32> -> vector<17x34xf32>
    %18 = tpu.reciprocal %15 {approx = true} : vector<17x1xf32> -> vector<17x1xf32>
    %19 = vector.broadcast %18 : vector<17x1xf32> to vector<17x34xf32>
    %20 = arith.mulf %17, %19 : vector<17x34xf32>
    %21 = arith.truncf %20 : vector<17x34xf32> to vector<17x34xbf16>
    %c0_12 = arith.constant 0 : index
    %c0_13 = arith.constant 0 : index
    %c0_14 = arith.constant 0 : index
    %22 = vector.load %arg4[%c0_12, %c0_13, %c0_14] : memref<1x17x34xbf16, #tpu.memory_space<vmem>>, vector<1x17x34xbf16>
    %23 = vector.shape_cast %22 : vector<1x17x34xbf16> to vector<17x34xbf16>
    %24 = vector.shape_cast %21 : vector<17x34xbf16> to vector<1x17x34xbf16>
    tpu.vector_store %arg4[%c0_12, %c0_13, %c0_14], %24 {strides = array<i32>} : memref<1x17x34xbf16, #tpu.memory_space<vmem>>, vector<1x17x34xbf16>,
    return
  }
  func.func @transform_0(%arg0: i32) -> (i32, i32, i32) {
    %c0_i32 = arith.constant 0 : i32
    %c0_i32_0 = arith.constant 0 : i32
    %c0_i32_1 = arith.constant 0 : i32
    return %arg0, %c0_i32, %c0_i32_0 : i32, i32, i32
  }
  func.func @transform_1(%arg0: i32) -> (i32, i32, i32) {
    %c0_i32 = arith.constant 0 : i32
    %c0_i32_0 = arith.constant 0 : i32
    %c0_i32_1 = arith.constant 0 : i32
    return %arg0, %c0_i32, %c0_i32_0 : i32, i32, i32
  }
  func.func @transform_2(%arg0: i32) -> (i32, i32, i32) {
    %c0_i32 = arith.constant 0 : i32
    %c0_i32_0 = arith.constant 0 : i32
    %c0_i32_1 = arith.constant 0 : i32
    return %arg0, %c0_i32, %c0_i32_0 : i32, i32, i32
  }
  func.func @transform_3(%arg0: i32) -> (i32, i32, i32) {
    %c0_i32 = arith.constant 0 : i32
    %c0_i32_0 = arith.constant 0 : i32
    %c0_i32_1 = arith.constant 0 : i32
    return %arg0, %c0_i32, %c0_i32_0 : i32, i32, i32
  }
}

module attributes {stable_mosaic.version = 11 : i64} {
  func.func @_mm_kernel_single_k(%arg0: i32, %arg1: i32, %arg2: memref<584x8xbf16, #tpu.memory_space<vmem>>, %arg3: memref<8x8xbf16, #tpu.memory_space<vmem>>, %arg4: memref<1x8xf32, #tpu.memory_space<vmem>>, %arg5: memref<1x8xf32, #tpu.memory_space<vmem>>, %arg6: memref<584x8xbf16, #tpu.memory_space<vmem>>) attributes {dimension_semantics = [#tpu.dimension_semantics<parallel>, #tpu.dimension_semantics<parallel>], iteration_bounds = array<i64: 1, 1>, scalar_prefetch = 0 : i64, scratch_operands = 0 : i64, tpu.core_type = #tpu.core_type<tc>, window_params = [{transform_indices = @transform_0, window_bounds = array<i64: 584, 8>}, {transform_indices = @transform_1, window_bounds = array<i64: 8, 8>}, {transform_indices = @transform_2, window_bounds = array<i64: 1, 8>}, {transform_indices = @transform_3, window_bounds = array<i64: 1, 8>}, {transform_indices = @transform_4, window_bounds = array<i64: 584, 8>}]} {
    %c0 = arith.constant 0 : index
    %c0_0 = arith.constant 0 : index
    %0 = vector.load %arg2[%c0, %c0_0] : memref<584x8xbf16, #tpu.memory_space<vmem>>, vector<584x8xbf16>
    %c0_1 = arith.constant 0 : index
    %c0_2 = arith.constant 0 : index
    %1 = vector.load %arg3[%c0_1, %c0_2] : memref<8x8xbf16, #tpu.memory_space<vmem>>, vector<8x8xbf16>
    %cst = arith.constant dense<0.000000e+00> : vector<584x8xf32>
    %2 = tpu.matmul %0, %1, %cst {dimension_numbers = #tpu.dot_dimension_numbers<[1], [0], [0], [1], [0, 0, 1, 1], [], []>} : vector<584x8xbf16>, vector<8x8xbf16>, vector<584x8xf32> -> vector<584x8xf32>
    %c0_3 = arith.constant 0 : index
    %c0_4 = arith.constant 0 : index
    %3 = vector.load %arg4[%c0_3, %c0_4] : memref<1x8xf32, #tpu.memory_space<vmem>>, vector<1x8xf32>
    %4 = vector.broadcast %3 : vector<1x8xf32> to vector<584x8xf32>
    %5 = arith.addf %2, %4 : vector<584x8xf32>
    %cst_5 = arith.constant 0.000000e+00 : f32
    %6 = vector.broadcast %cst_5 : f32 to vector<584x8xf32>
    %7 = arith.cmpf oge, %5, %6 : vector<584x8xf32>
    %c0_6 = arith.constant 0 : index
    %c0_7 = arith.constant 0 : index
    %8 = vector.load %arg5[%c0_6, %c0_7] : memref<1x8xf32, #tpu.memory_space<vmem>>, vector<1x8xf32>
    %9 = vector.broadcast %8 : vector<1x8xf32> to vector<584x8xf32>
    %10 = arith.mulf %9, %5 : vector<584x8xf32>
    %11 = arith.select %7, %5, %10 : vector<584x8xi1>, vector<584x8xf32>
    %12 = arith.truncf %11 : vector<584x8xf32> to vector<584x8xbf16>
    %c0_8 = arith.constant 0 : index
    %c0_9 = arith.constant 0 : index
    %13 = vector.load %arg6[%c0_8, %c0_9] : memref<584x8xbf16, #tpu.memory_space<vmem>>, vector<584x8xbf16>
    tpu.vector_store %arg6[%c0_8, %c0_9], %12 {strides = array<i32>} : memref<584x8xbf16, #tpu.memory_space<vmem>>, vector<584x8xbf16>,
    return
  }
  func.func @transform_0(%arg0: i32, %arg1: i32) -> (i32, i32) {
    %c0_i32 = arith.constant 0 : i32
    %c0_i32_0 = arith.constant 0 : i32
    return %arg0, %c0_i32 : i32, i32
  }
  func.func @transform_1(%arg0: i32, %arg1: i32) -> (i32, i32) {
    %c0_i32 = arith.constant 0 : i32
    %c0_i32_0 = arith.constant 0 : i32
    return %c0_i32, %arg1 : i32, i32
  }
  func.func @transform_2(%arg0: i32, %arg1: i32) -> (i32, i32) {
    %c0_i32 = arith.constant 0 : i32
    %c0_i32_0 = arith.constant 0 : i32
    return %c0_i32, %arg1 : i32, i32
  }
  func.func @transform_3(%arg0: i32, %arg1: i32) -> (i32, i32) {
    %c0_i32 = arith.constant 0 : i32
    %c0_i32_0 = arith.constant 0 : i32
    return %c0_i32, %arg1 : i32, i32
  }
  func.func @transform_4(%arg0: i32, %arg1: i32) -> (i32, i32) {
    %c0_i32 = arith.constant 0 : i32
    return %arg0, %arg1 : i32, i32
  }
}

module attributes {stable_mosaic.version = 11 : i64} {
  func.func @_grouped_ln_kernel(%arg0: i32, %arg1: i32, %arg2: memref<1x40x136xbf16, #tpu.memory_space<vmem>>, %arg3: memref<1x1x136xf32, #tpu.memory_space<vmem>>, %arg4: memref<1x1x136xf32, #tpu.memory_space<vmem>>, %arg5: memref<1x40x136xf32, #tpu.memory_space<vmem>>) attributes {dimension_semantics = [#tpu.dimension_semantics<parallel>, #tpu.dimension_semantics<parallel>], iteration_bounds = array<i64: 1, 1>, scalar_prefetch = 0 : i64, scratch_operands = 0 : i64, tpu.core_type = #tpu.core_type<tc>, window_params = [{transform_indices = @transform_0, window_bounds = array<i64: 1, 40, 136>}, {transform_indices = @transform_1, window_bounds = array<i64: 1, 1, 136>}, {transform_indices = @transform_2, window_bounds = array<i64: 1, 1, 136>}, {transform_indices = @transform_3, window_bounds = array<i64: 1, 40, 136>}]} {
    %c0 = arith.constant 0 : index
    %c0_0 = arith.constant 0 : index
    %c0_1 = arith.constant 0 : index
    %0 = vector.load %arg2[%c0, %c0_0, %c0_1] : memref<1x40x136xbf16, #tpu.memory_space<vmem>>, vector<1x40x136xbf16>
    %1 = vector.shape_cast %0 : vector<1x40x136xbf16> to vector<40x136xbf16>
    %2 = arith.extf %1 : vector<40x136xbf16> to vector<40x136xf32>
    %cst = arith.constant dense<0.000000e+00> : vector<40xf32>
    %3 = vector.multi_reduction <add>, %2, %cst [1] : vector<40x136xf32> to vector<40xf32>
    %4 = vector.shape_cast %3 : vector<40xf32> to vector<40x1xf32>
    %cst_2 = arith.constant 1.360000e+02 : f32
    %5 = vector.broadcast %cst_2 : f32 to vector<40x1xf32>
    %6 = arith.divf %4, %5 : vector<40x1xf32>
    %7 = vector.broadcast %6 : vector<40x1xf32> to vector<40x136xf32>
    %8 = arith.subf %2, %7 : vector<40x136xf32>
    %9 = arith.mulf %8, %8 : vector<40x136xf32>
    %cst_3 = arith.constant dense<0.000000e+00> : vector<40xf32>
    %10 = vector.multi_reduction <add>, %9, %cst_3 [1] : vector<40x136xf32> to vector<40xf32>
    %11 = vector.shape_cast %10 : vector<40xf32> to vector<40x1xf32>
    %cst_4 = arith.constant 1.360000e+02 : f32
    %12 = vector.broadcast %cst_4 : f32 to vector<40x1xf32>
    %13 = arith.divf %11, %12 : vector<40x1xf32>
    %14 = vector.broadcast %6 : vector<40x1xf32> to vector<40x136xf32>
    %15 = arith.subf %2, %14 : vector<40x136xf32>
    %cst_5 = arith.constant 9.99999974E-6 : f32
    %16 = vector.broadcast %cst_5 : f32 to vector<40x1xf32>
    %17 = arith.addf %13, %16 : vector<40x1xf32>
    %18 = math.rsqrt %17 : vector<40x1xf32>
    %19 = vector.broadcast %18 : vector<40x1xf32> to vector<40x136xf32>
    %20 = arith.mulf %15, %19 : vector<40x136xf32>
    %c0_6 = arith.constant 0 : index
    %c0_7 = arith.constant 0 : index
    %c0_8 = arith.constant 0 : index
    %21 = vector.load %arg3[%c0_6, %c0_7, %c0_8] : memref<1x1x136xf32, #tpu.memory_space<vmem>>, vector<1x1x136xf32>
    %22 = vector.shape_cast %21 : vector<1x1x136xf32> to vector<1x136xf32>
    %23 = vector.broadcast %22 : vector<1x136xf32> to vector<40x136xf32>
    %24 = arith.mulf %20, %23 : vector<40x136xf32>
    %c0_9 = arith.constant 0 : index
    %c0_10 = arith.constant 0 : index
    %c0_11 = arith.constant 0 : index
    %25 = vector.load %arg4[%c0_9, %c0_10, %c0_11] : memref<1x1x136xf32, #tpu.memory_space<vmem>>, vector<1x1x136xf32>
    %26 = vector.shape_cast %25 : vector<1x1x136xf32> to vector<1x136xf32>
    %27 = vector.broadcast %26 : vector<1x136xf32> to vector<40x136xf32>
    %28 = arith.addf %24, %27 : vector<40x136xf32>
    %c0_12 = arith.constant 0 : index
    %c0_13 = arith.constant 0 : index
    %c0_14 = arith.constant 0 : index
    %29 = vector.load %arg5[%c0_12, %c0_13, %c0_14] : memref<1x40x136xf32, #tpu.memory_space<vmem>>, vector<1x40x136xf32>
    %30 = vector.shape_cast %29 : vector<1x40x136xf32> to vector<40x136xf32>
    %31 = vector.shape_cast %28 : vector<40x136xf32> to vector<1x40x136xf32>
    tpu.vector_store %arg5[%c0_12, %c0_13, %c0_14], %31 {strides = array<i32>} : memref<1x40x136xf32, #tpu.memory_space<vmem>>, vector<1x40x136xf32>,
    return
  }
  func.func @transform_0(%arg0: i32, %arg1: i32) -> (i32, i32, i32) {
    %c0_i32 = arith.constant 0 : i32
    %c0_i32_0 = arith.constant 0 : i32
    return %arg0, %arg1, %c0_i32 : i32, i32, i32
  }
  func.func @transform_1(%arg0: i32, %arg1: i32) -> (i32, i32, i32) {
    %c0_i32 = arith.constant 0 : i32
    %c0_i32_0 = arith.constant 0 : i32
    %c0_i32_1 = arith.constant 0 : i32
    return %arg0, %c0_i32, %c0_i32_0 : i32, i32, i32
  }
  func.func @transform_2(%arg0: i32, %arg1: i32) -> (i32, i32, i32) {
    %c0_i32 = arith.constant 0 : i32
    %c0_i32_0 = arith.constant 0 : i32
    %c0_i32_1 = arith.constant 0 : i32
    return %arg0, %c0_i32, %c0_i32_0 : i32, i32, i32
  }
  func.func @transform_3(%arg0: i32, %arg1: i32) -> (i32, i32, i32) {
    %c0_i32 = arith.constant 0 : i32
    %c0_i32_0 = arith.constant 0 : i32
    return %arg0, %arg1, %c0_i32 : i32, i32, i32
  }
}

module attributes {stable_mosaic.version = 11 : i64} {
  func.func @_mm_kernel_single_k(%arg0: i32, %arg1: i32, %arg2: memref<584x72xbf16, #tpu.memory_space<vmem>>, %arg3: memref<72x4xbf16, #tpu.memory_space<vmem>>, %arg4: memref<1x4xf32, #tpu.memory_space<vmem>>, %arg5: memref<1x4xf32, #tpu.memory_space<vmem>>, %arg6: memref<584x4xf32, #tpu.memory_space<vmem>>) attributes {dimension_semantics = [#tpu.dimension_semantics<parallel>, #tpu.dimension_semantics<parallel>], iteration_bounds = array<i64: 1, 1>, scalar_prefetch = 0 : i64, scratch_operands = 0 : i64, tpu.core_type = #tpu.core_type<tc>, window_params = [{transform_indices = @transform_0, window_bounds = array<i64: 584, 72>}, {transform_indices = @transform_1, window_bounds = array<i64: 72, 4>}, {transform_indices = @transform_2, window_bounds = array<i64: 1, 4>}, {transform_indices = @transform_3, window_bounds = array<i64: 1, 4>}, {transform_indices = @transform_4, window_bounds = array<i64: 584, 4>}]} {
    %c0 = arith.constant 0 : index
    %c0_0 = arith.constant 0 : index
    %0 = vector.load %arg2[%c0, %c0_0] : memref<584x72xbf16, #tpu.memory_space<vmem>>, vector<584x72xbf16>
    %c0_1 = arith.constant 0 : index
    %c0_2 = arith.constant 0 : index
    %1 = vector.load %arg3[%c0_1, %c0_2] : memref<72x4xbf16, #tpu.memory_space<vmem>>, vector<72x4xbf16>
    %cst = arith.constant dense<0.000000e+00> : vector<584x4xf32>
    %2 = tpu.matmul %0, %1, %cst {dimension_numbers = #tpu.dot_dimension_numbers<[1], [0], [0], [1], [0, 0, 1, 1], [], []>} : vector<584x72xbf16>, vector<72x4xbf16>, vector<584x4xf32> -> vector<584x4xf32>
    %c0_3 = arith.constant 0 : index
    %c0_4 = arith.constant 0 : index
    %3 = vector.load %arg4[%c0_3, %c0_4] : memref<1x4xf32, #tpu.memory_space<vmem>>, vector<1x4xf32>
    %4 = vector.broadcast %3 : vector<1x4xf32> to vector<584x4xf32>
    %5 = arith.addf %2, %4 : vector<584x4xf32>
    %cst_5 = arith.constant 0.000000e+00 : f32
    %6 = vector.broadcast %cst_5 : f32 to vector<584x4xf32>
    %7 = arith.cmpf oge, %5, %6 : vector<584x4xf32>
    %c0_6 = arith.constant 0 : index
    %c0_7 = arith.constant 0 : index
    %8 = vector.load %arg5[%c0_6, %c0_7] : memref<1x4xf32, #tpu.memory_space<vmem>>, vector<1x4xf32>
    %9 = vector.broadcast %8 : vector<1x4xf32> to vector<584x4xf32>
    %10 = arith.mulf %9, %5 : vector<584x4xf32>
    %11 = arith.select %7, %5, %10 : vector<584x4xi1>, vector<584x4xf32>
    %c0_8 = arith.constant 0 : index
    %c0_9 = arith.constant 0 : index
    %12 = vector.load %arg6[%c0_8, %c0_9] : memref<584x4xf32, #tpu.memory_space<vmem>>, vector<584x4xf32>
    tpu.vector_store %arg6[%c0_8, %c0_9], %11 {strides = array<i32>} : memref<584x4xf32, #tpu.memory_space<vmem>>, vector<584x4xf32>,
    return
  }
  func.func @transform_0(%arg0: i32, %arg1: i32) -> (i32, i32) {
    %c0_i32 = arith.constant 0 : i32
    %c0_i32_0 = arith.constant 0 : i32
    return %arg0, %c0_i32 : i32, i32
  }
  func.func @transform_1(%arg0: i32, %arg1: i32) -> (i32, i32) {
    %c0_i32 = arith.constant 0 : i32
    %c0_i32_0 = arith.constant 0 : i32
    return %c0_i32, %arg1 : i32, i32
  }
  func.func @transform_2(%arg0: i32, %arg1: i32) -> (i32, i32) {
    %c0_i32 = arith.constant 0 : i32
    %c0_i32_0 = arith.constant 0 : i32
    return %c0_i32, %arg1 : i32, i32
  }
  func.func @transform_3(%arg0: i32, %arg1: i32) -> (i32, i32) {
    %c0_i32 = arith.constant 0 : i32
    %c0_i32_0 = arith.constant 0 : i32
    return %c0_i32, %arg1 : i32, i32
  }
  func.func @transform_4(%arg0: i32, %arg1: i32) -> (i32, i32) {
    %c0_i32 = arith.constant 0 : i32
    return %arg0, %arg1 : i32, i32
  }
}

</mosaic_0001>

<llo_original>
// kernel: tf_gridnet_forward.33
$region0: #{tf_gridnet_forward.33}
  #allocation0 [shape = 'u32[]', space=smem, size = 0x4, offset = 0x4, fixed_abs, tag = 'smem constant byte address 0x4 - core index']
  #allocation1 [shape = 'u32[144,128]{1,0:T(1,128)}', space=vmem, size = 0x12000, scoped, tag = 'internal scratch']
  %s0 = inlined_call_operand.vmem [shape: bf16[584,18], index: 0, kind: input, shape index: {}]
  %s1 = inlined_call_operand.vmem [shape: bf16[18,8], index: 1, kind: input, shape index: {}]
  %s2 = inlined_call_operand.vmem [shape: f32[1,8], index: 2, kind: input, shape index: {}]
  %s3 = inlined_call_operand.vmem [shape: f32[1,8], index: 3, kind: input, shape index: {}]
  %s4 = inlined_call_operand.vmem [shape: f32[584,8], index: 4, kind: output, shape index: {}]
  %s5 = sld [smem:[#allocation0]]
  $region26: #{tf_gridnet_forward.33} parent=0
    _
  %s7 = ssub.s32 1, %s5
  %s8 = scalar_select 0, %s7, %s5
  // Predicated region
  $region2: #{tf_gridnet_forward.33} parent=0 // pred_check
    _
  $region3: #{tf_gridnet_forward.33} parent=0 // pred_check_branch
    %10 = sbr.rel (0) target = $region5
  $region4: #{tf_gridnet_forward.33} parent=0 // pred_region
    _
  $region5: #{tf_gridnet_forward.33} parent=0 // pred_fallthru
    _
  // Predicated region
  $region6: #{tf_gridnet_forward.33} parent=0 // pred_check
    _
  $region7: #{tf_gridnet_forward.33} parent=0 // pred_check_branch
    %12 = sbr.rel (0) target = $region9
  $region8: #{tf_gridnet_forward.33} parent=0 // pred_region
    _
  $region9: #{tf_gridnet_forward.33} parent=0 // pred_fallthru
    _
  // Predicated region
  $region10: #{tf_gridnet_forward.33} parent=0 // pred_check
    _
  $region11: #{tf_gridnet_forward.33} parent=0 // pred_check_branch
    %14 = sbr.rel (0) target = $region13
  $region12: #{tf_gridnet_forward.33} parent=0 // pred_region
    _
  $region13: #{tf_gridnet_forward.33} parent=0 // pred_fallthru
    _
  // Predicated region
  $region14: #{tf_gridnet_forward.33} parent=0 // pred_check
    _
  $region15: #{tf_gridnet_forward.33} parent=0 // pred_check_branch
    %16 = sbr.rel (0) target = $region17
  $region16: #{tf_gridnet_forward.33} parent=0 // pred_region
    _
  $region17: #{tf_gridnet_forward.33} parent=0 // pred_fallthru
    _
  %v18 = vld [vmem:[%s0] sm:$0xf]
  %v19 = vld [vmem:[%s0 + $0x4] sm:$0xf]
  %v20 = vld [vmem:[%s0 + $0x8] sm:$0xf]
  %v21 = vld [vmem:[%s0 + $0xc] sm:$0xf]
  %v22 = vld [vmem:[%s0 + $0x10] sm:$0xf]
  %v23 = vld [vmem:[%s0 + $0x14] sm:$0xf]
  %v24 = vld [vmem:[%s0 + $0x18] sm:$0xf]
  %v25 = vld [vmem:[%s0 + $0x1c] sm:$0xf]
  %v26 = vld [vmem:[%s0 + $0x20] sm:$0xf]
  %v27 = vld [vmem:[%s0 + $0x24] sm:$0xf]
  %v28 = vld [vmem:[%s0 + $0x28] sm:$0xf]
  %v29 = vld [vmem:[%s0 + $0x2c] sm:$0xf]
  %v30 = vld [vmem:[%s0 + $0x30] sm:$0xf]
  %v31 = vld [vmem:[%s0 + $0x34] sm:$0xf]
  %v32 = vld [vmem:[%s0 + $0x38] sm:$0xf]
  %v33 = vld [vmem:[%s0 + $0x3c] sm:$0xf]
  %v34 = vld [vmem:[%s0 + $0x40] sm:$0xf]
  %v35 = vld [vmem:[%s0 + $0x44] sm:$0xf]
  %v36 = vld [vmem:[%s0 + $0x48] sm:$0xf]
  %v37 = vld [vmem:[%s0 + $0x4c] sm:$0xf]
  %v38 = vld [vmem:[%s0 + $0x50] sm:$0xf]
  %v39 = vld [vmem:[%s0 + $0x54] sm:$0xf]
  %v40 = vld [vmem:[%s0 + $0x58] sm:$0xf]
  %v41 = vld [vmem:[%s0 + $0x5c] sm:$0xf]
  %v42 = vld [vmem:[%s0 + $0x60] sm:$0xf]
  %v43 = vld [vmem:[%s0 + $0x64] sm:$0xf]
  %v44 = vld [vmem:[%s0 + $0x68] sm:$0xf]
  %v45 = vld [vmem:[%s0 + $0x6c] sm:$0xf]
  %v46 = vld [vmem:[%s0 + $0x70] sm:$0xf]
  %v47 = vld [vmem:[%s0 + $0x74] sm:$0xf]
  %v48 = vld [vmem:[%s0 + $0x78] sm:$0xf]
  %v49 = vld [vmem:[%s0 + $0x7c] sm:$0xf]
  %v50 = vld [vmem:[%s0 + $0x80] sm:$0xf]
  %v51 = vld [vmem:[%s0 + $0x84] sm:$0xf]
  %v52 = vld [vmem:[%s0 + $0x88] sm:$0xf]
  %v53 = vld [vmem:[%s0 + $0x8c] sm:$0xf]
  %v54 = vld [vmem:[%s0 + $0x90] sm:$0xf]
  %v55 = vld [vmem:[%s0 + $0x94] sm:$0xf]
  %v56 = vld [vmem:[%s0 + $0x98] sm:$0xf]
  %v57 = vld [vmem:[%s0 + $0x9c] sm:$0xf]
  %v58 = vld [vmem:[%s0 + $0xa0] sm:$0xf]
  %v59 = vld [vmem:[%s0 + $0xa4] sm:$0xf]
  %v60 = vld [vmem:[%s0 + $0xa8] sm:$0xf]
  %v61 = vld [vmem:[%s0 + $0xac] sm:$0xf]
  %v62 = vld [vmem:[%s0 + $0xb0] sm:$0xf]
  %v63 = vld [vmem:[%s0 + $0xb4] sm:$0xf]
  %v64 = vld [vmem:[%s0 + $0xb8] sm:$0xf]
  %v65 = vld [vmem:[%s0 + $0xbc] sm:$0xf]
  %v66 = vld [vmem:[%s0 + $0xc0] sm:$0xf]
  %v67 = vld [vmem:[%s0 + $0xc4] sm:$0xf]
  %v68 = vld [vmem:[%s0 + $0xc8] sm:$0xf]
  %v69 = vld [vmem:[%s0 + $0xcc] sm:$0xf]
  %v70 = vld [vmem:[%s0 + $0xd0] sm:$0xf]
  %v71 = vld [vmem:[%s0 + $0xd4] sm:$0xf]
  %v72 = vld [vmem:[%s0 + $0xd8] sm:$0xf]
  %v73 = vld [vmem:[%s0 + $0xdc] sm:$0xf]
  %v74 = vld [vmem:[%s0 + $0xe0] sm:$0xf]
  %v75 = vld [vmem:[%s0 + $0xe4] sm:$0xf]
  %v76 = vld [vmem:[%s0 + $0xe8] sm:$0xf]
  %v77 = vld [vmem:[%s0 + $0xec] sm:$0xf]
  %v78 = vld [vmem:[%s0 + $0xf0] sm:$0xf]
  %v79 = vld [vmem:[%s0 + $0xf4] sm:$0xf]
  %v80 = vld [vmem:[%s0 + $0xf8] sm:$0xf]
  %v81 = vld [vmem:[%s0 + $0xfc] sm:$0xf]
  %v82 = vld [vmem:[%s0 + $0x100] sm:$0xf]
  %v83 = vld [vmem:[%s0 + $0x104] sm:$0xf]
  %v84 = vld [vmem:[%s0 + $0x108] sm:$0xf]
  %v85 = vld [vmem:[%s0 + $0x10c] sm:$0xf]
  %v86 = vld [vmem:[%s0 + $0x110] sm:$0xf]
  %v87 = vld [vmem:[%s0 + $0x114] sm:$0xf]
  %v88 = vld [vmem:[%s0 + $0x118] sm:$0xf]
  %v89 = vld [vmem:[%s0 + $0x11c] sm:$0xf]
  %v90 = vld [vmem:[%s0 + $0x120] sm:$0xf]
  %v91 = vld [vmem:[%s1] sm:$0xf]
  %v92 = vld [vmem:[%s1 + $0x4] sm:$0xf]
  %v93 = vld [vmem:[%s1 + $0x8] sm:$0x1]
  %v94 = vld [vmem:[%s2] sm:$0x1]
  %v96 = vlaneseq
  %v97 = vshrl.u32 %v96, 7
  %v98 = vsub.s32 0, %v97
  %v99 = vrot.slane %v94, %v98
  %v174 = vunpack.c.l.b16 %v18
  %v175 = vunpack.c.l.b16 %v19
  %v176 = vunpack.c.l.b16 %v20
  %v177 = vunpack.c.l.b16 %v21
  %v178 = vunpack.c.l.b16 %v22
  %v179 = vunpack.c.l.b16 %v23
  %v180 = vunpack.c.l.b16 %v24
  %v181 = vunpack.c.l.b16 %v25
  %v182 = vunpack.c.l.b16 %v26
  %v183 = vunpack.c.l.b16 %v27
  %v184 = vunpack.c.l.b16 %v28
  %v185 = vunpack.c.l.b16 %v29
  %v186 = vunpack.c.l.b16 %v30
  %v187 = vunpack.c.l.b16 %v31
  %v188 = vunpack.c.l.b16 %v32
  %v189 = vunpack.c.l.b16 %v33
  %v190 = vunpack.c.l.b16 %v34
  %v191 = vunpack.c.l.b16 %v35
  %v192 = vunpack.c.l.b16 %v36
  %v193 = vunpack.c.l.b16 %v37
  %v194 = vunpack.c.l.b16 %v38
  %v195 = vunpack.c.l.b16 %v39
  %v196 = vunpack.c.l.b16 %v40
  %v197 = vunpack.c.l.b16 %v41
  %v198 = vunpack.c.l.b16 %v42
  %v199 = vunpack.c.l.b16 %v43
  %v200 = vunpack.c.l.b16 %v44
  %v201 = vunpack.c.l.b16 %v45
  %v202 = vunpack.c.l.b16 %v46
  %v203 = vunpack.c.l.b16 %v47
  %v204 = vunpack.c.l.b16 %v48
  %v205 = vunpack.c.l.b16 %v49
  %v206 = vunpack.c.l.b16 %v50
  %v207 = vunpack.c.l.b16 %v51
  %v208 = vunpack.c.l.b16 %v52
  %v209 = vunpack.c.l.b16 %v53
  %v210 = vunpack.c.l.b16 %v54
  %v211 = vunpack.c.l.b16 %v55
  %v212 = vunpack.c.l.b16 %v56
  %v213 = vunpack.c.l.b16 %v57
  %v214 = vunpack.c.l.b16 %v58
  %v215 = vunpack.c.l.b16 %v59
  %v216 = vunpack.c.l.b16 %v60
  %v217 = vunpack.c.l.b16 %v61
  %v218 = vunpack.c.l.b16 %v62
  %v219 = vunpack.c.l.b16 %v63
  %v220 = vunpack.c.l.b16 %v64
  %v221 = vunpack.c.l.b16 %v65
  %v222 = vunpack.c.l.b16 %v66
  %v223 = vunpack.c.l.b16 %v67
  %v224 = vunpack.c.l.b16 %v68
  %v225 = vunpack.c.l.b16 %v69
  %v226 = vunpack.c.l.b16 %v70
  %v227 = vunpack.c.l.b16 %v71
  %v228 = vunpack.c.l.b16 %v72
  %v229 = vunpack.c.l.b16 %v73
  %v230 = vunpack.c.l.b16 %v74
  %v231 = vunpack.c.l.b16 %v75
  %v232 = vunpack.c.l.b16 %v76
  %v233 = vunpack.c.l.b16 %v77
  %v234 = vunpack.c.l.b16 %v78
  %v235 = vunpack.c.l.b16 %v79
  %v236 = vunpack.c.l.b16 %v80
  %v237 = vunpack.c.l.b16 %v81
  %v238 = vunpack.c.l.b16 %v82
  %v239 = vunpack.c.l.b16 %v83
  %v240 = vunpack.c.l.b16 %v84
  %v241 = vunpack.c.l.b16 %v85
  %v242 = vunpack.c.l.b16 %v86
  %v243 = vunpack.c.l.b16 %v87
  %v244 = vunpack.c.l.b16 %v88
  %v245 = vunpack.c.l.b16 %v89
  %v246 = vunpack.c.l.b16 %v90
  %v247 = vpack.c.b16 %v175, %v174
  %v248 = vpack.c.b16 %v177, %v176
  %v249 = vpack.c.b16 %v179, %v178
  %v250 = vpack.c.b16 %v181, %v180
  %v251 = vpack.c.b16 %v183, %v182
  %v252 = vpack.c.b16 %v185, %v184
  %v253 = vpack.c.b16 %v187, %v186
  %v254 = vpack.c.b16 %v189, %v188
  %v255 = vpack.c.b16 %v191, %v190
  %v256 = vpack.c.b16 %v193, %v192
  %v257 = vpack.c.b16 %v195, %v194
  %v258 = vpack.c.b16 %v197, %v196
  %v259 = vpack.c.b16 %v199, %v198
  %v260 = vpack.c.b16 %v201, %v200
  %v261 = vpack.c.b16 %v203, %v202
  %v262 = vpack.c.b16 %v205, %v204
  %v263 = vpack.c.b16 %v207, %v206
  %v264 = vpack.c.b16 %v209, %v208
  %v265 = vpack.c.b16 %v211, %v210
  %v266 = vpack.c.b16 %v213, %v212
  %v267 = vpack.c.b16 %v215, %v214
  %v268 = vpack.c.b16 %v217, %v216
  %v269 = vpack.c.b16 %v219, %v218
  %v270 = vpack.c.b16 %v221, %v220
  %v271 = vpack.c.b16 %v223, %v222
  %v272 = vpack.c.b16 %v225, %v224
  %v273 = vpack.c.b16 %v227, %v226
  %v274 = vpack.c.b16 %v229, %v228
  %v275 = vpack.c.b16 %v231, %v230
  %v276 = vpack.c.b16 %v233, %v232
  %v277 = vpack.c.b16 %v235, %v234
  %v278 = vpack.c.b16 %v237, %v236
  %v279 = vpack.c.b16 %v239, %v238
  %v280 = vpack.c.b16 %v241, %v240
  %v281 = vpack.c.b16 %v243, %v242
  %v282 = vpack.c.b16 %v245, %v244
  %v283 = vpack.c.b16 %v246, %v246
  %v287 = vunpack.c.l.b16 %v91
  %v288 = vunpack.c.l.b16 %v92
  %v289 = vunpack.c.l.b16 %v93
  %v290 = vpack.c.b16 %v288, %v287
  %v291 = vpack.c.b16 %v289, %v289
  %vm293 = vcmask 146432
  %v295 = vsel %vm293, %v247, 0
  %v298 = vsel %vm293, %v248, 0
  %v301 = vsel %vm293, %v249, 0
  %v304 = vsel %vm293, %v250, 0
  %v307 = vsel %vm293, %v251, 0
  %v310 = vsel %vm293, %v252, 0
  %v313 = vsel %vm293, %v253, 0
  %v316 = vsel %vm293, %v254, 0
  %v319 = vsel %vm293, %v255, 0
  %v322 = vsel %vm293, %v256, 0
  %v325 = vsel %vm293, %v257, 0
  %v328 = vsel %vm293, %v258, 0
  %v331 = vsel %vm293, %v259, 0
  %v334 = vsel %vm293, %v260, 0
  %v337 = vsel %vm293, %v261, 0
  %v340 = vsel %vm293, %v262, 0
  %v343 = vsel %vm293, %v263, 0
  %v346 = vsel %vm293, %v264, 0
  %v349 = vsel %vm293, %v265, 0
  %v352 = vsel %vm293, %v266, 0
  %v355 = vsel %vm293, %v267, 0
  %v358 = vsel %vm293, %v268, 0
  %v361 = vsel %vm293, %v269, 0
  %v364 = vsel %vm293, %v270, 0
  %v367 = vsel %vm293, %v271, 0
  %v370 = vsel %vm293, %v272, 0
  %v373 = vsel %vm293, %v273, 0
  %v376 = vsel %vm293, %v274, 0
  %v379 = vsel %vm293, %v275, 0
  %v382 = vsel %vm293, %v276, 0
  %v385 = vsel %vm293, %v277, 0
  %v388 = vsel %vm293, %v278, 0
  %v391 = vsel %vm293, %v279, 0
  %v394 = vsel %vm293, %v280, 0
  %v397 = vsel %vm293, %v281, 0
  %v400 = vsel %vm293, %v282, 0
  %v403 = vsel %vm293, %v283, 0
  %vm405 = vcmask 1040384
  %v407 = vsel %vm405, %v291, 0
  %409 = vmatprep.subr.bf16.mxu0 0
  %410 = vmatpush1.bf16.msra.mxu0 %v290
  %411 = vmatprep.subr.bf16.mxu0 0
  %412 = vmatpush1.bf16.msra.mxu0 %v407
  %413 = vmatprep.subr.bf16.mxu0 0
  %414 = vmatpush1.bf16.msra.mxu0 0
  %415 = vmatprep.subr.bf16.mxu0 0
  %416 = vmatpush1.bf16.msra.mxu0 0
  %417 = vmatprep.subr.bf16.mxu0 0
  %418 = vmatpush1.bf16.msra.mxu0 0
  %419 = vmatprep.subr.bf16.mxu0 0
  %420 = vmatpush1.bf16.msra.mxu0 0
  %421 = vmatprep.subr.bf16.mxu0 0
  %422 = vmatpush1.bf16.msra.mxu0 0
  %423 = vmatprep.subr.bf16.mxu0 0
  %424 = vmatpush1.bf16.msra.mxu0 0
  %425 = vmatprep.subr.bf16.mxu0 0
  %426 = vmatpush1.bf16.msra.mxu0 0
  %427 = vmatprep.subr.bf16.mxu0 0
  %428 = vmatpush1.bf16.msra.mxu0 0
  %429 = vmatprep.subr.bf16.mxu0 0
  %430 = vmatpush1.bf16.msra.mxu0 0
  %431 = vmatprep.subr.bf16.mxu0 0
  %432 = vmatpush1.bf16.msra.mxu0 0
  %433 = vmatprep.subr.bf16.mxu0 0
  %434 = vmatpush1.bf16.msra.mxu0 0
  %435 = vmatprep.subr.bf16.mxu0 0
  %436 = vmatpush1.bf16.msra.mxu0 0
  %437 = vmatprep.subr.bf16.mxu0 0
  %438 = vmatpush1.bf16.msra.mxu0 0
  %439 = vmatprep.subr.bf16.mxu0 0
  %440 = vmatpush1.bf16.msra.mxu0 0
  %441 = vmatprep.mubr.bf16.mxu0 0
  %442 = vmatmul.mubr.bf16.gmra.mrb[0].mxu0 %v295
  %v443 = vpop.f32.mrb[0].mxu0
  %v444 = vadd.f32 %v99, %v443
  %v445 = vpop.f32.mrb[0].mxu0
  %v446 = vpop.f32.mrb[0].mxu0
  %v447 = vadd.f32 %v99, %v446
  %v448 = vpop.f32.mrb[0].mxu0
  %449 = vmatprep.mubr.bf16.mxu0 0
  %450 = vmatmul.mubr.bf16.gmra.mrb[0].mxu0 %v298
  %v451 = vpop.f32.mrb[0].mxu0
  %v452 = vadd.f32 %v99, %v451
  %v453 = vpop.f32.mrb[0].mxu0
  %v454 = vpop.f32.mrb[0].mxu0
  %v455 = vadd.f32 %v99, %v454
  %v456 = vpop.f32.mrb[0].mxu0
  %457 = vmatprep.mubr.bf16.mxu0 0
  %458 = vmatmul.mubr.bf16.gmra.mrb[0].mxu0 %v301
  %v459 = vpop.f32.mrb[0].mxu0
  %v460 = vadd.f32 %v99, %v459
  %v461 = vpop.f32.mrb[0].mxu0
  %v462 = vpop.f32.mrb[0].mxu0
  %v463 = vadd.f32 %v99, %v462
  %v464 = vpop.f32.mrb[0].mxu0
  %465 = vmatprep.mubr.bf16.mxu0 0
  %466 = vmatmul.mubr.bf16.gmra.mrb[0].mxu0 %v304
  %v467 = vpop.f32.mrb[0].mxu0
  %v468 = vadd.f32 %v99, %v467
  %v469 = vpop.f32.mrb[0].mxu0
  %v470 = vpop.f32.mrb[0].mxu0
  %v471 = vadd.f32 %v99, %v470
  %v472 = vpop.f32.mrb[0].mxu0
  %473 = vmatprep.mubr.bf16.mxu0 0
  %474 = vmatmul.mubr.bf16.gmra.mrb[0].mxu0 %v307
  %v475 = vpop.f32.mrb[0].mxu0
  %v476 = vadd.f32 %v99, %v475
  %v477 = vpop.f32.mrb[0].mxu0
  %v478 = vpop.f32.mrb[0].mxu0
  %v479 = vadd.f32 %v99, %v478
  %v480 = vpop.f32.mrb[0].mxu0
  %481 = vmatprep.mubr.bf16.mxu0 0
  %482 = vmatmul.mubr.bf16.gmra.mrb[0].mxu0 %v310
  %v483 = vpop.f32.mrb[0].mxu0
  %v484 = vadd.f32 %v99, %v483
  %v485 = vpop.f32.mrb[0].mxu0
  %v486 = vpop.f32.mrb[0].mxu0
  %v487 = vadd.f32 %v99, %v486
  %v488 = vpop.f32.mrb[0].mxu0
  %489 = vmatprep.mubr.bf16.mxu0 0
  %490 = vmatmul.mubr.bf16.gmra.mrb[0].mxu0 %v313
  %v491 = vpop.f32.mrb[0].mxu0
  %v492 = vadd.f32 %v99, %v491
  %v493 = vpop.f32.mrb[0].mxu0
  %v494 = vpop.f32.mrb[0].mxu0
  %v495 = vadd.f32 %v99, %v494
  %v496 = vpop.f32.mrb[0].mxu0
  %497 = vmatprep.mubr.bf16.mxu0 0
  %498 = vmatmul.mubr.bf16.gmra.mrb[0].mxu0 %v316
  %v499 = vpop.f32.mrb[0].mxu0
  %v500 = vadd.f32 %v99, %v499
  %v501 = vpop.f32.mrb[0].mxu0
  %v502 = vpop.f32.mrb[0].mxu0
  %v503 = vadd.f32 %v99, %v502
  %v504 = vpop.f32.mrb[0].mxu0
  %505 = vmatprep.mubr.bf16.mxu0 0
  %506 = vmatmul.mubr.bf16.gmra.mrb[0].mxu0 %v319
  %v507 = vpop.f32.mrb[0].mxu0
  %v508 = vadd.f32 %v99, %v507
  %v509 = vpop.f32.mrb[0].mxu0
  %v510 = vpop.f32.mrb[0].mxu0
  %v511 = vadd.f32 %v99, %v510
  %v512 = vpop.f32.mrb[0].mxu0
  %513 = vmatprep.mubr.bf16.mxu0 0
  %514 = vmatmul.mubr.bf16.gmra.mrb[0].mxu0 %v322
  %v515 = vpop.f32.mrb[0].mxu0
  %v516 = vadd.f32 %v99, %v515
  %v517 = vpop.f32.mrb[0].mxu0
  %v518 = vpop.f32.mrb[0].mxu0
  %v519 = vadd.f32 %v99, %v518
  %v520 = vpop.f32.mrb[0].mxu0
  %521 = vmatprep.mubr.bf16.mxu0 0
  %522 = vmatmul.mubr.bf16.gmra.mrb[0].mxu0 %v325
  %v523 = vpop.f32.mrb[0].mxu0
  %v524 = vadd.f32 %v99, %v523
  %v525 = vpop.f32.mrb[0].mxu0
  %v526 = vpop.f32.mrb[0].mxu0
  %v527 = vadd.f32 %v99, %v526
  %v528 = vpop.f32.mrb[0].mxu0
  %529 = vmatprep.mubr.bf16.mxu0 0
  %530 = vmatmul.mubr.bf16.gmra.mrb[0].mxu0 %v328
  %v531 = vpop.f32.mrb[0].mxu0
  %v532 = vadd.f32 %v99, %v531
  %v533 = vpop.f32.mrb[0].mxu0
  %v534 = vpop.f32.mrb[0].mxu0
  %v535 = vadd.f32 %v99, %v534
  %v536 = vpop.f32.mrb[0].mxu0
  %537 = vmatprep.mubr.bf16.mxu0 0
  %538 = vmatmul.mubr.bf16.gmra.mrb[0].mxu0 %v331
  %v539 = vpop.f32.mrb[0].mxu0
  %v540 = vadd.f32 %v99, %v539
  %v541 = vpop.f32.mrb[0].mxu0
  %v542 = vpop.f32.mrb[0].mxu0
  %v543 = vadd.f32 %v99, %v542
  %v544 = vpop.f32.mrb[0].mxu0
  %545 = vmatprep.mubr.bf16.mxu0 0
  %546 = vmatmul.mubr.bf16.gmra.mrb[0].mxu0 %v334
  %v547 = vpop.f32.mrb[0].mxu0
  %v548 = vadd.f32 %v99, %v547
  %v549 = vpop.f32.mrb[0].mxu0
  %v550 = vpop.f32.mrb[0].mxu0
  %v551 = vadd.f32 %v99, %v550
  %v552 = vpop.f32.mrb[0].mxu0
  %553 = vmatprep.mubr.bf16.mxu0 0
  %554 = vmatmul.mubr.bf16.gmra.mrb[0].mxu0 %v337
  %v555 = vpop.f32.mrb[0].mxu0
  %v556 = vadd.f32 %v99, %v555
  %v557 = vpop.f32.mrb[0].mxu0
  %v558 = vpop.f32.mrb[0].mxu0
  %v559 = vadd.f32 %v99, %v558
  %v560 = vpop.f32.mrb[0].mxu0
  %561 = vmatprep.mubr.bf16.mxu0 0
  %562 = vmatmul.mubr.bf16.gmra.mrb[0].mxu0 %v340
  %v563 = vpop.f32.mrb[0].mxu0
  %v564 = vadd.f32 %v99, %v563
  %v565 = vpop.f32.mrb[0].mxu0
  %v566 = vpop.f32.mrb[0].mxu0
  %v567 = vadd.f32 %v99, %v566
  %v568 = vpop.f32.mrb[0].mxu0
  %569 = vmatprep.mubr.bf16.mxu0 0
  %570 = vmatmul.mubr.bf16.gmra.mrb[0].mxu0 %v343
  %v571 = vpop.f32.mrb[0].mxu0
  %v572 = vadd.f32 %v99, %v571
  %v573 = vpop.f32.mrb[0].mxu0
  %v574 = vpop.f32.mrb[0].mxu0
  %v575 = vadd.f32 %v99, %v574
  %v576 = vpop.f32.mrb[0].mxu0
  %577 = vmatprep.mubr.bf16.mxu0 0
  %578 = vmatmul.mubr.bf16.gmra.mrb[0].mxu0 %v346
  %v579 = vpop.f32.mrb[0].mxu0
  %v580 = vadd.f32 %v99, %v579
  %v581 = vpop.f32.mrb[0].mxu0
  %v582 = vpop.f32.mrb[0].mxu0
  %v583 = vadd.f32 %v99, %v582
  %v584 = vpop.f32.mrb[0].mxu0
  %585 = vmatprep.mubr.bf16.mxu0 0
  %586 = vmatmul.mubr.bf16.gmra.mrb[0].mxu0 %v349
  %v587 = vpop.f32.mrb[0].mxu0
  %v588 = vadd.f32 %v99, %v587
  %v589 = vpop.f32.mrb[0].mxu0
  %v590 = vpop.f32.mrb[0].mxu0
  %v591 = vadd.f32 %v99, %v590
  %v592 = vpop.f32.mrb[0].mxu0
  %593 = vmatprep.mubr.bf16.mxu0 0
  %594 = vmatmul.mubr.bf16.gmra.mrb[0].mxu0 %v352
  %v595 = vpop.f32.mrb[0].mxu0
  %v596 = vadd.f32 %v99, %v595
  %v597 = vpop.f32.mrb[0].mxu0
  %v598 = vpop.f32.mrb[0].mxu0
  %v599 = vadd.f32 %v99, %v598
  %v600 = vpop.f32.mrb[0].mxu0
  %601 = vmatprep.mubr.bf16.mxu0 0
  %602 = vmatmul.mubr.bf16.gmra.mrb[0].mxu0 %v355
  %v603 = vpop.f32.mrb[0].mxu0
  %v604 = vadd.f32 %v99, %v603
  %v605 = vpop.f32.mrb[0].mxu0
  %v606 = vpop.f32.mrb[0].mxu0
  %v607 = vadd.f32 %v99, %v606
  %v608 = vpop.f32.mrb[0].mxu0
  %609 = vmatprep.mubr.bf16.mxu0 0
  %610 = vmatmul.mubr.bf16.gmra.mrb[0].mxu0 %v358
  %v611 = vpop.f32.mrb[0].mxu0
  %v612 = vadd.f32 %v99, %v611
  %v613 = vpop.f32.mrb[0].mxu0
  %v614 = vpop.f32.mrb[0].mxu0
  %v615 = vadd.f32 %v99, %v614
  %v616 = vpop.f32.mrb[0].mxu0
  %617 = vmatprep.mubr.bf16.mxu0 0
  %618 = vmatmul.mubr.bf16.gmra.mrb[0].mxu0 %v361
  %v619 = vpop.f32.mrb[0].mxu0
  %v620 = vadd.f32 %v99, %v619
  %v621 = vpop.f32.mrb[0].mxu0
  %v622 = vpop.f32.mrb[0].mxu0
  %v623 = vadd.f32 %v99, %v622
  %v624 = vpop.f32.mrb[0].mxu0
  %625 = vmatprep.mubr.bf16.mxu0 0
  %626 = vmatmul.mubr.bf16.gmra.mrb[0].mxu0 %v364
  %v627 = vpop.f32.mrb[0].mxu0
  %v628 = vadd.f32 %v99, %v627
  %v629 = vpop.f32.mrb[0].mxu0
  %v630 = vpop.f32.mrb[0].mxu0
  %v631 = vadd.f32 %v99, %v630
  %v632 = vpop.f32.mrb[0].mxu0
  %633 = vmatprep.mubr.bf16.mxu0 0
  %634 = vmatmul.mubr.bf16.gmra.mrb[0].mxu0 %v367
  %v635 = vpop.f32.mrb[0].mxu0
  %v636 = vadd.f32 %v99, %v635
  %v637 = vpop.f32.mrb[0].mxu0
  %v638 = vpop.f32.mrb[0].mxu0
  %v639 = vadd.f32 %v99, %v638
  %v640 = vpop.f32.mrb[0].mxu0
  %641 = vmatprep.mubr.bf16.mxu0 0
  %642 = vmatmul.mubr.bf16.gmra.mrb[0].mxu0 %v370
  %v643 = vpop.f32.mrb[0].mxu0
  %v644 = vadd.f32 %v99, %v643
  %v645 = vpop.f32.mrb[0].mxu0
  %v646 = vpop.f32.mrb[0].mxu0
  %v647 = vadd.f32 %v99, %v646
  %v648 = vpop.f32.mrb[0].mxu0
  %649 = vmatprep.mubr.bf16.mxu0 0
  %650 = vmatmul.mubr.bf16.gmra.mrb[0].mxu0 %v373
  %v651 = vpop.f32.mrb[0].mxu0
  %v652 = vadd.f32 %v99, %v651
  %v653 = vpop.f32.mrb[0].mxu0
  %v654 = vpop.f32.mrb[0].mxu0
  %v655 = vadd.f32 %v99, %v654
  %v656 = vpop.f32.mrb[0].mxu0
  %657 = vmatprep.mubr.bf16.mxu0 0
  %658 = vmatmul.mubr.bf16.gmra.mrb[0].mxu0 %v376
  %v659 = vpop.f32.mrb[0].mxu0
  %v660 = vadd.f32 %v99, %v659
  %v661 = vpop.f32.mrb[0].mxu0
  %v662 = vpop.f32.mrb[0].mxu0
  %v663 = vadd.f32 %v99, %v662
  %v664 = vpop.f32.mrb[0].mxu0
  %665 = vmatprep.mubr.bf16.mxu0 0
  %666 = vmatmul.mubr.bf16.gmra.mrb[0].mxu0 %v379
  %v667 = vpop.f32.mrb[0].mxu0
  %v668 = vadd.f32 %v99, %v667
  %v669 = vpop.f32.mrb[0].mxu0
  %v670 = vpop.f32.mrb[0].mxu0
  %v671 = vadd.f32 %v99, %v670
  %v672 = vpop.f32.mrb[0].mxu0
  %673 = vmatprep.mubr.bf16.mxu0 0
  %674 = vmatmul.mubr.bf16.gmra.mrb[0].mxu0 %v382
  %v675 = vpop.f32.mrb[0].mxu0
  %v676 = vadd.f32 %v99, %v675
  %v677 = vpop.f32.mrb[0].mxu0
  %v678 = vpop.f32.mrb[0].mxu0
  %v679 = vadd.f32 %v99, %v678
  %v680 = vpop.f32.mrb[0].mxu0
  %681 = vmatprep.mubr.bf16.mxu0 0
  %682 = vmatmul.mubr.bf16.gmra.mrb[0].mxu0 %v385
  %v683 = vpop.f32.mrb[0].mxu0
  %v684 = vadd.f32 %v99, %v683
  %v685 = vpop.f32.mrb[0].mxu0
  %v686 = vpop.f32.mrb[0].mxu0
  %v687 = vadd.f32 %v99, %v686
  %v688 = vpop.f32.mrb[0].mxu0
  %689 = vmatprep.mubr.bf16.mxu0 0
  %690 = vmatmul.mubr.bf16.gmra.mrb[0].mxu0 %v388
  %v691 = vpop.f32.mrb[0].mxu0
  %v692 = vadd.f32 %v99, %v691
  %v693 = vpop.f32.mrb[0].mxu0
  %v694 = vpop.f32.mrb[0].mxu0
  %v695 = vadd.f32 %v99, %v694
  %v696 = vpop.f32.mrb[0].mxu0
  %697 = vmatprep.mubr.bf16.mxu0 0
  %698 = vmatmul.mubr.bf16.gmra.mrb[0].mxu0 %v391
  %v699 = vpop.f32.mrb[0].mxu0
  %v700 = vadd.f32 %v99, %v699
  %v701 = vpop.f32.mrb[0].mxu0
  %v702 = vpop.f32.mrb[0].mxu0
  %v703 = vadd.f32 %v99, %v702
  %v704 = vpop.f32.mrb[0].mxu0
  %705 = vmatprep.mubr.bf16.mxu0 0
  %706 = vmatmul.mubr.bf16.gmra.mrb[0].mxu0 %v394
  %v707 = vpop.f32.mrb[0].mxu0
  %v708 = vadd.f32 %v99, %v707
  %v709 = vpop.f32.mrb[0].mxu0
  %v710 = vpop.f32.mrb[0].mxu0
  %v711 = vadd.f32 %v99, %v710
  %v712 = vpop.f32.mrb[0].mxu0
  %713 = vmatprep.mubr.bf16.mxu0 0
  %714 = vmatmul.mubr.bf16.gmra.mrb[0].mxu0 %v397
  %v715 = vpop.f32.mrb[0].mxu0
  %v716 = vadd.f32 %v99, %v715
  %v717 = vpop.f32.mrb[0].mxu0
  %v718 = vpop.f32.mrb[0].mxu0
  %v719 = vadd.f32 %v99, %v718
  %v720 = vpop.f32.mrb[0].mxu0
  %721 = vmatprep.mubr.bf16.mxu0 0
  %722 = vmatmul.mubr.bf16.gmra.mrb[0].mxu0 %v400
  %v723 = vpop.f32.mrb[0].mxu0
  %v724 = vadd.f32 %v99, %v723
  %v725 = vpop.f32.mrb[0].mxu0
  %v726 = vpop.f32.mrb[0].mxu0
  %v727 = vadd.f32 %v99, %v726
  %v728 = vpop.f32.mrb[0].mxu0
  %729 = vmatprep.mubr.bf16.mxu0 0
  %730 = vmatmul.mubr.bf16.gmra.mrb[0].mxu0 %v403
  %v731 = vpop.f32.mrb[0].mxu0
  %v732 = vadd.f32 %v99, %v731
  %v733 = vpop.f32.mrb[0].mxu0
  %v734 = vpop.f32.mrb[0].mxu0
  %v735 = vpop.f32.mrb[0].mxu0
  %736 = vdwg.mxu0
  %vm737 = vcmp.ge.f32.partialorder %v444, 0.0
  %vm738 = vcmp.ge.f32.partialorder %v447, 0.0
  %vm739 = vcmp.ge.f32.partialorder %v452, 0.0
  %vm740 = vcmp.ge.f32.partialorder %v455, 0.0
  %vm741 = vcmp.ge.f32.partialorder %v460, 0.0
  %vm742 = vcmp.ge.f32.partialorder %v463, 0.0
  %vm743 = vcmp.ge.f32.partialorder %v468, 0.0
  %vm744 = vcmp.ge.f32.partialorder %v471, 0.0
  %vm745 = vcmp.ge.f32.partialorder %v476, 0.0
  %vm746 = vcmp.ge.f32.partialorder %v479, 0.0
  %vm747 = vcmp.ge.f32.partialorder %v484, 0.0
  %vm748 = vcmp.ge.f32.partialorder %v487, 0.0
  %vm749 = vcmp.ge.f32.partialorder %v492, 0.0
  %vm750 = vcmp.ge.f32.partialorder %v495, 0.0
  %vm751 = vcmp.ge.f32.partialorder %v500, 0.0
  %vm752 = vcmp.ge.f32.partialorder %v503, 0.0
  %vm753 = vcmp.ge.f32.partialorder %v508, 0.0
  %vm754 = vcmp.ge.f32.partialorder %v511, 0.0
  %vm755 = vcmp.ge.f32.partialorder %v516, 0.0
  %vm756 = vcmp.ge.f32.partialorder %v519, 0.0
  %vm757 = vcmp.ge.f32.partialorder %v524, 0.0
  %vm758 = vcmp.ge.f32.partialorder %v527, 0.0
  %vm759 = vcmp.ge.f32.partialorder %v532, 0.0
  %vm760 = vcmp.ge.f32.partialorder %v535, 0.0
  %vm761 = vcmp.ge.f32.partialorder %v540, 0.0
  %vm762 = vcmp.ge.f32.partialorder %v543, 0.0
  %vm763 = vcmp.ge.f32.partialorder %v548, 0.0
  %vm764 = vcmp.ge.f32.partialorder %v551, 0.0
  %vm765 = vcmp.ge.f32.partialorder %v556, 0.0
  %vm766 = vcmp.ge.f32.partialorder %v559, 0.0
  %vm767 = vcmp.ge.f32.partialorder %v564, 0.0
  %vm768 = vcmp.ge.f32.partialorder %v567, 0.0
  %vm769 = vcmp.ge.f32.partialorder %v572, 0.0
  %vm770 = vcmp.ge.f32.partialorder %v575, 0.0
  %vm771 = vcmp.ge.f32.partialorder %v580, 0.0
  %vm772 = vcmp.ge.f32.partialorder %v583, 0.0
  %vm773 = vcmp.ge.f32.partialorder %v588, 0.0
  %vm774 = vcmp.ge.f32.partialorder %v591, 0.0
  %vm775 = vcmp.ge.f32.partialorder %v596, 0.0
  %vm776 = vcmp.ge.f32.partialorder %v599, 0.0
  %vm777 = vcmp.ge.f32.partialorder %v604, 0.0
  %vm778 = vcmp.ge.f32.partialorder %v607, 0.0
  %vm779 = vcmp.ge.f32.partialorder %v612, 0.0
  %vm780 = vcmp.ge.f32.partialorder %v615, 0.0
  %vm781 = vcmp.ge.f32.partialorder %v620, 0.0
  %vm782 = vcmp.ge.f32.partialorder %v623, 0.0
  %vm783 = vcmp.ge.f32.partialorder %v628, 0.0
  %vm784 = vcmp.ge.f32.partialorder %v631, 0.0
  %vm785 = vcmp.ge.f32.partialorder %v636, 0.0
  %vm786 = vcmp.ge.f32.partialorder %v639, 0.0
  %vm787 = vcmp.ge.f32.partialorder %v644, 0.0
  %vm788 = vcmp.ge.f32.partialorder %v647, 0.0
  %vm789 = vcmp.ge.f32.partialorder %v652, 0.0
  %vm790 = vcmp.ge.f32.partialorder %v655, 0.0
  %vm791 = vcmp.ge.f32.partialorder %v660, 0.0
  %vm792 = vcmp.ge.f32.partialorder %v663, 0.0
  %vm793 = vcmp.ge.f32.partialorder %v668, 0.0
  %vm794 = vcmp.ge.f32.partialorder %v671, 0.0
  %vm795 = vcmp.ge.f32.partialorder %v676, 0.0
  %vm796 = vcmp.ge.f32.partialorder %v679, 0.0
  %vm797 = vcmp.ge.f32.partialorder %v684, 0.0
  %vm798 = vcmp.ge.f32.partialorder %v687, 0.0
  %vm799 = vcmp.ge.f32.partialorder %v692, 0.0
  %vm800 = vcmp.ge.f32.partialorder %v695, 0.0
  %vm801 = vcmp.ge.f32.partialorder %v700, 0.0
  %vm802 = vcmp.ge.f32.partialorder %v703, 0.0
  %vm803 = vcmp.ge.f32.partialorder %v708, 0.0
  %vm804 = vcmp.ge.f32.partialorder %v711, 0.0
  %vm805 = vcmp.ge.f32.partialorder %v716, 0.0
  %vm806 = vcmp.ge.f32.partialorder %v719, 0.0
  %vm807 = vcmp.ge.f32.partialorder %v724, 0.0
  %vm808 = vcmp.ge.f32.partialorder %v727, 0.0
  %vm809 = vcmp.ge.f32.partialorder %v732, 0.0
  %v810 = vld [vmem:[%s3] sm:$0x1]
  %v812 = vlaneseq
  %v813 = vshrl.u32 %v812, 7
  %v814 = vsub.s32 0, %v813
  %v815 = vrot.slane %v810, %v814
  %v817 = vmul.f32 %v815, %v444
  %v818 = vmul.f32 %v815, %v447
  %v819 = vmul.f32 %v815, %v452
  %v820 = vmul.f32 %v815, %v455
  %v821 = vmul.f32 %v815, %v460
  %v822 = vmul.f32 %v815, %v463
  %v823 = vmul.f32 %v815, %v468
  %v824 = vmul.f32 %v815, %v471
  %v825 = vmul.f32 %v815, %v476
  %v826 = vmul.f32 %v815, %v479
  %v827 = vmul.f32 %v815, %v484
  %v828 = vmul.f32 %v815, %v487
  %v829 = vmul.f32 %v815, %v492
  %v830 = vmul.f32 %v815, %v495
  %v831 = vmul.f32 %v815, %v500
  %v832 = vmul.f32 %v815, %v503
  %v833 = vmul.f32 %v815, %v508
  %v834 = vmul.f32 %v815, %v511
  %v835 = vmul.f32 %v815, %v516
  %v836 = vmul.f32 %v815, %v519
  %v837 = vmul.f32 %v815, %v524
  %v838 = vmul.f32 %v815, %v527
  %v839 = vmul.f32 %v815, %v532
  %v840 = vmul.f32 %v815, %v535
  %v841 = vmul.f32 %v815, %v540
  %v842 = vmul.f32 %v815, %v543
  %v843 = vmul.f32 %v815, %v548
  %v844 = vmul.f32 %v815, %v551
  %v845 = vmul.f32 %v815, %v556
  %v846 = vmul.f32 %v815, %v559
  %v847 = vmul.f32 %v815, %v564
  %v848 = vmul.f32 %v815, %v567
  %v849 = vmul.f32 %v815, %v572
  %v850 = vmul.f32 %v815, %v575
  %v851 = vmul.f32 %v815, %v580
  %v852 = vmul.f32 %v815, %v583
  %v853 = vmul.f32 %v815, %v588
  %v854 = vmul.f32 %v815, %v591
  %v855 = vmul.f32 %v815, %v596
  %v856 = vmul.f32 %v815, %v599
  %v857 = vmul.f32 %v815, %v604
  %v858 = vmul.f32 %v815, %v607
  %v859 = vmul.f32 %v815, %v612
  %v860 = vmul.f32 %v815, %v615
  %v861 = vmul.f32 %v815, %v620
  %v862 = vmul.f32 %v815, %v623
  %v863 = vmul.f32 %v815, %v628
  %v864 = vmul.f32 %v815, %v631
  %v865 = vmul.f32 %v815, %v636
  %v866 = vmul.f32 %v815, %v639
  %v867 = vmul.f32 %v815, %v644
  %v868 = vmul.f32 %v815, %v647
  %v869 = vmul.f32 %v815, %v652
  %v870 = vmul.f32 %v815, %v655
  %v871 = vmul.f32 %v815, %v660
  %v872 = vmul.f32 %v815, %v663
  %v873 = vmul.f32 %v815, %v668
  %v874 = vmul.f32 %v815, %v671
  %v875 = vmul.f32 %v815, %v676
  %v876 = vmul.f32 %v815, %v679
  %v877 = vmul.f32 %v815, %v684
  %v878 = vmul.f32 %v815, %v687
  %v879 = vmul.f32 %v815, %v692
  %v880 = vmul.f32 %v815, %v695
  %v881 = vmul.f32 %v815, %v700
  %v882 = vmul.f32 %v815, %v703
  %v883 = vmul.f32 %v815, %v708
  %v884 = vmul.f32 %v815, %v711
  %v885 = vmul.f32 %v815, %v716
  %v886 = vmul.f32 %v815, %v719
  %v887 = vmul.f32 %v815, %v724
  %v888 = vmul.f32 %v815, %v727
  %v889 = vmul.f32 %v815, %v732
  %v890 = vsel %vm737, %v444, %v817
  %v891 = vsel %vm738, %v447, %v818
  %v892 = vsel %vm739, %v452, %v819
  %v893 = vsel %vm740, %v455, %v820
  %v894 = vsel %vm741, %v460, %v821
  %v895 = vsel %vm742, %v463, %v822
  %v896 = vsel %vm743, %v468, %v823
  %v897 = vsel %vm744, %v471, %v824
  %v898 = vsel %vm745, %v476, %v825
  %v899 = vsel %vm746, %v479, %v826
  %v900 = vsel %vm747, %v484, %v827
  %v901 = vsel %vm748, %v487, %v828
  %v902 = vsel %vm749, %v492, %v829
  %v903 = vsel %vm750, %v495, %v830
  %v904 = vsel %vm751, %v500, %v831
  %v905 = vsel %vm752, %v503, %v832
  %v906 = vsel %vm753, %v508, %v833
  %v907 = vsel %vm754, %v511, %v834
  %v908 = vsel %vm755, %v516, %v835
  %v909 = vsel %vm756, %v519, %v836
  %v910 = vsel %vm757, %v524, %v837
  %v911 = vsel %vm758, %v527, %v838
  %v912 = vsel %vm759, %v532, %v839
  %v913 = vsel %vm760, %v535, %v840
  %v914 = vsel %vm761, %v540, %v841
  %v915 = vsel %vm762, %v543, %v842
  %v916 = vsel %vm763, %v548, %v843
  %v917 = vsel %vm764, %v551, %v844
  %v918 = vsel %vm765, %v556, %v845
  %v919 = vsel %vm766, %v559, %v846
  %v920 = vsel %vm767, %v564, %v847
  %v921 = vsel %vm768, %v567, %v848
  %v922 = vsel %vm769, %v572, %v849
  %v923 = vsel %vm770, %v575, %v850
  %v924 = vsel %vm771, %v580, %v851
  %v925 = vsel %vm772, %v583, %v852
  %v926 = vsel %vm773, %v588, %v853
  %v927 = vsel %vm774, %v591, %v854
  %v928 = vsel %vm775, %v596, %v855
  %v929 = vsel %vm776, %v599, %v856
  %v930 = vsel %vm777, %v604, %v857
  %v931 = vsel %vm778, %v607, %v858
  %v932 = vsel %vm779, %v612, %v859
  %v933 = vsel %vm780, %v615, %v860
  %v934 = vsel %vm781, %v620, %v861
  %v935 = vsel %vm782, %v623, %v862
  %v936 = vsel %vm783, %v628, %v863
  %v937 = vsel %vm784, %v631, %v864
  %v938 = vsel %vm785, %v636, %v865
  %v939 = vsel %vm786, %v639, %v866
  %v940 = vsel %vm787, %v644, %v867
  %v941 = vsel %vm788, %v647, %v868
  %v942 = vsel %vm789, %v652, %v869
  %v943 = vsel %vm790, %v655, %v870
  %v944 = vsel %vm791, %v660, %v871
  %v945 = vsel %vm792, %v663, %v872
  %v946 = vsel %vm793, %v668, %v873
  %v947 = vsel %vm794, %v671, %v874
  %v948 = vsel %vm795, %v676, %v875
  %v949 = vsel %vm796, %v679, %v876
  %v950 = vsel %vm797, %v684, %v877
  %v951 = vsel %vm798, %v687, %v878
  %v952 = vsel %vm799, %v692, %v879
  %v953 = vsel %vm800, %v695, %v880
  %v954 = vsel %vm801, %v700, %v881
  %v955 = vsel %vm802, %v703, %v882
  %v956 = vsel %vm803, %v708, %v883
  %v957 = vsel %vm804, %v711, %v884
  %v958 = vsel %vm805, %v716, %v885
  %v959 = vsel %vm806, %v719, %v886
  %v960 = vsel %vm807, %v724, %v887
  %v961 = vsel %vm808, %v727, %v888
  %v962 = vsel %vm809, %v732, %v889
  %vm963 = vcmask 64512
  %964 = vst.msk [vmem:[%s4] sm:$0xff] %vm963, %v890
  %965 = vst.msk [vmem:[%s4 + $0x8] sm:$0xff] %vm963, %v891
  %966 = vst.msk [vmem:[%s4 + $0x10] sm:$0xff] %vm963, %v892
  %967 = vst.msk [vmem:[%s4 + $0x18] sm:$0xff] %vm963, %v893
  %968 = vst.msk [vmem:[%s4 + $0x20] sm:$0xff] %vm963, %v894
  %969 = vst.msk [vmem:[%s4 + $0x28] sm:$0xff] %vm963, %v895
  %970 = vst.msk [vmem:[%s4 + $0x30] sm:$0xff] %vm963, %v896
  %971 = vst.msk [vmem:[%s4 + $0x38] sm:$0xff] %vm963, %v897
  %972 = vst.msk [vmem:[%s4 + $0x40] sm:$0xff] %vm963, %v898
  %973 = vst.msk [vmem:[%s4 + $0x48] sm:$0xff] %vm963, %v899
  %974 = vst.msk [vmem:[%s4 + $0x50] sm:$0xff] %vm963, %v900
  %975 = vst.msk [vmem:[%s4 + $0x58] sm:$0xff] %vm963, %v901
  %976 = vst.msk [vmem:[%s4 + $0x60] sm:$0xff] %vm963, %v902
  %977 = vst.msk [vmem:[%s4 + $0x68] sm:$0xff] %vm963, %v903
  %978 = vst.msk [vmem:[%s4 + $0x70] sm:$0xff] %vm963, %v904
  %979 = vst.msk [vmem:[%s4 + $0x78] sm:$0xff] %vm963, %v905
  %980 = vst.msk [vmem:[%s4 + $0x80] sm:$0xff] %vm963, %v906
  %981 = vst.msk [vmem:[%s4 + $0x88] sm:$0xff] %vm963, %v907
  %982 = vst.msk [vmem:[%s4 + $0x90] sm:$0xff] %vm963, %v908
  %983 = vst.msk [vmem:[%s4 + $0x98] sm:$0xff] %vm963, %v909
  %984 = vst.msk [vmem:[%s4 + $0xa0] sm:$0xff] %vm963, %v910
  %985 = vst.msk [vmem:[%s4 + $0xa8] sm:$0xff] %vm963, %v911
  %986 = vst.msk [vmem:[%s4 + $0xb0] sm:$0xff] %vm963, %v912
  %987 = vst.msk [vmem:[%s4 + $0xb8] sm:$0xff] %vm963, %v913
  %988 = vst.msk [vmem:[%s4 + $0xc0] sm:$0xff] %vm963, %v914
  %989 = vst.msk [vmem:[%s4 + $0xc8] sm:$0xff] %vm963, %v915
  %990 = vst.msk [vmem:[%s4 + $0xd0] sm:$0xff] %vm963, %v916
  %991 = vst.msk [vmem:[%s4 + $0xd8] sm:$0xff] %vm963, %v917
  %992 = vst.msk [vmem:[%s4 + $0xe0] sm:$0xff] %vm963, %v918
  %993 = vst.msk [vmem:[%s4 + $0xe8] sm:$0xff] %vm963, %v919
  %994 = vst.msk [vmem:[%s4 + $0xf0] sm:$0xff] %vm963, %v920
  %995 = vst.msk [vmem:[%s4 + $0xf8] sm:$0xff] %vm963, %v921
  %996 = vst.msk [vmem:[%s4 + $0x100] sm:$0xff] %vm963, %v922
  %997 = vst.msk [vmem:[%s4 + $0x108] sm:$0xff] %vm963, %v923
  %998 = vst.msk [vmem:[%s4 + $0x110] sm:$0xff] %vm963, %v924
  %999 = vst.msk [vmem:[%s4 + $0x118] sm:$0xff] %vm963, %v925
  %1000 = vst.msk [vmem:[%s4 + $0x120] sm:$0xff] %vm963, %v926
  %1001 = vst.msk [vmem:[%s4 + $0x128] sm:$0xff] %vm963, %v927
  %1002 = vst.msk [vmem:[%s4 + $0x130] sm:$0xff] %vm963, %v928
  %1003 = vst.msk [vmem:[%s4 + $0x138] sm:$0xff] %vm963, %v929
  %1004 = vst.msk [vmem:[%s4 + $0x140] sm:$0xff] %vm963, %v930
  %1005 = vst.msk [vmem:[%s4 + $0x148] sm:$0xff] %vm963, %v931
  %1006 = vst.msk [vmem:[%s4 + $0x150] sm:$0xff] %vm963, %v932
  %1007 = vst.msk [vmem:[%s4 + $0x158] sm:$0xff] %vm963, %v933
  %1008 = vst.msk [vmem:[%s4 + $0x160] sm:$0xff] %vm963, %v934
  %1009 = vst.msk [vmem:[%s4 + $0x168] sm:$0xff] %vm963, %v935
  %1010 = vst.msk [vmem:[%s4 + $0x170] sm:$0xff] %vm963, %v936
  %1011 = vst.msk [vmem:[%s4 + $0x178] sm:$0xff] %vm963, %v937
  %1012 = vst.msk [vmem:[%s4 + $0x180] sm:$0xff] %vm963, %v938
  %1013 = vst.msk [vmem:[%s4 + $0x188] sm:$0xff] %vm963, %v939
  %1014 = vst.msk [vmem:[%s4 + $0x190] sm:$0xff] %vm963, %v940
  %1015 = vst.msk [vmem:[%s4 + $0x198] sm:$0xff] %vm963, %v941
  %1016 = vst.msk [vmem:[%s4 + $0x1a0] sm:$0xff] %vm963, %v942
  %1017 = vst.msk [vmem:[%s4 + $0x1a8] sm:$0xff] %vm963, %v943
  %1018 = vst.msk [vmem:[%s4 + $0x1b0] sm:$0xff] %vm963, %v944
  %1019 = vst.msk [vmem:[%s4 + $0x1b8] sm:$0xff] %vm963, %v945
  %1020 = vst.msk [vmem:[%s4 + $0x1c0] sm:$0xff] %vm963, %v946
  %1021 = vst.msk [vmem:[%s4 + $0x1c8] sm:$0xff] %vm963, %v947
  %1022 = vst.msk [vmem:[%s4 + $0x1d0] sm:$0xff] %vm963, %v948
  %1023 = vst.msk [vmem:[%s4 + $0x1d8] sm:$0xff] %vm963, %v949
  %1024 = vst.msk [vmem:[%s4 + $0x1e0] sm:$0xff] %vm963, %v950
  %1025 = vst.msk [vmem:[%s4 + $0x1e8] sm:$0xff] %vm963, %v951
  %1026 = vst.msk [vmem:[%s4 + $0x1f0] sm:$0xff] %vm963, %v952
  %1027 = vst.msk [vmem:[%s4 + $0x1f8] sm:$0xff] %vm963, %v953
  %1028 = vst.msk [vmem:[%s4 + $0x200] sm:$0xff] %vm963, %v954
  %1029 = vst.msk [vmem:[%s4 + $0x208] sm:$0xff] %vm963, %v955
  %1030 = vst.msk [vmem:[%s4 + $0x210] sm:$0xff] %vm963, %v956
  %1031 = vst.msk [vmem:[%s4 + $0x218] sm:$0xff] %vm963, %v957
  %1032 = vst.msk [vmem:[%s4 + $0x220] sm:$0xff] %vm963, %v958
  %1033 = vst.msk [vmem:[%s4 + $0x228] sm:$0xff] %vm963, %v959
  %1034 = vst.msk [vmem:[%s4 + $0x230] sm:$0xff] %vm963, %v960
  %1035 = vst.msk [vmem:[%s4 + $0x238] sm:$0xff] %vm963, %v961
  %1036 = vst.msk [vmem:[%s4 + $0x240] sm:$0xff] %vm963, %v962
  // Predicated region
  $region18: #{tf_gridnet_forward.33} parent=0 // pred_check
    _
  $region19: #{tf_gridnet_forward.33} parent=0 // pred_check_branch
    %1038 = sbr.rel (0) target = $region21
  $region20: #{tf_gridnet_forward.33} parent=0 // pred_region
    _
  $region21: #{tf_gridnet_forward.33} parent=0 // pred_fallthru
    _
  // Predicated region
  $region22: #{tf_gridnet_forward.33} parent=0 // pred_check
    _
  $region23: #{tf_gridnet_forward.33} parent=0 // pred_check_branch
    %1040 = sbr.rel (0) target = $region25
  $region24: #{tf_gridnet_forward.33} parent=0 // pred_region
    _
  $region25: #{tf_gridnet_forward.33} parent=0 // pred_fallthru
    _

// kernel: tf_gridnet_forward.34
$region0: #{tf_gridnet_forward.34}
  #allocation0 [shape = 'u32[]', space=smem, size = 0x4, offset = 0x4, fixed_abs, tag = 'smem constant byte address 0x4 - core index']
  #allocation1 [shape = 'u32[144,128]{1,0:T(1,128)}', space=vmem, size = 0x12000, scoped, tag = 'internal scratch']
  %s0 = inlined_call_operand.vmem [shape: f32[1,8,2312], index: 0, kind: input, shape index: {}]
  %s1 = inlined_call_operand.vmem [shape: f32[1,1,2312], index: 1, kind: input, shape index: {}]
  %s2 = inlined_call_operand.vmem [shape: f32[1,1,2312], index: 2, kind: input, shape index: {}]
  %s3 = inlined_call_operand.vmem [shape: f32[1,8,2312], index: 3, kind: output, shape index: {}]
  %s4 = sld [smem:[#allocation0]]
  $region22: #{tf_gridnet_forward.34} parent=0
    _
  %s6 = ssub.s32 1, %s4
  %s7 = scalar_select 0, %s6, %s4
  // Predicated region
  $region2: #{tf_gridnet_forward.34} parent=0 // pred_check
    _
  $region3: #{tf_gridnet_forward.34} parent=0 // pred_check_branch
    %9 = sbr.rel (0) target = $region5
  $region4: #{tf_gridnet_forward.34} parent=0 // pred_region
    _
  $region5: #{tf_gridnet_forward.34} parent=0 // pred_fallthru
    _
  // Predicated region
  $region6: #{tf_gridnet_forward.34} parent=0 // pred_check
    _
  $region7: #{tf_gridnet_forward.34} parent=0 // pred_check_branch
    %11 = sbr.rel (0) target = $region9
  $region8: #{tf_gridnet_forward.34} parent=0 // pred_region
    _
  $region9: #{tf_gridnet_forward.34} parent=0 // pred_fallthru
    _
  // Predicated region
  $region10: #{tf_gridnet_forward.34} parent=0 // pred_check
    _
  $region11: #{tf_gridnet_forward.34} parent=0 // pred_check_branch
    %13 = sbr.rel (0) target = $region13
  $region12: #{tf_gridnet_forward.34} parent=0 // pred_region
    _
  $region13: #{tf_gridnet_forward.34} parent=0 // pred_fallthru
    _
  %v14 = vld [vmem:[%s0] sm:$0xff]
  %v15 = vld [vmem:[%s0 + $0x8] sm:$0xff]
  %v16 = vld [vmem:[%s0 + $0x10] sm:$0xff]
  %v17 = vld [vmem:[%s0 + $0x18] sm:$0xff]
  %v18 = vld [vmem:[%s0 + $0x20] sm:$0xff]
  %v19 = vld [vmem:[%s0 + $0x28] sm:$0xff]
  %v20 = vld [vmem:[%s0 + $0x30] sm:$0xff]
  %v21 = vld [vmem:[%s0 + $0x38] sm:$0xff]
  %v22 = vld [vmem:[%s0 + $0x40] sm:$0xff]
  %v23 = vld [vmem:[%s0 + $0x48] sm:$0xff]
  %v24 = vld [vmem:[%s0 + $0x50] sm:$0xff]
  %v25 = vld [vmem:[%s0 + $0x58] sm:$0xff]
  %v26 = vld [vmem:[%s0 + $0x60] sm:$0xff]
  %v27 = vld [vmem:[%s0 + $0x68] sm:$0xff]
  %v28 = vld [vmem:[%s0 + $0x70] sm:$0xff]
  %v29 = vld [vmem:[%s0 + $0x78] sm:$0xff]
  %v30 = vld [vmem:[%s0 + $0x80] sm:$0xff]
  %v31 = vld [vmem:[%s0 + $0x88] sm:$0xff]
  %v32 = vld [vmem:[%s0 + $0x90] sm:$0xff]
  %v33 = vadd.f32 %v14, %v15
  %v34 = vadd.f32 %v33, %v16
  %v35 = vadd.f32 %v34, %v17
  %v36 = vadd.f32 %v35, %v18
  %v37 = vadd.f32 %v36, %v19
  %v38 = vadd.f32 %v37, %v20
  %v39 = vadd.f32 %v38, %v21
  %v40 = vadd.f32 %v39, %v22
  %v41 = vadd.f32 %v40, %v23
  %v42 = vadd.f32 %v41, %v24
  %v43 = vadd.f32 %v42, %v25
  %v44 = vadd.f32 %v43, %v26
  %v45 = vadd.f32 %v44, %v27
  %v46 = vadd.f32 %v45, %v28
  %v47 = vadd.f32 %v46, %v29
  %v48 = vadd.f32 %v47, %v30
  %v49 = vadd.f32 %v48, %v31
  %vm50 = vcmask 64512
  %v51 = vsel %vm50, %v32, 0.0
  %v52 = vadd.f32 %v49, %v51
  %53 = vadd.xlane.f32.xlu0 %v52
  %v54 = vpop.xlane.xlu0 %53
  %v55 = vrcp.pop 2312.0
  %v56 = vmul.f32 %v54, %v55
  %v57 = vsub.f32 %v14, %v56
  %v58 = vsub.f32 %v15, %v56
  %v59 = vsub.f32 %v16, %v56
  %v60 = vsub.f32 %v17, %v56
  %v61 = vsub.f32 %v18, %v56
  %v62 = vsub.f32 %v19, %v56
  %v63 = vsub.f32 %v20, %v56
  %v64 = vsub.f32 %v21, %v56
  %v65 = vsub.f32 %v22, %v56
  %v66 = vsub.f32 %v23, %v56
  %v67 = vsub.f32 %v24, %v56
  %v68 = vsub.f32 %v25, %v56
  %v69 = vsub.f32 %v26, %v56
  %v70 = vsub.f32 %v27, %v56
  %v71 = vsub.f32 %v28, %v56
  %v72 = vsub.f32 %v29, %v56
  %v73 = vsub.f32 %v30, %v56
  %v74 = vsub.f32 %v31, %v56
  %v75 = vsub.f32 %v32, %v56
  %v76 = vmul.f32 %v57, %v57
  %v77 = vmul.f32 %v58, %v58
  %v78 = vmul.f32 %v59, %v59
  %v79 = vmul.f32 %v60, %v60
  %v80 = vmul.f32 %v61, %v61
  %v81 = vmul.f32 %v62, %v62
  %v82 = vmul.f32 %v63, %v63
  %v83 = vmul.f32 %v64, %v64
  %v84 = vmul.f32 %v65, %v65
  %v85 = vmul.f32 %v66, %v66
  %v86 = vmul.f32 %v67, %v67
  %v87 = vmul.f32 %v68, %v68
  %v88 = vmul.f32 %v69, %v69
  %v89 = vmul.f32 %v70, %v70
  %v90 = vmul.f32 %v71, %v71
  %v91 = vmul.f32 %v72, %v72
  %v92 = vmul.f32 %v73, %v73
  %v93 = vmul.f32 %v74, %v74
  %v94 = vmul.f32 %v75, %v75
  %v95 = vadd.f32 %v76, %v77
  %v96 = vadd.f32 %v95, %v78
  %v97 = vadd.f32 %v96, %v79
  %v98 = vadd.f32 %v97, %v80
  %v99 = vadd.f32 %v98, %v81
  %v100 = vadd.f32 %v99, %v82
  %v101 = vadd.f32 %v100, %v83
  %v102 = vadd.f32 %v101, %v84
  %v103 = vadd.f32 %v102, %v85
  %v104 = vadd.f32 %v103, %v86
  %v105 = vadd.f32 %v104, %v87
  %v106 = vadd.f32 %v105, %v88
  %v107 = vadd.f32 %v106, %v89
  %v108 = vadd.f32 %v107, %v90
  %v109 = vadd.f32 %v108, %v91
  %v110 = vadd.f32 %v109, %v92
  %v111 = vadd.f32 %v110, %v93
  %v112 = vsel %vm50, %v94, 0.0
  %v113 = vadd.f32 %v111, %v112
  %114 = vadd.xlane.f32.xlu0 %v113
  %v115 = vpop.xlane.xlu0 %114
  %v116 = vmul.f32 %v115, %v55
  %v117 = vadd.f32 %v116, 1e-08
  %v118 = vrsqrt.pop %v117
  %v119 = vmul.f32 %v57, %v118
  %v120 = vmul.f32 %v58, %v118
  %v121 = vmul.f32 %v59, %v118
  %v122 = vmul.f32 %v60, %v118
  %v123 = vmul.f32 %v61, %v118
  %v124 = vmul.f32 %v62, %v118
  %v125 = vmul.f32 %v63, %v118
  %v126 = vmul.f32 %v64, %v118
  %v127 = vmul.f32 %v65, %v118
  %v128 = vmul.f32 %v66, %v118
  %v129 = vmul.f32 %v67, %v118
  %v130 = vmul.f32 %v68, %v118
  %v131 = vmul.f32 %v69, %v118
  %v132 = vmul.f32 %v70, %v118
  %v133 = vmul.f32 %v71, %v118
  %v134 = vmul.f32 %v72, %v118
  %v135 = vmul.f32 %v73, %v118
  %v136 = vmul.f32 %v74, %v118
  %v137 = vmul.f32 %v75, %v118
  %v138 = vld [vmem:[%s1] sm:$0xff]
  %v139 = vld [vmem:[%s1 + $0x8] sm:$0xff]
  %v140 = vld [vmem:[%s1 + $0x10] sm:$0x7]
  %v144 = vlaneseq
  %v145 = vshrl.u32 %v144, 7
  %v146 = vsub.s32 0, %v145
  %v147 = vrot.slane %v138, %v146
  %v148 = vlaneseq
  %v149 = vshrl.u32 %v148, 7
  %v150 = vsub.s32 1, %v149
  %v151 = vrot.slane %v138, %v150
  %v152 = vlaneseq
  %v153 = vshrl.u32 %v152, 7
  %v154 = vsub.s32 2, %v153
  %v155 = vrot.slane %v138, %v154
  %v156 = vlaneseq
  %v157 = vshrl.u32 %v156, 7
  %v158 = vsub.s32 3, %v157
  %v159 = vrot.slane %v138, %v158
  %v160 = vlaneseq
  %v161 = vshrl.u32 %v160, 7
  %v162 = vsub.s32 4, %v161
  %v163 = vrot.slane %v138, %v162
  %v164 = vlaneseq
  %v165 = vshrl.u32 %v164, 7
  %v166 = vsub.s32 5, %v165
  %v167 = vrot.slane %v138, %v166
  %v168 = vlaneseq
  %v169 = vshrl.u32 %v168, 7
  %v170 = vsub.s32 6, %v169
  %v171 = vrot.slane %v138, %v170
  %v172 = vlaneseq
  %v173 = vshrl.u32 %v172, 7
  %v174 = vsub.s32 7, %v173
  %v175 = vrot.slane %v138, %v174
  %v176 = vlaneseq
  %v177 = vshrl.u32 %v176, 7
  %v178 = vsub.s32 0, %v177
  %v179 = vrot.slane %v139, %v178
  %v180 = vlaneseq
  %v181 = vshrl.u32 %v180, 7
  %v182 = vsub.s32 1, %v181
  %v183 = vrot.slane %v139, %v182
  %v184 = vlaneseq
  %v185 = vshrl.u32 %v184, 7
  %v186 = vsub.s32 2, %v185
  %v187 = vrot.slane %v139, %v186
  %v188 = vlaneseq
  %v189 = vshrl.u32 %v188, 7
  %v190 = vsub.s32 3, %v189
  %v191 = vrot.slane %v139, %v190
  %v192 = vlaneseq
  %v193 = vshrl.u32 %v192, 7
  %v194 = vsub.s32 4, %v193
  %v195 = vrot.slane %v139, %v194
  %v196 = vlaneseq
  %v197 = vshrl.u32 %v196, 7
  %v198 = vsub.s32 5, %v197
  %v199 = vrot.slane %v139, %v198
  %v200 = vlaneseq
  %v201 = vshrl.u32 %v200, 7
  %v202 = vsub.s32 6, %v201
  %v203 = vrot.slane %v139, %v202
  %v204 = vlaneseq
  %v205 = vshrl.u32 %v204, 7
  %v206 = vsub.s32 7, %v205
  %v207 = vrot.slane %v139, %v206
  %v208 = vlaneseq
  %v209 = vshrl.u32 %v208, 7
  %v210 = vsub.s32 0, %v209
  %v211 = vrot.slane %v140, %v210
  %v212 = vlaneseq
  %v213 = vshrl.u32 %v212, 7
  %v214 = vsub.s32 1, %v213
  %v215 = vrot.slane %v140, %v214
  %v216 = vlaneseq
  %v217 = vshrl.u32 %v216, 7
  %v218 = vsub.s32 2, %v217
  %v219 = vrot.slane %v140, %v218
  %v239 = vmul.f32 %v119, %v147
  %v240 = vmul.f32 %v120, %v151
  %v241 = vmul.f32 %v121, %v155
  %v242 = vmul.f32 %v122, %v159
  %v243 = vmul.f32 %v123, %v163
  %v244 = vmul.f32 %v124, %v167
  %v245 = vmul.f32 %v125, %v171
  %v246 = vmul.f32 %v126, %v175
  %v247 = vmul.f32 %v127, %v179
  %v248 = vmul.f32 %v128, %v183
  %v249 = vmul.f32 %v129, %v187
  %v250 = vmul.f32 %v130, %v191
  %v251 = vmul.f32 %v131, %v195
  %v252 = vmul.f32 %v132, %v199
  %v253 = vmul.f32 %v133, %v203
  %v254 = vmul.f32 %v134, %v207
  %v255 = vmul.f32 %v135, %v211
  %v256 = vmul.f32 %v136, %v215
  %v257 = vmul.f32 %v137, %v219
  %v258 = vld [vmem:[%s2] sm:$0xff]
  %v259 = vld [vmem:[%s2 + $0x8] sm:$0xff]
  %v260 = vld [vmem:[%s2 + $0x10] sm:$0x7]
  %v264 = vlaneseq
  %v265 = vshrl.u32 %v264, 7
  %v266 = vsub.s32 0, %v265
  %v267 = vrot.slane %v258, %v266
  %v268 = vlaneseq
  %v269 = vshrl.u32 %v268, 7
  %v270 = vsub.s32 1, %v269
  %v271 = vrot.slane %v258, %v270
  %v272 = vlaneseq
  %v273 = vshrl.u32 %v272, 7
  %v274 = vsub.s32 2, %v273
  %v275 = vrot.slane %v258, %v274
  %v276 = vlaneseq
  %v277 = vshrl.u32 %v276, 7
  %v278 = vsub.s32 3, %v277
  %v279 = vrot.slane %v258, %v278
  %v280 = vlaneseq
  %v281 = vshrl.u32 %v280, 7
  %v282 = vsub.s32 4, %v281
  %v283 = vrot.slane %v258, %v282
  %v284 = vlaneseq
  %v285 = vshrl.u32 %v284, 7
  %v286 = vsub.s32 5, %v285
  %v287 = vrot.slane %v258, %v286
  %v288 = vlaneseq
  %v289 = vshrl.u32 %v288, 7
  %v290 = vsub.s32 6, %v289
  %v291 = vrot.slane %v258, %v290
  %v292 = vlaneseq
  %v293 = vshrl.u32 %v292, 7
  %v294 = vsub.s32 7, %v293
  %v295 = vrot.slane %v258, %v294
  %v296 = vlaneseq
  %v297 = vshrl.u32 %v296, 7
  %v298 = vsub.s32 0, %v297
  %v299 = vrot.slane %v259, %v298
  %v300 = vlaneseq
  %v301 = vshrl.u32 %v300, 7
  %v302 = vsub.s32 1, %v301
  %v303 = vrot.slane %v259, %v302
  %v304 = vlaneseq
  %v305 = vshrl.u32 %v304, 7
  %v306 = vsub.s32 2, %v305
  %v307 = vrot.slane %v259, %v306
  %v308 = vlaneseq
  %v309 = vshrl.u32 %v308, 7
  %v310 = vsub.s32 3, %v309
  %v311 = vrot.slane %v259, %v310
  %v312 = vlaneseq
  %v313 = vshrl.u32 %v312, 7
  %v314 = vsub.s32 4, %v313
  %v315 = vrot.slane %v259, %v314
  %v316 = vlaneseq
  %v317 = vshrl.u32 %v316, 7
  %v318 = vsub.s32 5, %v317
  %v319 = vrot.slane %v259, %v318
  %v320 = vlaneseq
  %v321 = vshrl.u32 %v320, 7
  %v322 = vsub.s32 6, %v321
  %v323 = vrot.slane %v259, %v322
  %v324 = vlaneseq
  %v325 = vshrl.u32 %v324, 7
  %v326 = vsub.s32 7, %v325
  %v327 = vrot.slane %v259, %v326
  %v328 = vlaneseq
  %v329 = vshrl.u32 %v328, 7
  %v330 = vsub.s32 0, %v329
  %v331 = vrot.slane %v260, %v330
  %v332 = vlaneseq
  %v333 = vshrl.u32 %v332, 7
  %v334 = vsub.s32 1, %v333
  %v335 = vrot.slane %v260, %v334
  %v336 = vlaneseq
  %v337 = vshrl.u32 %v336, 7
  %v338 = vsub.s32 2, %v337
  %v339 = vrot.slane %v260, %v338
  %v359 = vadd.f32 %v239, %v267
  %v360 = vadd.f32 %v240, %v271
  %v361 = vadd.f32 %v241, %v275
  %v362 = vadd.f32 %v242, %v279
  %v363 = vadd.f32 %v243, %v283
  %v364 = vadd.f32 %v244, %v287
  %v365 = vadd.f32 %v245, %v291
  %v366 = vadd.f32 %v246, %v295
  %v367 = vadd.f32 %v247, %v299
  %v368 = vadd.f32 %v248, %v303
  %v369 = vadd.f32 %v249, %v307
  %v370 = vadd.f32 %v250, %v311
  %v371 = vadd.f32 %v251, %v315
  %v372 = vadd.f32 %v252, %v319
  %v373 = vadd.f32 %v253, %v323
  %v374 = vadd.f32 %v254, %v327
  %v375 = vadd.f32 %v255, %v331
  %v376 = vadd.f32 %v256, %v335
  %v377 = vadd.f32 %v257, %v339
  %378 = vst [vmem:[%s3] sm:$0xff] %v359
  %379 = vst [vmem:[%s3 + $0x8] sm:$0xff] %v360
  %380 = vst [vmem:[%s3 + $0x10] sm:$0xff] %v361
  %381 = vst [vmem:[%s3 + $0x18] sm:$0xff] %v362
  %382 = vst [vmem:[%s3 + $0x20] sm:$0xff] %v363
  %383 = vst [vmem:[%s3 + $0x28] sm:$0xff] %v364
  %384 = vst [vmem:[%s3 + $0x30] sm:$0xff] %v365
  %385 = vst [vmem:[%s3 + $0x38] sm:$0xff] %v366
  %386 = vst [vmem:[%s3 + $0x40] sm:$0xff] %v367
  %387 = vst [vmem:[%s3 + $0x48] sm:$0xff] %v368
  %388 = vst [vmem:[%s3 + $0x50] sm:$0xff] %v369
  %389 = vst [vmem:[%s3 + $0x58] sm:$0xff] %v370
  %390 = vst [vmem:[%s3 + $0x60] sm:$0xff] %v371
  %391 = vst [vmem:[%s3 + $0x68] sm:$0xff] %v372
  %392 = vst [vmem:[%s3 + $0x70] sm:$0xff] %v373
  %393 = vst [vmem:[%s3 + $0x78] sm:$0xff] %v374
  %394 = vst [vmem:[%s3 + $0x80] sm:$0xff] %v375
  %395 = vst [vmem:[%s3 + $0x88] sm:$0xff] %v376
  %396 = vst.msk [vmem:[%s3 + $0x90] sm:$0xff] %vm50, %v377
  // Predicated region
  $region14: #{tf_gridnet_forward.34} parent=0 // pred_check
    _
  $region15: #{tf_gridnet_forward.34} parent=0 // pred_check_branch
    %398 = sbr.rel (0) target = $region17
  $region16: #{tf_gridnet_forward.34} parent=0 // pred_region
    _
  $region17: #{tf_gridnet_forward.34} parent=0 // pred_fallthru
    _
  // Predicated region
  $region18: #{tf_gridnet_forward.34} parent=0 // pred_check
    _
  $region19: #{tf_gridnet_forward.34} parent=0 // pred_check_branch
    %400 = sbr.rel (0) target = $region21
  $region20: #{tf_gridnet_forward.34} parent=0 // pred_region
    _
  $region21: #{tf_gridnet_forward.34} parent=0 // pred_fallthru
    _

// kernel: tf_gridnet_forward.35
$region0: #{tf_gridnet_forward.35}
  #allocation0 [shape = 'u32[]', space=smem, size = 0x4, offset = 0x4, fixed_abs, tag = 'smem constant byte address 0x4 - core index']
  #allocation1 [shape = 'u32[144,128]{1,0:T(1,128)}', space=vmem, size = 0x12000, scoped, tag = 'internal scratch']
  %s0 = inlined_call_operand.vmem [shape: f32[2,8,400], index: 0, kind: input, shape index: {}]
  %s1 = inlined_call_operand.vmem [shape: f32[1,8,1], index: 1, kind: input, shape index: {}]
  %s2 = inlined_call_operand.vmem [shape: f32[1,8,1], index: 2, kind: input, shape index: {}]
  %s3 = inlined_call_operand.vmem [shape: bf16[2,8,400], index: 3, kind: output, shape index: {}]
  %s4 = sld [smem:[#allocation0]]
  $region45: #{tf_gridnet_forward.35} parent=0
    _
  %s6 = ssub.s32 1, %s4
  %s7 = scalar_select 0, %s6, %s4
  loop: start=0, step=1, limit=4
  $region2: #{tf_gridnet_forward.35} parent=0 // loop_pre_header
    _
  $region3: #{tf_gridnet_forward.35} parent=0 // loop_header
    %s9 = sphi 0, %s13
    %p10 = scmp.ge.s32.totalorder %s9, 4
    %s16 = sphi 0, %s28
    %s17 = sphi 0, %s24
    %s18 = sphi 0, %s16
    %s19 = sphi 0, %s17
    %s20 = sphi 0, %s18
    %s21 = sphi 0, %s19
    %s33 = sphi 0, %s35
    %s36 = sphi 0, %s33
    %s37 = sphi 0, %s36
    %s53 = sphi 0, %s37
    %s57 = sphi 0, %s57
    %s59 = sphi 0, %s57
    %s60 = sphi 0, %s59
    %s74 = sphi 0, %s60
    %s78 = sphi 0, %s78
    %s80 = sphi 0, %s78
    %s81 = sphi 0, %s80
    %s95 = sphi 0, %s81
    %s103 = sphi 0, %s105
    %s106 = sphi 0, %s103
    %s107 = sphi 0, %s106
    %s123 = sphi 0, %s107
  $region4: #{tf_gridnet_forward.35} parent=0 // loop_header_branch
    %12 = sbr.rel (%p10) target = $region8
  $region5: #{tf_gridnet_forward.35} parent=0 // loop_body
    %s14 = ssub.s32 %s9, 1
    %s15 = ssub.s32 %s9, 2
    %s22 = sadd.s32 1, %s17
    %p23 = scmp.ge.s32.totalorder %s22, 1
    %s24 = scalar_select %p23, 0, %s22
    %s25 = sadd.s32 1, %s16
    %s26 = scalar_select %p23, %s25, %s16
    %p27 = scmp.ge.s32.totalorder %s26, 2
    %s28 = scalar_select %p27, 0, %s26
    %s29 = ssub.s32 %s16, %s28
    %s30 = ssub.s32 %s17, %s24
    %s31 = sor.u32 %s29, %s30
    %p32 = scmp.eq.s32.totalorder %s31, 0
    %s34 = sadd.s32 %s33, 1
    %s35 = scalar_select %p32, %s33, %s34
    %p38 = pneg %p32
    %p39 = scmp.eq.s32.totalorder %s9, 1
    %p40 = por %p38, %p39
    %p41 = scmp.ne.s32.totalorder %s33, %s36
    %p42 = scmp.eq.s32.totalorder %s9, 0
    %p43 = por %p41, %p42
    %p44 = scmp.ne.s32.totalorder %s33, %s36
    %p45 = scmp.eq.s32.totalorder %s14, 1
    %p46 = por %p44, %p45
    %p47 = scmp.ne.s32.totalorder %s36, %s37
    %p48 = scmp.eq.s32.totalorder %s14, 0
    %p49 = por %p47, %p48
    %p50 = scmp.ne.s32.totalorder %s36, %s37
    %p51 = scmp.eq.s32.totalorder %s15, 1
    %p52 = por %p50, %p51
    %p54 = scmp.ne.s32.totalorder %s37, %s53
    %p55 = scmp.eq.s32.totalorder %s15, 0
    %p56 = por %p54, %p55
    %s58 = sadd.s32 %s57, 1
    %p61 = scmp.eq.s32.totalorder %s9, 1
    %p62 = scmp.ne.s32.totalorder %s57, %s59
    %p63 = scmp.eq.s32.totalorder %s9, 0
    %p64 = por %p62, %p63
    %p65 = scmp.ne.s32.totalorder %s57, %s59
    %p66 = scmp.eq.s32.totalorder %s14, 1
    %p67 = por %p65, %p66
    %p68 = scmp.ne.s32.totalorder %s59, %s60
    %p69 = scmp.eq.s32.totalorder %s14, 0
    %p70 = por %p68, %p69
    %p71 = scmp.ne.s32.totalorder %s59, %s60
    %p72 = scmp.eq.s32.totalorder %s15, 1
    %p73 = por %p71, %p72
    %p75 = scmp.ne.s32.totalorder %s60, %s74
    %p76 = scmp.eq.s32.totalorder %s15, 0
    %p77 = por %p75, %p76
    %s79 = sadd.s32 %s78, 1
    %p82 = scmp.eq.s32.totalorder %s9, 1
    %p83 = scmp.ne.s32.totalorder %s78, %s80
    %p84 = scmp.eq.s32.totalorder %s9, 0
    %p85 = por %p83, %p84
    %p86 = scmp.ne.s32.totalorder %s78, %s80
    %p87 = scmp.eq.s32.totalorder %s14, 1
    %p88 = por %p86, %p87
    %p89 = scmp.ne.s32.totalorder %s80, %s81
    %p90 = scmp.eq.s32.totalorder %s14, 0
    %p91 = por %p89, %p90
    %p92 = scmp.ne.s32.totalorder %s80, %s81
    %p93 = scmp.eq.s32.totalorder %s15, 1
    %p94 = por %p92, %p93
    %p96 = scmp.ne.s32.totalorder %s81, %s95
    %p97 = scmp.eq.s32.totalorder %s15, 0
    %p98 = por %p96, %p97
    %s99 = ssub.s32 %s16, %s28
    %s100 = ssub.s32 %s17, %s24
    %s101 = sor.u32 %s99, %s100
    %p102 = scmp.eq.s32.totalorder %s101, 0
    %s104 = sadd.s32 %s103, 1
    %s105 = scalar_select %p102, %s103, %s104
    %p108 = pneg %p102
    %p109 = scmp.eq.s32.totalorder %s9, 1
    %p110 = por %p108, %p109
    %p111 = scmp.ne.s32.totalorder %s103, %s106
    %p112 = scmp.eq.s32.totalorder %s9, 0
    %p113 = por %p111, %p112
    %p114 = scmp.ne.s32.totalorder %s103, %s106
    %p115 = scmp.eq.s32.totalorder %s14, 1
    %p116 = por %p114, %p115
    %p117 = scmp.ne.s32.totalorder %s106, %s107
    %p118 = scmp.eq.s32.totalorder %s14, 0
    %p119 = por %p117, %p118
    %p120 = scmp.ne.s32.totalorder %s106, %s107
    %p121 = scmp.eq.s32.totalorder %s15, 1
    %p122 = por %p120, %p121
    %p124 = scmp.ne.s32.totalorder %s107, %s123
    %p125 = scmp.eq.s32.totalorder %s15, 0
    %p126 = por %p124, %p125
    %p127 = scmp.le.s32.totalorder 1, %s9
    %p128 = scmp.lt.s32.totalorder %s9, 3
    %p129 = pnand %p127, %p128
    %p130 = pneg %p129
    // Predicated region
    $region9: #{tf_gridnet_forward.35} parent=5 // pred_check
      _
    $region10: #{tf_gridnet_forward.35} parent=5 // pred_check_branch
      %132 = sbr.rel (%p129) target = $region12
    $region11: #{tf_gridnet_forward.35} parent=5 // pred_region
      %s133 = ssub.s32 %s9, 1
      // Predicated region
      $region13: #{tf_gridnet_forward.35} parent=11 // pred_check
        %p134 = pneg %p70
      $region14: #{tf_gridnet_forward.35} parent=11 // pred_check_branch
        %136 = sbr.rel (%p134) target = $region16
      $region15: #{tf_gridnet_forward.35} parent=11 // pred_region
        _
      $region16: #{tf_gridnet_forward.35} parent=11 // pred_fallthru
        _
      // Predicated region
      $region17: #{tf_gridnet_forward.35} parent=11 // pred_check
        %p137 = pneg %p91
      $region18: #{tf_gridnet_forward.35} parent=11 // pred_check_branch
        %139 = sbr.rel (%p137) target = $region20
      $region19: #{tf_gridnet_forward.35} parent=11 // pred_region
        _
      $region20: #{tf_gridnet_forward.35} parent=11 // pred_fallthru
        _
    $region12: #{tf_gridnet_forward.35} parent=5 // pred_fallthru
      _
    %p140 = scmp.lt.s32.totalorder %s9, 2
    // Predicated region
    $region21: #{tf_gridnet_forward.35} parent=5 // pred_check
      %p141 = pneg %p140
    $region22: #{tf_gridnet_forward.35} parent=5 // pred_check_branch
      %143 = sbr.rel (%p141) target = $region24
    $region23: #{tf_gridnet_forward.35} parent=5 // pred_region
      // Predicated region
      $region25: #{tf_gridnet_forward.35} parent=23 // pred_check
        %p144 = pneg %p43
      $region26: #{tf_gridnet_forward.35} parent=23 // pred_check_branch
        %146 = sbr.rel (%p144) target = $region28
      $region27: #{tf_gridnet_forward.35} parent=23 // pred_region
        %s147 = smul.u32 4, %s17
        %p148 = scmp.lt.s32.totalorder %s16, 1
        %s149 = scalar_select %p148, %s16, 1
        %p150 = scmp.lt.s32.totalorder %s147, 3
        %s151 = scalar_select %p150, %s147, 3
        %s152 = smul.addr %s149, 4
        %s153 = sadd.s32 %s151, %s152
        %s154 = smul.addr %s153, 8
        %s155 = scalar_lea.vmem %s0, %s154
        %s156 = smul.u32 4, %s17
      $region28: #{tf_gridnet_forward.35} parent=23 // pred_fallthru
        _
    $region24: #{tf_gridnet_forward.35} parent=5 // pred_fallthru
      _
    %p157 = scmp.le.s32.totalorder 1, %s9
    %p158 = scmp.lt.s32.totalorder %s9, 3
    %p159 = pnand %p157, %p158
    %p160 = pneg %p159
    // Predicated region
    $region29: #{tf_gridnet_forward.35} parent=5 // pred_check
      _
    $region30: #{tf_gridnet_forward.35} parent=5 // pred_check_branch
      %162 = sbr.rel (%p159) target = $region32
    $region31: #{tf_gridnet_forward.35} parent=5 // pred_region
      %s163 = ssub.s32 %s9, 1
      %s164 = smul.u32 4, %s19
      %p165 = scmp.lt.s32.totalorder %s18, 1
      %s166 = scalar_select %p165, %s18, 1
      %p167 = scmp.lt.s32.totalorder %s164, 3
      %s168 = scalar_select %p167, %s164, 3
      %s169 = smul.addr %s166, 4
      %s170 = sadd.s32 %s168, %s169
      %s171 = smul.addr %s170, 8
      %s172 = scalar_lea.vmem %s0, %s171
      %p173 = pneg %p49
      %p174 = pneg %p46
      %p175 = pneg %p70
      %p176 = pneg %p67
      %p177 = pneg %p91
      %p178 = pneg %p88
      %p179 = pneg %p119
      %p180 = pneg %p116
      %s181 = smul.u32 4, %s19
      %p182 = scmp.lt.s32.totalorder %s18, 1
      %s183 = scalar_select %p182, %s18, 1
      %p184 = scmp.lt.s32.totalorder %s181, 3
      %s185 = scalar_select %p184, %s181, 3
      %s186 = smul.addr %s183, 4
      %s187 = sadd.s32 %s185, %s186
      %s188 = smul.addr %s187, 4
      %s189 = scalar_lea.vmem %s3, %s188
      %s190 = smul.u32 4, %s19
      %p191 = scmp.lt.s32.totalorder %s18, 1
      %s192 = scalar_select %p191, %s18, 1
      %p193 = scmp.lt.s32.totalorder %s190, 3
      %s194 = scalar_select %p193, %s190, 3
      %s195 = smul.addr %s192, 4
      %s196 = sadd.s32 %s194, %s195
      %s197 = smul.addr %s196, 8
      %s198 = scalar_lea.vmem %s0, %s197
      %s199 = smul.u32 4, %s19
      %s200 = smul.u32 4, %s19
      %p201 = scmp.lt.s32.totalorder %s18, 1
      %s202 = scalar_select %p201, %s18, 1
      %p203 = scmp.lt.s32.totalorder %s200, 3
      %s204 = scalar_select %p203, %s200, 3
      %s205 = smul.addr %s202, 4
      %s206 = sadd.s32 %s204, %s205
      %s207 = smul.addr %s206, 4
      %s208 = scalar_lea.vmem %s3, %s207
      %s209 = smul.u32 4, %s19
      %v210 = vld [vmem:[%s198] sm:$0xff]
      %v211 = vld [vmem:[%s198 + $0x8] sm:$0xff]
      %v212 = vld [vmem:[%s198 + $0x10] sm:$0xff]
      %v213 = vld [vmem:[%s198 + $0x18] sm:$0xff]
      %v214 = vrot.slane %v210, 4
      %v215 = vadd.f32 %v210, %v214
      %v216 = vrot.slane %v215, 2
      %v217 = vadd.f32 %v215, %v216
      %v218 = vrot.slane %v217, 1
      %v219 = vadd.f32 %v217, %v218
      %v220 = vrot.slane %v211, 4
      %v221 = vadd.f32 %v211, %v220
      %v222 = vrot.slane %v221, 2
      %v223 = vadd.f32 %v221, %v222
      %v224 = vrot.slane %v223, 1
      %v225 = vadd.f32 %v223, %v224
      %v226 = vrot.slane %v212, 4
      %v227 = vadd.f32 %v212, %v226
      %v228 = vrot.slane %v227, 2
      %v229 = vadd.f32 %v227, %v228
      %v230 = vrot.slane %v229, 1
      %v231 = vadd.f32 %v229, %v230
      %vm232 = vcmask 130048
      %v233 = vsel %vm232, %v213, 0.0
      %v234 = vrot.slane %v233, 4
      %v235 = vadd.f32 %v233, %v234
      %v236 = vrot.slane %v235, 2
      %v237 = vadd.f32 %v235, %v236
      %v238 = vrot.slane %v237, 1
      %v239 = vadd.f32 %v237, %v238
      %v240 = vrcp.pop 8.0
      %v241 = vmul.f32 %v219, %v240
      %v242 = vmul.f32 %v225, %v240
      %v243 = vmul.f32 %v231, %v240
      %v244 = vmul.f32 %v239, %v240
      %v245 = vsub.f32 %v210, %v241
      %v246 = vsub.f32 %v211, %v242
      %v247 = vsub.f32 %v212, %v243
      %v248 = vsub.f32 %v213, %v244
      %v249 = vmul.f32 %v245, %v245
      %v250 = vmul.f32 %v246, %v246
      %v251 = vmul.f32 %v247, %v247
      %v252 = vmul.f32 %v248, %v248
      %v253 = vrot.slane %v249, 4
      %v254 = vadd.f32 %v249, %v253
      %v255 = vrot.slane %v254, 2
      %v256 = vadd.f32 %v254, %v255
      %v257 = vrot.slane %v256, 1
      %v258 = vadd.f32 %v256, %v257
      %v259 = vrot.slane %v250, 4
      %v260 = vadd.f32 %v250, %v259
      %v261 = vrot.slane %v260, 2
      %v262 = vadd.f32 %v260, %v261
      %v263 = vrot.slane %v262, 1
      %v264 = vadd.f32 %v262, %v263
      %v265 = vrot.slane %v251, 4
      %v266 = vadd.f32 %v251, %v265
      %v267 = vrot.slane %v266, 2
      %v268 = vadd.f32 %v266, %v267
      %v269 = vrot.slane %v268, 1
      %v270 = vadd.f32 %v268, %v269
      %v271 = vsel %vm232, %v252, 0.0
      %v272 = vrot.slane %v271, 4
      %v273 = vadd.f32 %v271, %v272
      %v274 = vrot.slane %v273, 2
      %v275 = vadd.f32 %v273, %v274
      %v276 = vrot.slane %v275, 1
      %v277 = vadd.f32 %v275, %v276
      %v278 = vmul.f32 %v258, %v240
      %v279 = vmul.f32 %v264, %v240
      %v280 = vmul.f32 %v270, %v240
      %v281 = vmul.f32 %v277, %v240
      %v282 = vadd.f32 %v278, 1e-05
      %v283 = vadd.f32 %v279, 1e-05
      %v284 = vadd.f32 %v280, 1e-05
      %v285 = vadd.f32 %v281, 1e-05
      %v286 = vrsqrt.pop %v282
      %v287 = vrsqrt.pop %v283
      %v288 = vrsqrt.pop %v284
      %v289 = vrsqrt.pop %v285
      %v290 = vmul.f32 %v245, %v286
      %v291 = vmul.f32 %v246, %v287
      %v292 = vmul.f32 %v247, %v288
      %v293 = vmul.f32 %v248, %v289
      %v294 = vld [vmem:[%s1] sm:$0xff]
      %296 = vset.pattern.permute.xlu0 0
      %297 = vperm.xlu0 %296, %v294
      %v298 = vpop.permute.xlu0 %297
      %v300 = vmul.f32 %v290, %v298
      %v301 = vmul.f32 %v291, %v298
      %v302 = vmul.f32 %v292, %v298
      %v303 = vmul.f32 %v293, %v298
      %v304 = vld [vmem:[%s2] sm:$0xff]
      %306 = vset.pattern.permute.xlu0 0
      %307 = vperm.xlu0 %306, %v304
      %v308 = vpop.permute.xlu0 %307
      %v310 = vadd.f32 %v300, %v308
      %v311 = vadd.f32 %v301, %v308
      %v312 = vadd.f32 %v302, %v308
      %v313 = vadd.f32 %v303, %v308
      %v314 = vpack.c.bf16 %v310, %v310
      %v315 = vpack.c.bf16 %v311, %v311
      %v316 = vpack.c.bf16 %v312, %v312
      %v317 = vpack.c.bf16 %v313, %v313
      %v322 = vunpack.c.l.b16 %v314
      %v323 = vunpack.c.l.b16 %v315
      %v324 = vunpack.c.l.b16 %v316
      %v325 = vunpack.c.l.b16 %v317
      %v326 = vpack.c.b16 %v323, %v322
      %v327 = vpack.c.b16 %v325, %v324
      %330 = vst [vmem:[%s208] sm:$0xff] %v326
      %vm331 = vcmask 1043456
      %vm332 = vcmask 130052
      %vm333 = vmor %vm332, %vm331
      %334 = vst.msk [vmem:[%s208 + $0x8] sm:$0xff] %vm333, %v327
      %s335 = smul.u32 4, %s19
      %p336 = scmp.lt.s32.totalorder %s18, 1
      %s337 = scalar_select %p336, %s18, 1
      %p338 = scmp.lt.s32.totalorder %s335, 3
      %s339 = scalar_select %p338, %s335, 3
      %s340 = smul.addr %s337, 4
      %s341 = sadd.s32 %s339, %s340
      %s342 = smul.addr %s341, 4
      %s343 = scalar_lea.vmem %s3, %s342
      // Predicated region
      $region33: #{tf_gridnet_forward.35} parent=31 // pred_check
        %p344 = pneg %p116
      $region34: #{tf_gridnet_forward.35} parent=31 // pred_check_branch
        %346 = sbr.rel (%p344) target = $region36
      $region35: #{tf_gridnet_forward.35} parent=31 // pred_region
        %s347 = smul.u32 4, %s19
      $region36: #{tf_gridnet_forward.35} parent=31 // pred_fallthru
        _
    $region32: #{tf_gridnet_forward.35} parent=5 // pred_fallthru
      _
    %p348 = scmp.le.s32.totalorder 2, %s9
    // Predicated region
    $region37: #{tf_gridnet_forward.35} parent=5 // pred_check
      %p349 = pneg %p348
    $region38: #{tf_gridnet_forward.35} parent=5 // pred_check_branch
      %351 = sbr.rel (%p349) target = $region40
    $region39: #{tf_gridnet_forward.35} parent=5 // pred_region
      %s352 = ssub.s32 %s9, 2
      // Predicated region
      $region41: #{tf_gridnet_forward.35} parent=39 // pred_check
        %p353 = pneg %p122
      $region42: #{tf_gridnet_forward.35} parent=39 // pred_check_branch
        %355 = sbr.rel (%p353) target = $region44
      $region43: #{tf_gridnet_forward.35} parent=39 // pred_region
        %s356 = smul.u32 4, %s21
        %p357 = scmp.lt.s32.totalorder %s20, 1
        %s358 = scalar_select %p357, %s20, 1
        %p359 = scmp.lt.s32.totalorder %s356, 3
        %s360 = scalar_select %p359, %s356, 3
        %s361 = smul.addr %s358, 4
        %s362 = sadd.s32 %s360, %s361
        %s363 = smul.addr %s362, 4
        %s364 = scalar_lea.vmem %s3, %s363
      $region44: #{tf_gridnet_forward.35} parent=39 // pred_fallthru
        _
    $region40: #{tf_gridnet_forward.35} parent=5 // pred_fallthru
      _
  $region6: #{tf_gridnet_forward.35} parent=0 // loop_footer
    %s13 = sadd.s32 1, %s9
  $region7: #{tf_gridnet_forward.35} parent=0 // loop_footer_branch
    %8 = sbr.rel target = $region3
  $region8: #{tf_gridnet_forward.35} parent=0 // loop_exit
    _

// kernel: tf_gridnet_forward.37
$region0: #{tf_gridnet_forward.37}
  #allocation0 [shape = 'u32[]', space=smem, size = 0x4, offset = 0x4, fixed_abs, tag = 'smem constant byte address 0x4 - core index']
  #allocation1 [shape = 'u32[144,128]{1,0:T(1,128)}', space=vmem, size = 0x12000, scoped, tag = 'internal scratch']
  #allocation2 [shape = 'f32[40,128]{1,0:T(8,128)}', space=vmem, size = 0x5000, scoped, tag = 'scratch operand']
  #allocation3 [shape = 'f32[40,128]{1,0:T(8,128)}', space=vmem, size = 0x5000, scoped, tag = 'scratch operand']
  %s0 = inlined_call_operand.vmem [shape: bf16[5,40,1024], index: 0, kind: input, shape index: {}]
  %s1 = inlined_call_operand.vmem [shape: bf16[128,1024], index: 1, kind: input, shape index: {}]
  %s2 = inlined_call_operand.vmem [shape: bf16[5,40,256], index: 2, kind: output, shape index: {}]
  %s3 = sld [smem:[#allocation0]]
  $region135: #{tf_gridnet_forward.37} parent=0
    _
  %s5 = ssub.s32 1, %s3
  %s6 = scalar_select 0, %s5, %s3
  $region1: #{tf_gridnet_forward.37} parent=0
    #allocation4 [shape = 'u8[409600]{0}', space=vmem, size = 0x64000, scoped, tag = 'input window, operand 0']
    #allocation5 [shape = 'u8[262144]{0}', space=vmem, size = 0x40000, scoped, tag = 'input window, operand 1']
    #allocation6 [shape = 'u8[102400]{0}', space=vmem, size = 0x19000, scoped, tag = 'output window, operand 0']
    loop: start=0, step=1, limit=4
    $region2: #{tf_gridnet_forward.37} parent=1 // loop_pre_header
      _
    $region3: #{tf_gridnet_forward.37} parent=1 // loop_header
      %s8 = sphi 0, %s12
      %p9 = scmp.ge.s32.totalorder %s8, 4
      %s15 = sphi 0, %s34
      %s16 = sphi 0, %s30
      %s17 = sphi 0, %s26
      %s18 = sphi 0, %s15
      %s19 = sphi 0, %s16
      %s20 = sphi 0, %s17
      %s21 = sphi 0, %s18
      %s22 = sphi 0, %s19
      %s23 = sphi 0, %s20
      %s49 = sphi 0, %s51
      %s52 = sphi 0, %s49
      %s53 = sphi 0, %s52
      %s69 = sphi 0, %s53
      %s75 = sphi 0, %s77
      %s78 = sphi 0, %s75
      %s79 = sphi 0, %s78
      %s95 = sphi 0, %s79
      %s113 = sphi 0, %s115
      %s116 = sphi 0, %s113
      %s117 = sphi 0, %s116
      %s133 = sphi 0, %s117
    $region4: #{tf_gridnet_forward.37} parent=1 // loop_header_branch
      %11 = sbr.rel (%p9) target = $region8
    $region5: #{tf_gridnet_forward.37} parent=1 // loop_body
      %s13 = ssub.s32 %s8, 1
      %s14 = ssub.s32 %s8, 2
      %s24 = sadd.s32 1, %s17
      %p25 = scmp.ge.s32.totalorder %s24, 1
      %s26 = scalar_select %p25, 0, %s24
      %s27 = sadd.s32 1, %s16
      %s28 = scalar_select %p25, %s27, %s16
      %p29 = scmp.ge.s32.totalorder %s28, 1
      %s30 = scalar_select %p29, 0, %s28
      %s31 = sadd.s32 1, %s15
      %s32 = scalar_select %p29, %s31, %s15
      %p33 = scmp.ge.s32.totalorder %s32, 2
      %s34 = scalar_select %p33, 0, %s32
      %s35 = smul.u32 %s17, 2
      %s36 = ssub.s32 0, %s35
      %s37 = smul.u32 %s15, %s36
      %s38 = sadd.s32 %s17, %s37
      %s39 = smul.u32 %s26, 2
      %s40 = ssub.s32 0, %s39
      %s41 = smul.u32 %s34, %s40
      %s42 = sadd.s32 %s26, %s41
      %s43 = ssub.s32 %s38, %s42
      %s44 = ssub.s32 %s16, %s30
      %s45 = sor.u32 %s43, %s44
      %s46 = ssub.s32 %s15, %s34
      %s47 = sor.u32 %s45, %s46
      %p48 = scmp.eq.s32.totalorder %s47, 0
      %s50 = sadd.s32 %s49, 1
      %s51 = scalar_select %p48, %s49, %s50
      %p54 = pneg %p48
      %p55 = scmp.eq.s32.totalorder %s8, 1
      %p56 = por %p54, %p55
      %p57 = scmp.ne.s32.totalorder %s49, %s52
      %p58 = scmp.eq.s32.totalorder %s8, 0
      %p59 = por %p57, %p58
      %p60 = scmp.ne.s32.totalorder %s49, %s52
      %p61 = scmp.eq.s32.totalorder %s13, 1
      %p62 = por %p60, %p61
      %p63 = scmp.ne.s32.totalorder %s52, %s53
      %p64 = scmp.eq.s32.totalorder %s13, 0
      %p65 = por %p63, %p64
      %p66 = scmp.ne.s32.totalorder %s52, %s53
      %p67 = scmp.eq.s32.totalorder %s14, 1
      %p68 = por %p66, %p67
      %p70 = scmp.ne.s32.totalorder %s53, %s69
      %p71 = scmp.eq.s32.totalorder %s14, 0
      %p72 = por %p70, %p71
      %s73 = ssub.s32 %s15, %s34
      %p74 = scmp.eq.s32.totalorder %s73, 0
      %s76 = sadd.s32 %s75, 1
      %s77 = scalar_select %p74, %s75, %s76
      %p80 = pneg %p74
      %p81 = scmp.eq.s32.totalorder %s8, 1
      %p82 = por %p80, %p81
      %p83 = scmp.ne.s32.totalorder %s75, %s78
      %p84 = scmp.eq.s32.totalorder %s8, 0
      %p85 = por %p83, %p84
      %p86 = scmp.ne.s32.totalorder %s75, %s78
      %p87 = scmp.eq.s32.totalorder %s13, 1
      %p88 = por %p86, %p87
      %p89 = scmp.ne.s32.totalorder %s78, %s79
      %p90 = scmp.eq.s32.totalorder %s13, 0
      %p91 = por %p89, %p90
      %p92 = scmp.ne.s32.totalorder %s78, %s79
      %p93 = scmp.eq.s32.totalorder %s14, 1
      %p94 = por %p92, %p93
      %p96 = scmp.ne.s32.totalorder %s79, %s95
      %p97 = scmp.eq.s32.totalorder %s14, 0
      %p98 = por %p96, %p97
      %s99 = smul.u32 %s17, 2
      %s100 = ssub.s32 0, %s99
      %s101 = smul.u32 %s15, %s100
      %s102 = sadd.s32 %s17, %s101
      %s103 = smul.u32 %s26, 2
      %s104 = ssub.s32 0, %s103
      %s105 = smul.u32 %s34, %s104
      %s106 = sadd.s32 %s26, %s105
      %s107 = ssub.s32 %s102, %s106
      %s108 = ssub.s32 %s16, %s30
      %s109 = sor.u32 %s107, %s108
      %s110 = ssub.s32 %s15, %s34
      %s111 = sor.u32 %s109, %s110
      %p112 = scmp.eq.s32.totalorder %s111, 0
      %s114 = sadd.s32 %s113, 1
      %s115 = scalar_select %p112, %s113, %s114
      %p118 = pneg %p112
      %p119 = scmp.eq.s32.totalorder %s8, 1
      %p120 = por %p118, %p119
      %p121 = scmp.ne.s32.totalorder %s113, %s116
      %p122 = scmp.eq.s32.totalorder %s8, 0
      %p123 = por %p121, %p122
      %p124 = scmp.ne.s32.totalorder %s113, %s116
      %p125 = scmp.eq.s32.totalorder %s13, 1
      %p126 = por %p124, %p125
      %p127 = scmp.ne.s32.totalorder %s116, %s117
      %p128 = scmp.eq.s32.totalorder %s13, 0
      %p129 = por %p127, %p128
      %p130 = scmp.ne.s32.totalorder %s116, %s117
      %p131 = scmp.eq.s32.totalorder %s14, 1
      %p132 = por %p130, %p131
      %p134 = scmp.ne.s32.totalorder %s117, %s133
      %p135 = scmp.eq.s32.totalorder %s14, 0
      %p136 = por %p134, %p135
      %p137 = scmp.le.s32.totalorder 1, %s8
      %p138 = scmp.lt.s32.totalorder %s8, 3
      %p139 = pnand %p137, %p138
      %p140 = pneg %p139
      // Predicated region
      $region9: #{tf_gridnet_forward.37} parent=5 // pred_check
        _
      $region10: #{tf_gridnet_forward.37} parent=5 // pred_check_branch
        %142 = sbr.rel (%p139) target = $region12
      $region11: #{tf_gridnet_forward.37} parent=5 // pred_region
        %s143 = ssub.s32 %s8, 1
      $region12: #{tf_gridnet_forward.37} parent=5 // pred_fallthru
        _
      %p144 = scmp.lt.s32.totalorder %s8, 2
      // Predicated region
      $region13: #{tf_gridnet_forward.37} parent=5 // pred_check
        %p145 = pneg %p144
      $region14: #{tf_gridnet_forward.37} parent=5 // pred_check_branch
        %147 = sbr.rel (%p145) target = $region16
      $region15: #{tf_gridnet_forward.37} parent=5 // pred_region
        // Predicated region
        $region17: #{tf_gridnet_forward.37} parent=15 // pred_check
          %p148 = pneg %p59
        $region18: #{tf_gridnet_forward.37} parent=15 // pred_check_branch
          %150 = sbr.rel (%p148) target = $region20
        $region19: #{tf_gridnet_forward.37} parent=15 // pred_region
          %s151 = sand.u32 %s49, 1
          %s152 = sand.u32 %s49, 1
          %s153 = smul.addr %s152, 400
          %s154 = scalar_lea.vmem [#allocation4], %s153
          %s155 = smul.u32 %s17, 2
          %s156 = ssub.s32 0, %s155
          %s157 = smul.u32 %s15, %s156
          %s158 = sadd.s32 %s17, %s157
          %s159 = smul.u32 5, %s158
          %s160 = smul.u32 5, %s16
          %s161 = smul.u32 4, %s15
          %s162 = smul.addr %s160, 8
          %s163 = sadd.s32 %s161, %s162
          %s164 = smul.addr %s159, 40
          %s165 = sadd.s32 %s163, %s164
          %s166 = smul.addr %s165, 4
          %s167 = scalar_lea.vmem %s0, %s166
          // Predicated region
          $region21: #{tf_gridnet_forward.37} parent=19 // pred_check
            _
          $region22: #{tf_gridnet_forward.37} parent=19 // pred_check_branch
            %169 = sbr.rel (0) target = $region24
          $region23: #{tf_gridnet_forward.37} parent=19 // pred_region
            // Predicated region
            $region25: #{tf_gridnet_forward.37} parent=23 // pred_check
              _
            $region26: #{tf_gridnet_forward.37} parent=23 // pred_check_branch
              %171 = sbr.rel (0) target = $region28
            $region27: #{tf_gridnet_forward.37} parent=23 // pred_region
              loop: start=0, step=1, limit=1
              $region29: #{tf_gridnet_forward.37} parent=27 // loop_pre_header
                _
              $region30: #{tf_gridnet_forward.37} parent=27 // loop_header
                %s173 = sphi 0, %s177
                %p174 = scmp.ge.s32.totalorder %s173, 1
                %s178 = sphi %s167, %s167
                %s179 = sphi %s154, %s154
              $region31: #{tf_gridnet_forward.37} parent=27 // loop_header_branch
                %176 = sbr.rel (%p174) target = $region35
              $region32: #{tf_gridnet_forward.37} parent=27 // loop_body
                %v180 = vld [vmem:[%s178] sm:$0xff]
                %181 = vst [vmem:[%s179] sm:$0xff] %v180
                %v182 = vld [vmem:[%s178 + $0x8] sm:$0xff]
                %183 = vst [vmem:[%s179 + $0x8] sm:$0xff] %v182
                %v184 = vld [vmem:[%s178 + $0x20] sm:$0xff]
                %185 = vst [vmem:[%s179 + $0x10] sm:$0xff] %v184
                %v186 = vld [vmem:[%s178 + $0x28] sm:$0xff]
                %187 = vst [vmem:[%s179 + $0x18] sm:$0xff] %v186
                %v188 = vld [vmem:[%s178 + $0x40] sm:$0xff]
                %189 = vst [vmem:[%s179 + $0x20] sm:$0xff] %v188
                %v190 = vld [vmem:[%s178 + $0x48] sm:$0xff]
                %191 = vst [vmem:[%s179 + $0x28] sm:$0xff] %v190
                %v192 = vld [vmem:[%s178 + $0x60] sm:$0xff]
                %193 = vst [vmem:[%s179 + $0x30] sm:$0xff] %v192
                %v194 = vld [vmem:[%s178 + $0x68] sm:$0xff]
                %195 = vst [vmem:[%s179 + $0x38] sm:$0xff] %v194
                %v196 = vld [vmem:[%s178 + $0x80] sm:$0xff]
                %197 = vst [vmem:[%s179 + $0x40] sm:$0xff] %v196
                %v198 = vld [vmem:[%s178 + $0x88] sm:$0xff]
                %199 = vst [vmem:[%s179 + $0x48] sm:$0xff] %v198
                %v200 = vld [vmem:[%s178 + $0xa0] sm:$0xff]
                %201 = vst [vmem:[%s179 + $0x50] sm:$0xff] %v200
                %v202 = vld [vmem:[%s178 + $0xa8] sm:$0xff]
                %203 = vst [vmem:[%s179 + $0x58] sm:$0xff] %v202
                %v204 = vld [vmem:[%s178 + $0xc0] sm:$0xff]
                %205 = vst [vmem:[%s179 + $0x60] sm:$0xff] %v204
                %v206 = vld [vmem:[%s178 + $0xc8] sm:$0xff]
                %207 = vst [vmem:[%s179 + $0x68] sm:$0xff] %v206
                %v208 = vld [vmem:[%s178 + $0xe0] sm:$0xff]
                %209 = vst [vmem:[%s179 + $0x70] sm:$0xff] %v208
                %v210 = vld [vmem:[%s178 + $0xe8] sm:$0xff]
                %211 = vst [vmem:[%s179 + $0x78] sm:$0xff] %v210
                %v212 = vld [vmem:[%s178 + $0x100] sm:$0xff]
                %213 = vst [vmem:[%s179 + $0x80] sm:$0xff] %v212
                %v214 = vld [vmem:[%s178 + $0x108] sm:$0xff]
                %215 = vst [vmem:[%s179 + $0x88] sm:$0xff] %v214
                %v216 = vld [vmem:[%s178 + $0x120] sm:$0xff]
                %217 = vst [vmem:[%s179 + $0x90] sm:$0xff] %v216
                %v218 = vld [vmem:[%s178 + $0x128] sm:$0xff]
                %219 = vst [vmem:[%s179 + $0x98] sm:$0xff] %v218
                %v220 = vld [vmem:[%s178 + $0x140] sm:$0xff]
                %221 = vst [vmem:[%s179 + $0xa0] sm:$0xff] %v220
                %v222 = vld [vmem:[%s178 + $0x148] sm:$0xff]
                %223 = vst [vmem:[%s179 + $0xa8] sm:$0xff] %v222
                %v224 = vld [vmem:[%s178 + $0x160] sm:$0xff]
                %225 = vst [vmem:[%s179 + $0xb0] sm:$0xff] %v224
                %v226 = vld [vmem:[%s178 + $0x168] sm:$0xff]
                %227 = vst [vmem:[%s179 + $0xb8] sm:$0xff] %v226
                %v228 = vld [vmem:[%s178 + $0x180] sm:$0xff]
                %229 = vst [vmem:[%s179 + $0xc0] sm:$0xff] %v228
                %v230 = vld [vmem:[%s178 + $0x188] sm:$0xff]
                %231 = vst [vmem:[%s179 + $0xc8] sm:$0xff] %v230
                %v232 = vld [vmem:[%s178 + $0x1a0] sm:$0xff]
                %233 = vst [vmem:[%s179 + $0xd0] sm:$0xff] %v232
                %v234 = vld [vmem:[%s178 + $0x1a8] sm:$0xff]
                %235 = vst [vmem:[%s179 + $0xd8] sm:$0xff] %v234
                %v236 = vld [vmem:[%s178 + $0x1c0] sm:$0xff]
                %237 = vst [vmem:[%s179 + $0xe0] sm:$0xff] %v236
                %v238 = vld [vmem:[%s178 + $0x1c8] sm:$0xff]
                %239 = vst [vmem:[%s179 + $0xe8] sm:$0xff] %v238
                %v240 = vld [vmem:[%s178 + $0x1e0] sm:$0xff]
                %241 = vst [vmem:[%s179 + $0xf0] sm:$0xff] %v240
                %v242 = vld [vmem:[%s178 + $0x1e8] sm:$0xff]
                %243 = vst [vmem:[%s179 + $0xf8] sm:$0xff] %v242
                %v244 = vld [vmem:[%s178 + $0x200] sm:$0xff]
                %245 = vst [vmem:[%s179 + $0x100] sm:$0xff] %v244
                %v246 = vld [vmem:[%s178 + $0x208] sm:$0xff]
                %247 = vst [vmem:[%s179 + $0x108] sm:$0xff] %v246
                %v248 = vld [vmem:[%s178 + $0x220] sm:$0xff]
                %249 = vst [vmem:[%s179 + $0x110] sm:$0xff] %v248
                %v250 = vld [vmem:[%s178 + $0x228] sm:$0xff]
                %251 = vst [vmem:[%s179 + $0x118] sm:$0xff] %v250
                %v252 = vld [vmem:[%s178 + $0x240] sm:$0xff]
                %253 = vst [vmem:[%s179 + $0x120] sm:$0xff] %v252
                %v254 = vld [vmem:[%s178 + $0x248] sm:$0xff]
                %255 = vst [vmem:[%s179 + $0x128] sm:$0xff] %v254
                %v256 = vld [vmem:[%s178 + $0x260] sm:$0xff]
                %257 = vst [vmem:[%s179 + $0x130] sm:$0xff] %v256
                %v258 = vld [vmem:[%s178 + $0x268] sm:$0xff]
                %259 = vst [vmem:[%s179 + $0x138] sm:$0xff] %v258
                %v260 = vld [vmem:[%s178 + $0x280] sm:$0xff]
                %261 = vst [vmem:[%s179 + $0x140] sm:$0xff] %v260
                %v262 = vld [vmem:[%s178 + $0x288] sm:$0xff]
                %263 = vst [vmem:[%s179 + $0x148] sm:$0xff] %v262
                %v264 = vld [vmem:[%s178 + $0x2a0] sm:$0xff]
                %265 = vst [vmem:[%s179 + $0x150] sm:$0xff] %v264
                %v266 = vld [vmem:[%s178 + $0x2a8] sm:$0xff]
                %267 = vst [vmem:[%s179 + $0x158] sm:$0xff] %v266
                %v268 = vld [vmem:[%s178 + $0x2c0] sm:$0xff]
                %269 = vst [vmem:[%s179 + $0x160] sm:$0xff] %v268
                %v270 = vld [vmem:[%s178 + $0x2c8] sm:$0xff]
                %271 = vst [vmem:[%s179 + $0x168] sm:$0xff] %v270
                %v272 = vld [vmem:[%s178 + $0x2e0] sm:$0xff]
                %273 = vst [vmem:[%s179 + $0x170] sm:$0xff] %v272
                %v274 = vld [vmem:[%s178 + $0x2e8] sm:$0xff]
                %275 = vst [vmem:[%s179 + $0x178] sm:$0xff] %v274
                %v276 = vld [vmem:[%s178 + $0x300] sm:$0xff]
                %277 = vst [vmem:[%s179 + $0x180] sm:$0xff] %v276
                %v278 = vld [vmem:[%s178 + $0x308] sm:$0xff]
                %279 = vst [vmem:[%s179 + $0x188] sm:$0xff] %v278
              $region33: #{tf_gridnet_forward.37} parent=27 // loop_footer
                %s177 = sadd.s32 1, %s173
              $region34: #{tf_gridnet_forward.37} parent=27 // loop_footer_branch
                %172 = sbr.rel target = $region30
              $region35: #{tf_gridnet_forward.37} parent=27 // loop_exit
                _
            $region28: #{tf_gridnet_forward.37} parent=23 // pred_fallthru
              _
            // Predicated region
            $region36: #{tf_gridnet_forward.37} parent=23 // pred_check
              _
            $region37: #{tf_gridnet_forward.37} parent=23 // pred_check_branch
              %281 = sbr.rel target = $region39
            $region38: #{tf_gridnet_forward.37} parent=23 // pred_region
              _
            $region39: #{tf_gridnet_forward.37} parent=23 // pred_fallthru
              _
          $region24: #{tf_gridnet_forward.37} parent=19 // pred_fallthru
            _
          %282 = vnop
        $region20: #{tf_gridnet_forward.37} parent=15 // pred_fallthru
          _
        // Predicated region
        $region40: #{tf_gridnet_forward.37} parent=15 // pred_check
          %p283 = pneg %p85
        $region41: #{tf_gridnet_forward.37} parent=15 // pred_check_branch
          %285 = sbr.rel (%p283) target = $region43
        $region42: #{tf_gridnet_forward.37} parent=15 // pred_region
          %s286 = sand.u32 %s75, 1
          %s287 = sand.u32 %s75, 1
          %s288 = smul.addr %s287, 256
          %s289 = scalar_lea.vmem [#allocation5], %s288
          %s290 = smul.u32 4, %s15
          %s291 = smul.addr %s290, 4
          %s292 = scalar_lea.vmem %s1, %s291
          // Predicated region
          $region44: #{tf_gridnet_forward.37} parent=42 // pred_check
            _
          $region45: #{tf_gridnet_forward.37} parent=42 // pred_check_branch
            %294 = sbr.rel (0) target = $region47
          $region46: #{tf_gridnet_forward.37} parent=42 // pred_region
            // Predicated region
            $region48: #{tf_gridnet_forward.37} parent=46 // pred_check
              _
            $region49: #{tf_gridnet_forward.37} parent=46 // pred_check_branch
              %296 = sbr.rel (0) target = $region51
            $region50: #{tf_gridnet_forward.37} parent=46 // pred_region
              loop: start=0, step=1, limit=1
              $region52: #{tf_gridnet_forward.37} parent=50 // loop_pre_header
                _
              $region53: #{tf_gridnet_forward.37} parent=50 // loop_header
                %s298 = sphi 0, %s302
                %p299 = scmp.ge.s32.totalorder %s298, 1
                %s303 = sphi %s292, %s292
                %s304 = sphi %s289, %s289
              $region54: #{tf_gridnet_forward.37} parent=50 // loop_header_branch
                %301 = sbr.rel (%p299) target = $region58
              $region55: #{tf_gridnet_forward.37} parent=50 // loop_body
                %v305 = vld [vmem:[%s303] sm:$0xff]
                %306 = vst [vmem:[%s304] sm:$0xff] %v305
                %v307 = vld [vmem:[%s303 + $0x8] sm:$0xff]
                %308 = vst [vmem:[%s304 + $0x8] sm:$0xff] %v307
                %v309 = vld [vmem:[%s303 + $0x20] sm:$0xff]
                %310 = vst [vmem:[%s304 + $0x10] sm:$0xff] %v309
                %v311 = vld [vmem:[%s303 + $0x28] sm:$0xff]
                %312 = vst [vmem:[%s304 + $0x18] sm:$0xff] %v311
                %v313 = vld [vmem:[%s303 + $0x40] sm:$0xff]
                %314 = vst [vmem:[%s304 + $0x20] sm:$0xff] %v313
                %v315 = vld [vmem:[%s303 + $0x48] sm:$0xff]
                %316 = vst [vmem:[%s304 + $0x28] sm:$0xff] %v315
                %v317 = vld [vmem:[%s303 + $0x60] sm:$0xff]
                %318 = vst [vmem:[%s304 + $0x30] sm:$0xff] %v317
                %v319 = vld [vmem:[%s303 + $0x68] sm:$0xff]
                %320 = vst [vmem:[%s304 + $0x38] sm:$0xff] %v319
                %v321 = vld [vmem:[%s303 + $0x80] sm:$0xff]
                %322 = vst [vmem:[%s304 + $0x40] sm:$0xff] %v321
                %v323 = vld [vmem:[%s303 + $0x88] sm:$0xff]
                %324 = vst [vmem:[%s304 + $0x48] sm:$0xff] %v323
                %v325 = vld [vmem:[%s303 + $0xa0] sm:$0xff]
                %326 = vst [vmem:[%s304 + $0x50] sm:$0xff] %v325
                %v327 = vld [vmem:[%s303 + $0xa8] sm:$0xff]
                %328 = vst [vmem:[%s304 + $0x58] sm:$0xff] %v327
                %v329 = vld [vmem:[%s303 + $0xc0] sm:$0xff]
                %330 = vst [vmem:[%s304 + $0x60] sm:$0xff] %v329
                %v331 = vld [vmem:[%s303 + $0xc8] sm:$0xff]
                %332 = vst [vmem:[%s304 + $0x68] sm:$0xff] %v331
                %v333 = vld [vmem:[%s303 + $0xe0] sm:$0xff]
                %334 = vst [vmem:[%s304 + $0x70] sm:$0xff] %v333
                %v335 = vld [vmem:[%s303 + $0xe8] sm:$0xff]
                %336 = vst [vmem:[%s304 + $0x78] sm:$0xff] %v335
                %v337 = vld [vmem:[%s303 + $0x100] sm:$0xff]
                %338 = vst [vmem:[%s304 + $0x80] sm:$0xff] %v337
                %v339 = vld [vmem:[%s303 + $0x108] sm:$0xff]
                %340 = vst [vmem:[%s304 + $0x88] sm:$0xff] %v339
                %v341 = vld [vmem:[%s303 + $0x120] sm:$0xff]
                %342 = vst [vmem:[%s304 + $0x90] sm:$0xff] %v341
                %v343 = vld [vmem:[%s303 + $0x128] sm:$0xff]
                %344 = vst [vmem:[%s304 + $0x98] sm:$0xff] %v343
                %v345 = vld [vmem:[%s303 + $0x140] sm:$0xff]
                %346 = vst [vmem:[%s304 + $0xa0] sm:$0xff] %v345
                %v347 = vld [vmem:[%s303 + $0x148] sm:$0xff]
                %348 = vst [vmem:[%s304 + $0xa8] sm:$0xff] %v347
                %v349 = vld [vmem:[%s303 + $0x160] sm:$0xff]
                %350 = vst [vmem:[%s304 + $0xb0] sm:$0xff] %v349
                %v351 = vld [vmem:[%s303 + $0x168] sm:$0xff]
                %352 = vst [vmem:[%s304 + $0xb8] sm:$0xff] %v351
                %v353 = vld [vmem:[%s303 + $0x180] sm:$0xff]
                %354 = vst [vmem:[%s304 + $0xc0] sm:$0xff] %v353
                %v355 = vld [vmem:[%s303 + $0x188] sm:$0xff]
                %356 = vst [vmem:[%s304 + $0xc8] sm:$0xff] %v355
                %v357 = vld [vmem:[%s303 + $0x1a0] sm:$0xff]
                %358 = vst [vmem:[%s304 + $0xd0] sm:$0xff] %v357
                %v359 = vld [vmem:[%s303 + $0x1a8] sm:$0xff]
                %360 = vst [vmem:[%s304 + $0xd8] sm:$0xff] %v359
                %v361 = vld [vmem:[%s303 + $0x1c0] sm:$0xff]
                %362 = vst [vmem:[%s304 + $0xe0] sm:$0xff] %v361
                %v363 = vld [vmem:[%s303 + $0x1c8] sm:$0xff]
                %364 = vst [vmem:[%s304 + $0xe8] sm:$0xff] %v363
                %v365 = vld [vmem:[%s303 + $0x1e0] sm:$0xff]
                %366 = vst [vmem:[%s304 + $0xf0] sm:$0xff] %v365
                %v367 = vld [vmem:[%s303 + $0x1e8] sm:$0xff]
                %368 = vst [vmem:[%s304 + $0xf8] sm:$0xff] %v367
              $region56: #{tf_gridnet_forward.37} parent=50 // loop_footer
                %s302 = sadd.s32 1, %s298
              $region57: #{tf_gridnet_forward.37} parent=50 // loop_footer_branch
                %297 = sbr.rel target = $region53
              $region58: #{tf_gridnet_forward.37} parent=50 // loop_exit
                _
            $region51: #{tf_gridnet_forward.37} parent=46 // pred_fallthru
              _
            // Predicated region
            $region59: #{tf_gridnet_forward.37} parent=46 // pred_check
              _
            $region60: #{tf_gridnet_forward.37} parent=46 // pred_check_branch
              %370 = sbr.rel target = $region62
            $region61: #{tf_gridnet_forward.37} parent=46 // pred_region
              _
            $region62: #{tf_gridnet_forward.37} parent=46 // pred_fallthru
              _
          $region47: #{tf_gridnet_forward.37} parent=42 // pred_fallthru
            _
          %371 = vnop
        $region43: #{tf_gridnet_forward.37} parent=15 // pred_fallthru
          _
      $region16: #{tf_gridnet_forward.37} parent=5 // pred_fallthru
        _
      %p372 = scmp.le.s32.totalorder 1, %s8
      %p373 = scmp.lt.s32.totalorder %s8, 3
      %p374 = pnand %p372, %p373
      %p375 = pneg %p374
      // Predicated region
      $region63: #{tf_gridnet_forward.37} parent=5 // pred_check
        _
      $region64: #{tf_gridnet_forward.37} parent=5 // pred_check_branch
        %377 = sbr.rel (%p374) target = $region66
      $region65: #{tf_gridnet_forward.37} parent=5 // pred_region
        %s378 = ssub.s32 %s8, 1
        %s379 = sand.u32 %s52, 1
        %s380 = sand.u32 %s52, 1
        %s381 = smul.addr %s380, 400
        %s382 = scalar_lea.vmem [#allocation4], %s381
        // Predicated region
        $region67: #{tf_gridnet_forward.37} parent=65 // pred_check
          %p383 = pneg %p65
        $region68: #{tf_gridnet_forward.37} parent=65 // pred_check_branch
          %385 = sbr.rel (%p383) target = $region70
        $region69: #{tf_gridnet_forward.37} parent=65 // pred_region
          _
        $region70: #{tf_gridnet_forward.37} parent=65 // pred_fallthru
          _
        %s386 = sand.u32 %s78, 1
        %s387 = sand.u32 %s78, 1
        %s388 = smul.addr %s387, 256
        %s389 = scalar_lea.vmem [#allocation5], %s388
        // Predicated region
        $region71: #{tf_gridnet_forward.37} parent=65 // pred_check
          %p390 = pneg %p91
        $region72: #{tf_gridnet_forward.37} parent=65 // pred_check_branch
          %392 = sbr.rel (%p390) target = $region74
        $region73: #{tf_gridnet_forward.37} parent=65 // pred_region
          _
        $region74: #{tf_gridnet_forward.37} parent=65 // pred_fallthru
          _
        %s393 = sand.u32 %s52, 1
        %s394 = sand.u32 %s52, 1
        %s395 = smul.addr %s394, 400
        %s396 = scalar_lea.vmem [#allocation4], %s395
        %p397 = pneg %p65
        %p398 = pneg %p62
        %s399 = sand.u32 %s78, 1
        %s400 = sand.u32 %s78, 1
        %s401 = smul.addr %s400, 256
        %s402 = scalar_lea.vmem [#allocation5], %s401
        %p403 = pneg %p91
        %p404 = pneg %p88
        %p405 = pneg %p129
        %p406 = pneg %p126
        %s407 = sand.u32 %s116, 1
        %s408 = sand.u32 %s116, 1
        %s409 = smul.addr %s408, 100
        %s410 = scalar_lea.vmem [#allocation6], %s409
        %s411 = smul.u32 %s20, 2
        %s412 = ssub.s32 0, %s411
        %s413 = smul.u32 %s18, %s412
        %s414 = sadd.s32 %s20, %s413
        %s415 = smul.u32 5, %s414
        %s416 = smul.u32 5, %s19
        %s417 = smul.u32 4, %s18
        %s418 = smul.u32 4, %s18
        %s419 = smul.u32 %s20, 2
        %s420 = ssub.s32 0, %s419
        %s421 = smul.u32 %s18, %s420
        %s422 = sadd.s32 %s20, %s421
        %s423 = smul.u32 5, %s422
        %s424 = smul.u32 5, %s19
        %p426 = scmp.eq.s32.totalorder %s20, 0
        // Predicated region
        $region75: #{tf_gridnet_forward.37} parent=65 // pred_check
          %p427 = pneg %p426
        $region76: #{tf_gridnet_forward.37} parent=65 // pred_check_branch
          %429 = sbr.rel (%p427) target = $region78
        $region77: #{tf_gridnet_forward.37} parent=65 // pred_region
          %430 = vst [vmem:[#allocation2] sm:$0xff] 0.0
          %431 = vst [vmem:[#allocation2 + $0x8] sm:$0xff] 0.0
          %432 = vst [vmem:[#allocation2 + $0x10] sm:$0xff] 0.0
          %433 = vst [vmem:[#allocation2 + $0x18] sm:$0xff] 0.0
          %434 = vst [vmem:[#allocation2 + $0x20] sm:$0xff] 0.0
          %435 = vst [vmem:[#allocation3] sm:$0xff] 0.0
          %436 = vst [vmem:[#allocation3 + $0x8] sm:$0xff] 0.0
          %437 = vst [vmem:[#allocation3 + $0x10] sm:$0xff] 0.0
          %438 = vst [vmem:[#allocation3 + $0x18] sm:$0xff] 0.0
          %439 = vst [vmem:[#allocation3 + $0x20] sm:$0xff] 0.0
        $region78: #{tf_gridnet_forward.37} parent=65 // pred_fallthru
          _
        %s440 = smul.u32 %s20, 2
        %s441 = ssub.s32 0, %s440
        %s442 = smul.u32 %s18, %s441
        %s443 = sadd.s32 %s20, %s442
        %s444 = smul.u32 %s443, 5
        loop: start=0, step=1, limit=5
        $region79: #{tf_gridnet_forward.37} parent=65 // loop_pre_header
          _
        $region80: #{tf_gridnet_forward.37} parent=65 // loop_header
          %s446 = sphi 0, %s450
          %p447 = scmp.ge.s32.totalorder %s446, 5
        $region81: #{tf_gridnet_forward.37} parent=65 // loop_header_branch
          %449 = sbr.rel (%p447) target = $region85
        $region82: #{tf_gridnet_forward.37} parent=65 // loop_body
          %s451 = smul.u32 %s446, 2
          %s452 = ssub.s32 4, %s451
          %s453 = smul.u32 %s18, %s452
          %s454 = sadd.s32 %s446, %s453
          %s455 = smul.u32 %s454, 20
          %s456 = smul.addr %s455, 4
          %s457 = scalar_lea.vmem %s382, %s456 [#allocation4]
          %v458 = vld [vmem:[%s457] sm:$0xff]
          %v459 = vld [vmem:[%s457 + $0x8] sm:$0xff]
          %v460 = vld [vmem:[%s457 + $0x10] sm:$0xff]
          %v461 = vld [vmem:[%s457 + $0x18] sm:$0xff]
          %v462 = vld [vmem:[%s457 + $0x20] sm:$0xff]
          %v463 = vld [vmem:[%s457 + $0x28] sm:$0xff]
          %v464 = vld [vmem:[%s457 + $0x30] sm:$0xff]
          %v465 = vld [vmem:[%s457 + $0x38] sm:$0xff]
          %v466 = vld [vmem:[%s457 + $0x40] sm:$0xff]
          %v467 = vld [vmem:[%s457 + $0x48] sm:$0xff]
          %v468 = vunpack.c.l.bf16 %v458
          %v469 = vunpack.c.h.bf16 %v458
          %v470 = vunpack.c.l.bf16 %v459
          %v471 = vunpack.c.h.bf16 %v459
          %v472 = vunpack.c.l.bf16 %v460
          %v473 = vunpack.c.h.bf16 %v460
          %v474 = vunpack.c.l.bf16 %v461
          %v475 = vunpack.c.h.bf16 %v461
          %v476 = vunpack.c.l.bf16 %v462
          %v477 = vunpack.c.h.bf16 %v462
          %v478 = vunpack.c.l.bf16 %v463
          %v479 = vunpack.c.h.bf16 %v463
          %v480 = vunpack.c.l.bf16 %v464
          %v481 = vunpack.c.h.bf16 %v464
          %v482 = vunpack.c.l.bf16 %v465
          %v483 = vunpack.c.h.bf16 %v465
          %v484 = vunpack.c.l.bf16 %v466
          %v485 = vunpack.c.h.bf16 %v466
          %v486 = vunpack.c.l.bf16 %v467
          %v487 = vunpack.c.h.bf16 %v467
          %v488 = vld [vmem:[#allocation2] sm:$0xff]
          %v489 = vld [vmem:[#allocation2 + $0x8] sm:$0xff]
          %v490 = vld [vmem:[#allocation2 + $0x10] sm:$0xff]
          %v491 = vld [vmem:[#allocation2 + $0x18] sm:$0xff]
          %v492 = vld [vmem:[#allocation2 + $0x20] sm:$0xff]
          %v493 = vpack.c.bf16 %v489, %v488
          %v494 = vpack.c.bf16 %v491, %v490
          %v495 = vpack.c.bf16 %v492, %v492
          %v496 = vld [vmem:[%s389] sm:$0xff]
          %v497 = vld [vmem:[%s389 + $0x8] sm:$0xff]
          %v498 = vld [vmem:[%s389 + $0x10] sm:$0xff]
          %v499 = vld [vmem:[%s389 + $0x18] sm:$0xff]
          %v500 = vld [vmem:[%s389 + $0x20] sm:$0xff]
          %v501 = vld [vmem:[%s389 + $0x28] sm:$0xff]
          %v502 = vld [vmem:[%s389 + $0x30] sm:$0xff]
          %v503 = vld [vmem:[%s389 + $0x38] sm:$0xff]
          %v504 = vld [vmem:[%s389 + $0x40] sm:$0xff]
          %v505 = vld [vmem:[%s389 + $0x48] sm:$0xff]
          %v506 = vld [vmem:[%s389 + $0x50] sm:$0xff]
          %v507 = vld [vmem:[%s389 + $0x58] sm:$0xff]
          %v508 = vld [vmem:[%s389 + $0x60] sm:$0xff]
          %v509 = vld [vmem:[%s389 + $0x68] sm:$0xff]
          %v510 = vld [vmem:[%s389 + $0x70] sm:$0xff]
          %v511 = vld [vmem:[%s389 + $0x78] sm:$0xff]
          %v512 = vld [vmem:[%s389 + $0x80] sm:$0xff]
          %v513 = vld [vmem:[%s389 + $0x88] sm:$0xff]
          %v514 = vld [vmem:[%s389 + $0x90] sm:$0xff]
          %v515 = vld [vmem:[%s389 + $0x98] sm:$0xff]
          %v516 = vld [vmem:[%s389 + $0xa0] sm:$0xff]
          %v517 = vld [vmem:[%s389 + $0xa8] sm:$0xff]
          %v518 = vld [vmem:[%s389 + $0xb0] sm:$0xff]
          %v519 = vld [vmem:[%s389 + $0xb8] sm:$0xff]
          %v520 = vld [vmem:[%s389 + $0xc0] sm:$0xff]
          %v521 = vld [vmem:[%s389 + $0xc8] sm:$0xff]
          %v522 = vld [vmem:[%s389 + $0xd0] sm:$0xff]
          %v523 = vld [vmem:[%s389 + $0xd8] sm:$0xff]
          %v524 = vld [vmem:[%s389 + $0xe0] sm:$0xff]
          %v525 = vld [vmem:[%s389 + $0xe8] sm:$0xff]
          %v526 = vld [vmem:[%s389 + $0xf0] sm:$0xff]
          %v527 = vld [vmem:[%s389 + $0xf8] sm:$0xff]
          %v560 = vunpack.c.l.b16 %v496
          %v561 = vunpack.c.h.b16 %v496
          %v562 = vunpack.c.l.b16 %v497
          %v563 = vunpack.c.h.b16 %v497
          %v564 = vunpack.c.l.b16 %v498
          %v565 = vunpack.c.h.b16 %v498
          %v566 = vunpack.c.l.b16 %v499
          %v567 = vunpack.c.h.b16 %v499
          %v568 = vunpack.c.l.b16 %v500
          %v569 = vunpack.c.h.b16 %v500
          %v570 = vunpack.c.l.b16 %v501
          %v571 = vunpack.c.h.b16 %v501
          %v572 = vunpack.c.l.b16 %v502
          %v573 = vunpack.c.h.b16 %v502
          %v574 = vunpack.c.l.b16 %v503
          %v575 = vunpack.c.h.b16 %v503
          %v576 = vunpack.c.l.b16 %v504
          %v577 = vunpack.c.h.b16 %v504
          %v578 = vunpack.c.l.b16 %v505
          %v579 = vunpack.c.h.b16 %v505
          %v580 = vunpack.c.l.b16 %v506
          %v581 = vunpack.c.h.b16 %v506
          %v582 = vunpack.c.l.b16 %v507
          %v583 = vunpack.c.h.b16 %v507
          %v584 = vunpack.c.l.b16 %v508
          %v585 = vunpack.c.h.b16 %v508
          %v586 = vunpack.c.l.b16 %v509
          %v587 = vunpack.c.h.b16 %v509
          %v588 = vunpack.c.l.b16 %v510
          %v589 = vunpack.c.h.b16 %v510
          %v590 = vunpack.c.l.b16 %v511
          %v591 = vunpack.c.h.b16 %v511
          %v592 = vunpack.c.l.b16 %v512
          %v593 = vunpack.c.h.b16 %v512
          %v594 = vunpack.c.l.b16 %v513
          %v595 = vunpack.c.h.b16 %v513
          %v596 = vunpack.c.l.b16 %v514
          %v597 = vunpack.c.h.b16 %v514
          %v598 = vunpack.c.l.b16 %v515
          %v599 = vunpack.c.h.b16 %v515
          %v600 = vunpack.c.l.b16 %v516
          %v601 = vunpack.c.h.b16 %v516
          %v602 = vunpack.c.l.b16 %v517
          %v603 = vunpack.c.h.b16 %v517
          %v604 = vunpack.c.l.b16 %v518
          %v605 = vunpack.c.h.b16 %v518
          %v606 = vunpack.c.l.b16 %v519
          %v607 = vunpack.c.h.b16 %v519
          %v608 = vunpack.c.l.b16 %v520
          %v609 = vunpack.c.h.b16 %v520
          %v610 = vunpack.c.l.b16 %v521
          %v611 = vunpack.c.h.b16 %v521
          %v612 = vunpack.c.l.b16 %v522
          %v613 = vunpack.c.h.b16 %v522
          %v614 = vunpack.c.l.b16 %v523
          %v615 = vunpack.c.h.b16 %v523
          %v616 = vunpack.c.l.b16 %v524
          %v617 = vunpack.c.h.b16 %v524
          %v618 = vunpack.c.l.b16 %v525
          %v619 = vunpack.c.h.b16 %v525
          %v620 = vunpack.c.l.b16 %v526
          %v621 = vunpack.c.h.b16 %v526
          %v622 = vunpack.c.l.b16 %v527
          %v623 = vunpack.c.h.b16 %v527
          %v624 = vpack.c.b16 %v564, %v560
          %v625 = vpack.c.b16 %v565, %v561
          %v626 = vpack.c.b16 %v566, %v562
          %v627 = vpack.c.b16 %v567, %v563
          %v628 = vpack.c.b16 %v572, %v568
          %v629 = vpack.c.b16 %v573, %v569
          %v630 = vpack.c.b16 %v574, %v570
          %v631 = vpack.c.b16 %v575, %v571
          %v632 = vpack.c.b16 %v580, %v576
          %v633 = vpack.c.b16 %v581, %v577
          %v634 = vpack.c.b16 %v582, %v578
          %v635 = vpack.c.b16 %v583, %v579
          %v636 = vpack.c.b16 %v588, %v584
          %v637 = vpack.c.b16 %v589, %v585
          %v638 = vpack.c.b16 %v590, %v586
          %v639 = vpack.c.b16 %v591, %v587
          %v640 = vpack.c.b16 %v596, %v592
          %v641 = vpack.c.b16 %v597, %v593
          %v642 = vpack.c.b16 %v598, %v594
          %v643 = vpack.c.b16 %v599, %v595
          %v644 = vpack.c.b16 %v604, %v600
          %v645 = vpack.c.b16 %v605, %v601
          %v646 = vpack.c.b16 %v606, %v602
          %v647 = vpack.c.b16 %v607, %v603
          %v648 = vpack.c.b16 %v612, %v608
          %v649 = vpack.c.b16 %v613, %v609
          %v650 = vpack.c.b16 %v614, %v610
          %v651 = vpack.c.b16 %v615, %v611
          %v652 = vpack.c.b16 %v620, %v616
          %v653 = vpack.c.b16 %v621, %v617
          %v654 = vpack.c.b16 %v622, %v618
          %v655 = vpack.c.b16 %v623, %v619
          %688 = vmatprep.subr.bf16.mxu0 %v625
          %689 = vmatpush1.bf16.msra.mxu0 %v624
          %690 = vmatprep.subr.bf16.mxu0 %v629
          %691 = vmatpush1.bf16.msra.mxu0 %v628
          %692 = vmatprep.subr.bf16.mxu0 %v633
          %693 = vmatpush1.bf16.msra.mxu0 %v632
          %694 = vmatprep.subr.bf16.mxu0 %v637
          %695 = vmatpush1.bf16.msra.mxu0 %v636
          %696 = vmatprep.subr.bf16.mxu0 %v641
          %697 = vmatpush1.bf16.msra.mxu0 %v640
          %698 = vmatprep.subr.bf16.mxu0 %v645
          %699 = vmatpush1.bf16.msra.mxu0 %v644
          %700 = vmatprep.subr.bf16.mxu0 %v649
          %701 = vmatpush1.bf16.msra.mxu0 %v648
          %702 = vmatprep.subr.bf16.mxu0 %v653
          %703 = vmatpush1.bf16.msra.mxu0 %v652
          %704 = vmatprep.subr.bf16.mxu0 0
          %705 = vmatpush1.bf16.msra.mxu0 0
          %706 = vmatprep.subr.bf16.mxu0 0
          %707 = vmatpush1.bf16.msra.mxu0 0
          %708 = vmatprep.subr.bf16.mxu0 0
          %709 = vmatpush1.bf16.msra.mxu0 0
          %710 = vmatprep.subr.bf16.mxu0 0
          %711 = vmatpush1.bf16.msra.mxu0 0
          %712 = vmatprep.subr.bf16.mxu0 0
          %713 = vmatpush1.bf16.msra.mxu0 0
          %714 = vmatprep.subr.bf16.mxu0 0
          %715 = vmatpush1.bf16.msra.mxu0 0
          %716 = vmatprep.subr.bf16.mxu0 0
          %717 = vmatpush1.bf16.msra.mxu0 0
          %718 = vmatprep.subr.bf16.mxu0 0
          %719 = vmatpush1.bf16.msra.mxu0 0
          %720 = vmatprep.mubr.bf16.mxu0 0
          %721 = vmatmul.mubr.bf16.gmra.mrb[0].mxu0 %v493
          %v722 = vpop.f32.mrb[0].mxu0
          %v723 = vadd.f32 0.0, %v722
          %v724 = vpop.f32.mrb[0].mxu0
          %v725 = vadd.f32 0.0, %v724
          %v726 = vpop.f32.mrb[0].mxu0
          %v727 = vadd.f32 0.0, %v726
          %v728 = vpop.f32.mrb[0].mxu0
          %v729 = vadd.f32 0.0, %v728
          %730 = vmatprep.mubr.bf16.mxu0 0
          %731 = vmatmul.mubr.bf16.gmra.mrb[0].mxu0 %v494
          %v732 = vpop.f32.mrb[0].mxu0
          %v733 = vadd.f32 0.0, %v732
          %v734 = vpop.f32.mrb[0].mxu0
          %v735 = vadd.f32 0.0, %v734
          %v736 = vpop.f32.mrb[0].mxu0
          %v737 = vadd.f32 0.0, %v736
          %v738 = vpop.f32.mrb[0].mxu0
          %v739 = vadd.f32 0.0, %v738
          %740 = vmatprep.mubr.bf16.mxu0 0
          %741 = vmatmul.mubr.bf16.gmra.mrb[0].mxu0 %v495
          %v742 = vpop.f32.mrb[0].mxu0
          %v743 = vadd.f32 0.0, %v742
          %v744 = vpop.f32.mrb[0].mxu0
          %v745 = vadd.f32 0.0, %v744
          %v746 = vpop.f32.mrb[0].mxu0
          %v747 = vpop.f32.mrb[0].mxu0
          %748 = vdwg.mxu0
          %749 = vmatprep.subr.bf16.mxu0 %v627
          %750 = vmatpush1.bf16.msra.mxu0 %v626
          %751 = vmatprep.subr.bf16.mxu0 %v631
          %752 = vmatpush1.bf16.msra.mxu0 %v630
          %753 = vmatprep.subr.bf16.mxu0 %v635
          %754 = vmatpush1.bf16.msra.mxu0 %v634
          %755 = vmatprep.subr.bf16.mxu0 %v639
          %756 = vmatpush1.bf16.msra.mxu0 %v638
          %757 = vmatprep.subr.bf16.mxu0 %v643
          %758 = vmatpush1.bf16.msra.mxu0 %v642
          %759 = vmatprep.subr.bf16.mxu0 %v647
          %760 = vmatpush1.bf16.msra.mxu0 %v646
          %761 = vmatprep.subr.bf16.mxu0 %v651
          %762 = vmatpush1.bf16.msra.mxu0 %v650
          %763 = vmatprep.subr.bf16.mxu0 %v655
          %764 = vmatpush1.bf16.msra.mxu0 %v654
          %765 = vmatprep.subr.bf16.mxu0 0
          %766 = vmatpush1.bf16.msra.mxu0 0
          %767 = vmatprep.subr.bf16.mxu0 0
          %768 = vmatpush1.bf16.msra.mxu0 0
          %769 = vmatprep.subr.bf16.mxu0 0
          %770 = vmatpush1.bf16.msra.mxu0 0
          %771 = vmatprep.subr.bf16.mxu0 0
          %772 = vmatpush1.bf16.msra.mxu0 0
          %773 = vmatprep.subr.bf16.mxu0 0
          %774 = vmatpush1.bf16.msra.mxu0 0
          %775 = vmatprep.subr.bf16.mxu0 0
          %776 = vmatpush1.bf16.msra.mxu0 0
          %777 = vmatprep.subr.bf16.mxu0 0
          %778 = vmatpush1.bf16.msra.mxu0 0
          %779 = vmatprep.subr.bf16.mxu0 0
          %780 = vmatpush1.bf16.msra.mxu0 0
          %781 = vmatprep.mubr.bf16.mxu0 0
          %782 = vmatmul.mubr.bf16.gmra.mrb[0].mxu0 %v493
          %v783 = vpop.f32.mrb[0].mxu0
          %v784 = vadd.f32 0.0, %v783
          %v785 = vpop.f32.mrb[0].mxu0
          %v786 = vadd.f32 0.0, %v785
          %v787 = vpop.f32.mrb[0].mxu0
          %v788 = vadd.f32 0.0, %v787
          %v789 = vpop.f32.mrb[0].mxu0
          %v790 = vadd.f32 0.0, %v789
          %791 = vmatprep.mubr.bf16.mxu0 0
          %792 = vmatmul.mubr.bf16.gmra.mrb[0].mxu0 %v494
          %v793 = vpop.f32.mrb[0].mxu0
          %v794 = vadd.f32 0.0, %v793
          %v795 = vpop.f32.mrb[0].mxu0
          %v796 = vadd.f32 0.0, %v795
          %v797 = vpop.f32.mrb[0].mxu0
          %v798 = vadd.f32 0.0, %v797
          %v799 = vpop.f32.mrb[0].mxu0
          %v800 = vadd.f32 0.0, %v799
          %801 = vmatprep.mubr.bf16.mxu0 0
          %802 = vmatmul.mubr.bf16.gmra.mrb[0].mxu0 %v495
          %v803 = vpop.f32.mrb[0].mxu0
          %v804 = vadd.f32 0.0, %v803
          %v805 = vpop.f32.mrb[0].mxu0
          %v806 = vadd.f32 0.0, %v805
          %v807 = vpop.f32.mrb[0].mxu0
          %v808 = vpop.f32.mrb[0].mxu0
          %809 = vdwg.mxu0
          %v810 = vadd.f32 %v468, %v723
          %v811 = vadd.f32 %v469, %v725
          %v812 = vadd.f32 %v470, %v784
          %v813 = vadd.f32 %v471, %v786
          %v814 = vadd.f32 %v472, %v727
          %v815 = vadd.f32 %v473, %v729
          %v816 = vadd.f32 %v474, %v788
          %v817 = vadd.f32 %v475, %v790
          %v818 = vadd.f32 %v476, %v733
          %v819 = vadd.f32 %v477, %v735
          %v820 = vadd.f32 %v478, %v794
          %v821 = vadd.f32 %v479, %v796
          %v822 = vadd.f32 %v480, %v737
          %v823 = vadd.f32 %v481, %v739
          %v824 = vadd.f32 %v482, %v798
          %v825 = vadd.f32 %v483, %v800
          %v826 = vadd.f32 %v484, %v743
          %v827 = vadd.f32 %v485, %v745
          %v828 = vadd.f32 %v486, %v804
          %v829 = vadd.f32 %v487, %v806
          %v830 = vxor.u32 %v810, 2147483648
          %v831 = vxor.u32 %v814, 2147483648
          %v832 = vxor.u32 %v818, 2147483648
          %v833 = vxor.u32 %v822, 2147483648
          %v834 = vxor.u32 %v826, 2147483648
          %v835 = vmul.f32 %v830, 1.442695
          %v836 = vpow.pop %v835
          %v837 = vmul.f32 %v831, 1.442695
          %v838 = vpow.pop %v837
          %v839 = vmul.f32 %v832, 1.442695
          %v840 = vpow.pop %v839
          %v841 = vmul.f32 %v833, 1.442695
          %v842 = vpow.pop %v841
          %v843 = vmul.f32 %v834, 1.442695
          %v844 = vpow.pop %v843
          %v845 = vadd.f32 %v836, 1.0
          %v846 = vadd.f32 %v838, 1.0
          %v847 = vadd.f32 %v840, 1.0
          %v848 = vadd.f32 %v842, 1.0
          %v849 = vadd.f32 %v844, 1.0
          %v850 = vrcp.pop %v845
          %v851 = vmul.f32 1.0, %v850
          %v852 = vrcp.pop %v846
          %v853 = vmul.f32 1.0, %v852
          %v854 = vrcp.pop %v847
          %v855 = vmul.f32 1.0, %v854
          %v856 = vrcp.pop %v848
          %v857 = vmul.f32 1.0, %v856
          %v858 = vrcp.pop %v849
          %v859 = vmul.f32 1.0, %v858
          %v860 = vxor.u32 %v811, 2147483648
          %v861 = vxor.u32 %v815, 2147483648
          %v862 = vxor.u32 %v819, 2147483648
          %v863 = vxor.u32 %v823, 2147483648
          %v864 = vxor.u32 %v827, 2147483648
          %v865 = vmul.f32 %v860, 1.442695
          %v866 = vpow.pop %v865
          %v867 = vmul.f32 %v861, 1.442695
          %v868 = vpow.pop %v867
          %v869 = vmul.f32 %v862, 1.442695
          %v870 = vpow.pop %v869
          %v871 = vmul.f32 %v863, 1.442695
          %v872 = vpow.pop %v871
          %v873 = vmul.f32 %v864, 1.442695
          %v874 = vpow.pop %v873
          %v875 = vadd.f32 %v866, 1.0
          %v876 = vadd.f32 %v868, 1.0
          %v877 = vadd.f32 %v870, 1.0
          %v878 = vadd.f32 %v872, 1.0
          %v879 = vadd.f32 %v874, 1.0
          %v880 = vrcp.pop %v875
          %v881 = vmul.f32 1.0, %v880
          %v882 = vrcp.pop %v876
          %v883 = vmul.f32 1.0, %v882
          %v884 = vrcp.pop %v877
          %v885 = vmul.f32 1.0, %v884
          %v886 = vrcp.pop %v878
          %v887 = vmul.f32 1.0, %v886
          %v888 = vrcp.pop %v879
          %v889 = vmul.f32 1.0, %v888
          %v890 = vtanh.pop %v812
          %v891 = vtanh.pop %v816
          %v892 = vtanh.pop %v820
          %v893 = vtanh.pop %v824
          %v894 = vtanh.pop %v828
          %v895 = vxor.u32 %v813, 2147483648
          %v896 = vxor.u32 %v817, 2147483648
          %v897 = vxor.u32 %v821, 2147483648
          %v898 = vxor.u32 %v825, 2147483648
          %v899 = vxor.u32 %v829, 2147483648
          %v900 = vmul.f32 %v895, 1.442695
          %v901 = vpow.pop %v900
          %v902 = vmul.f32 %v896, 1.442695
          %v903 = vpow.pop %v902
          %v904 = vmul.f32 %v897, 1.442695
          %v905 = vpow.pop %v904
          %v906 = vmul.f32 %v898, 1.442695
          %v907 = vpow.pop %v906
          %v908 = vmul.f32 %v899, 1.442695
          %v909 = vpow.pop %v908
          %v910 = vadd.f32 %v901, 1.0
          %v911 = vadd.f32 %v903, 1.0
          %v912 = vadd.f32 %v905, 1.0
          %v913 = vadd.f32 %v907, 1.0
          %v914 = vadd.f32 %v909, 1.0
          %v915 = vrcp.pop %v910
          %v916 = vmul.f32 1.0, %v915
          %v917 = vrcp.pop %v911
          %v918 = vmul.f32 1.0, %v917
          %v919 = vrcp.pop %v912
          %v920 = vmul.f32 1.0, %v919
          %v921 = vrcp.pop %v913
          %v922 = vmul.f32 1.0, %v921
          %v923 = vrcp.pop %v914
          %v924 = vmul.f32 1.0, %v923
          %v925 = vld [vmem:[#allocation3] sm:$0xff]
          %v926 = vld [vmem:[#allocation3 + $0x8] sm:$0xff]
          %v927 = vld [vmem:[#allocation3 + $0x10] sm:$0xff]
          %v928 = vld [vmem:[#allocation3 + $0x18] sm:$0xff]
          %v929 = vld [vmem:[#allocation3 + $0x20] sm:$0xff]
          %v930 = vmul.f32 %v881, %v925
          %v931 = vmul.f32 %v883, %v926
          %v932 = vmul.f32 %v885, %v927
          %v933 = vmul.f32 %v887, %v928
          %v934 = vmul.f32 %v889, %v929
          %v935 = vmul.f32 %v851, %v890
          %v936 = vmul.f32 %v853, %v891
          %v937 = vmul.f32 %v855, %v892
          %v938 = vmul.f32 %v857, %v893
          %v939 = vmul.f32 %v859, %v894
          %v940 = vadd.f32 %v930, %v935
          %v941 = vadd.f32 %v931, %v936
          %v942 = vadd.f32 %v932, %v937
          %v943 = vadd.f32 %v933, %v938
          %v944 = vadd.f32 %v934, %v939
          %v945 = vtanh.pop %v940
          %v946 = vtanh.pop %v941
          %v947 = vtanh.pop %v942
          %v948 = vtanh.pop %v943
          %v949 = vtanh.pop %v944
          %v950 = vmul.f32 %v916, %v945
          %v951 = vmul.f32 %v918, %v946
          %v952 = vmul.f32 %v920, %v947
          %v953 = vmul.f32 %v922, %v948
          %v954 = vmul.f32 %v924, %v949
          %s955 = sadd.s32 %s444, %s454
          %p956 = scmp.lt.s32.totalorder %s955, 5
          %s957 = scalar_select %p956, 1, 0
          %v958 = vstv %s957
          %vm959 = vcmp.eq.s32.totalorder %v958, 1
          %v960 = vsel %vm959, %v940, %v925
          %v961 = vsel %vm959, %v941, %v926
          %v962 = vsel %vm959, %v942, %v927
          %v963 = vsel %vm959, %v943, %v928
          %v964 = vsel %vm959, %v944, %v929
          %965 = vst [vmem:[#allocation3] sm:$0xff] %v960
          %966 = vst [vmem:[#allocation3 + $0x8] sm:$0xff] %v961
          %967 = vst [vmem:[#allocation3 + $0x10] sm:$0xff] %v962
          %968 = vst [vmem:[#allocation3 + $0x18] sm:$0xff] %v963
          %969 = vst [vmem:[#allocation3 + $0x20] sm:$0xff] %v964
          %v970 = vld [vmem:[#allocation2] sm:$0xff]
          %v971 = vld [vmem:[#allocation2 + $0x8] sm:$0xff]
          %v972 = vld [vmem:[#allocation2 + $0x10] sm:$0xff]
          %v973 = vld [vmem:[#allocation2 + $0x18] sm:$0xff]
          %v974 = vld [vmem:[#allocation2 + $0x20] sm:$0xff]
          %v975 = vsel %vm959, %v950, %v970
          %v976 = vsel %vm959, %v951, %v971
          %v977 = vsel %vm959, %v952, %v972
          %v978 = vsel %vm959, %v953, %v973
          %v979 = vsel %vm959, %v954, %v974
          %980 = vst [vmem:[#allocation2] sm:$0xff] %v975
          %981 = vst [vmem:[#allocation2 + $0x8] sm:$0xff] %v976
          %982 = vst [vmem:[#allocation2 + $0x10] sm:$0xff] %v977
          %983 = vst [vmem:[#allocation2 + $0x18] sm:$0xff] %v978
          %984 = vst [vmem:[#allocation2 + $0x20] sm:$0xff] %v979
          %v985 = vpack.c.bf16 %v951, %v950
          %v986 = vpack.c.bf16 %v953, %v952
          %v987 = vpack.c.bf16 %v954, %v954
          %v991 = vunpack.c.l.b16 %v985
          %v992 = vunpack.c.h.b16 %v985
          %v993 = vunpack.c.l.b16 %v986
          %v994 = vunpack.c.h.b16 %v986
          %v995 = vunpack.c.l.b16 %v987
          %v996 = vpack.c.b16 %v991, %v991
          %v997 = vpack.c.b16 %v992, %v992
          %v998 = vpack.c.b16 %v993, %v993
          %v999 = vpack.c.b16 %v994, %v994
          %v1000 = vpack.c.b16 %v995, %v995
          %s1006 = smul.u32 %s454, 5
          %s1007 = smul.addr %s1006, 4
          %s1008 = scalar_lea.vmem %s410, %s1007 [#allocation6]
          %1009 = vst [vmem:[%s1008] sm:$0xf] %v996
          %1010 = vst [vmem:[%s1008 + $0x4] sm:$0xf] %v997
          %1011 = vst [vmem:[%s1008 + $0x8] sm:$0xf] %v998
          %1012 = vst [vmem:[%s1008 + $0xc] sm:$0xf] %v999
          %1013 = vst [vmem:[%s1008 + $0x10] sm:$0xf] %v1000
        $region83: #{tf_gridnet_forward.37} parent=65 // loop_footer
          %s450 = sadd.s32 1, %s446
        $region84: #{tf_gridnet_forward.37} parent=65 // loop_footer_branch
          %445 = sbr.rel target = $region80
        $region85: #{tf_gridnet_forward.37} parent=65 // loop_exit
          _
        %s1014 = sand.u32 %s116, 1
        %s1015 = sand.u32 %s116, 1
        %s1016 = smul.addr %s1015, 100
        %s1017 = scalar_lea.vmem [#allocation6], %s1016
        // Predicated region
        $region86: #{tf_gridnet_forward.37} parent=65 // pred_check
          %p1018 = pneg %p126
        $region87: #{tf_gridnet_forward.37} parent=65 // pred_check_branch
          %1020 = sbr.rel (%p1018) target = $region89
        $region88: #{tf_gridnet_forward.37} parent=65 // pred_region
          %s1021 = smul.u32 %s20, 2
          %s1022 = ssub.s32 0, %s1021
          %s1023 = smul.u32 %s18, %s1022
          %s1024 = sadd.s32 %s20, %s1023
          %s1025 = smul.u32 5, %s1024
          %s1026 = smul.u32 5, %s19
          %s1027 = smul.addr %s1026, 2
          %s1028 = sadd.s32 %s18, %s1027
          %s1029 = smul.addr %s1025, 10
          %s1030 = sadd.s32 %s1028, %s1029
          %s1031 = smul.addr %s1030, 4
          %s1032 = scalar_lea.vmem %s2, %s1031
          // Predicated region
          $region90: #{tf_gridnet_forward.37} parent=88 // pred_check
            _
          $region91: #{tf_gridnet_forward.37} parent=88 // pred_check_branch
            %1034 = sbr.rel (0) target = $region93
          $region92: #{tf_gridnet_forward.37} parent=88 // pred_region
            // Predicated region
            $region94: #{tf_gridnet_forward.37} parent=92 // pred_check
              _
            $region95: #{tf_gridnet_forward.37} parent=92 // pred_check_branch
              %1036 = sbr.rel target = $region97
            $region96: #{tf_gridnet_forward.37} parent=92 // pred_region
              // Predicated region
              $region109: #{tf_gridnet_forward.37} parent=96 // pred_check
                _
              $region110: #{tf_gridnet_forward.37} parent=96 // pred_check_branch
                %1099 = sbr.rel (0) target = $region112
              $region111: #{tf_gridnet_forward.37} parent=96 // pred_region
                loop: start=0, step=1, limit=1
                $region113: #{tf_gridnet_forward.37} parent=111 // loop_pre_header
                  _
                $region114: #{tf_gridnet_forward.37} parent=111 // loop_header
                  %s1101 = sphi 0, %s1105
                  %p1102 = scmp.ge.s32.totalorder %s1101, 1
                  %s1106 = sphi %s1017, %s1017
                  %s1107 = sphi %s1032, %s1032
                $region115: #{tf_gridnet_forward.37} parent=111 // loop_header_branch
                  %1104 = sbr.rel (%p1102) target = $region119
                $region116: #{tf_gridnet_forward.37} parent=111 // loop_body
                  _
                $region117: #{tf_gridnet_forward.37} parent=111 // loop_footer
                  %s1105 = sadd.s32 1, %s1101
                $region118: #{tf_gridnet_forward.37} parent=111 // loop_footer_branch
                  %1100 = sbr.rel target = $region114
                $region119: #{tf_gridnet_forward.37} parent=111 // loop_exit
                  _
                loop: start=0, step=1, limit=1
                $region120: #{tf_gridnet_forward.37} parent=111 // loop_pre_header
                  _
                $region121: #{tf_gridnet_forward.37} parent=111 // loop_header
                  %s1110 = sphi 0, %s1114
                  %p1111 = scmp.ge.s32.totalorder %s1110, 1
                  %s1115 = sphi %s1017, %s1017
                  %s1116 = sphi %s1032, %s1032
                $region122: #{tf_gridnet_forward.37} parent=111 // loop_header_branch
                  %1113 = sbr.rel (%p1111) target = $region126
                $region123: #{tf_gridnet_forward.37} parent=111 // loop_body
                  %v1117 = vld [vmem:[%s1115] sm:$0xf]
                  %1118 = vst [vmem:[%s1116] sm:$0xf] %v1117
                  %v1119 = vld [vmem:[%s1115 + $0x4] sm:$0xf]
                  %1120 = vst [vmem:[%s1116 + $0x8] sm:$0xf] %v1119
                  %v1121 = vld [vmem:[%s1115 + $0x8] sm:$0xf]
                  %1122 = vst [vmem:[%s1116 + $0x10] sm:$0xf] %v1121
                  %v1123 = vld [vmem:[%s1115 + $0xc] sm:$0xf]
                  %1124 = vst [vmem:[%s1116 + $0x18] sm:$0xf] %v1123
                  %v1125 = vld [vmem:[%s1115 + $0x10] sm:$0xf]
                  %1126 = vst [vmem:[%s1116 + $0x20] sm:$0xf] %v1125
                  %v1127 = vld [vmem:[%s1115 + $0x14] sm:$0xf]
                  %1128 = vst [vmem:[%s1116 + $0x28] sm:$0xf] %v1127
                  %v1129 = vld [vmem:[%s1115 + $0x18] sm:$0xf]
                  %1130 = vst [vmem:[%s1116 + $0x30] sm:$0xf] %v1129
                  %v1131 = vld [vmem:[%s1115 + $0x1c] sm:$0xf]
                  %1132 = vst [vmem:[%s1116 + $0x38] sm:$0xf] %v1131
                  %v1133 = vld [vmem:[%s1115 + $0x20] sm:$0xf]
                  %1134 = vst [vmem:[%s1116 + $0x40] sm:$0xf] %v1133
                  %v1135 = vld [vmem:[%s1115 + $0x24] sm:$0xf]
                  %1136 = vst [vmem:[%s1116 + $0x48] sm:$0xf] %v1135
                  %v1137 = vld [vmem:[%s1115 + $0x28] sm:$0xf]
                  %1138 = vst [vmem:[%s1116 + $0x50] sm:$0xf] %v1137
                  %v1139 = vld [vmem:[%s1115 + $0x2c] sm:$0xf]
                  %1140 = vst [vmem:[%s1116 + $0x58] sm:$0xf] %v1139
                  %v1141 = vld [vmem:[%s1115 + $0x30] sm:$0xf]
                  %1142 = vst [vmem:[%s1116 + $0x60] sm:$0xf] %v1141
                  %v1143 = vld [vmem:[%s1115 + $0x34] sm:$0xf]
                  %1144 = vst [vmem:[%s1116 + $0x68] sm:$0xf] %v1143
                  %v1145 = vld [vmem:[%s1115 + $0x38] sm:$0xf]
                  %1146 = vst [vmem:[%s1116 + $0x70] sm:$0xf] %v1145
                  %v1147 = vld [vmem:[%s1115 + $0x3c] sm:$0xf]
                  %1148 = vst [vmem:[%s1116 + $0x78] sm:$0xf] %v1147
                  %v1149 = vld [vmem:[%s1115 + $0x40] sm:$0xf]
                  %1150 = vst [vmem:[%s1116 + $0x80] sm:$0xf] %v1149
                  %v1151 = vld [vmem:[%s1115 + $0x44] sm:$0xf]
                  %1152 = vst [vmem:[%s1116 + $0x88] sm:$0xf] %v1151
                  %v1153 = vld [vmem:[%s1115 + $0x48] sm:$0xf]
                  %1154 = vst [vmem:[%s1116 + $0x90] sm:$0xf] %v1153
                  %v1155 = vld [vmem:[%s1115 + $0x4c] sm:$0xf]
                  %1156 = vst [vmem:[%s1116 + $0x98] sm:$0xf] %v1155
                  %v1157 = vld [vmem:[%s1115 + $0x50] sm:$0xf]
                  %1158 = vst [vmem:[%s1116 + $0xa0] sm:$0xf] %v1157
                  %v1159 = vld [vmem:[%s1115 + $0x54] sm:$0xf]
                  %1160 = vst [vmem:[%s1116 + $0xa8] sm:$0xf] %v1159
                  %v1161 = vld [vmem:[%s1115 + $0x58] sm:$0xf]
                  %1162 = vst [vmem:[%s1116 + $0xb0] sm:$0xf] %v1161
                  %v1163 = vld [vmem:[%s1115 + $0x5c] sm:$0xf]
                  %1164 = vst [vmem:[%s1116 + $0xb8] sm:$0xf] %v1163
                  %v1165 = vld [vmem:[%s1115 + $0x60] sm:$0xf]
                  %1166 = vst [vmem:[%s1116 + $0xc0] sm:$0xf] %v1165
                $region124: #{tf_gridnet_forward.37} parent=111 // loop_footer
                  %s1114 = sadd.s32 1, %s1110
                $region125: #{tf_gridnet_forward.37} parent=111 // loop_footer_branch
                  %1109 = sbr.rel target = $region121
                $region126: #{tf_gridnet_forward.37} parent=111 // loop_exit
                  _
              $region112: #{tf_gridnet_forward.37} parent=96 // pred_fallthru
                _
            $region97: #{tf_gridnet_forward.37} parent=92 // pred_fallthru
              _
            // Predicated region
            $region98: #{tf_gridnet_forward.37} parent=92 // pred_check
              _
            $region99: #{tf_gridnet_forward.37} parent=92 // pred_check_branch
              %1038 = sbr.rel (0) target = $region101
            $region100: #{tf_gridnet_forward.37} parent=92 // pred_region
              loop: start=0, step=1, limit=1
              $region102: #{tf_gridnet_forward.37} parent=100 // loop_pre_header
                _
              $region103: #{tf_gridnet_forward.37} parent=100 // loop_header
                %s1041 = sphi 0, %s1045
                %p1042 = scmp.ge.s32.totalorder %s1041, 1
                %s1046 = sphi %s1017, %s1017
                %s1047 = sphi %s1032, %s1032
              $region104: #{tf_gridnet_forward.37} parent=100 // loop_header_branch
                %1044 = sbr.rel (%p1042) target = $region108
              $region105: #{tf_gridnet_forward.37} parent=100 // loop_body
                %v1048 = vld [vmem:[%s1046] sm:$0xf]
                %1049 = vst [vmem:[%s1047] sm:$0xf] %v1048
                %v1050 = vld [vmem:[%s1046 + $0x4] sm:$0xf]
                %1051 = vst [vmem:[%s1047 + $0x8] sm:$0xf] %v1050
                %v1052 = vld [vmem:[%s1046 + $0x8] sm:$0xf]
                %1053 = vst [vmem:[%s1047 + $0x10] sm:$0xf] %v1052
                %v1054 = vld [vmem:[%s1046 + $0xc] sm:$0xf]
                %1055 = vst [vmem:[%s1047 + $0x18] sm:$0xf] %v1054
                %v1056 = vld [vmem:[%s1046 + $0x10] sm:$0xf]
                %1057 = vst [vmem:[%s1047 + $0x20] sm:$0xf] %v1056
                %v1058 = vld [vmem:[%s1046 + $0x14] sm:$0xf]
                %1059 = vst [vmem:[%s1047 + $0x28] sm:$0xf] %v1058
                %v1060 = vld [vmem:[%s1046 + $0x18] sm:$0xf]
                %1061 = vst [vmem:[%s1047 + $0x30] sm:$0xf] %v1060
                %v1062 = vld [vmem:[%s1046 + $0x1c] sm:$0xf]
                %1063 = vst [vmem:[%s1047 + $0x38] sm:$0xf] %v1062
                %v1064 = vld [vmem:[%s1046 + $0x20] sm:$0xf]
                %1065 = vst [vmem:[%s1047 + $0x40] sm:$0xf] %v1064
                %v1066 = vld [vmem:[%s1046 + $0x24] sm:$0xf]
                %1067 = vst [vmem:[%s1047 + $0x48] sm:$0xf] %v1066
                %v1068 = vld [vmem:[%s1046 + $0x28] sm:$0xf]
                %1069 = vst [vmem:[%s1047 + $0x50] sm:$0xf] %v1068
                %v1070 = vld [vmem:[%s1046 + $0x2c] sm:$0xf]
                %1071 = vst [vmem:[%s1047 + $0x58] sm:$0xf] %v1070
                %v1072 = vld [vmem:[%s1046 + $0x30] sm:$0xf]
                %1073 = vst [vmem:[%s1047 + $0x60] sm:$0xf] %v1072
                %v1074 = vld [vmem:[%s1046 + $0x34] sm:$0xf]
                %1075 = vst [vmem:[%s1047 + $0x68] sm:$0xf] %v1074
                %v1076 = vld [vmem:[%s1046 + $0x38] sm:$0xf]
                %1077 = vst [vmem:[%s1047 + $0x70] sm:$0xf] %v1076
                %v1078 = vld [vmem:[%s1046 + $0x3c] sm:$0xf]
                %1079 = vst [vmem:[%s1047 + $0x78] sm:$0xf] %v1078
                %v1080 = vld [vmem:[%s1046 + $0x40] sm:$0xf]
                %1081 = vst [vmem:[%s1047 + $0x80] sm:$0xf] %v1080
                %v1082 = vld [vmem:[%s1046 + $0x44] sm:$0xf]
                %1083 = vst [vmem:[%s1047 + $0x88] sm:$0xf] %v1082
                %v1084 = vld [vmem:[%s1046 + $0x48] sm:$0xf]
                %1085 = vst [vmem:[%s1047 + $0x90] sm:$0xf] %v1084
                %v1086 = vld [vmem:[%s1046 + $0x4c] sm:$0xf]
                %1087 = vst [vmem:[%s1047 + $0x98] sm:$0xf] %v1086
                %v1088 = vld [vmem:[%s1046 + $0x50] sm:$0xf]
                %1089 = vst [vmem:[%s1047 + $0xa0] sm:$0xf] %v1088
                %v1090 = vld [vmem:[%s1046 + $0x54] sm:$0xf]
                %1091 = vst [vmem:[%s1047 + $0xa8] sm:$0xf] %v1090
                %v1092 = vld [vmem:[%s1046 + $0x58] sm:$0xf]
                %1093 = vst [vmem:[%s1047 + $0xb0] sm:$0xf] %v1092
                %v1094 = vld [vmem:[%s1046 + $0x5c] sm:$0xf]
                %1095 = vst [vmem:[%s1047 + $0xb8] sm:$0xf] %v1094
                %v1096 = vld [vmem:[%s1046 + $0x60] sm:$0xf]
                %1097 = vst [vmem:[%s1047 + $0xc0] sm:$0xf] %v1096
              $region106: #{tf_gridnet_forward.37} parent=100 // loop_footer
                %s1045 = sadd.s32 1, %s1041
              $region107: #{tf_gridnet_forward.37} parent=100 // loop_footer_branch
                %1040 = sbr.rel target = $region103
              $region108: #{tf_gridnet_forward.37} parent=100 // loop_exit
                _
            $region101: #{tf_gridnet_forward.37} parent=92 // pred_fallthru
              _
          $region93: #{tf_gridnet_forward.37} parent=88 // pred_fallthru
            _
          %1167 = vnop
        $region89: #{tf_gridnet_forward.37} parent=65 // pred_fallthru
          _
      $region66: #{tf_gridnet_forward.37} parent=5 // pred_fallthru
        _
      %p1168 = scmp.le.s32.totalorder 2, %s8
      // Predicated region
      $region127: #{tf_gridnet_forward.37} parent=5 // pred_check
        %p1169 = pneg %p1168
      $region128: #{tf_gridnet_forward.37} parent=5 // pred_check_branch
        %1171 = sbr.rel (%p1169) target = $region130
      $region129: #{tf_gridnet_forward.37} parent=5 // pred_region
        %s1172 = ssub.s32 %s8, 2
        // Predicated region
        $region131: #{tf_gridnet_forward.37} parent=129 // pred_check
          %p1173 = pneg %p132
        $region132: #{tf_gridnet_forward.37} parent=129 // pred_check_branch
          %1175 = sbr.rel (%p1173) target = $region134
        $region133: #{tf_gridnet_forward.37} parent=129 // pred_region
          %s1176 = sand.u32 %s117, 1
          %s1177 = sand.u32 %s117, 1
          %s1178 = smul.addr %s1177, 100
          %s1179 = scalar_lea.vmem [#allocation6], %s1178
        $region134: #{tf_gridnet_forward.37} parent=129 // pred_fallthru
          _
      $region130: #{tf_gridnet_forward.37} parent=5 // pred_fallthru
        _
    $region6: #{tf_gridnet_forward.37} parent=1 // loop_footer
      %s12 = sadd.s32 1, %s8
    $region7: #{tf_gridnet_forward.37} parent=1 // loop_footer_branch
      %7 = sbr.rel target = $region3
    $region8: #{tf_gridnet_forward.37} parent=1 // loop_exit
      _

// kernel: tf_gridnet_forward.38
$region0: #{tf_gridnet_forward.38}
  #allocation0 [shape = 'u32[]', space=smem, size = 0x4, offset = 0x4, fixed_abs, tag = 'smem constant byte address 0x4 - core index']
  #allocation1 [shape = 'u32[144,128]{1,0:T(1,128)}', space=vmem, size = 0x12000, scoped, tag = 'internal scratch']
  %s0 = inlined_call_operand.vmem [shape: bf16[200,256], index: 0, kind: input, shape index: {}]
  %s1 = inlined_call_operand.vmem [shape: bf16[256,32], index: 1, kind: input, shape index: {}]
  %s2 = inlined_call_operand.vmem [shape: f32[1,32], index: 2, kind: input, shape index: {}]
  %s3 = inlined_call_operand.vmem [shape: f32[1,32], index: 3, kind: input, shape index: {}]
  %s4 = inlined_call_operand.vmem [shape: f32[200,32], index: 4, kind: output, shape index: {}]
  %s5 = sld [smem:[#allocation0]]
  $region26: #{tf_gridnet_forward.38} parent=0
    _
  %s7 = ssub.s32 1, %s5
  %s8 = scalar_select 0, %s7, %s5
  // Predicated region
  $region2: #{tf_gridnet_forward.38} parent=0 // pred_check
    _
  $region3: #{tf_gridnet_forward.38} parent=0 // pred_check_branch
    %10 = sbr.rel (0) target = $region5
  $region4: #{tf_gridnet_forward.38} parent=0 // pred_region
    _
  $region5: #{tf_gridnet_forward.38} parent=0 // pred_fallthru
    _
  // Predicated region
  $region6: #{tf_gridnet_forward.38} parent=0 // pred_check
    _
  $region7: #{tf_gridnet_forward.38} parent=0 // pred_check_branch
    %12 = sbr.rel (0) target = $region9
  $region8: #{tf_gridnet_forward.38} parent=0 // pred_region
    _
  $region9: #{tf_gridnet_forward.38} parent=0 // pred_fallthru
    _
  // Predicated region
  $region10: #{tf_gridnet_forward.38} parent=0 // pred_check
    _
  $region11: #{tf_gridnet_forward.38} parent=0 // pred_check_branch
    %14 = sbr.rel (0) target = $region13
  $region12: #{tf_gridnet_forward.38} parent=0 // pred_region
    _
  $region13: #{tf_gridnet_forward.38} parent=0 // pred_fallthru
    _
  // Predicated region
  $region14: #{tf_gridnet_forward.38} parent=0 // pred_check
    _
  $region15: #{tf_gridnet_forward.38} parent=0 // pred_check_branch
    %16 = sbr.rel (0) target = $region17
  $region16: #{tf_gridnet_forward.38} parent=0 // pred_region
    _
  $region17: #{tf_gridnet_forward.38} parent=0 // pred_fallthru
    _
  %v18 = vld [vmem:[%s0] sm:$0xff]
  %v19 = vld [vmem:[%s0 + $0x8] sm:$0xff]
  %v20 = vld [vmem:[%s0 + $0x10] sm:$0xff]
  %v21 = vld [vmem:[%s0 + $0x18] sm:$0xff]
  %v22 = vld [vmem:[%s0 + $0x20] sm:$0xff]
  %v23 = vld [vmem:[%s0 + $0x28] sm:$0xff]
  %v24 = vld [vmem:[%s0 + $0x30] sm:$0xff]
  %v25 = vld [vmem:[%s0 + $0x38] sm:$0xff]
  %v26 = vld [vmem:[%s0 + $0x40] sm:$0xff]
  %v27 = vld [vmem:[%s0 + $0x48] sm:$0xff]
  %v28 = vld [vmem:[%s0 + $0x50] sm:$0xff]
  %v29 = vld [vmem:[%s0 + $0x58] sm:$0xff]
  %v30 = vld [vmem:[%s0 + $0x60] sm:$0xff]
  %v31 = vld [vmem:[%s0 + $0x68] sm:$0xff]
  %v32 = vld [vmem:[%s0 + $0x70] sm:$0xff]
  %v33 = vld [vmem:[%s0 + $0x78] sm:$0xff]
  %v34 = vld [vmem:[%s0 + $0x80] sm:$0xff]
  %v35 = vld [vmem:[%s0 + $0x88] sm:$0xff]
  %v36 = vld [vmem:[%s0 + $0x90] sm:$0xff]
  %v37 = vld [vmem:[%s0 + $0x98] sm:$0xff]
  %v38 = vld [vmem:[%s0 + $0xa0] sm:$0xff]
  %v39 = vld [vmem:[%s0 + $0xa8] sm:$0xff]
  %v40 = vld [vmem:[%s0 + $0xb0] sm:$0xff]
  %v41 = vld [vmem:[%s0 + $0xb8] sm:$0xff]
  %v42 = vld [vmem:[%s0 + $0xc0] sm:$0xff]
  %v43 = vld [vmem:[%s1] sm:$0xf]
  %v44 = vld [vmem:[%s1 + $0x4] sm:$0xf]
  %v45 = vld [vmem:[%s1 + $0x8] sm:$0xf]
  %v46 = vld [vmem:[%s1 + $0xc] sm:$0xf]
  %v47 = vld [vmem:[%s1 + $0x10] sm:$0xf]
  %v48 = vld [vmem:[%s1 + $0x14] sm:$0xf]
  %v49 = vld [vmem:[%s1 + $0x18] sm:$0xf]
  %v50 = vld [vmem:[%s1 + $0x1c] sm:$0xf]
  %v51 = vld [vmem:[%s1 + $0x20] sm:$0xf]
  %v52 = vld [vmem:[%s1 + $0x24] sm:$0xf]
  %v53 = vld [vmem:[%s1 + $0x28] sm:$0xf]
  %v54 = vld [vmem:[%s1 + $0x2c] sm:$0xf]
  %v55 = vld [vmem:[%s1 + $0x30] sm:$0xf]
  %v56 = vld [vmem:[%s1 + $0x34] sm:$0xf]
  %v57 = vld [vmem:[%s1 + $0x38] sm:$0xf]
  %v58 = vld [vmem:[%s1 + $0x3c] sm:$0xf]
  %v59 = vld [vmem:[%s1 + $0x40] sm:$0xf]
  %v60 = vld [vmem:[%s1 + $0x44] sm:$0xf]
  %v61 = vld [vmem:[%s1 + $0x48] sm:$0xf]
  %v62 = vld [vmem:[%s1 + $0x4c] sm:$0xf]
  %v63 = vld [vmem:[%s1 + $0x50] sm:$0xf]
  %v64 = vld [vmem:[%s1 + $0x54] sm:$0xf]
  %v65 = vld [vmem:[%s1 + $0x58] sm:$0xf]
  %v66 = vld [vmem:[%s1 + $0x5c] sm:$0xf]
  %v67 = vld [vmem:[%s1 + $0x60] sm:$0xf]
  %v68 = vld [vmem:[%s1 + $0x64] sm:$0xf]
  %v69 = vld [vmem:[%s1 + $0x68] sm:$0xf]
  %v70 = vld [vmem:[%s1 + $0x6c] sm:$0xf]
  %v71 = vld [vmem:[%s1 + $0x70] sm:$0xf]
  %v72 = vld [vmem:[%s1 + $0x74] sm:$0xf]
  %v73 = vld [vmem:[%s1 + $0x78] sm:$0xf]
  %v74 = vld [vmem:[%s1 + $0x7c] sm:$0xf]
  %v75 = vld [vmem:[%s2] sm:$0x1]
  %v77 = vlaneseq
  %v78 = vshrl.u32 %v77, 7
  %v79 = vsub.s32 0, %v78
  %v80 = vrot.slane %v75, %v79
  %v107 = vunpack.c.l.b16 %v18
  %v108 = vunpack.c.h.b16 %v18
  %v109 = vunpack.c.l.b16 %v19
  %v110 = vunpack.c.h.b16 %v19
  %v111 = vunpack.c.l.b16 %v20
  %v112 = vunpack.c.h.b16 %v20
  %v113 = vunpack.c.l.b16 %v21
  %v114 = vunpack.c.h.b16 %v21
  %v115 = vunpack.c.l.b16 %v22
  %v116 = vunpack.c.h.b16 %v22
  %v117 = vunpack.c.l.b16 %v23
  %v118 = vunpack.c.h.b16 %v23
  %v119 = vunpack.c.l.b16 %v24
  %v120 = vunpack.c.h.b16 %v24
  %v121 = vunpack.c.l.b16 %v25
  %v122 = vunpack.c.h.b16 %v25
  %v123 = vunpack.c.l.b16 %v26
  %v124 = vunpack.c.h.b16 %v26
  %v125 = vunpack.c.l.b16 %v27
  %v126 = vunpack.c.h.b16 %v27
  %v127 = vunpack.c.l.b16 %v28
  %v128 = vunpack.c.h.b16 %v28
  %v129 = vunpack.c.l.b16 %v29
  %v130 = vunpack.c.h.b16 %v29
  %v131 = vunpack.c.l.b16 %v30
  %v132 = vunpack.c.h.b16 %v30
  %v133 = vunpack.c.l.b16 %v31
  %v134 = vunpack.c.h.b16 %v31
  %v135 = vunpack.c.l.b16 %v32
  %v136 = vunpack.c.h.b16 %v32
  %v137 = vunpack.c.l.b16 %v33
  %v138 = vunpack.c.h.b16 %v33
  %v139 = vunpack.c.l.b16 %v34
  %v140 = vunpack.c.h.b16 %v34
  %v141 = vunpack.c.l.b16 %v35
  %v142 = vunpack.c.h.b16 %v35
  %v143 = vunpack.c.l.b16 %v36
  %v144 = vunpack.c.h.b16 %v36
  %v145 = vunpack.c.l.b16 %v37
  %v146 = vunpack.c.h.b16 %v37
  %v147 = vunpack.c.l.b16 %v38
  %v148 = vunpack.c.h.b16 %v38
  %v149 = vunpack.c.l.b16 %v39
  %v150 = vunpack.c.h.b16 %v39
  %v151 = vunpack.c.l.b16 %v40
  %v152 = vunpack.c.h.b16 %v40
  %v153 = vunpack.c.l.b16 %v41
  %v154 = vunpack.c.h.b16 %v41
  %v155 = vunpack.c.l.b16 %v42
  %v156 = vunpack.c.h.b16 %v42
  %v157 = vpack.c.b16 %v109, %v107
  %v158 = vpack.c.b16 %v110, %v108
  %v159 = vpack.c.b16 %v113, %v111
  %v160 = vpack.c.b16 %v114, %v112
  %v161 = vpack.c.b16 %v117, %v115
  %v162 = vpack.c.b16 %v118, %v116
  %v163 = vpack.c.b16 %v121, %v119
  %v164 = vpack.c.b16 %v122, %v120
  %v165 = vpack.c.b16 %v125, %v123
  %v166 = vpack.c.b16 %v126, %v124
  %v167 = vpack.c.b16 %v129, %v127
  %v168 = vpack.c.b16 %v130, %v128
  %v169 = vpack.c.b16 %v133, %v131
  %v170 = vpack.c.b16 %v134, %v132
  %v171 = vpack.c.b16 %v137, %v135
  %v172 = vpack.c.b16 %v138, %v136
  %v173 = vpack.c.b16 %v141, %v139
  %v174 = vpack.c.b16 %v142, %v140
  %v175 = vpack.c.b16 %v145, %v143
  %v176 = vpack.c.b16 %v146, %v144
  %v177 = vpack.c.b16 %v149, %v147
  %v178 = vpack.c.b16 %v150, %v148
  %v179 = vpack.c.b16 %v153, %v151
  %v180 = vpack.c.b16 %v154, %v152
  %v181 = vpack.c.b16 %v155, %v155
  %v182 = vpack.c.b16 %v156, %v156
  %v241 = vunpack.c.l.b16 %v43
  %v242 = vunpack.c.l.b16 %v44
  %v243 = vunpack.c.l.b16 %v45
  %v244 = vunpack.c.l.b16 %v46
  %v245 = vunpack.c.l.b16 %v47
  %v246 = vunpack.c.l.b16 %v48
  %v247 = vunpack.c.l.b16 %v49
  %v248 = vunpack.c.l.b16 %v50
  %v249 = vunpack.c.l.b16 %v51
  %v250 = vunpack.c.l.b16 %v52
  %v251 = vunpack.c.l.b16 %v53
  %v252 = vunpack.c.l.b16 %v54
  %v253 = vunpack.c.l.b16 %v55
  %v254 = vunpack.c.l.b16 %v56
  %v255 = vunpack.c.l.b16 %v57
  %v256 = vunpack.c.l.b16 %v58
  %v257 = vunpack.c.l.b16 %v59
  %v258 = vunpack.c.l.b16 %v60
  %v259 = vunpack.c.l.b16 %v61
  %v260 = vunpack.c.l.b16 %v62
  %v261 = vunpack.c.l.b16 %v63
  %v262 = vunpack.c.l.b16 %v64
  %v263 = vunpack.c.l.b16 %v65
  %v264 = vunpack.c.l.b16 %v66
  %v265 = vunpack.c.l.b16 %v67
  %v266 = vunpack.c.l.b16 %v68
  %v267 = vunpack.c.l.b16 %v69
  %v268 = vunpack.c.l.b16 %v70
  %v269 = vunpack.c.l.b16 %v71
  %v270 = vunpack.c.l.b16 %v72
  %v271 = vunpack.c.l.b16 %v73
  %v272 = vunpack.c.l.b16 %v74
  %v273 = vpack.c.b16 %v242, %v241
  %v274 = vpack.c.b16 %v244, %v243
  %v275 = vpack.c.b16 %v246, %v245
  %v276 = vpack.c.b16 %v248, %v247
  %v277 = vpack.c.b16 %v250, %v249
  %v278 = vpack.c.b16 %v252, %v251
  %v279 = vpack.c.b16 %v254, %v253
  %v280 = vpack.c.b16 %v256, %v255
  %v281 = vpack.c.b16 %v258, %v257
  %v282 = vpack.c.b16 %v260, %v259
  %v283 = vpack.c.b16 %v262, %v261
  %v284 = vpack.c.b16 %v264, %v263
  %v285 = vpack.c.b16 %v266, %v265
  %v286 = vpack.c.b16 %v268, %v267
  %v287 = vpack.c.b16 %v270, %v269
  %v288 = vpack.c.b16 %v272, %v271
  %305 = vmatprep.subr.bf16.mxu0 0
  %306 = vmatpush1.bf16.msra.mxu0 %v273
  %307 = vmatprep.subr.bf16.mxu0 0
  %308 = vmatpush1.bf16.msra.mxu0 %v274
  %309 = vmatprep.subr.bf16.mxu0 0
  %310 = vmatpush1.bf16.msra.mxu0 %v275
  %311 = vmatprep.subr.bf16.mxu0 0
  %312 = vmatpush1.bf16.msra.mxu0 %v276
  %313 = vmatprep.subr.bf16.mxu0 0
  %314 = vmatpush1.bf16.msra.mxu0 %v277
  %315 = vmatprep.subr.bf16.mxu0 0
  %316 = vmatpush1.bf16.msra.mxu0 %v278
  %317 = vmatprep.subr.bf16.mxu0 0
  %318 = vmatpush1.bf16.msra.mxu0 %v279
  %319 = vmatprep.subr.bf16.mxu0 0
  %320 = vmatpush1.bf16.msra.mxu0 %v280
  %321 = vmatprep.subr.bf16.mxu0 0
  %322 = vmatpush1.bf16.msra.mxu0 %v281
  %323 = vmatprep.subr.bf16.mxu0 0
  %324 = vmatpush1.bf16.msra.mxu0 %v282
  %325 = vmatprep.subr.bf16.mxu0 0
  %326 = vmatpush1.bf16.msra.mxu0 %v283
  %327 = vmatprep.subr.bf16.mxu0 0
  %328 = vmatpush1.bf16.msra.mxu0 %v284
  %329 = vmatprep.subr.bf16.mxu0 0
  %330 = vmatpush1.bf16.msra.mxu0 %v285
  %331 = vmatprep.subr.bf16.mxu0 0
  %332 = vmatpush1.bf16.msra.mxu0 %v286
  %333 = vmatprep.subr.bf16.mxu0 0
  %334 = vmatpush1.bf16.msra.mxu0 %v287
  %335 = vmatprep.subr.bf16.mxu0 0
  %336 = vmatpush1.bf16.msra.mxu0 %v288
  %337 = vmatprep.mubr.bf16.mxu0 %v158
  %338 = vmatmul.mubr.bf16.gmra.mrb[0].mxu0 %v157
  %v339 = vpop.f32.mrb[0].mxu0
  %v340 = vadd.f32 %v80, %v339
  %v341 = vpop.f32.mrb[0].mxu0
  %v342 = vpop.f32.mrb[0].mxu0
  %v343 = vadd.f32 %v80, %v342
  %v344 = vpop.f32.mrb[0].mxu0
  %345 = vmatprep.mubr.bf16.mxu0 %v160
  %346 = vmatmul.mubr.bf16.gmra.mrb[0].mxu0 %v159
  %v347 = vpop.f32.mrb[0].mxu0
  %v348 = vadd.f32 %v80, %v347
  %v349 = vpop.f32.mrb[0].mxu0
  %v350 = vpop.f32.mrb[0].mxu0
  %v351 = vadd.f32 %v80, %v350
  %v352 = vpop.f32.mrb[0].mxu0
  %353 = vmatprep.mubr.bf16.mxu0 %v162
  %354 = vmatmul.mubr.bf16.gmra.mrb[0].mxu0 %v161
  %v355 = vpop.f32.mrb[0].mxu0
  %v356 = vadd.f32 %v80, %v355
  %v357 = vpop.f32.mrb[0].mxu0
  %v358 = vpop.f32.mrb[0].mxu0
  %v359 = vadd.f32 %v80, %v358
  %v360 = vpop.f32.mrb[0].mxu0
  %361 = vmatprep.mubr.bf16.mxu0 %v164
  %362 = vmatmul.mubr.bf16.gmra.mrb[0].mxu0 %v163
  %v363 = vpop.f32.mrb[0].mxu0
  %v364 = vadd.f32 %v80, %v363
  %v365 = vpop.f32.mrb[0].mxu0
  %v366 = vpop.f32.mrb[0].mxu0
  %v367 = vadd.f32 %v80, %v366
  %v368 = vpop.f32.mrb[0].mxu0
  %369 = vmatprep.mubr.bf16.mxu0 %v166
  %370 = vmatmul.mubr.bf16.gmra.mrb[0].mxu0 %v165
  %v371 = vpop.f32.mrb[0].mxu0
  %v372 = vadd.f32 %v80, %v371
  %v373 = vpop.f32.mrb[0].mxu0
  %v374 = vpop.f32.mrb[0].mxu0
  %v375 = vadd.f32 %v80, %v374
  %v376 = vpop.f32.mrb[0].mxu0
  %377 = vmatprep.mubr.bf16.mxu0 %v168
  %378 = vmatmul.mubr.bf16.gmra.mrb[0].mxu0 %v167
  %v379 = vpop.f32.mrb[0].mxu0
  %v380 = vadd.f32 %v80, %v379
  %v381 = vpop.f32.mrb[0].mxu0
  %v382 = vpop.f32.mrb[0].mxu0
  %v383 = vadd.f32 %v80, %v382
  %v384 = vpop.f32.mrb[0].mxu0
  %385 = vmatprep.mubr.bf16.mxu0 %v170
  %386 = vmatmul.mubr.bf16.gmra.mrb[0].mxu0 %v169
  %v387 = vpop.f32.mrb[0].mxu0
  %v388 = vadd.f32 %v80, %v387
  %v389 = vpop.f32.mrb[0].mxu0
  %v390 = vpop.f32.mrb[0].mxu0
  %v391 = vadd.f32 %v80, %v390
  %v392 = vpop.f32.mrb[0].mxu0
  %393 = vmatprep.mubr.bf16.mxu0 %v172
  %394 = vmatmul.mubr.bf16.gmra.mrb[0].mxu0 %v171
  %v395 = vpop.f32.mrb[0].mxu0
  %v396 = vadd.f32 %v80, %v395
  %v397 = vpop.f32.mrb[0].mxu0
  %v398 = vpop.f32.mrb[0].mxu0
  %v399 = vadd.f32 %v80, %v398
  %v400 = vpop.f32.mrb[0].mxu0
  %401 = vmatprep.mubr.bf16.mxu0 %v174
  %402 = vmatmul.mubr.bf16.gmra.mrb[0].mxu0 %v173
  %v403 = vpop.f32.mrb[0].mxu0
  %v404 = vadd.f32 %v80, %v403
  %v405 = vpop.f32.mrb[0].mxu0
  %v406 = vpop.f32.mrb[0].mxu0
  %v407 = vadd.f32 %v80, %v406
  %v408 = vpop.f32.mrb[0].mxu0
  %409 = vmatprep.mubr.bf16.mxu0 %v176
  %410 = vmatmul.mubr.bf16.gmra.mrb[0].mxu0 %v175
  %v411 = vpop.f32.mrb[0].mxu0
  %v412 = vadd.f32 %v80, %v411
  %v413 = vpop.f32.mrb[0].mxu0
  %v414 = vpop.f32.mrb[0].mxu0
  %v415 = vadd.f32 %v80, %v414
  %v416 = vpop.f32.mrb[0].mxu0
  %417 = vmatprep.mubr.bf16.mxu0 %v178
  %418 = vmatmul.mubr.bf16.gmra.mrb[0].mxu0 %v177
  %v419 = vpop.f32.mrb[0].mxu0
  %v420 = vadd.f32 %v80, %v419
  %v421 = vpop.f32.mrb[0].mxu0
  %v422 = vpop.f32.mrb[0].mxu0
  %v423 = vadd.f32 %v80, %v422
  %v424 = vpop.f32.mrb[0].mxu0
  %425 = vmatprep.mubr.bf16.mxu0 %v180
  %426 = vmatmul.mubr.bf16.gmra.mrb[0].mxu0 %v179
  %v427 = vpop.f32.mrb[0].mxu0
  %v428 = vadd.f32 %v80, %v427
  %v429 = vpop.f32.mrb[0].mxu0
  %v430 = vpop.f32.mrb[0].mxu0
  %v431 = vadd.f32 %v80, %v430
  %v432 = vpop.f32.mrb[0].mxu0
  %433 = vmatprep.mubr.bf16.mxu0 %v182
  %434 = vmatmul.mubr.bf16.gmra.mrb[0].mxu0 %v181
  %v435 = vpop.f32.mrb[0].mxu0
  %v436 = vadd.f32 %v80, %v435
  %v437 = vpop.f32.mrb[0].mxu0
  %v438 = vpop.f32.mrb[0].mxu0
  %v439 = vpop.f32.mrb[0].mxu0
  %440 = vdwg.mxu0
  %vm441 = vcmp.ge.f32.partialorder %v340, 0.0
  %vm442 = vcmp.ge.f32.partialorder %v343, 0.0
  %vm443 = vcmp.ge.f32.partialorder %v348, 0.0
  %vm444 = vcmp.ge.f32.partialorder %v351, 0.0
  %vm445 = vcmp.ge.f32.partialorder %v356, 0.0
  %vm446 = vcmp.ge.f32.partialorder %v359, 0.0
  %vm447 = vcmp.ge.f32.partialorder %v364, 0.0
  %vm448 = vcmp.ge.f32.partialorder %v367, 0.0
  %vm449 = vcmp.ge.f32.partialorder %v372, 0.0
  %vm450 = vcmp.ge.f32.partialorder %v375, 0.0
  %vm451 = vcmp.ge.f32.partialorder %v380, 0.0
  %vm452 = vcmp.ge.f32.partialorder %v383, 0.0
  %vm453 = vcmp.ge.f32.partialorder %v388, 0.0
  %vm454 = vcmp.ge.f32.partialorder %v391, 0.0
  %vm455 = vcmp.ge.f32.partialorder %v396, 0.0
  %vm456 = vcmp.ge.f32.partialorder %v399, 0.0
  %vm457 = vcmp.ge.f32.partialorder %v404, 0.0
  %vm458 = vcmp.ge.f32.partialorder %v407, 0.0
  %vm459 = vcmp.ge.f32.partialorder %v412, 0.0
  %vm460 = vcmp.ge.f32.partialorder %v415, 0.0
  %vm461 = vcmp.ge.f32.partialorder %v420, 0.0
  %vm462 = vcmp.ge.f32.partialorder %v423, 0.0
  %vm463 = vcmp.ge.f32.partialorder %v428, 0.0
  %vm464 = vcmp.ge.f32.partialorder %v431, 0.0
  %vm465 = vcmp.ge.f32.partialorder %v436, 0.0
  %v466 = vld [vmem:[%s3] sm:$0x1]
  %v468 = vlaneseq
  %v469 = vshrl.u32 %v468, 7
  %v470 = vsub.s32 0, %v469
  %v471 = vrot.slane %v466, %v470
  %v473 = vmul.f32 %v471, %v340
  %v474 = vmul.f32 %v471, %v343
  %v475 = vmul.f32 %v471, %v348
  %v476 = vmul.f32 %v471, %v351
  %v477 = vmul.f32 %v471, %v356
  %v478 = vmul.f32 %v471, %v359
  %v479 = vmul.f32 %v471, %v364
  %v480 = vmul.f32 %v471, %v367
  %v481 = vmul.f32 %v471, %v372
  %v482 = vmul.f32 %v471, %v375
  %v483 = vmul.f32 %v471, %v380
  %v484 = vmul.f32 %v471, %v383
  %v485 = vmul.f32 %v471, %v388
  %v486 = vmul.f32 %v471, %v391
  %v487 = vmul.f32 %v471, %v396
  %v488 = vmul.f32 %v471, %v399
  %v489 = vmul.f32 %v471, %v404
  %v490 = vmul.f32 %v471, %v407
  %v491 = vmul.f32 %v471, %v412
  %v492 = vmul.f32 %v471, %v415
  %v493 = vmul.f32 %v471, %v420
  %v494 = vmul.f32 %v471, %v423
  %v495 = vmul.f32 %v471, %v428
  %v496 = vmul.f32 %v471, %v431
  %v497 = vmul.f32 %v471, %v436
  %v498 = vsel %vm441, %v340, %v473
  %v499 = vsel %vm442, %v343, %v474
  %v500 = vsel %vm443, %v348, %v475
  %v501 = vsel %vm444, %v351, %v476
  %v502 = vsel %vm445, %v356, %v477
  %v503 = vsel %vm446, %v359, %v478
  %v504 = vsel %vm447, %v364, %v479
  %v505 = vsel %vm448, %v367, %v480
  %v506 = vsel %vm449, %v372, %v481
  %v507 = vsel %vm450, %v375, %v482
  %v508 = vsel %vm451, %v380, %v483
  %v509 = vsel %vm452, %v383, %v484
  %v510 = vsel %vm453, %v388, %v485
  %v511 = vsel %vm454, %v391, %v486
  %v512 = vsel %vm455, %v396, %v487
  %v513 = vsel %vm456, %v399, %v488
  %v514 = vsel %vm457, %v404, %v489
  %v515 = vsel %vm458, %v407, %v490
  %v516 = vsel %vm459, %v412, %v491
  %v517 = vsel %vm460, %v415, %v492
  %v518 = vsel %vm461, %v420, %v493
  %v519 = vsel %vm462, %v423, %v494
  %v520 = vsel %vm463, %v428, %v495
  %v521 = vsel %vm464, %v431, %v496
  %v522 = vsel %vm465, %v436, %v497
  %vm523 = vcmask 261120
  %524 = vst.msk [vmem:[%s4] sm:$0xff] %vm523, %v498
  %525 = vst.msk [vmem:[%s4 + $0x8] sm:$0xff] %vm523, %v499
  %526 = vst.msk [vmem:[%s4 + $0x10] sm:$0xff] %vm523, %v500
  %527 = vst.msk [vmem:[%s4 + $0x18] sm:$0xff] %vm523, %v501
  %528 = vst.msk [vmem:[%s4 + $0x20] sm:$0xff] %vm523, %v502
  %529 = vst.msk [vmem:[%s4 + $0x28] sm:$0xff] %vm523, %v503
  %530 = vst.msk [vmem:[%s4 + $0x30] sm:$0xff] %vm523, %v504
  %531 = vst.msk [vmem:[%s4 + $0x38] sm:$0xff] %vm523, %v505
  %532 = vst.msk [vmem:[%s4 + $0x40] sm:$0xff] %vm523, %v506
  %533 = vst.msk [vmem:[%s4 + $0x48] sm:$0xff] %vm523, %v507
  %534 = vst.msk [vmem:[%s4 + $0x50] sm:$0xff] %vm523, %v508
  %535 = vst.msk [vmem:[%s4 + $0x58] sm:$0xff] %vm523, %v509
  %536 = vst.msk [vmem:[%s4 + $0x60] sm:$0xff] %vm523, %v510
  %537 = vst.msk [vmem:[%s4 + $0x68] sm:$0xff] %vm523, %v511
  %538 = vst.msk [vmem:[%s4 + $0x70] sm:$0xff] %vm523, %v512
  %539 = vst.msk [vmem:[%s4 + $0x78] sm:$0xff] %vm523, %v513
  %540 = vst.msk [vmem:[%s4 + $0x80] sm:$0xff] %vm523, %v514
  %541 = vst.msk [vmem:[%s4 + $0x88] sm:$0xff] %vm523, %v515
  %542 = vst.msk [vmem:[%s4 + $0x90] sm:$0xff] %vm523, %v516
  %543 = vst.msk [vmem:[%s4 + $0x98] sm:$0xff] %vm523, %v517
  %544 = vst.msk [vmem:[%s4 + $0xa0] sm:$0xff] %vm523, %v518
  %545 = vst.msk [vmem:[%s4 + $0xa8] sm:$0xff] %vm523, %v519
  %546 = vst.msk [vmem:[%s4 + $0xb0] sm:$0xff] %vm523, %v520
  %547 = vst.msk [vmem:[%s4 + $0xb8] sm:$0xff] %vm523, %v521
  %548 = vst.msk [vmem:[%s4 + $0xc0] sm:$0xff] %vm523, %v522
  // Predicated region
  $region18: #{tf_gridnet_forward.38} parent=0 // pred_check
    _
  $region19: #{tf_gridnet_forward.38} parent=0 // pred_check_branch
    %550 = sbr.rel (0) target = $region21
  $region20: #{tf_gridnet_forward.38} parent=0 // pred_region
    _
  $region21: #{tf_gridnet_forward.38} parent=0 // pred_fallthru
    _
  // Predicated region
  $region22: #{tf_gridnet_forward.38} parent=0 // pred_check
    _
  $region23: #{tf_gridnet_forward.38} parent=0 // pred_check_branch
    %552 = sbr.rel (0) target = $region25
  $region24: #{tf_gridnet_forward.38} parent=0 // pred_region
    _
  $region25: #{tf_gridnet_forward.38} parent=0 // pred_fallthru
    _

// kernel: tf_gridnet_forward.36
$region0: #{tf_gridnet_forward.36}
  #allocation0 [shape = 'u32[]', space=smem, size = 0x4, offset = 0x4, fixed_abs, tag = 'smem constant byte address 0x4 - core index']
  #allocation1 [shape = 'u32[144,128]{1,0:T(1,128)}', space=vmem, size = 0x12000, scoped, tag = 'internal scratch']
  %s0 = inlined_call_operand.vmem [shape: bf16[200,32], index: 0, kind: input, shape index: {}]
  %s1 = inlined_call_operand.vmem [shape: bf16[32,1024], index: 1, kind: input, shape index: {}]
  %s2 = inlined_call_operand.vmem [shape: f32[1,1024], index: 2, kind: input, shape index: {}]
  %s3 = inlined_call_operand.vmem [shape: f32[1,1024], index: 3, kind: input, shape index: {}]
  %s4 = inlined_call_operand.vmem [shape: bf16[200,1024], index: 4, kind: output, shape index: {}]
  %s5 = sld [smem:[#allocation0]]
  $region91: #{tf_gridnet_forward.36} parent=0
    _
  %s7 = ssub.s32 1, %s5
  %s8 = scalar_select 0, %s7, %s5
  $region1: #{tf_gridnet_forward.36} parent=0
    #allocation2 [shape = 'u8[65536]{0}', space=vmem, size = 0x10000, scoped, tag = 'input window, operand 1']
    #allocation3 [shape = 'u8[409600]{0}', space=vmem, size = 0x64000, scoped, tag = 'output window, operand 0']
    loop: start=0, step=1, limit=4
    $region2: #{tf_gridnet_forward.36} parent=1 // loop_pre_header
      _
    $region3: #{tf_gridnet_forward.36} parent=1 // loop_header
      %s10 = sphi 0, %s14
      %p11 = scmp.ge.s32.totalorder %s10, 4
      %s17 = sphi 0, %s29
      %s18 = sphi 0, %s25
      %s19 = sphi 0, %s17
      %s20 = sphi 0, %s18
      %s21 = sphi 0, %s19
      %s22 = sphi 0, %s20
      %s32 = sphi 0, %s34
      %s35 = sphi 0, %s32
      %s36 = sphi 0, %s35
      %s52 = sphi 0, %s36
      %s58 = sphi 0, %s60
      %s61 = sphi 0, %s58
      %s62 = sphi 0, %s61
      %s78 = sphi 0, %s62
      %s84 = sphi 0, %s86
      %s87 = sphi 0, %s84
      %s88 = sphi 0, %s87
      %s104 = sphi 0, %s88
      %s110 = sphi 0, %s112
      %s113 = sphi 0, %s110
      %s114 = sphi 0, %s113
      %s130 = sphi 0, %s114
      %s138 = sphi 0, %s140
      %s141 = sphi 0, %s138
      %s142 = sphi 0, %s141
      %s158 = sphi 0, %s142
    $region4: #{tf_gridnet_forward.36} parent=1 // loop_header_branch
      %13 = sbr.rel (%p11) target = $region8
    $region5: #{tf_gridnet_forward.36} parent=1 // loop_body
      %s15 = ssub.s32 %s10, 1
      %s16 = ssub.s32 %s10, 2
      %s23 = sadd.s32 1, %s18
      %p24 = scmp.ge.s32.totalorder %s23, 2
      %s25 = scalar_select %p24, 0, %s23
      %s26 = sadd.s32 1, %s17
      %s27 = scalar_select %p24, %s26, %s17
      %p28 = scmp.ge.s32.totalorder %s27, 1
      %s29 = scalar_select %p28, 0, %s27
      %s30 = ssub.s32 %s17, %s29
      %p31 = scmp.eq.s32.totalorder %s30, 0
      %s33 = sadd.s32 %s32, 1
      %s34 = scalar_select %p31, %s32, %s33
      %p37 = pneg %p31
      %p38 = scmp.eq.s32.totalorder %s10, 1
      %p39 = por %p37, %p38
      %p40 = scmp.ne.s32.totalorder %s32, %s35
      %p41 = scmp.eq.s32.totalorder %s10, 0
      %p42 = por %p40, %p41
      %p43 = scmp.ne.s32.totalorder %s32, %s35
      %p44 = scmp.eq.s32.totalorder %s15, 1
      %p45 = por %p43, %p44
      %p46 = scmp.ne.s32.totalorder %s35, %s36
      %p47 = scmp.eq.s32.totalorder %s15, 0
      %p48 = por %p46, %p47
      %p49 = scmp.ne.s32.totalorder %s35, %s36
      %p50 = scmp.eq.s32.totalorder %s16, 1
      %p51 = por %p49, %p50
      %p53 = scmp.ne.s32.totalorder %s36, %s52
      %p54 = scmp.eq.s32.totalorder %s16, 0
      %p55 = por %p53, %p54
      %s56 = ssub.s32 %s18, %s25
      %p57 = scmp.eq.s32.totalorder %s56, 0
      %s59 = sadd.s32 %s58, 1
      %s60 = scalar_select %p57, %s58, %s59
      %p63 = pneg %p57
      %p64 = scmp.eq.s32.totalorder %s10, 1
      %p65 = por %p63, %p64
      %p66 = scmp.ne.s32.totalorder %s58, %s61
      %p67 = scmp.eq.s32.totalorder %s10, 0
      %p68 = por %p66, %p67
      %p69 = scmp.ne.s32.totalorder %s58, %s61
      %p70 = scmp.eq.s32.totalorder %s15, 1
      %p71 = por %p69, %p70
      %p72 = scmp.ne.s32.totalorder %s61, %s62
      %p73 = scmp.eq.s32.totalorder %s15, 0
      %p74 = por %p72, %p73
      %p75 = scmp.ne.s32.totalorder %s61, %s62
      %p76 = scmp.eq.s32.totalorder %s16, 1
      %p77 = por %p75, %p76
      %p79 = scmp.ne.s32.totalorder %s62, %s78
      %p80 = scmp.eq.s32.totalorder %s16, 0
      %p81 = por %p79, %p80
      %s82 = ssub.s32 %s18, %s25
      %p83 = scmp.eq.s32.totalorder %s82, 0
      %s85 = sadd.s32 %s84, 1
      %s86 = scalar_select %p83, %s84, %s85
      %p89 = pneg %p83
      %p90 = scmp.eq.s32.totalorder %s10, 1
      %p91 = por %p89, %p90
      %p92 = scmp.ne.s32.totalorder %s84, %s87
      %p93 = scmp.eq.s32.totalorder %s10, 0
      %p94 = por %p92, %p93
      %p95 = scmp.ne.s32.totalorder %s84, %s87
      %p96 = scmp.eq.s32.totalorder %s15, 1
      %p97 = por %p95, %p96
      %p98 = scmp.ne.s32.totalorder %s87, %s88
      %p99 = scmp.eq.s32.totalorder %s15, 0
      %p100 = por %p98, %p99
      %p101 = scmp.ne.s32.totalorder %s87, %s88
      %p102 = scmp.eq.s32.totalorder %s16, 1
      %p103 = por %p101, %p102
      %p105 = scmp.ne.s32.totalorder %s88, %s104
      %p106 = scmp.eq.s32.totalorder %s16, 0
      %p107 = por %p105, %p106
      %s108 = ssub.s32 %s18, %s25
      %p109 = scmp.eq.s32.totalorder %s108, 0
      %s111 = sadd.s32 %s110, 1
      %s112 = scalar_select %p109, %s110, %s111
      %p115 = pneg %p109
      %p116 = scmp.eq.s32.totalorder %s10, 1
      %p117 = por %p115, %p116
      %p118 = scmp.ne.s32.totalorder %s110, %s113
      %p119 = scmp.eq.s32.totalorder %s10, 0
      %p120 = por %p118, %p119
      %p121 = scmp.ne.s32.totalorder %s110, %s113
      %p122 = scmp.eq.s32.totalorder %s15, 1
      %p123 = por %p121, %p122
      %p124 = scmp.ne.s32.totalorder %s113, %s114
      %p125 = scmp.eq.s32.totalorder %s15, 0
      %p126 = por %p124, %p125
      %p127 = scmp.ne.s32.totalorder %s113, %s114
      %p128 = scmp.eq.s32.totalorder %s16, 1
      %p129 = por %p127, %p128
      %p131 = scmp.ne.s32.totalorder %s114, %s130
      %p132 = scmp.eq.s32.totalorder %s16, 0
      %p133 = por %p131, %p132
      %s134 = ssub.s32 %s17, %s29
      %s135 = ssub.s32 %s18, %s25
      %s136 = sor.u32 %s134, %s135
      %p137 = scmp.eq.s32.totalorder %s136, 0
      %s139 = sadd.s32 %s138, 1
      %s140 = scalar_select %p137, %s138, %s139
      %p143 = pneg %p137
      %p144 = scmp.eq.s32.totalorder %s10, 1
      %p145 = por %p143, %p144
      %p146 = scmp.ne.s32.totalorder %s138, %s141
      %p147 = scmp.eq.s32.totalorder %s10, 0
      %p148 = por %p146, %p147
      %p149 = scmp.ne.s32.totalorder %s138, %s141
      %p150 = scmp.eq.s32.totalorder %s15, 1
      %p151 = por %p149, %p150
      %p152 = scmp.ne.s32.totalorder %s141, %s142
      %p153 = scmp.eq.s32.totalorder %s15, 0
      %p154 = por %p152, %p153
      %p155 = scmp.ne.s32.totalorder %s141, %s142
      %p156 = scmp.eq.s32.totalorder %s16, 1
      %p157 = por %p155, %p156
      %p159 = scmp.ne.s32.totalorder %s142, %s158
      %p160 = scmp.eq.s32.totalorder %s16, 0
      %p161 = por %p159, %p160
      %p162 = scmp.le.s32.totalorder 1, %s10
      %p163 = scmp.lt.s32.totalorder %s10, 3
      %p164 = pnand %p162, %p163
      %p165 = pneg %p164
      // Predicated region
      $region9: #{tf_gridnet_forward.36} parent=5 // pred_check
        _
      $region10: #{tf_gridnet_forward.36} parent=5 // pred_check_branch
        %167 = sbr.rel (%p164) target = $region12
      $region11: #{tf_gridnet_forward.36} parent=5 // pred_region
        %s168 = ssub.s32 %s10, 1
        // Predicated region
        $region13: #{tf_gridnet_forward.36} parent=11 // pred_check
          %p169 = pneg %p48
        $region14: #{tf_gridnet_forward.36} parent=11 // pred_check_branch
          %171 = sbr.rel (%p169) target = $region16
        $region15: #{tf_gridnet_forward.36} parent=11 // pred_region
          %s172 = smul.u32 25, %s19
          %p173 = scmp.lt.s32.totalorder %s172, 24
          %s174 = scalar_select %p173, %s172, 24
          %s175 = smul.addr %s174, 4
          %s176 = scalar_lea.vmem %s0, %s175
          %s177 = smul.u32 25, %s19
        $region16: #{tf_gridnet_forward.36} parent=11 // pred_fallthru
          _
      $region12: #{tf_gridnet_forward.36} parent=5 // pred_fallthru
        _
      %p178 = scmp.lt.s32.totalorder %s10, 2
      // Predicated region
      $region17: #{tf_gridnet_forward.36} parent=5 // pred_check
        %p179 = pneg %p178
      $region18: #{tf_gridnet_forward.36} parent=5 // pred_check_branch
        %181 = sbr.rel (%p179) target = $region20
      $region19: #{tf_gridnet_forward.36} parent=5 // pred_region
        // Predicated region
        $region21: #{tf_gridnet_forward.36} parent=19 // pred_check
          %p182 = pneg %p68
        $region22: #{tf_gridnet_forward.36} parent=19 // pred_check_branch
          %184 = sbr.rel (%p182) target = $region24
        $region23: #{tf_gridnet_forward.36} parent=19 // pred_region
          %s185 = sand.u32 %s58, 1
          %s186 = sand.u32 %s58, 1
          %s187 = smul.addr %s186, 64
          %s188 = scalar_lea.vmem [#allocation2], %s187
          %s189 = smul.u32 4, %s18
          %s190 = smul.addr %s189, 4
          %s191 = scalar_lea.vmem %s1, %s190
          // Predicated region
          $region25: #{tf_gridnet_forward.36} parent=23 // pred_check
            _
          $region26: #{tf_gridnet_forward.36} parent=23 // pred_check_branch
            %193 = sbr.rel (0) target = $region28
          $region27: #{tf_gridnet_forward.36} parent=23 // pred_region
            // Predicated region
            $region29: #{tf_gridnet_forward.36} parent=27 // pred_check
              _
            $region30: #{tf_gridnet_forward.36} parent=27 // pred_check_branch
              %195 = sbr.rel (0) target = $region32
            $region31: #{tf_gridnet_forward.36} parent=27 // pred_region
              loop: start=0, step=1, limit=1
              $region33: #{tf_gridnet_forward.36} parent=31 // loop_pre_header
                _
              $region34: #{tf_gridnet_forward.36} parent=31 // loop_header
                %s197 = sphi 0, %s201
                %p198 = scmp.ge.s32.totalorder %s197, 1
                %s202 = sphi %s191, %s191
                %s203 = sphi %s188, %s188
              $region35: #{tf_gridnet_forward.36} parent=31 // loop_header_branch
                %200 = sbr.rel (%p198) target = $region39
              $region36: #{tf_gridnet_forward.36} parent=31 // loop_body
                %v204 = vld [vmem:[%s202] sm:$0xff]
                %205 = vst [vmem:[%s203] sm:$0xff] %v204
                %v206 = vld [vmem:[%s202 + $0x8] sm:$0xff]
                %207 = vst [vmem:[%s203 + $0x8] sm:$0xff] %v206
                %v208 = vld [vmem:[%s202 + $0x20] sm:$0xff]
                %209 = vst [vmem:[%s203 + $0x10] sm:$0xff] %v208
                %v210 = vld [vmem:[%s202 + $0x28] sm:$0xff]
                %211 = vst [vmem:[%s203 + $0x18] sm:$0xff] %v210
                %v212 = vld [vmem:[%s202 + $0x40] sm:$0xff]
                %213 = vst [vmem:[%s203 + $0x20] sm:$0xff] %v212
                %v214 = vld [vmem:[%s202 + $0x48] sm:$0xff]
                %215 = vst [vmem:[%s203 + $0x28] sm:$0xff] %v214
                %v216 = vld [vmem:[%s202 + $0x60] sm:$0xff]
                %217 = vst [vmem:[%s203 + $0x30] sm:$0xff] %v216
                %v218 = vld [vmem:[%s202 + $0x68] sm:$0xff]
                %219 = vst [vmem:[%s203 + $0x38] sm:$0xff] %v218
              $region37: #{tf_gridnet_forward.36} parent=31 // loop_footer
                %s201 = sadd.s32 1, %s197
              $region38: #{tf_gridnet_forward.36} parent=31 // loop_footer_branch
                %196 = sbr.rel target = $region34
              $region39: #{tf_gridnet_forward.36} parent=31 // loop_exit
                _
            $region32: #{tf_gridnet_forward.36} parent=27 // pred_fallthru
              _
            // Predicated region
            $region40: #{tf_gridnet_forward.36} parent=27 // pred_check
              _
            $region41: #{tf_gridnet_forward.36} parent=27 // pred_check_branch
              %221 = sbr.rel target = $region43
            $region42: #{tf_gridnet_forward.36} parent=27 // pred_region
              _
            $region43: #{tf_gridnet_forward.36} parent=27 // pred_fallthru
              _
          $region28: #{tf_gridnet_forward.36} parent=23 // pred_fallthru
            _
          %222 = vnop
        $region24: #{tf_gridnet_forward.36} parent=19 // pred_fallthru
          _
        // Predicated region
        $region44: #{tf_gridnet_forward.36} parent=19 // pred_check
          %p223 = pneg %p94
        $region45: #{tf_gridnet_forward.36} parent=19 // pred_check_branch
          %225 = sbr.rel (%p223) target = $region47
        $region46: #{tf_gridnet_forward.36} parent=19 // pred_region
          %s226 = smul.u32 4, %s18
          %p227 = scmp.lt.s32.totalorder %s226, 7
          %s228 = scalar_select %p227, %s226, 7
          %s229 = scalar_lea.vmem %s2, %s228
          %s230 = smul.u32 4, %s18
        $region47: #{tf_gridnet_forward.36} parent=19 // pred_fallthru
          _
        // Predicated region
        $region48: #{tf_gridnet_forward.36} parent=19 // pred_check
          %p231 = pneg %p120
        $region49: #{tf_gridnet_forward.36} parent=19 // pred_check_branch
          %233 = sbr.rel (%p231) target = $region51
        $region50: #{tf_gridnet_forward.36} parent=19 // pred_region
          %s234 = smul.u32 4, %s18
          %p235 = scmp.lt.s32.totalorder %s234, 7
          %s236 = scalar_select %p235, %s234, 7
          %s237 = scalar_lea.vmem %s3, %s236
          %s238 = smul.u32 4, %s18
        $region51: #{tf_gridnet_forward.36} parent=19 // pred_fallthru
          _
      $region20: #{tf_gridnet_forward.36} parent=5 // pred_fallthru
        _
      %p239 = scmp.le.s32.totalorder 1, %s10
      %p240 = scmp.lt.s32.totalorder %s10, 3
      %p241 = pnand %p239, %p240
      %p242 = pneg %p241
      // Predicated region
      $region52: #{tf_gridnet_forward.36} parent=5 // pred_check
        _
      $region53: #{tf_gridnet_forward.36} parent=5 // pred_check_branch
        %244 = sbr.rel (%p241) target = $region55
      $region54: #{tf_gridnet_forward.36} parent=5 // pred_region
        %s245 = ssub.s32 %s10, 1
        %s246 = sand.u32 %s61, 1
        %s247 = sand.u32 %s61, 1
        %s248 = smul.addr %s247, 64
        %s249 = scalar_lea.vmem [#allocation2], %s248
        // Predicated region
        $region56: #{tf_gridnet_forward.36} parent=54 // pred_check
          %p250 = pneg %p74
        $region57: #{tf_gridnet_forward.36} parent=54 // pred_check_branch
          %252 = sbr.rel (%p250) target = $region59
        $region58: #{tf_gridnet_forward.36} parent=54 // pred_region
          _
        $region59: #{tf_gridnet_forward.36} parent=54 // pred_fallthru
          _
        %s253 = smul.u32 25, %s19
        %p254 = scmp.lt.s32.totalorder %s253, 24
        %s255 = scalar_select %p254, %s253, 24
        %s256 = smul.addr %s255, 4
        %s257 = scalar_lea.vmem %s0, %s256
        %p258 = pneg %p48
        %p259 = pneg %p45
        %s260 = sand.u32 %s61, 1
        %s261 = sand.u32 %s61, 1
        %s262 = smul.addr %s261, 64
        %s263 = scalar_lea.vmem [#allocation2], %s262
        %p264 = pneg %p74
        %p265 = pneg %p71
        %s266 = smul.u32 4, %s20
        %p267 = scmp.lt.s32.totalorder %s266, 7
        %s268 = scalar_select %p267, %s266, 7
        %s269 = scalar_lea.vmem %s2, %s268
        %p270 = pneg %p100
        %p271 = pneg %p97
        %s272 = smul.u32 4, %s20
        %p273 = scmp.lt.s32.totalorder %s272, 7
        %s274 = scalar_select %p273, %s272, 7
        %s275 = scalar_lea.vmem %s3, %s274
        %p276 = pneg %p126
        %p277 = pneg %p123
        %p278 = pneg %p154
        %p279 = pneg %p151
        %s280 = sand.u32 %s141, 1
        %s281 = sand.u32 %s141, 1
        %s282 = smul.addr %s281, 400
        %s283 = scalar_lea.vmem [#allocation3], %s282
        %s284 = smul.u32 25, %s19
        %p285 = scmp.lt.s32.totalorder %s284, 24
        %s286 = scalar_select %p285, %s284, 24
        %s287 = smul.addr %s286, 4
        %s288 = scalar_lea.vmem %s0, %s287
        %s289 = smul.u32 25, %s19
        %s290 = smul.u32 4, %s20
        %s291 = smul.u32 4, %s20
        %p292 = scmp.lt.s32.totalorder %s291, 7
        %s293 = scalar_select %p292, %s291, 7
        %s294 = scalar_lea.vmem %s2, %s293
        %s295 = smul.u32 4, %s20
        %s296 = smul.u32 4, %s20
        %p297 = scmp.lt.s32.totalorder %s296, 7
        %s298 = scalar_select %p297, %s296, 7
        %s299 = scalar_lea.vmem %s3, %s298
        %s300 = smul.u32 4, %s20
        %s301 = smul.u32 25, %s19
        %s302 = smul.u32 4, %s20
        %v304 = vld [vmem:[%s288] sm:$0xf]
        %v305 = vld [vmem:[%s288 + $0x4] sm:$0xf]
        %v306 = vld [vmem:[%s288 + $0x8] sm:$0xf]
        %v307 = vld [vmem:[%s288 + $0xc] sm:$0xf]
        %v308 = vld [vmem:[%s288 + $0x10] sm:$0xf]
        %v309 = vld [vmem:[%s288 + $0x14] sm:$0xf]
        %v310 = vld [vmem:[%s288 + $0x18] sm:$0xf]
        %v311 = vld [vmem:[%s288 + $0x1c] sm:$0xf]
        %v312 = vld [vmem:[%s288 + $0x20] sm:$0xf]
        %v313 = vld [vmem:[%s288 + $0x24] sm:$0xf]
        %v314 = vld [vmem:[%s288 + $0x28] sm:$0xf]
        %v315 = vld [vmem:[%s288 + $0x2c] sm:$0xf]
        %v316 = vld [vmem:[%s288 + $0x30] sm:$0xf]
        %v317 = vld [vmem:[%s288 + $0x34] sm:$0xf]
        %v318 = vld [vmem:[%s288 + $0x38] sm:$0xf]
        %v319 = vld [vmem:[%s288 + $0x3c] sm:$0xf]
        %v320 = vld [vmem:[%s288 + $0x40] sm:$0xf]
        %v321 = vld [vmem:[%s288 + $0x44] sm:$0xf]
        %v322 = vld [vmem:[%s288 + $0x48] sm:$0xf]
        %v323 = vld [vmem:[%s288 + $0x4c] sm:$0xf]
        %v324 = vld [vmem:[%s288 + $0x50] sm:$0xf]
        %v325 = vld [vmem:[%s288 + $0x54] sm:$0xf]
        %v326 = vld [vmem:[%s288 + $0x58] sm:$0xf]
        %v327 = vld [vmem:[%s288 + $0x5c] sm:$0xf]
        %v328 = vld [vmem:[%s288 + $0x60] sm:$0xf]
        %v329 = vld [vmem:[%s249] sm:$0xff]
        %v330 = vld [vmem:[%s249 + $0x8] sm:$0xff]
        %v331 = vld [vmem:[%s249 + $0x10] sm:$0xff]
        %v332 = vld [vmem:[%s249 + $0x18] sm:$0xff]
        %v333 = vld [vmem:[%s249 + $0x20] sm:$0xff]
        %v334 = vld [vmem:[%s249 + $0x28] sm:$0xff]
        %v335 = vld [vmem:[%s249 + $0x30] sm:$0xff]
        %v336 = vld [vmem:[%s249 + $0x38] sm:$0xff]
        %v337 = vld [vmem:[%s294] sm:$0xf]
        %v339 = vlaneseq
        %v340 = vshrl.u32 %v339, 7
        %v341 = vsub.s32 0, %v340
        %v342 = vrot.slane %v337, %v341
        %v343 = vlaneseq
        %v344 = vshrl.u32 %v343, 7
        %v345 = vsub.s32 1, %v344
        %v346 = vrot.slane %v337, %v345
        %v347 = vlaneseq
        %v348 = vshrl.u32 %v347, 7
        %v349 = vsub.s32 2, %v348
        %v350 = vrot.slane %v337, %v349
        %v351 = vlaneseq
        %v352 = vshrl.u32 %v351, 7
        %v353 = vsub.s32 3, %v352
        %v354 = vrot.slane %v337, %v353
        %v384 = vunpack.c.l.b16 %v304
        %v385 = vunpack.c.l.b16 %v305
        %v386 = vunpack.c.l.b16 %v306
        %v387 = vunpack.c.l.b16 %v307
        %v388 = vunpack.c.l.b16 %v308
        %v389 = vunpack.c.l.b16 %v309
        %v390 = vunpack.c.l.b16 %v310
        %v391 = vunpack.c.l.b16 %v311
        %v392 = vunpack.c.l.b16 %v312
        %v393 = vunpack.c.l.b16 %v313
        %v394 = vunpack.c.l.b16 %v314
        %v395 = vunpack.c.l.b16 %v315
        %v396 = vunpack.c.l.b16 %v316
        %v397 = vunpack.c.l.b16 %v317
        %v398 = vunpack.c.l.b16 %v318
        %v399 = vunpack.c.l.b16 %v319
        %v400 = vunpack.c.l.b16 %v320
        %v401 = vunpack.c.l.b16 %v321
        %v402 = vunpack.c.l.b16 %v322
        %v403 = vunpack.c.l.b16 %v323
        %v404 = vunpack.c.l.b16 %v324
        %v405 = vunpack.c.l.b16 %v325
        %v406 = vunpack.c.l.b16 %v326
        %v407 = vunpack.c.l.b16 %v327
        %v408 = vunpack.c.l.b16 %v328
        %v409 = vpack.c.b16 %v385, %v384
        %v410 = vpack.c.b16 %v387, %v386
        %v411 = vpack.c.b16 %v389, %v388
        %v412 = vpack.c.b16 %v391, %v390
        %v413 = vpack.c.b16 %v393, %v392
        %v414 = vpack.c.b16 %v395, %v394
        %v415 = vpack.c.b16 %v397, %v396
        %v416 = vpack.c.b16 %v399, %v398
        %v417 = vpack.c.b16 %v401, %v400
        %v418 = vpack.c.b16 %v403, %v402
        %v419 = vpack.c.b16 %v405, %v404
        %v420 = vpack.c.b16 %v407, %v406
        %v421 = vpack.c.b16 %v408, %v408
        %v430 = vunpack.c.l.b16 %v329
        %v431 = vunpack.c.h.b16 %v329
        %v432 = vunpack.c.l.b16 %v330
        %v433 = vunpack.c.h.b16 %v330
        %v434 = vunpack.c.l.b16 %v331
        %v435 = vunpack.c.h.b16 %v331
        %v436 = vunpack.c.l.b16 %v332
        %v437 = vunpack.c.h.b16 %v332
        %v438 = vunpack.c.l.b16 %v333
        %v439 = vunpack.c.h.b16 %v333
        %v440 = vunpack.c.l.b16 %v334
        %v441 = vunpack.c.h.b16 %v334
        %v442 = vunpack.c.l.b16 %v335
        %v443 = vunpack.c.h.b16 %v335
        %v444 = vunpack.c.l.b16 %v336
        %v445 = vunpack.c.h.b16 %v336
        %v446 = vpack.c.b16 %v434, %v430
        %v447 = vpack.c.b16 %v435, %v431
        %v448 = vpack.c.b16 %v436, %v432
        %v449 = vpack.c.b16 %v437, %v433
        %v450 = vpack.c.b16 %v442, %v438
        %v451 = vpack.c.b16 %v443, %v439
        %v452 = vpack.c.b16 %v444, %v440
        %v453 = vpack.c.b16 %v445, %v441
        %vm462 = vcmask 261120
        %v464 = vsel %vm462, %v409, 0
        %v467 = vsel %vm462, %v410, 0
        %v470 = vsel %vm462, %v411, 0
        %v473 = vsel %vm462, %v412, 0
        %v476 = vsel %vm462, %v413, 0
        %v479 = vsel %vm462, %v414, 0
        %v482 = vsel %vm462, %v415, 0
        %v485 = vsel %vm462, %v416, 0
        %v488 = vsel %vm462, %v417, 0
        %v491 = vsel %vm462, %v418, 0
        %v494 = vsel %vm462, %v419, 0
        %v497 = vsel %vm462, %v420, 0
        %v500 = vsel %vm462, %v421, 0
        %502 = vmatprep.subr.bf16.mxu0 %v447
        %503 = vmatpush1.bf16.msra.mxu0 %v446
        %504 = vmatprep.subr.bf16.mxu0 %v451
        %505 = vmatpush1.bf16.msra.mxu0 %v450
        %506 = vmatprep.subr.bf16.mxu0 0
        %507 = vmatpush1.bf16.msra.mxu0 0
        %508 = vmatprep.subr.bf16.mxu0 0
        %509 = vmatpush1.bf16.msra.mxu0 0
        %510 = vmatprep.subr.bf16.mxu0 0
        %511 = vmatpush1.bf16.msra.mxu0 0
        %512 = vmatprep.subr.bf16.mxu0 0
        %513 = vmatpush1.bf16.msra.mxu0 0
        %514 = vmatprep.subr.bf16.mxu0 0
        %515 = vmatpush1.bf16.msra.mxu0 0
        %516 = vmatprep.subr.bf16.mxu0 0
        %517 = vmatpush1.bf16.msra.mxu0 0
        %518 = vmatprep.subr.bf16.mxu0 0
        %519 = vmatpush1.bf16.msra.mxu0 0
        %520 = vmatprep.subr.bf16.mxu0 0
        %521 = vmatpush1.bf16.msra.mxu0 0
        %522 = vmatprep.subr.bf16.mxu0 0
        %523 = vmatpush1.bf16.msra.mxu0 0
        %524 = vmatprep.subr.bf16.mxu0 0
        %525 = vmatpush1.bf16.msra.mxu0 0
        %526 = vmatprep.subr.bf16.mxu0 0
        %527 = vmatpush1.bf16.msra.mxu0 0
        %528 = vmatprep.subr.bf16.mxu0 0
        %529 = vmatpush1.bf16.msra.mxu0 0
        %530 = vmatprep.subr.bf16.mxu0 0
        %531 = vmatpush1.bf16.msra.mxu0 0
        %532 = vmatprep.subr.bf16.mxu0 0
        %533 = vmatpush1.bf16.msra.mxu0 0
        %534 = vmatprep.mubr.bf16.mxu0 0
        %535 = vmatmul.mubr.bf16.gmra.mrb[0].mxu0 %v464
        %v536 = vpop.f32.mrb[0].mxu0
        %v537 = vadd.f32 %v342, %v536
        %v538 = vpop.f32.mrb[0].mxu0
        %v539 = vadd.f32 %v346, %v538
        %v540 = vpop.f32.mrb[0].mxu0
        %v541 = vadd.f32 %v342, %v540
        %v542 = vpop.f32.mrb[0].mxu0
        %v543 = vadd.f32 %v346, %v542
        %544 = vmatprep.mubr.bf16.mxu0 0
        %545 = vmatmul.mubr.bf16.gmra.mrb[0].mxu0 %v467
        %v546 = vpop.f32.mrb[0].mxu0
        %v547 = vadd.f32 %v342, %v546
        %v548 = vpop.f32.mrb[0].mxu0
        %v549 = vadd.f32 %v346, %v548
        %v550 = vpop.f32.mrb[0].mxu0
        %v551 = vadd.f32 %v342, %v550
        %v552 = vpop.f32.mrb[0].mxu0
        %v553 = vadd.f32 %v346, %v552
        %554 = vmatprep.mubr.bf16.mxu0 0
        %555 = vmatmul.mubr.bf16.gmra.mrb[0].mxu0 %v470
        %v556 = vpop.f32.mrb[0].mxu0
        %v557 = vadd.f32 %v342, %v556
        %v558 = vpop.f32.mrb[0].mxu0
        %v559 = vadd.f32 %v346, %v558
        %v560 = vpop.f32.mrb[0].mxu0
        %v561 = vadd.f32 %v342, %v560
        %v562 = vpop.f32.mrb[0].mxu0
        %v563 = vadd.f32 %v346, %v562
        %564 = vmatprep.mubr.bf16.mxu0 0
        %565 = vmatmul.mubr.bf16.gmra.mrb[0].mxu0 %v473
        %v566 = vpop.f32.mrb[0].mxu0
        %v567 = vadd.f32 %v342, %v566
        %v568 = vpop.f32.mrb[0].mxu0
        %v569 = vadd.f32 %v346, %v568
        %v570 = vpop.f32.mrb[0].mxu0
        %v571 = vadd.f32 %v342, %v570
        %v572 = vpop.f32.mrb[0].mxu0
        %v573 = vadd.f32 %v346, %v572
        %574 = vmatprep.mubr.bf16.mxu0 0
        %575 = vmatmul.mubr.bf16.gmra.mrb[0].mxu0 %v476
        %v576 = vpop.f32.mrb[0].mxu0
        %v577 = vadd.f32 %v342, %v576
        %v578 = vpop.f32.mrb[0].mxu0
        %v579 = vadd.f32 %v346, %v578
        %v580 = vpop.f32.mrb[0].mxu0
        %v581 = vadd.f32 %v342, %v580
        %v582 = vpop.f32.mrb[0].mxu0
        %v583 = vadd.f32 %v346, %v582
        %584 = vmatprep.mubr.bf16.mxu0 0
        %585 = vmatmul.mubr.bf16.gmra.mrb[0].mxu0 %v479
        %v586 = vpop.f32.mrb[0].mxu0
        %v587 = vadd.f32 %v342, %v586
        %v588 = vpop.f32.mrb[0].mxu0
        %v589 = vadd.f32 %v346, %v588
        %v590 = vpop.f32.mrb[0].mxu0
        %v591 = vadd.f32 %v342, %v590
        %v592 = vpop.f32.mrb[0].mxu0
        %v593 = vadd.f32 %v346, %v592
        %594 = vmatprep.mubr.bf16.mxu0 0
        %595 = vmatmul.mubr.bf16.gmra.mrb[0].mxu0 %v482
        %v596 = vpop.f32.mrb[0].mxu0
        %v597 = vadd.f32 %v342, %v596
        %v598 = vpop.f32.mrb[0].mxu0
        %v599 = vadd.f32 %v346, %v598
        %v600 = vpop.f32.mrb[0].mxu0
        %v601 = vadd.f32 %v342, %v600
        %v602 = vpop.f32.mrb[0].mxu0
        %v603 = vadd.f32 %v346, %v602
        %604 = vmatprep.mubr.bf16.mxu0 0
        %605 = vmatmul.mubr.bf16.gmra.mrb[0].mxu0 %v485
        %v606 = vpop.f32.mrb[0].mxu0
        %v607 = vadd.f32 %v342, %v606
        %v608 = vpop.f32.mrb[0].mxu0
        %v609 = vadd.f32 %v346, %v608
        %v610 = vpop.f32.mrb[0].mxu0
        %v611 = vadd.f32 %v342, %v610
        %v612 = vpop.f32.mrb[0].mxu0
        %v613 = vadd.f32 %v346, %v612
        %614 = vmatprep.mubr.bf16.mxu0 0
        %615 = vmatmul.mubr.bf16.gmra.mrb[0].mxu0 %v488
        %v616 = vpop.f32.mrb[0].mxu0
        %v617 = vadd.f32 %v342, %v616
        %v618 = vpop.f32.mrb[0].mxu0
        %v619 = vadd.f32 %v346, %v618
        %v620 = vpop.f32.mrb[0].mxu0
        %v621 = vadd.f32 %v342, %v620
        %v622 = vpop.f32.mrb[0].mxu0
        %v623 = vadd.f32 %v346, %v622
        %624 = vmatprep.mubr.bf16.mxu0 0
        %625 = vmatmul.mubr.bf16.gmra.mrb[0].mxu0 %v491
        %v626 = vpop.f32.mrb[0].mxu0
        %v627 = vadd.f32 %v342, %v626
        %v628 = vpop.f32.mrb[0].mxu0
        %v629 = vadd.f32 %v346, %v628
        %v630 = vpop.f32.mrb[0].mxu0
        %v631 = vadd.f32 %v342, %v630
        %v632 = vpop.f32.mrb[0].mxu0
        %v633 = vadd.f32 %v346, %v632
        %634 = vmatprep.mubr.bf16.mxu0 0
        %635 = vmatmul.mubr.bf16.gmra.mrb[0].mxu0 %v494
        %v636 = vpop.f32.mrb[0].mxu0
        %v637 = vadd.f32 %v342, %v636
        %v638 = vpop.f32.mrb[0].mxu0
        %v639 = vadd.f32 %v346, %v638
        %v640 = vpop.f32.mrb[0].mxu0
        %v641 = vadd.f32 %v342, %v640
        %v642 = vpop.f32.mrb[0].mxu0
        %v643 = vadd.f32 %v346, %v642
        %644 = vmatprep.mubr.bf16.mxu0 0
        %645 = vmatmul.mubr.bf16.gmra.mrb[0].mxu0 %v497
        %v646 = vpop.f32.mrb[0].mxu0
        %v647 = vadd.f32 %v342, %v646
        %v648 = vpop.f32.mrb[0].mxu0
        %v649 = vadd.f32 %v346, %v648
        %v650 = vpop.f32.mrb[0].mxu0
        %v651 = vadd.f32 %v342, %v650
        %v652 = vpop.f32.mrb[0].mxu0
        %v653 = vadd.f32 %v346, %v652
        %654 = vmatprep.mubr.bf16.mxu0 0
        %655 = vmatmul.mubr.bf16.gmra.mrb[0].mxu0 %v500
        %v656 = vpop.f32.mrb[0].mxu0
        %v657 = vadd.f32 %v342, %v656
        %v658 = vpop.f32.mrb[0].mxu0
        %v659 = vadd.f32 %v346, %v658
        %v660 = vpop.f32.mrb[0].mxu0
        %v661 = vpop.f32.mrb[0].mxu0
        %662 = vdwg.mxu0
        %663 = vmatprep.subr.bf16.mxu0 %v449
        %664 = vmatpush1.bf16.msra.mxu0 %v448
        %665 = vmatprep.subr.bf16.mxu0 %v453
        %666 = vmatpush1.bf16.msra.mxu0 %v452
        %667 = vmatprep.subr.bf16.mxu0 0
        %668 = vmatpush1.bf16.msra.mxu0 0
        %669 = vmatprep.subr.bf16.mxu0 0
        %670 = vmatpush1.bf16.msra.mxu0 0
        %671 = vmatprep.subr.bf16.mxu0 0
        %672 = vmatpush1.bf16.msra.mxu0 0
        %673 = vmatprep.subr.bf16.mxu0 0
        %674 = vmatpush1.bf16.msra.mxu0 0
        %675 = vmatprep.subr.bf16.mxu0 0
        %676 = vmatpush1.bf16.msra.mxu0 0
        %677 = vmatprep.subr.bf16.mxu0 0
        %678 = vmatpush1.bf16.msra.mxu0 0
        %679 = vmatprep.subr.bf16.mxu0 0
        %680 = vmatpush1.bf16.msra.mxu0 0
        %681 = vmatprep.subr.bf16.mxu0 0
        %682 = vmatpush1.bf16.msra.mxu0 0
        %683 = vmatprep.subr.bf16.mxu0 0
        %684 = vmatpush1.bf16.msra.mxu0 0
        %685 = vmatprep.subr.bf16.mxu0 0
        %686 = vmatpush1.bf16.msra.mxu0 0
        %687 = vmatprep.subr.bf16.mxu0 0
        %688 = vmatpush1.bf16.msra.mxu0 0
        %689 = vmatprep.subr.bf16.mxu0 0
        %690 = vmatpush1.bf16.msra.mxu0 0
        %691 = vmatprep.subr.bf16.mxu0 0
        %692 = vmatpush1.bf16.msra.mxu0 0
        %693 = vmatprep.subr.bf16.mxu0 0
        %694 = vmatpush1.bf16.msra.mxu0 0
        %695 = vmatprep.mubr.bf16.mxu0 0
        %696 = vmatmul.mubr.bf16.gmra.mrb[0].mxu0 %v464
        %v697 = vpop.f32.mrb[0].mxu0
        %v698 = vadd.f32 %v350, %v697
        %v699 = vpop.f32.mrb[0].mxu0
        %v700 = vadd.f32 %v354, %v699
        %v701 = vpop.f32.mrb[0].mxu0
        %v702 = vadd.f32 %v350, %v701
        %v703 = vpop.f32.mrb[0].mxu0
        %v704 = vadd.f32 %v354, %v703
        %705 = vmatprep.mubr.bf16.mxu0 0
        %706 = vmatmul.mubr.bf16.gmra.mrb[0].mxu0 %v467
        %v707 = vpop.f32.mrb[0].mxu0
        %v708 = vadd.f32 %v350, %v707
        %v709 = vpop.f32.mrb[0].mxu0
        %v710 = vadd.f32 %v354, %v709
        %v711 = vpop.f32.mrb[0].mxu0
        %v712 = vadd.f32 %v350, %v711
        %v713 = vpop.f32.mrb[0].mxu0
        %v714 = vadd.f32 %v354, %v713
        %715 = vmatprep.mubr.bf16.mxu0 0
        %716 = vmatmul.mubr.bf16.gmra.mrb[0].mxu0 %v470
        %v717 = vpop.f32.mrb[0].mxu0
        %v718 = vadd.f32 %v350, %v717
        %v719 = vpop.f32.mrb[0].mxu0
        %v720 = vadd.f32 %v354, %v719
        %v721 = vpop.f32.mrb[0].mxu0
        %v722 = vadd.f32 %v350, %v721
        %v723 = vpop.f32.mrb[0].mxu0
        %v724 = vadd.f32 %v354, %v723
        %725 = vmatprep.mubr.bf16.mxu0 0
        %726 = vmatmul.mubr.bf16.gmra.mrb[0].mxu0 %v473
        %v727 = vpop.f32.mrb[0].mxu0
        %v728 = vadd.f32 %v350, %v727
        %v729 = vpop.f32.mrb[0].mxu0
        %v730 = vadd.f32 %v354, %v729
        %v731 = vpop.f32.mrb[0].mxu0
        %v732 = vadd.f32 %v350, %v731
        %v733 = vpop.f32.mrb[0].mxu0
        %v734 = vadd.f32 %v354, %v733
        %735 = vmatprep.mubr.bf16.mxu0 0
        %736 = vmatmul.mubr.bf16.gmra.mrb[0].mxu0 %v476
        %v737 = vpop.f32.mrb[0].mxu0
        %v738 = vadd.f32 %v350, %v737
        %v739 = vpop.f32.mrb[0].mxu0
        %v740 = vadd.f32 %v354, %v739
        %v741 = vpop.f32.mrb[0].mxu0
        %v742 = vadd.f32 %v350, %v741
        %v743 = vpop.f32.mrb[0].mxu0
        %v744 = vadd.f32 %v354, %v743
        %745 = vmatprep.mubr.bf16.mxu0 0
        %746 = vmatmul.mubr.bf16.gmra.mrb[0].mxu0 %v479
        %v747 = vpop.f32.mrb[0].mxu0
        %v748 = vadd.f32 %v350, %v747
        %v749 = vpop.f32.mrb[0].mxu0
        %v750 = vadd.f32 %v354, %v749
        %v751 = vpop.f32.mrb[0].mxu0
        %v752 = vadd.f32 %v350, %v751
        %v753 = vpop.f32.mrb[0].mxu0
        %v754 = vadd.f32 %v354, %v753
        %755 = vmatprep.mubr.bf16.mxu0 0
        %756 = vmatmul.mubr.bf16.gmra.mrb[0].mxu0 %v482
        %v757 = vpop.f32.mrb[0].mxu0
        %v758 = vadd.f32 %v350, %v757
        %v759 = vpop.f32.mrb[0].mxu0
        %v760 = vadd.f32 %v354, %v759
        %v761 = vpop.f32.mrb[0].mxu0
        %v762 = vadd.f32 %v350, %v761
        %v763 = vpop.f32.mrb[0].mxu0
        %v764 = vadd.f32 %v354, %v763
        %765 = vmatprep.mubr.bf16.mxu0 0
        %766 = vmatmul.mubr.bf16.gmra.mrb[0].mxu0 %v485
        %v767 = vpop.f32.mrb[0].mxu0
        %v768 = vadd.f32 %v350, %v767
        %v769 = vpop.f32.mrb[0].mxu0
        %v770 = vadd.f32 %v354, %v769
        %v771 = vpop.f32.mrb[0].mxu0
        %v772 = vadd.f32 %v350, %v771
        %v773 = vpop.f32.mrb[0].mxu0
        %v774 = vadd.f32 %v354, %v773
        %775 = vmatprep.mubr.bf16.mxu0 0
        %776 = vmatmul.mubr.bf16.gmra.mrb[0].mxu0 %v488
        %v777 = vpop.f32.mrb[0].mxu0
        %v778 = vadd.f32 %v350, %v777
        %v779 = vpop.f32.mrb[0].mxu0
        %v780 = vadd.f32 %v354, %v779
        %v781 = vpop.f32.mrb[0].mxu0
        %v782 = vadd.f32 %v350, %v781
        %v783 = vpop.f32.mrb[0].mxu0
        %v784 = vadd.f32 %v354, %v783
        %785 = vmatprep.mubr.bf16.mxu0 0
        %786 = vmatmul.mubr.bf16.gmra.mrb[0].mxu0 %v491
        %v787 = vpop.f32.mrb[0].mxu0
        %v788 = vadd.f32 %v350, %v787
        %v789 = vpop.f32.mrb[0].mxu0
        %v790 = vadd.f32 %v354, %v789
        %v791 = vpop.f32.mrb[0].mxu0
        %v792 = vadd.f32 %v350, %v791
        %v793 = vpop.f32.mrb[0].mxu0
        %v794 = vadd.f32 %v354, %v793
        %795 = vmatprep.mubr.bf16.mxu0 0
        %796 = vmatmul.mubr.bf16.gmra.mrb[0].mxu0 %v494
        %v797 = vpop.f32.mrb[0].mxu0
        %v798 = vadd.f32 %v350, %v797
        %v799 = vpop.f32.mrb[0].mxu0
        %v800 = vadd.f32 %v354, %v799
        %v801 = vpop.f32.mrb[0].mxu0
        %v802 = vadd.f32 %v350, %v801
        %v803 = vpop.f32.mrb[0].mxu0
        %v804 = vadd.f32 %v354, %v803
        %805 = vmatprep.mubr.bf16.mxu0 0
        %806 = vmatmul.mubr.bf16.gmra.mrb[0].mxu0 %v497
        %v807 = vpop.f32.mrb[0].mxu0
        %v808 = vadd.f32 %v350, %v807
        %v809 = vpop.f32.mrb[0].mxu0
        %v810 = vadd.f32 %v354, %v809
        %v811 = vpop.f32.mrb[0].mxu0
        %v812 = vadd.f32 %v350, %v811
        %v813 = vpop.f32.mrb[0].mxu0
        %v814 = vadd.f32 %v354, %v813
        %815 = vmatprep.mubr.bf16.mxu0 0
        %816 = vmatmul.mubr.bf16.gmra.mrb[0].mxu0 %v500
        %v817 = vpop.f32.mrb[0].mxu0
        %v818 = vadd.f32 %v350, %v817
        %v819 = vpop.f32.mrb[0].mxu0
        %v820 = vadd.f32 %v354, %v819
        %v821 = vpop.f32.mrb[0].mxu0
        %v822 = vpop.f32.mrb[0].mxu0
        %823 = vdwg.mxu0
        %vm824 = vcmp.ge.f32.partialorder %v537, 0.0
        %vm825 = vcmp.ge.f32.partialorder %v539, 0.0
        %vm826 = vcmp.ge.f32.partialorder %v698, 0.0
        %vm827 = vcmp.ge.f32.partialorder %v700, 0.0
        %vm828 = vcmp.ge.f32.partialorder %v541, 0.0
        %vm829 = vcmp.ge.f32.partialorder %v543, 0.0
        %vm830 = vcmp.ge.f32.partialorder %v702, 0.0
        %vm831 = vcmp.ge.f32.partialorder %v704, 0.0
        %vm832 = vcmp.ge.f32.partialorder %v547, 0.0
        %vm833 = vcmp.ge.f32.partialorder %v549, 0.0
        %vm834 = vcmp.ge.f32.partialorder %v708, 0.0
        %vm835 = vcmp.ge.f32.partialorder %v710, 0.0
        %vm836 = vcmp.ge.f32.partialorder %v551, 0.0
        %vm837 = vcmp.ge.f32.partialorder %v553, 0.0
        %vm838 = vcmp.ge.f32.partialorder %v712, 0.0
        %vm839 = vcmp.ge.f32.partialorder %v714, 0.0
        %vm840 = vcmp.ge.f32.partialorder %v557, 0.0
        %vm841 = vcmp.ge.f32.partialorder %v559, 0.0
        %vm842 = vcmp.ge.f32.partialorder %v718, 0.0
        %vm843 = vcmp.ge.f32.partialorder %v720, 0.0
        %vm844 = vcmp.ge.f32.partialorder %v561, 0.0
        %vm845 = vcmp.ge.f32.partialorder %v563, 0.0
        %vm846 = vcmp.ge.f32.partialorder %v722, 0.0
        %vm847 = vcmp.ge.f32.partialorder %v724, 0.0
        %vm848 = vcmp.ge.f32.partialorder %v567, 0.0
        %vm849 = vcmp.ge.f32.partialorder %v569, 0.0
        %vm850 = vcmp.ge.f32.partialorder %v728, 0.0
        %vm851 = vcmp.ge.f32.partialorder %v730, 0.0
        %vm852 = vcmp.ge.f32.partialorder %v571, 0.0
        %vm853 = vcmp.ge.f32.partialorder %v573, 0.0
        %vm854 = vcmp.ge.f32.partialorder %v732, 0.0
        %vm855 = vcmp.ge.f32.partialorder %v734, 0.0
        %vm856 = vcmp.ge.f32.partialorder %v577, 0.0
        %vm857 = vcmp.ge.f32.partialorder %v579, 0.0
        %vm858 = vcmp.ge.f32.partialorder %v738, 0.0
        %vm859 = vcmp.ge.f32.partialorder %v740, 0.0
        %vm860 = vcmp.ge.f32.partialorder %v581, 0.0
        %vm861 = vcmp.ge.f32.partialorder %v583, 0.0
        %vm862 = vcmp.ge.f32.partialorder %v742, 0.0
        %vm863 = vcmp.ge.f32.partialorder %v744, 0.0
        %vm864 = vcmp.ge.f32.partialorder %v587, 0.0
        %vm865 = vcmp.ge.f32.partialorder %v589, 0.0
        %vm866 = vcmp.ge.f32.partialorder %v748, 0.0
        %vm867 = vcmp.ge.f32.partialorder %v750, 0.0
        %vm868 = vcmp.ge.f32.partialorder %v591, 0.0
        %vm869 = vcmp.ge.f32.partialorder %v593, 0.0
        %vm870 = vcmp.ge.f32.partialorder %v752, 0.0
        %vm871 = vcmp.ge.f32.partialorder %v754, 0.0
        %vm872 = vcmp.ge.f32.partialorder %v597, 0.0
        %vm873 = vcmp.ge.f32.partialorder %v599, 0.0
        %vm874 = vcmp.ge.f32.partialorder %v758, 0.0
        %vm875 = vcmp.ge.f32.partialorder %v760, 0.0
        %vm876 = vcmp.ge.f32.partialorder %v601, 0.0
        %vm877 = vcmp.ge.f32.partialorder %v603, 0.0
        %vm878 = vcmp.ge.f32.partialorder %v762, 0.0
        %vm879 = vcmp.ge.f32.partialorder %v764, 0.0
        %vm880 = vcmp.ge.f32.partialorder %v607, 0.0
        %vm881 = vcmp.ge.f32.partialorder %v609, 0.0
        %vm882 = vcmp.ge.f32.partialorder %v768, 0.0
        %vm883 = vcmp.ge.f32.partialorder %v770, 0.0
        %vm884 = vcmp.ge.f32.partialorder %v611, 0.0
        %vm885 = vcmp.ge.f32.partialorder %v613, 0.0
        %vm886 = vcmp.ge.f32.partialorder %v772, 0.0
        %vm887 = vcmp.ge.f32.partialorder %v774, 0.0
        %vm888 = vcmp.ge.f32.partialorder %v617, 0.0
        %vm889 = vcmp.ge.f32.partialorder %v619, 0.0
        %vm890 = vcmp.ge.f32.partialorder %v778, 0.0
        %vm891 = vcmp.ge.f32.partialorder %v780, 0.0
        %vm892 = vcmp.ge.f32.partialorder %v621, 0.0
        %vm893 = vcmp.ge.f32.partialorder %v623, 0.0
        %vm894 = vcmp.ge.f32.partialorder %v782, 0.0
        %vm895 = vcmp.ge.f32.partialorder %v784, 0.0
        %vm896 = vcmp.ge.f32.partialorder %v627, 0.0
        %vm897 = vcmp.ge.f32.partialorder %v629, 0.0
        %vm898 = vcmp.ge.f32.partialorder %v788, 0.0
        %vm899 = vcmp.ge.f32.partialorder %v790, 0.0
        %vm900 = vcmp.ge.f32.partialorder %v631, 0.0
        %vm901 = vcmp.ge.f32.partialorder %v633, 0.0
        %vm902 = vcmp.ge.f32.partialorder %v792, 0.0
        %vm903 = vcmp.ge.f32.partialorder %v794, 0.0
        %vm904 = vcmp.ge.f32.partialorder %v637, 0.0
        %vm905 = vcmp.ge.f32.partialorder %v639, 0.0
        %vm906 = vcmp.ge.f32.partialorder %v798, 0.0
        %vm907 = vcmp.ge.f32.partialorder %v800, 0.0
        %vm908 = vcmp.ge.f32.partialorder %v641, 0.0
        %vm909 = vcmp.ge.f32.partialorder %v643, 0.0
        %vm910 = vcmp.ge.f32.partialorder %v802, 0.0
        %vm911 = vcmp.ge.f32.partialorder %v804, 0.0
        %vm912 = vcmp.ge.f32.partialorder %v647, 0.0
        %vm913 = vcmp.ge.f32.partialorder %v649, 0.0
        %vm914 = vcmp.ge.f32.partialorder %v808, 0.0
        %vm915 = vcmp.ge.f32.partialorder %v810, 0.0
        %vm916 = vcmp.ge.f32.partialorder %v651, 0.0
        %vm917 = vcmp.ge.f32.partialorder %v653, 0.0
        %vm918 = vcmp.ge.f32.partialorder %v812, 0.0
        %vm919 = vcmp.ge.f32.partialorder %v814, 0.0
        %vm920 = vcmp.ge.f32.partialorder %v657, 0.0
        %vm921 = vcmp.ge.f32.partialorder %v659, 0.0
        %vm922 = vcmp.ge.f32.partialorder %v818, 0.0
        %vm923 = vcmp.ge.f32.partialorder %v820, 0.0
        %v924 = vld [vmem:[%s299] sm:$0xf]
        %v926 = vlaneseq
        %v927 = vshrl.u32 %v926, 7
        %v928 = vsub.s32 0, %v927
        %v929 = vrot.slane %v924, %v928
        %v930 = vlaneseq
        %v931 = vshrl.u32 %v930, 7
        %v932 = vsub.s32 1, %v931
        %v933 = vrot.slane %v924, %v932
        %v934 = vlaneseq
        %v935 = vshrl.u32 %v934, 7
        %v936 = vsub.s32 2, %v935
        %v937 = vrot.slane %v924, %v936
        %v938 = vlaneseq
        %v939 = vshrl.u32 %v938, 7
        %v940 = vsub.s32 3, %v939
        %v941 = vrot.slane %v924, %v940
        %v946 = vmul.f32 %v929, %v537
        %v947 = vmul.f32 %v933, %v539
        %v948 = vmul.f32 %v937, %v698
        %v949 = vmul.f32 %v941, %v700
        %v950 = vmul.f32 %v929, %v541
        %v951 = vmul.f32 %v933, %v543
        %v952 = vmul.f32 %v937, %v702
        %v953 = vmul.f32 %v941, %v704
        %v954 = vmul.f32 %v929, %v547
        %v955 = vmul.f32 %v933, %v549
        %v956 = vmul.f32 %v937, %v708
        %v957 = vmul.f32 %v941, %v710
        %v958 = vmul.f32 %v929, %v551
        %v959 = vmul.f32 %v933, %v553
        %v960 = vmul.f32 %v937, %v712
        %v961 = vmul.f32 %v941, %v714
        %v962 = vmul.f32 %v929, %v557
        %v963 = vmul.f32 %v933, %v559
        %v964 = vmul.f32 %v937, %v718
        %v965 = vmul.f32 %v941, %v720
        %v966 = vmul.f32 %v929, %v561
        %v967 = vmul.f32 %v933, %v563
        %v968 = vmul.f32 %v937, %v722
        %v969 = vmul.f32 %v941, %v724
        %v970 = vmul.f32 %v929, %v567
        %v971 = vmul.f32 %v933, %v569
        %v972 = vmul.f32 %v937, %v728
        %v973 = vmul.f32 %v941, %v730
        %v974 = vmul.f32 %v929, %v571
        %v975 = vmul.f32 %v933, %v573
        %v976 = vmul.f32 %v937, %v732
        %v977 = vmul.f32 %v941, %v734
        %v978 = vmul.f32 %v929, %v577
        %v979 = vmul.f32 %v933, %v579
        %v980 = vmul.f32 %v937, %v738
        %v981 = vmul.f32 %v941, %v740
        %v982 = vmul.f32 %v929, %v581
        %v983 = vmul.f32 %v933, %v583
        %v984 = vmul.f32 %v937, %v742
        %v985 = vmul.f32 %v941, %v744
        %v986 = vmul.f32 %v929, %v587
        %v987 = vmul.f32 %v933, %v589
        %v988 = vmul.f32 %v937, %v748
        %v989 = vmul.f32 %v941, %v750
        %v990 = vmul.f32 %v929, %v591
        %v991 = vmul.f32 %v933, %v593
        %v992 = vmul.f32 %v937, %v752
        %v993 = vmul.f32 %v941, %v754
        %v994 = vmul.f32 %v929, %v597
        %v995 = vmul.f32 %v933, %v599
        %v996 = vmul.f32 %v937, %v758
        %v997 = vmul.f32 %v941, %v760
        %v998 = vmul.f32 %v929, %v601
        %v999 = vmul.f32 %v933, %v603
        %v1000 = vmul.f32 %v937, %v762
        %v1001 = vmul.f32 %v941, %v764
        %v1002 = vmul.f32 %v929, %v607
        %v1003 = vmul.f32 %v933, %v609
        %v1004 = vmul.f32 %v937, %v768
        %v1005 = vmul.f32 %v941, %v770
        %v1006 = vmul.f32 %v929, %v611
        %v1007 = vmul.f32 %v933, %v613
        %v1008 = vmul.f32 %v937, %v772
        %v1009 = vmul.f32 %v941, %v774
        %v1010 = vmul.f32 %v929, %v617
        %v1011 = vmul.f32 %v933, %v619
        %v1012 = vmul.f32 %v937, %v778
        %v1013 = vmul.f32 %v941, %v780
        %v1014 = vmul.f32 %v929, %v621
        %v1015 = vmul.f32 %v933, %v623
        %v1016 = vmul.f32 %v937, %v782
        %v1017 = vmul.f32 %v941, %v784
        %v1018 = vmul.f32 %v929, %v627
        %v1019 = vmul.f32 %v933, %v629
        %v1020 = vmul.f32 %v937, %v788
        %v1021 = vmul.f32 %v941, %v790
        %v1022 = vmul.f32 %v929, %v631
        %v1023 = vmul.f32 %v933, %v633
        %v1024 = vmul.f32 %v937, %v792
        %v1025 = vmul.f32 %v941, %v794
        %v1026 = vmul.f32 %v929, %v637
        %v1027 = vmul.f32 %v933, %v639
        %v1028 = vmul.f32 %v937, %v798
        %v1029 = vmul.f32 %v941, %v800
        %v1030 = vmul.f32 %v929, %v641
        %v1031 = vmul.f32 %v933, %v643
        %v1032 = vmul.f32 %v937, %v802
        %v1033 = vmul.f32 %v941, %v804
        %v1034 = vmul.f32 %v929, %v647
        %v1035 = vmul.f32 %v933, %v649
        %v1036 = vmul.f32 %v937, %v808
        %v1037 = vmul.f32 %v941, %v810
        %v1038 = vmul.f32 %v929, %v651
        %v1039 = vmul.f32 %v933, %v653
        %v1040 = vmul.f32 %v937, %v812
        %v1041 = vmul.f32 %v941, %v814
        %v1042 = vmul.f32 %v929, %v657
        %v1043 = vmul.f32 %v933, %v659
        %v1044 = vmul.f32 %v937, %v818
        %v1045 = vmul.f32 %v941, %v820
        %v1046 = vsel %vm824, %v537, %v946
        %v1047 = vsel %vm825, %v539, %v947
        %v1048 = vsel %vm826, %v698, %v948
        %v1049 = vsel %vm827, %v700, %v949
        %v1050 = vsel %vm828, %v541, %v950
        %v1051 = vsel %vm829, %v543, %v951
        %v1052 = vsel %vm830, %v702, %v952
        %v1053 = vsel %vm831, %v704, %v953
        %v1054 = vsel %vm832, %v547, %v954
        %v1055 = vsel %vm833, %v549, %v955
        %v1056 = vsel %vm834, %v708, %v956
        %v1057 = vsel %vm835, %v710, %v957
        %v1058 = vsel %vm836, %v551, %v958
        %v1059 = vsel %vm837, %v553, %v959
        %v1060 = vsel %vm838, %v712, %v960
        %v1061 = vsel %vm839, %v714, %v961
        %v1062 = vsel %vm840, %v557, %v962
        %v1063 = vsel %vm841, %v559, %v963
        %v1064 = vsel %vm842, %v718, %v964
        %v1065 = vsel %vm843, %v720, %v965
        %v1066 = vsel %vm844, %v561, %v966
        %v1067 = vsel %vm845, %v563, %v967
        %v1068 = vsel %vm846, %v722, %v968
        %v1069 = vsel %vm847, %v724, %v969
        %v1070 = vsel %vm848, %v567, %v970
        %v1071 = vsel %vm849, %v569, %v971
        %v1072 = vsel %vm850, %v728, %v972
        %v1073 = vsel %vm851, %v730, %v973
        %v1074 = vsel %vm852, %v571, %v974
        %v1075 = vsel %vm853, %v573, %v975
        %v1076 = vsel %vm854, %v732, %v976
        %v1077 = vsel %vm855, %v734, %v977
        %v1078 = vsel %vm856, %v577, %v978
        %v1079 = vsel %vm857, %v579, %v979
        %v1080 = vsel %vm858, %v738, %v980
        %v1081 = vsel %vm859, %v740, %v981
        %v1082 = vsel %vm860, %v581, %v982
        %v1083 = vsel %vm861, %v583, %v983
        %v1084 = vsel %vm862, %v742, %v984
        %v1085 = vsel %vm863, %v744, %v985
        %v1086 = vsel %vm864, %v587, %v986
        %v1087 = vsel %vm865, %v589, %v987
        %v1088 = vsel %vm866, %v748, %v988
        %v1089 = vsel %vm867, %v750, %v989
        %v1090 = vsel %vm868, %v591, %v990
        %v1091 = vsel %vm869, %v593, %v991
        %v1092 = vsel %vm870, %v752, %v992
        %v1093 = vsel %vm871, %v754, %v993
        %v1094 = vsel %vm872, %v597, %v994
        %v1095 = vsel %vm873, %v599, %v995
        %v1096 = vsel %vm874, %v758, %v996
        %v1097 = vsel %vm875, %v760, %v997
        %v1098 = vsel %vm876, %v601, %v998
        %v1099 = vsel %vm877, %v603, %v999
        %v1100 = vsel %vm878, %v762, %v1000
        %v1101 = vsel %vm879, %v764, %v1001
        %v1102 = vsel %vm880, %v607, %v1002
        %v1103 = vsel %vm881, %v609, %v1003
        %v1104 = vsel %vm882, %v768, %v1004
        %v1105 = vsel %vm883, %v770, %v1005
        %v1106 = vsel %vm884, %v611, %v1006
        %v1107 = vsel %vm885, %v613, %v1007
        %v1108 = vsel %vm886, %v772, %v1008
        %v1109 = vsel %vm887, %v774, %v1009
        %v1110 = vsel %vm888, %v617, %v1010
        %v1111 = vsel %vm889, %v619, %v1011
        %v1112 = vsel %vm890, %v778, %v1012
        %v1113 = vsel %vm891, %v780, %v1013
        %v1114 = vsel %vm892, %v621, %v1014
        %v1115 = vsel %vm893, %v623, %v1015
        %v1116 = vsel %vm894, %v782, %v1016
        %v1117 = vsel %vm895, %v784, %v1017
        %v1118 = vsel %vm896, %v627, %v1018
        %v1119 = vsel %vm897, %v629, %v1019
        %v1120 = vsel %vm898, %v788, %v1020
        %v1121 = vsel %vm899, %v790, %v1021
        %v1122 = vsel %vm900, %v631, %v1022
        %v1123 = vsel %vm901, %v633, %v1023
        %v1124 = vsel %vm902, %v792, %v1024
        %v1125 = vsel %vm903, %v794, %v1025
        %v1126 = vsel %vm904, %v637, %v1026
        %v1127 = vsel %vm905, %v639, %v1027
        %v1128 = vsel %vm906, %v798, %v1028
        %v1129 = vsel %vm907, %v800, %v1029
        %v1130 = vsel %vm908, %v641, %v1030
        %v1131 = vsel %vm909, %v643, %v1031
        %v1132 = vsel %vm910, %v802, %v1032
        %v1133 = vsel %vm911, %v804, %v1033
        %v1134 = vsel %vm912, %v647, %v1034
        %v1135 = vsel %vm913, %v649, %v1035
        %v1136 = vsel %vm914, %v808, %v1036
        %v1137 = vsel %vm915, %v810, %v1037
        %v1138 = vsel %vm916, %v651, %v1038
        %v1139 = vsel %vm917, %v653, %v1039
        %v1140 = vsel %vm918, %v812, %v1040
        %v1141 = vsel %vm919, %v814, %v1041
        %v1142 = vsel %vm920, %v657, %v1042
        %v1143 = vsel %vm921, %v659, %v1043
        %v1144 = vsel %vm922, %v818, %v1044
        %v1145 = vsel %vm923, %v820, %v1045
        %v1146 = vpack.c.bf16 %v1050, %v1046
        %v1147 = vpack.c.bf16 %v1051, %v1047
        %v1148 = vpack.c.bf16 %v1052, %v1048
        %v1149 = vpack.c.bf16 %v1053, %v1049
        %v1150 = vpack.c.bf16 %v1058, %v1054
        %v1151 = vpack.c.bf16 %v1059, %v1055
        %v1152 = vpack.c.bf16 %v1060, %v1056
        %v1153 = vpack.c.bf16 %v1061, %v1057
        %v1154 = vpack.c.bf16 %v1066, %v1062
        %v1155 = vpack.c.bf16 %v1067, %v1063
        %v1156 = vpack.c.bf16 %v1068, %v1064
        %v1157 = vpack.c.bf16 %v1069, %v1065
        %v1158 = vpack.c.bf16 %v1074, %v1070
        %v1159 = vpack.c.bf16 %v1075, %v1071
        %v1160 = vpack.c.bf16 %v1076, %v1072
        %v1161 = vpack.c.bf16 %v1077, %v1073
        %v1162 = vpack.c.bf16 %v1082, %v1078
        %v1163 = vpack.c.bf16 %v1083, %v1079
        %v1164 = vpack.c.bf16 %v1084, %v1080
        %v1165 = vpack.c.bf16 %v1085, %v1081
        %v1166 = vpack.c.bf16 %v1090, %v1086
        %v1167 = vpack.c.bf16 %v1091, %v1087
        %v1168 = vpack.c.bf16 %v1092, %v1088
        %v1169 = vpack.c.bf16 %v1093, %v1089
        %v1170 = vpack.c.bf16 %v1098, %v1094
        %v1171 = vpack.c.bf16 %v1099, %v1095
        %v1172 = vpack.c.bf16 %v1100, %v1096
        %v1173 = vpack.c.bf16 %v1101, %v1097
        %v1174 = vpack.c.bf16 %v1106, %v1102
        %v1175 = vpack.c.bf16 %v1107, %v1103
        %v1176 = vpack.c.bf16 %v1108, %v1104
        %v1177 = vpack.c.bf16 %v1109, %v1105
        %v1178 = vpack.c.bf16 %v1114, %v1110
        %v1179 = vpack.c.bf16 %v1115, %v1111
        %v1180 = vpack.c.bf16 %v1116, %v1112
        %v1181 = vpack.c.bf16 %v1117, %v1113
        %v1182 = vpack.c.bf16 %v1122, %v1118
        %v1183 = vpack.c.bf16 %v1123, %v1119
        %v1184 = vpack.c.bf16 %v1124, %v1120
        %v1185 = vpack.c.bf16 %v1125, %v1121
        %v1186 = vpack.c.bf16 %v1130, %v1126
        %v1187 = vpack.c.bf16 %v1131, %v1127
        %v1188 = vpack.c.bf16 %v1132, %v1128
        %v1189 = vpack.c.bf16 %v1133, %v1129
        %v1190 = vpack.c.bf16 %v1138, %v1134
        %v1191 = vpack.c.bf16 %v1139, %v1135
        %v1192 = vpack.c.bf16 %v1140, %v1136
        %v1193 = vpack.c.bf16 %v1141, %v1137
        %v1194 = vpack.c.bf16 %v1142, %v1142
        %v1195 = vpack.c.bf16 %v1143, %v1143
        %v1196 = vpack.c.bf16 %v1144, %v1144
        %v1197 = vpack.c.bf16 %v1145, %v1145
        %v1250 = vunpack.c.l.b16 %v1146
        %v1251 = vunpack.c.l.b16 %v1147
        %v1252 = vunpack.c.l.b16 %v1148
        %v1253 = vunpack.c.l.b16 %v1149
        %v1254 = vunpack.c.h.b16 %v1146
        %v1255 = vunpack.c.h.b16 %v1147
        %v1256 = vunpack.c.h.b16 %v1148
        %v1257 = vunpack.c.h.b16 %v1149
        %v1258 = vunpack.c.l.b16 %v1150
        %v1259 = vunpack.c.l.b16 %v1151
        %v1260 = vunpack.c.l.b16 %v1152
        %v1261 = vunpack.c.l.b16 %v1153
        %v1262 = vunpack.c.h.b16 %v1150
        %v1263 = vunpack.c.h.b16 %v1151
        %v1264 = vunpack.c.h.b16 %v1152
        %v1265 = vunpack.c.h.b16 %v1153
        %v1266 = vunpack.c.l.b16 %v1154
        %v1267 = vunpack.c.l.b16 %v1155
        %v1268 = vunpack.c.l.b16 %v1156
        %v1269 = vunpack.c.l.b16 %v1157
        %v1270 = vunpack.c.h.b16 %v1154
        %v1271 = vunpack.c.h.b16 %v1155
        %v1272 = vunpack.c.h.b16 %v1156
        %v1273 = vunpack.c.h.b16 %v1157
        %v1274 = vunpack.c.l.b16 %v1158
        %v1275 = vunpack.c.l.b16 %v1159
        %v1276 = vunpack.c.l.b16 %v1160
        %v1277 = vunpack.c.l.b16 %v1161
        %v1278 = vunpack.c.h.b16 %v1158
        %v1279 = vunpack.c.h.b16 %v1159
        %v1280 = vunpack.c.h.b16 %v1160
        %v1281 = vunpack.c.h.b16 %v1161
        %v1282 = vunpack.c.l.b16 %v1162
        %v1283 = vunpack.c.l.b16 %v1163
        %v1284 = vunpack.c.l.b16 %v1164
        %v1285 = vunpack.c.l.b16 %v1165
        %v1286 = vunpack.c.h.b16 %v1162
        %v1287 = vunpack.c.h.b16 %v1163
        %v1288 = vunpack.c.h.b16 %v1164
        %v1289 = vunpack.c.h.b16 %v1165
        %v1290 = vunpack.c.l.b16 %v1166
        %v1291 = vunpack.c.l.b16 %v1167
        %v1292 = vunpack.c.l.b16 %v1168
        %v1293 = vunpack.c.l.b16 %v1169
        %v1294 = vunpack.c.h.b16 %v1166
        %v1295 = vunpack.c.h.b16 %v1167
        %v1296 = vunpack.c.h.b16 %v1168
        %v1297 = vunpack.c.h.b16 %v1169
        %v1298 = vunpack.c.l.b16 %v1170
        %v1299 = vunpack.c.l.b16 %v1171
        %v1300 = vunpack.c.l.b16 %v1172
        %v1301 = vunpack.c.l.b16 %v1173
        %v1302 = vunpack.c.h.b16 %v1170
        %v1303 = vunpack.c.h.b16 %v1171
        %v1304 = vunpack.c.h.b16 %v1172
        %v1305 = vunpack.c.h.b16 %v1173
        %v1306 = vunpack.c.l.b16 %v1174
        %v1307 = vunpack.c.l.b16 %v1175
        %v1308 = vunpack.c.l.b16 %v1176
        %v1309 = vunpack.c.l.b16 %v1177
        %v1310 = vunpack.c.h.b16 %v1174
        %v1311 = vunpack.c.h.b16 %v1175
        %v1312 = vunpack.c.h.b16 %v1176
        %v1313 = vunpack.c.h.b16 %v1177
        %v1314 = vunpack.c.l.b16 %v1178
        %v1315 = vunpack.c.l.b16 %v1179
        %v1316 = vunpack.c.l.b16 %v1180
        %v1317 = vunpack.c.l.b16 %v1181
        %v1318 = vunpack.c.h.b16 %v1178
        %v1319 = vunpack.c.h.b16 %v1179
        %v1320 = vunpack.c.h.b16 %v1180
        %v1321 = vunpack.c.h.b16 %v1181
        %v1322 = vunpack.c.l.b16 %v1182
        %v1323 = vunpack.c.l.b16 %v1183
        %v1324 = vunpack.c.l.b16 %v1184
        %v1325 = vunpack.c.l.b16 %v1185
        %v1326 = vunpack.c.h.b16 %v1182
        %v1327 = vunpack.c.h.b16 %v1183
        %v1328 = vunpack.c.h.b16 %v1184
        %v1329 = vunpack.c.h.b16 %v1185
        %v1330 = vunpack.c.l.b16 %v1186
        %v1331 = vunpack.c.l.b16 %v1187
        %v1332 = vunpack.c.l.b16 %v1188
        %v1333 = vunpack.c.l.b16 %v1189
        %v1334 = vunpack.c.h.b16 %v1186
        %v1335 = vunpack.c.h.b16 %v1187
        %v1336 = vunpack.c.h.b16 %v1188
        %v1337 = vunpack.c.h.b16 %v1189
        %v1338 = vunpack.c.l.b16 %v1190
        %v1339 = vunpack.c.l.b16 %v1191
        %v1340 = vunpack.c.l.b16 %v1192
        %v1341 = vunpack.c.l.b16 %v1193
        %v1342 = vunpack.c.h.b16 %v1190
        %v1343 = vunpack.c.h.b16 %v1191
        %v1344 = vunpack.c.h.b16 %v1192
        %v1345 = vunpack.c.h.b16 %v1193
        %v1346 = vunpack.c.l.b16 %v1194
        %v1347 = vunpack.c.l.b16 %v1195
        %v1348 = vunpack.c.l.b16 %v1196
        %v1349 = vunpack.c.l.b16 %v1197
        %v1350 = vpack.c.b16 %v1251, %v1250
        %v1351 = vpack.c.b16 %v1253, %v1252
        %v1352 = vpack.c.b16 %v1255, %v1254
        %v1353 = vpack.c.b16 %v1257, %v1256
        %v1354 = vpack.c.b16 %v1259, %v1258
        %v1355 = vpack.c.b16 %v1261, %v1260
        %v1356 = vpack.c.b16 %v1263, %v1262
        %v1357 = vpack.c.b16 %v1265, %v1264
        %v1358 = vpack.c.b16 %v1267, %v1266
        %v1359 = vpack.c.b16 %v1269, %v1268
        %v1360 = vpack.c.b16 %v1271, %v1270
        %v1361 = vpack.c.b16 %v1273, %v1272
        %v1362 = vpack.c.b16 %v1275, %v1274
        %v1363 = vpack.c.b16 %v1277, %v1276
        %v1364 = vpack.c.b16 %v1279, %v1278
        %v1365 = vpack.c.b16 %v1281, %v1280
        %v1366 = vpack.c.b16 %v1283, %v1282
        %v1367 = vpack.c.b16 %v1285, %v1284
        %v1368 = vpack.c.b16 %v1287, %v1286
        %v1369 = vpack.c.b16 %v1289, %v1288
        %v1370 = vpack.c.b16 %v1291, %v1290
        %v1371 = vpack.c.b16 %v1293, %v1292
        %v1372 = vpack.c.b16 %v1295, %v1294
        %v1373 = vpack.c.b16 %v1297, %v1296
        %v1374 = vpack.c.b16 %v1299, %v1298
        %v1375 = vpack.c.b16 %v1301, %v1300
        %v1376 = vpack.c.b16 %v1303, %v1302
        %v1377 = vpack.c.b16 %v1305, %v1304
        %v1378 = vpack.c.b16 %v1307, %v1306
        %v1379 = vpack.c.b16 %v1309, %v1308
        %v1380 = vpack.c.b16 %v1311, %v1310
        %v1381 = vpack.c.b16 %v1313, %v1312
        %v1382 = vpack.c.b16 %v1315, %v1314
        %v1383 = vpack.c.b16 %v1317, %v1316
        %v1384 = vpack.c.b16 %v1319, %v1318
        %v1385 = vpack.c.b16 %v1321, %v1320
        %v1386 = vpack.c.b16 %v1323, %v1322
        %v1387 = vpack.c.b16 %v1325, %v1324
        %v1388 = vpack.c.b16 %v1327, %v1326
        %v1389 = vpack.c.b16 %v1329, %v1328
        %v1390 = vpack.c.b16 %v1331, %v1330
        %v1391 = vpack.c.b16 %v1333, %v1332
        %v1392 = vpack.c.b16 %v1335, %v1334
        %v1393 = vpack.c.b16 %v1337, %v1336
        %v1394 = vpack.c.b16 %v1339, %v1338
        %v1395 = vpack.c.b16 %v1341, %v1340
        %v1396 = vpack.c.b16 %v1343, %v1342
        %v1397 = vpack.c.b16 %v1345, %v1344
        %v1398 = vpack.c.b16 %v1347, %v1346
        %v1399 = vpack.c.b16 %v1349, %v1348
        %1450 = vst [vmem:[%s283] sm:$0xff] %v1350
        %1451 = vst [vmem:[%s283 + $0x8] sm:$0xff] %v1351
        %1452 = vst [vmem:[%s283 + $0x10] sm:$0xff] %v1352
        %1453 = vst [vmem:[%s283 + $0x18] sm:$0xff] %v1353
        %1454 = vst [vmem:[%s283 + $0x20] sm:$0xff] %v1354
        %1455 = vst [vmem:[%s283 + $0x28] sm:$0xff] %v1355
        %1456 = vst [vmem:[%s283 + $0x30] sm:$0xff] %v1356
        %1457 = vst [vmem:[%s283 + $0x38] sm:$0xff] %v1357
        %1458 = vst [vmem:[%s283 + $0x40] sm:$0xff] %v1358
        %1459 = vst [vmem:[%s283 + $0x48] sm:$0xff] %v1359
        %1460 = vst [vmem:[%s283 + $0x50] sm:$0xff] %v1360
        %1461 = vst [vmem:[%s283 + $0x58] sm:$0xff] %v1361
        %1462 = vst [vmem:[%s283 + $0x60] sm:$0xff] %v1362
        %1463 = vst [vmem:[%s283 + $0x68] sm:$0xff] %v1363
        %1464 = vst [vmem:[%s283 + $0x70] sm:$0xff] %v1364
        %1465 = vst [vmem:[%s283 + $0x78] sm:$0xff] %v1365
        %1466 = vst [vmem:[%s283 + $0x80] sm:$0xff] %v1366
        %1467 = vst [vmem:[%s283 + $0x88] sm:$0xff] %v1367
        %1468 = vst [vmem:[%s283 + $0x90] sm:$0xff] %v1368
        %1469 = vst [vmem:[%s283 + $0x98] sm:$0xff] %v1369
        %1470 = vst [vmem:[%s283 + $0xa0] sm:$0xff] %v1370
        %1471 = vst [vmem:[%s283 + $0xa8] sm:$0xff] %v1371
        %1472 = vst [vmem:[%s283 + $0xb0] sm:$0xff] %v1372
        %1473 = vst [vmem:[%s283 + $0xb8] sm:$0xff] %v1373
        %1474 = vst [vmem:[%s283 + $0xc0] sm:$0xff] %v1374
        %1475 = vst [vmem:[%s283 + $0xc8] sm:$0xff] %v1375
        %1476 = vst [vmem:[%s283 + $0xd0] sm:$0xff] %v1376
        %1477 = vst [vmem:[%s283 + $0xd8] sm:$0xff] %v1377
        %1478 = vst [vmem:[%s283 + $0xe0] sm:$0xff] %v1378
        %1479 = vst [vmem:[%s283 + $0xe8] sm:$0xff] %v1379
        %1480 = vst [vmem:[%s283 + $0xf0] sm:$0xff] %v1380
        %1481 = vst [vmem:[%s283 + $0xf8] sm:$0xff] %v1381
        %1482 = vst [vmem:[%s283 + $0x100] sm:$0xff] %v1382
        %1483 = vst [vmem:[%s283 + $0x108] sm:$0xff] %v1383
        %1484 = vst [vmem:[%s283 + $0x110] sm:$0xff] %v1384
        %1485 = vst [vmem:[%s283 + $0x118] sm:$0xff] %v1385
        %1486 = vst [vmem:[%s283 + $0x120] sm:$0xff] %v1386
        %1487 = vst [vmem:[%s283 + $0x128] sm:$0xff] %v1387
        %1488 = vst [vmem:[%s283 + $0x130] sm:$0xff] %v1388
        %1489 = vst [vmem:[%s283 + $0x138] sm:$0xff] %v1389
        %1490 = vst [vmem:[%s283 + $0x140] sm:$0xff] %v1390
        %1491 = vst [vmem:[%s283 + $0x148] sm:$0xff] %v1391
        %1492 = vst [vmem:[%s283 + $0x150] sm:$0xff] %v1392
        %1493 = vst [vmem:[%s283 + $0x158] sm:$0xff] %v1393
        %1494 = vst [vmem:[%s283 + $0x160] sm:$0xff] %v1394
        %1495 = vst [vmem:[%s283 + $0x168] sm:$0xff] %v1395
        %1496 = vst [vmem:[%s283 + $0x170] sm:$0xff] %v1396
        %1497 = vst [vmem:[%s283 + $0x178] sm:$0xff] %v1397
        %1498 = vst [vmem:[%s283 + $0x180] sm:$0xff] %v1398
        %1499 = vst [vmem:[%s283 + $0x188] sm:$0xff] %v1399
        %s1500 = sand.u32 %s141, 1
        %s1501 = sand.u32 %s141, 1
        %s1502 = smul.addr %s1501, 400
        %s1503 = scalar_lea.vmem [#allocation3], %s1502
        // Predicated region
        $region60: #{tf_gridnet_forward.36} parent=54 // pred_check
          %p1504 = pneg %p151
        $region61: #{tf_gridnet_forward.36} parent=54 // pred_check_branch
          %1506 = sbr.rel (%p1504) target = $region63
        $region62: #{tf_gridnet_forward.36} parent=54 // pred_region
          %s1507 = smul.u32 25, %s19
          %s1508 = smul.u32 4, %s20
          %s1509 = smul.addr %s1507, 8
          %s1510 = sadd.s32 %s1508, %s1509
          %s1511 = smul.addr %s1510, 4
          %s1512 = scalar_lea.vmem %s4, %s1511
          // Predicated region
          $region64: #{tf_gridnet_forward.36} parent=62 // pred_check
            _
          $region65: #{tf_gridnet_forward.36} parent=62 // pred_check_branch
            %1514 = sbr.rel (0) target = $region67
          $region66: #{tf_gridnet_forward.36} parent=62 // pred_region
            // Predicated region
            $region68: #{tf_gridnet_forward.36} parent=66 // pred_check
              _
            $region69: #{tf_gridnet_forward.36} parent=66 // pred_check_branch
              %1516 = sbr.rel (0) target = $region71
            $region70: #{tf_gridnet_forward.36} parent=66 // pred_region
              loop: start=0, step=1, limit=1
              $region72: #{tf_gridnet_forward.36} parent=70 // loop_pre_header
                _
              $region73: #{tf_gridnet_forward.36} parent=70 // loop_header
                %s1518 = sphi 0, %s1522
                %p1519 = scmp.ge.s32.totalorder %s1518, 1
                %s1523 = sphi %s1503, %s1503
                %s1524 = sphi %s1512, %s1512
              $region74: #{tf_gridnet_forward.36} parent=70 // loop_header_branch
                %1521 = sbr.rel (%p1519) target = $region78
              $region75: #{tf_gridnet_forward.36} parent=70 // loop_body
                %v1525 = vld [vmem:[%s1523] sm:$0xff]
                %1526 = vst [vmem:[%s1524] sm:$0xff] %v1525
                %v1527 = vld [vmem:[%s1523 + $0x8] sm:$0xff]
                %1528 = vst [vmem:[%s1524 + $0x8] sm:$0xff] %v1527
                %v1529 = vld [vmem:[%s1523 + $0x10] sm:$0xff]
                %1530 = vst [vmem:[%s1524 + $0x20] sm:$0xff] %v1529
                %v1531 = vld [vmem:[%s1523 + $0x18] sm:$0xff]
                %1532 = vst [vmem:[%s1524 + $0x28] sm:$0xff] %v1531
                %v1533 = vld [vmem:[%s1523 + $0x20] sm:$0xff]
                %1534 = vst [vmem:[%s1524 + $0x40] sm:$0xff] %v1533
                %v1535 = vld [vmem:[%s1523 + $0x28] sm:$0xff]
                %1536 = vst [vmem:[%s1524 + $0x48] sm:$0xff] %v1535
                %v1537 = vld [vmem:[%s1523 + $0x30] sm:$0xff]
                %1538 = vst [vmem:[%s1524 + $0x60] sm:$0xff] %v1537
                %v1539 = vld [vmem:[%s1523 + $0x38] sm:$0xff]
                %1540 = vst [vmem:[%s1524 + $0x68] sm:$0xff] %v1539
                %v1541 = vld [vmem:[%s1523 + $0x40] sm:$0xff]
                %1542 = vst [vmem:[%s1524 + $0x80] sm:$0xff] %v1541
                %v1543 = vld [vmem:[%s1523 + $0x48] sm:$0xff]
                %1544 = vst [vmem:[%s1524 + $0x88] sm:$0xff] %v1543
                %v1545 = vld [vmem:[%s1523 + $0x50] sm:$0xff]
                %1546 = vst [vmem:[%s1524 + $0xa0] sm:$0xff] %v1545
                %v1547 = vld [vmem:[%s1523 + $0x58] sm:$0xff]
                %1548 = vst [vmem:[%s1524 + $0xa8] sm:$0xff] %v1547
                %v1549 = vld [vmem:[%s1523 + $0x60] sm:$0xff]
                %1550 = vst [vmem:[%s1524 + $0xc0] sm:$0xff] %v1549
                %v1551 = vld [vmem:[%s1523 + $0x68] sm:$0xff]
                %1552 = vst [vmem:[%s1524 + $0xc8] sm:$0xff] %v1551
                %v1553 = vld [vmem:[%s1523 + $0x70] sm:$0xff]
                %1554 = vst [vmem:[%s1524 + $0xe0] sm:$0xff] %v1553
                %v1555 = vld [vmem:[%s1523 + $0x78] sm:$0xff]
                %1556 = vst [vmem:[%s1524 + $0xe8] sm:$0xff] %v1555
                %v1557 = vld [vmem:[%s1523 + $0x80] sm:$0xff]
                %1558 = vst [vmem:[%s1524 + $0x100] sm:$0xff] %v1557
                %v1559 = vld [vmem:[%s1523 + $0x88] sm:$0xff]
                %1560 = vst [vmem:[%s1524 + $0x108] sm:$0xff] %v1559
                %v1561 = vld [vmem:[%s1523 + $0x90] sm:$0xff]
                %1562 = vst [vmem:[%s1524 + $0x120] sm:$0xff] %v1561
                %v1563 = vld [vmem:[%s1523 + $0x98] sm:$0xff]
                %1564 = vst [vmem:[%s1524 + $0x128] sm:$0xff] %v1563
                %v1565 = vld [vmem:[%s1523 + $0xa0] sm:$0xff]
                %1566 = vst [vmem:[%s1524 + $0x140] sm:$0xff] %v1565
                %v1567 = vld [vmem:[%s1523 + $0xa8] sm:$0xff]
                %1568 = vst [vmem:[%s1524 + $0x148] sm:$0xff] %v1567
                %v1569 = vld [vmem:[%s1523 + $0xb0] sm:$0xff]
                %1570 = vst [vmem:[%s1524 + $0x160] sm:$0xff] %v1569
                %v1571 = vld [vmem:[%s1523 + $0xb8] sm:$0xff]
                %1572 = vst [vmem:[%s1524 + $0x168] sm:$0xff] %v1571
                %v1573 = vld [vmem:[%s1523 + $0xc0] sm:$0xff]
                %1574 = vst [vmem:[%s1524 + $0x180] sm:$0xff] %v1573
                %v1575 = vld [vmem:[%s1523 + $0xc8] sm:$0xff]
                %1576 = vst [vmem:[%s1524 + $0x188] sm:$0xff] %v1575
                %v1577 = vld [vmem:[%s1523 + $0xd0] sm:$0xff]
                %1578 = vst [vmem:[%s1524 + $0x1a0] sm:$0xff] %v1577
                %v1579 = vld [vmem:[%s1523 + $0xd8] sm:$0xff]
                %1580 = vst [vmem:[%s1524 + $0x1a8] sm:$0xff] %v1579
                %v1581 = vld [vmem:[%s1523 + $0xe0] sm:$0xff]
                %1582 = vst [vmem:[%s1524 + $0x1c0] sm:$0xff] %v1581
                %v1583 = vld [vmem:[%s1523 + $0xe8] sm:$0xff]
                %1584 = vst [vmem:[%s1524 + $0x1c8] sm:$0xff] %v1583
                %v1585 = vld [vmem:[%s1523 + $0xf0] sm:$0xff]
                %1586 = vst [vmem:[%s1524 + $0x1e0] sm:$0xff] %v1585
                %v1587 = vld [vmem:[%s1523 + $0xf8] sm:$0xff]
                %1588 = vst [vmem:[%s1524 + $0x1e8] sm:$0xff] %v1587
                %v1589 = vld [vmem:[%s1523 + $0x100] sm:$0xff]
                %1590 = vst [vmem:[%s1524 + $0x200] sm:$0xff] %v1589
                %v1591 = vld [vmem:[%s1523 + $0x108] sm:$0xff]
                %1592 = vst [vmem:[%s1524 + $0x208] sm:$0xff] %v1591
                %v1593 = vld [vmem:[%s1523 + $0x110] sm:$0xff]
                %1594 = vst [vmem:[%s1524 + $0x220] sm:$0xff] %v1593
                %v1595 = vld [vmem:[%s1523 + $0x118] sm:$0xff]
                %1596 = vst [vmem:[%s1524 + $0x228] sm:$0xff] %v1595
                %v1597 = vld [vmem:[%s1523 + $0x120] sm:$0xff]
                %1598 = vst [vmem:[%s1524 + $0x240] sm:$0xff] %v1597
                %v1599 = vld [vmem:[%s1523 + $0x128] sm:$0xff]
                %1600 = vst [vmem:[%s1524 + $0x248] sm:$0xff] %v1599
                %v1601 = vld [vmem:[%s1523 + $0x130] sm:$0xff]
                %1602 = vst [vmem:[%s1524 + $0x260] sm:$0xff] %v1601
                %v1603 = vld [vmem:[%s1523 + $0x138] sm:$0xff]
                %1604 = vst [vmem:[%s1524 + $0x268] sm:$0xff] %v1603
                %v1605 = vld [vmem:[%s1523 + $0x140] sm:$0xff]
                %1606 = vst [vmem:[%s1524 + $0x280] sm:$0xff] %v1605
                %v1607 = vld [vmem:[%s1523 + $0x148] sm:$0xff]
                %1608 = vst [vmem:[%s1524 + $0x288] sm:$0xff] %v1607
                %v1609 = vld [vmem:[%s1523 + $0x150] sm:$0xff]
                %1610 = vst [vmem:[%s1524 + $0x2a0] sm:$0xff] %v1609
                %v1611 = vld [vmem:[%s1523 + $0x158] sm:$0xff]
                %1612 = vst [vmem:[%s1524 + $0x2a8] sm:$0xff] %v1611
                %v1613 = vld [vmem:[%s1523 + $0x160] sm:$0xff]
                %1614 = vst [vmem:[%s1524 + $0x2c0] sm:$0xff] %v1613
                %v1615 = vld [vmem:[%s1523 + $0x168] sm:$0xff]
                %1616 = vst [vmem:[%s1524 + $0x2c8] sm:$0xff] %v1615
                %v1617 = vld [vmem:[%s1523 + $0x170] sm:$0xff]
                %1618 = vst [vmem:[%s1524 + $0x2e0] sm:$0xff] %v1617
                %v1619 = vld [vmem:[%s1523 + $0x178] sm:$0xff]
                %1620 = vst [vmem:[%s1524 + $0x2e8] sm:$0xff] %v1619
                %v1621 = vld [vmem:[%s1523 + $0x180] sm:$0xff]
                %1622 = vst [vmem:[%s1524 + $0x300] sm:$0xff] %v1621
                %v1623 = vld [vmem:[%s1523 + $0x188] sm:$0xff]
                %1624 = vst [vmem:[%s1524 + $0x308] sm:$0xff] %v1623
              $region76: #{tf_gridnet_forward.36} parent=70 // loop_footer
                %s1522 = sadd.s32 1, %s1518
              $region77: #{tf_gridnet_forward.36} parent=70 // loop_footer_branch
                %1517 = sbr.rel target = $region73
              $region78: #{tf_gridnet_forward.36} parent=70 // loop_exit
                _
            $region71: #{tf_gridnet_forward.36} parent=66 // pred_fallthru
              _
            // Predicated region
            $region79: #{tf_gridnet_forward.36} parent=66 // pred_check
              _
            $region80: #{tf_gridnet_forward.36} parent=66 // pred_check_branch
              %1626 = sbr.rel target = $region82
            $region81: #{tf_gridnet_forward.36} parent=66 // pred_region
              _
            $region82: #{tf_gridnet_forward.36} parent=66 // pred_fallthru
              _
          $region67: #{tf_gridnet_forward.36} parent=62 // pred_fallthru
            _
          %1627 = vnop
        $region63: #{tf_gridnet_forward.36} parent=54 // pred_fallthru
          _
      $region55: #{tf_gridnet_forward.36} parent=5 // pred_fallthru
        _
      %p1628 = scmp.le.s32.totalorder 2, %s10
      // Predicated region
      $region83: #{tf_gridnet_forward.36} parent=5 // pred_check
        %p1629 = pneg %p1628
      $region84: #{tf_gridnet_forward.36} parent=5 // pred_check_branch
        %1631 = sbr.rel (%p1629) target = $region86
      $region85: #{tf_gridnet_forward.36} parent=5 // pred_region
        %s1632 = ssub.s32 %s10, 2
        // Predicated region
        $region87: #{tf_gridnet_forward.36} parent=85 // pred_check
          %p1633 = pneg %p157
        $region88: #{tf_gridnet_forward.36} parent=85 // pred_check_branch
          %1635 = sbr.rel (%p1633) target = $region90
        $region89: #{tf_gridnet_forward.36} parent=85 // pred_region
          %s1636 = sand.u32 %s142, 1
          %s1637 = sand.u32 %s142, 1
          %s1638 = smul.addr %s1637, 400
          %s1639 = scalar_lea.vmem [#allocation3], %s1638
        $region90: #{tf_gridnet_forward.36} parent=85 // pred_fallthru
          _
      $region86: #{tf_gridnet_forward.36} parent=5 // pred_fallthru
        _
    $region6: #{tf_gridnet_forward.36} parent=1 // loop_footer
      %s14 = sadd.s32 1, %s10
    $region7: #{tf_gridnet_forward.36} parent=1 // loop_footer_branch
      %9 = sbr.rel target = $region3
    $region8: #{tf_gridnet_forward.36} parent=1 // loop_exit
      _

// kernel: tf_gridnet_forward.43
$region0: #{tf_gridnet_forward.43}
  #allocation0 [shape = 'u32[]', space=smem, size = 0x4, offset = 0x4, fixed_abs, tag = 'smem constant byte address 0x4 - core index']
  #allocation1 [shape = 'u32[144,128]{1,0:T(1,128)}', space=vmem, size = 0x12000, scoped, tag = 'internal scratch']
  %s0 = inlined_call_operand.vmem [shape: bf16[584,8], index: 0, kind: input, shape index: {}]
  %s1 = inlined_call_operand.vmem [shape: bf16[8,24], index: 1, kind: input, shape index: {}]
  %s2 = inlined_call_operand.vmem [shape: f32[1,24], index: 2, kind: input, shape index: {}]
  %s3 = inlined_call_operand.vmem [shape: f32[1,24], index: 3, kind: input, shape index: {}]
  %s4 = inlined_call_operand.vmem [shape: bf16[584,24], index: 4, kind: output, shape index: {}]
  %s5 = sld [smem:[#allocation0]]
  $region26: #{tf_gridnet_forward.43} parent=0
    _
  %s7 = ssub.s32 1, %s5
  %s8 = scalar_select 0, %s7, %s5
  // Predicated region
  $region2: #{tf_gridnet_forward.43} parent=0 // pred_check
    _
  $region3: #{tf_gridnet_forward.43} parent=0 // pred_check_branch
    %10 = sbr.rel (0) target = $region5
  $region4: #{tf_gridnet_forward.43} parent=0 // pred_region
    _
  $region5: #{tf_gridnet_forward.43} parent=0 // pred_fallthru
    _
  // Predicated region
  $region6: #{tf_gridnet_forward.43} parent=0 // pred_check
    _
  $region7: #{tf_gridnet_forward.43} parent=0 // pred_check_branch
    %12 = sbr.rel (0) target = $region9
  $region8: #{tf_gridnet_forward.43} parent=0 // pred_region
    _
  $region9: #{tf_gridnet_forward.43} parent=0 // pred_fallthru
    _
  // Predicated region
  $region10: #{tf_gridnet_forward.43} parent=0 // pred_check
    _
  $region11: #{tf_gridnet_forward.43} parent=0 // pred_check_branch
    %14 = sbr.rel (0) target = $region13
  $region12: #{tf_gridnet_forward.43} parent=0 // pred_region
    _
  $region13: #{tf_gridnet_forward.43} parent=0 // pred_fallthru
    _
  // Predicated region
  $region14: #{tf_gridnet_forward.43} parent=0 // pred_check
    _
  $region15: #{tf_gridnet_forward.43} parent=0 // pred_check_branch
    %16 = sbr.rel (0) target = $region17
  $region16: #{tf_gridnet_forward.43} parent=0 // pred_region
    _
  $region17: #{tf_gridnet_forward.43} parent=0 // pred_fallthru
    _
  %v18 = vld [vmem:[%s0] sm:$0xf]
  %v19 = vld [vmem:[%s0 + $0x4] sm:$0xf]
  %v20 = vld [vmem:[%s0 + $0x8] sm:$0xf]
  %v21 = vld [vmem:[%s0 + $0xc] sm:$0xf]
  %v22 = vld [vmem:[%s0 + $0x10] sm:$0xf]
  %v23 = vld [vmem:[%s0 + $0x14] sm:$0xf]
  %v24 = vld [vmem:[%s0 + $0x18] sm:$0xf]
  %v25 = vld [vmem:[%s0 + $0x1c] sm:$0xf]
  %v26 = vld [vmem:[%s0 + $0x20] sm:$0xf]
  %v27 = vld [vmem:[%s0 + $0x24] sm:$0xf]
  %v28 = vld [vmem:[%s0 + $0x28] sm:$0xf]
  %v29 = vld [vmem:[%s0 + $0x2c] sm:$0xf]
  %v30 = vld [vmem:[%s0 + $0x30] sm:$0xf]
  %v31 = vld [vmem:[%s0 + $0x34] sm:$0xf]
  %v32 = vld [vmem:[%s0 + $0x38] sm:$0xf]
  %v33 = vld [vmem:[%s0 + $0x3c] sm:$0xf]
  %v34 = vld [vmem:[%s0 + $0x40] sm:$0xf]
  %v35 = vld [vmem:[%s0 + $0x44] sm:$0xf]
  %v36 = vld [vmem:[%s0 + $0x48] sm:$0xf]
  %v37 = vld [vmem:[%s0 + $0x4c] sm:$0xf]
  %v38 = vld [vmem:[%s0 + $0x50] sm:$0xf]
  %v39 = vld [vmem:[%s0 + $0x54] sm:$0xf]
  %v40 = vld [vmem:[%s0 + $0x58] sm:$0xf]
  %v41 = vld [vmem:[%s0 + $0x5c] sm:$0xf]
  %v42 = vld [vmem:[%s0 + $0x60] sm:$0xf]
  %v43 = vld [vmem:[%s0 + $0x64] sm:$0xf]
  %v44 = vld [vmem:[%s0 + $0x68] sm:$0xf]
  %v45 = vld [vmem:[%s0 + $0x6c] sm:$0xf]
  %v46 = vld [vmem:[%s0 + $0x70] sm:$0xf]
  %v47 = vld [vmem:[%s0 + $0x74] sm:$0xf]
  %v48 = vld [vmem:[%s0 + $0x78] sm:$0xf]
  %v49 = vld [vmem:[%s0 + $0x7c] sm:$0xf]
  %v50 = vld [vmem:[%s0 + $0x80] sm:$0xf]
  %v51 = vld [vmem:[%s0 + $0x84] sm:$0xf]
  %v52 = vld [vmem:[%s0 + $0x88] sm:$0xf]
  %v53 = vld [vmem:[%s0 + $0x8c] sm:$0xf]
  %v54 = vld [vmem:[%s0 + $0x90] sm:$0xf]
  %v55 = vld [vmem:[%s0 + $0x94] sm:$0xf]
  %v56 = vld [vmem:[%s0 + $0x98] sm:$0xf]
  %v57 = vld [vmem:[%s0 + $0x9c] sm:$0xf]
  %v58 = vld [vmem:[%s0 + $0xa0] sm:$0xf]
  %v59 = vld [vmem:[%s0 + $0xa4] sm:$0xf]
  %v60 = vld [vmem:[%s0 + $0xa8] sm:$0xf]
  %v61 = vld [vmem:[%s0 + $0xac] sm:$0xf]
  %v62 = vld [vmem:[%s0 + $0xb0] sm:$0xf]
  %v63 = vld [vmem:[%s0 + $0xb4] sm:$0xf]
  %v64 = vld [vmem:[%s0 + $0xb8] sm:$0xf]
  %v65 = vld [vmem:[%s0 + $0xbc] sm:$0xf]
  %v66 = vld [vmem:[%s0 + $0xc0] sm:$0xf]
  %v67 = vld [vmem:[%s0 + $0xc4] sm:$0xf]
  %v68 = vld [vmem:[%s0 + $0xc8] sm:$0xf]
  %v69 = vld [vmem:[%s0 + $0xcc] sm:$0xf]
  %v70 = vld [vmem:[%s0 + $0xd0] sm:$0xf]
  %v71 = vld [vmem:[%s0 + $0xd4] sm:$0xf]
  %v72 = vld [vmem:[%s0 + $0xd8] sm:$0xf]
  %v73 = vld [vmem:[%s0 + $0xdc] sm:$0xf]
  %v74 = vld [vmem:[%s0 + $0xe0] sm:$0xf]
  %v75 = vld [vmem:[%s0 + $0xe4] sm:$0xf]
  %v76 = vld [vmem:[%s0 + $0xe8] sm:$0xf]
  %v77 = vld [vmem:[%s0 + $0xec] sm:$0xf]
  %v78 = vld [vmem:[%s0 + $0xf0] sm:$0xf]
  %v79 = vld [vmem:[%s0 + $0xf4] sm:$0xf]
  %v80 = vld [vmem:[%s0 + $0xf8] sm:$0xf]
  %v81 = vld [vmem:[%s0 + $0xfc] sm:$0xf]
  %v82 = vld [vmem:[%s0 + $0x100] sm:$0xf]
  %v83 = vld [vmem:[%s0 + $0x104] sm:$0xf]
  %v84 = vld [vmem:[%s0 + $0x108] sm:$0xf]
  %v85 = vld [vmem:[%s0 + $0x10c] sm:$0xf]
  %v86 = vld [vmem:[%s0 + $0x110] sm:$0xf]
  %v87 = vld [vmem:[%s0 + $0x114] sm:$0xf]
  %v88 = vld [vmem:[%s0 + $0x118] sm:$0xf]
  %v89 = vld [vmem:[%s0 + $0x11c] sm:$0xf]
  %v90 = vld [vmem:[%s0 + $0x120] sm:$0xf]
  %v91 = vld [vmem:[%s1] sm:$0xf]
  %v92 = vld [vmem:[%s2] sm:$0x1]
  %v94 = vlaneseq
  %v95 = vshrl.u32 %v94, 7
  %v96 = vsub.s32 0, %v95
  %v97 = vrot.slane %v92, %v96
  %v172 = vunpack.c.l.b16 %v18
  %v173 = vunpack.c.l.b16 %v19
  %v174 = vunpack.c.l.b16 %v20
  %v175 = vunpack.c.l.b16 %v21
  %v176 = vunpack.c.l.b16 %v22
  %v177 = vunpack.c.l.b16 %v23
  %v178 = vunpack.c.l.b16 %v24
  %v179 = vunpack.c.l.b16 %v25
  %v180 = vunpack.c.l.b16 %v26
  %v181 = vunpack.c.l.b16 %v27
  %v182 = vunpack.c.l.b16 %v28
  %v183 = vunpack.c.l.b16 %v29
  %v184 = vunpack.c.l.b16 %v30
  %v185 = vunpack.c.l.b16 %v31
  %v186 = vunpack.c.l.b16 %v32
  %v187 = vunpack.c.l.b16 %v33
  %v188 = vunpack.c.l.b16 %v34
  %v189 = vunpack.c.l.b16 %v35
  %v190 = vunpack.c.l.b16 %v36
  %v191 = vunpack.c.l.b16 %v37
  %v192 = vunpack.c.l.b16 %v38
  %v193 = vunpack.c.l.b16 %v39
  %v194 = vunpack.c.l.b16 %v40
  %v195 = vunpack.c.l.b16 %v41
  %v196 = vunpack.c.l.b16 %v42
  %v197 = vunpack.c.l.b16 %v43
  %v198 = vunpack.c.l.b16 %v44
  %v199 = vunpack.c.l.b16 %v45
  %v200 = vunpack.c.l.b16 %v46
  %v201 = vunpack.c.l.b16 %v47
  %v202 = vunpack.c.l.b16 %v48
  %v203 = vunpack.c.l.b16 %v49
  %v204 = vunpack.c.l.b16 %v50
  %v205 = vunpack.c.l.b16 %v51
  %v206 = vunpack.c.l.b16 %v52
  %v207 = vunpack.c.l.b16 %v53
  %v208 = vunpack.c.l.b16 %v54
  %v209 = vunpack.c.l.b16 %v55
  %v210 = vunpack.c.l.b16 %v56
  %v211 = vunpack.c.l.b16 %v57
  %v212 = vunpack.c.l.b16 %v58
  %v213 = vunpack.c.l.b16 %v59
  %v214 = vunpack.c.l.b16 %v60
  %v215 = vunpack.c.l.b16 %v61
  %v216 = vunpack.c.l.b16 %v62
  %v217 = vunpack.c.l.b16 %v63
  %v218 = vunpack.c.l.b16 %v64
  %v219 = vunpack.c.l.b16 %v65
  %v220 = vunpack.c.l.b16 %v66
  %v221 = vunpack.c.l.b16 %v67
  %v222 = vunpack.c.l.b16 %v68
  %v223 = vunpack.c.l.b16 %v69
  %v224 = vunpack.c.l.b16 %v70
  %v225 = vunpack.c.l.b16 %v71
  %v226 = vunpack.c.l.b16 %v72
  %v227 = vunpack.c.l.b16 %v73
  %v228 = vunpack.c.l.b16 %v74
  %v229 = vunpack.c.l.b16 %v75
  %v230 = vunpack.c.l.b16 %v76
  %v231 = vunpack.c.l.b16 %v77
  %v232 = vunpack.c.l.b16 %v78
  %v233 = vunpack.c.l.b16 %v79
  %v234 = vunpack.c.l.b16 %v80
  %v235 = vunpack.c.l.b16 %v81
  %v236 = vunpack.c.l.b16 %v82
  %v237 = vunpack.c.l.b16 %v83
  %v238 = vunpack.c.l.b16 %v84
  %v239 = vunpack.c.l.b16 %v85
  %v240 = vunpack.c.l.b16 %v86
  %v241 = vunpack.c.l.b16 %v87
  %v242 = vunpack.c.l.b16 %v88
  %v243 = vunpack.c.l.b16 %v89
  %v244 = vunpack.c.l.b16 %v90
  %v245 = vpack.c.b16 %v173, %v172
  %v246 = vpack.c.b16 %v175, %v174
  %v247 = vpack.c.b16 %v177, %v176
  %v248 = vpack.c.b16 %v179, %v178
  %v249 = vpack.c.b16 %v181, %v180
  %v250 = vpack.c.b16 %v183, %v182
  %v251 = vpack.c.b16 %v185, %v184
  %v252 = vpack.c.b16 %v187, %v186
  %v253 = vpack.c.b16 %v189, %v188
  %v254 = vpack.c.b16 %v191, %v190
  %v255 = vpack.c.b16 %v193, %v192
  %v256 = vpack.c.b16 %v195, %v194
  %v257 = vpack.c.b16 %v197, %v196
  %v258 = vpack.c.b16 %v199, %v198
  %v259 = vpack.c.b16 %v201, %v200
  %v260 = vpack.c.b16 %v203, %v202
  %v261 = vpack.c.b16 %v205, %v204
  %v262 = vpack.c.b16 %v207, %v206
  %v263 = vpack.c.b16 %v209, %v208
  %v264 = vpack.c.b16 %v211, %v210
  %v265 = vpack.c.b16 %v213, %v212
  %v266 = vpack.c.b16 %v215, %v214
  %v267 = vpack.c.b16 %v217, %v216
  %v268 = vpack.c.b16 %v219, %v218
  %v269 = vpack.c.b16 %v221, %v220
  %v270 = vpack.c.b16 %v223, %v222
  %v271 = vpack.c.b16 %v225, %v224
  %v272 = vpack.c.b16 %v227, %v226
  %v273 = vpack.c.b16 %v229, %v228
  %v274 = vpack.c.b16 %v231, %v230
  %v275 = vpack.c.b16 %v233, %v232
  %v276 = vpack.c.b16 %v235, %v234
  %v277 = vpack.c.b16 %v237, %v236
  %v278 = vpack.c.b16 %v239, %v238
  %v279 = vpack.c.b16 %v241, %v240
  %v280 = vpack.c.b16 %v243, %v242
  %v281 = vpack.c.b16 %v244, %v244
  %vm282 = vcmask 64512
  %v284 = vsel %vm282, %v245, 0
  %v287 = vsel %vm282, %v246, 0
  %v290 = vsel %vm282, %v247, 0
  %v293 = vsel %vm282, %v248, 0
  %v296 = vsel %vm282, %v249, 0
  %v299 = vsel %vm282, %v250, 0
  %v302 = vsel %vm282, %v251, 0
  %v305 = vsel %vm282, %v252, 0
  %v308 = vsel %vm282, %v253, 0
  %v311 = vsel %vm282, %v254, 0
  %v314 = vsel %vm282, %v255, 0
  %v317 = vsel %vm282, %v256, 0
  %v320 = vsel %vm282, %v257, 0
  %v323 = vsel %vm282, %v258, 0
  %v326 = vsel %vm282, %v259, 0
  %v329 = vsel %vm282, %v260, 0
  %v332 = vsel %vm282, %v261, 0
  %v335 = vsel %vm282, %v262, 0
  %v338 = vsel %vm282, %v263, 0
  %v341 = vsel %vm282, %v264, 0
  %v344 = vsel %vm282, %v265, 0
  %v347 = vsel %vm282, %v266, 0
  %v350 = vsel %vm282, %v267, 0
  %v353 = vsel %vm282, %v268, 0
  %v356 = vsel %vm282, %v269, 0
  %v359 = vsel %vm282, %v270, 0
  %v362 = vsel %vm282, %v271, 0
  %v365 = vsel %vm282, %v272, 0
  %v368 = vsel %vm282, %v273, 0
  %v371 = vsel %vm282, %v274, 0
  %v374 = vsel %vm282, %v275, 0
  %v377 = vsel %vm282, %v276, 0
  %v380 = vsel %vm282, %v277, 0
  %v383 = vsel %vm282, %v278, 0
  %v386 = vsel %vm282, %v279, 0
  %v389 = vsel %vm282, %v280, 0
  %v392 = vsel %vm282, %v281, 0
  %vm394 = vcmask 1043456
  %v396 = vsel %vm394, %v91, 0
  %398 = vmatprep.subr.bf16.mxu0 0
  %399 = vmatpush1.bf16.msra.mxu0 %v396
  %400 = vmatprep.subr.bf16.mxu0 0
  %401 = vmatpush1.bf16.msra.mxu0 0
  %402 = vmatprep.subr.bf16.mxu0 0
  %403 = vmatpush1.bf16.msra.mxu0 0
  %404 = vmatprep.subr.bf16.mxu0 0
  %405 = vmatpush1.bf16.msra.mxu0 0
  %406 = vmatprep.subr.bf16.mxu0 0
  %407 = vmatpush1.bf16.msra.mxu0 0
  %408 = vmatprep.subr.bf16.mxu0 0
  %409 = vmatpush1.bf16.msra.mxu0 0
  %410 = vmatprep.subr.bf16.mxu0 0
  %411 = vmatpush1.bf16.msra.mxu0 0
  %412 = vmatprep.subr.bf16.mxu0 0
  %413 = vmatpush1.bf16.msra.mxu0 0
  %414 = vmatprep.subr.bf16.mxu0 0
  %415 = vmatpush1.bf16.msra.mxu0 0
  %416 = vmatprep.subr.bf16.mxu0 0
  %417 = vmatpush1.bf16.msra.mxu0 0
  %418 = vmatprep.subr.bf16.mxu0 0
  %419 = vmatpush1.bf16.msra.mxu0 0
  %420 = vmatprep.subr.bf16.mxu0 0
  %421 = vmatpush1.bf16.msra.mxu0 0
  %422 = vmatprep.subr.bf16.mxu0 0
  %423 = vmatpush1.bf16.msra.mxu0 0
  %424 = vmatprep.subr.bf16.mxu0 0
  %425 = vmatpush1.bf16.msra.mxu0 0
  %426 = vmatprep.subr.bf16.mxu0 0
  %427 = vmatpush1.bf16.msra.mxu0 0
  %428 = vmatprep.subr.bf16.mxu0 0
  %429 = vmatpush1.bf16.msra.mxu0 0
  %430 = vmatprep.mubr.bf16.mxu0 0
  %431 = vmatmul.mubr.bf16.gmra.mrb[0].mxu0 %v284
  %v432 = vpop.f32.mrb[0].mxu0
  %v433 = vadd.f32 %v97, %v432
  %v434 = vpop.f32.mrb[0].mxu0
  %v435 = vpop.f32.mrb[0].mxu0
  %v436 = vadd.f32 %v97, %v435
  %v437 = vpop.f32.mrb[0].mxu0
  %438 = vmatprep.mubr.bf16.mxu0 0
  %439 = vmatmul.mubr.bf16.gmra.mrb[0].mxu0 %v287
  %v440 = vpop.f32.mrb[0].mxu0
  %v441 = vadd.f32 %v97, %v440
  %v442 = vpop.f32.mrb[0].mxu0
  %v443 = vpop.f32.mrb[0].mxu0
  %v444 = vadd.f32 %v97, %v443
  %v445 = vpop.f32.mrb[0].mxu0
  %446 = vmatprep.mubr.bf16.mxu0 0
  %447 = vmatmul.mubr.bf16.gmra.mrb[0].mxu0 %v290
  %v448 = vpop.f32.mrb[0].mxu0
  %v449 = vadd.f32 %v97, %v448
  %v450 = vpop.f32.mrb[0].mxu0
  %v451 = vpop.f32.mrb[0].mxu0
  %v452 = vadd.f32 %v97, %v451
  %v453 = vpop.f32.mrb[0].mxu0
  %454 = vmatprep.mubr.bf16.mxu0 0
  %455 = vmatmul.mubr.bf16.gmra.mrb[0].mxu0 %v293
  %v456 = vpop.f32.mrb[0].mxu0
  %v457 = vadd.f32 %v97, %v456
  %v458 = vpop.f32.mrb[0].mxu0
  %v459 = vpop.f32.mrb[0].mxu0
  %v460 = vadd.f32 %v97, %v459
  %v461 = vpop.f32.mrb[0].mxu0
  %462 = vmatprep.mubr.bf16.mxu0 0
  %463 = vmatmul.mubr.bf16.gmra.mrb[0].mxu0 %v296
  %v464 = vpop.f32.mrb[0].mxu0
  %v465 = vadd.f32 %v97, %v464
  %v466 = vpop.f32.mrb[0].mxu0
  %v467 = vpop.f32.mrb[0].mxu0
  %v468 = vadd.f32 %v97, %v467
  %v469 = vpop.f32.mrb[0].mxu0
  %470 = vmatprep.mubr.bf16.mxu0 0
  %471 = vmatmul.mubr.bf16.gmra.mrb[0].mxu0 %v299
  %v472 = vpop.f32.mrb[0].mxu0
  %v473 = vadd.f32 %v97, %v472
  %v474 = vpop.f32.mrb[0].mxu0
  %v475 = vpop.f32.mrb[0].mxu0
  %v476 = vadd.f32 %v97, %v475
  %v477 = vpop.f32.mrb[0].mxu0
  %478 = vmatprep.mubr.bf16.mxu0 0
  %479 = vmatmul.mubr.bf16.gmra.mrb[0].mxu0 %v302
  %v480 = vpop.f32.mrb[0].mxu0
  %v481 = vadd.f32 %v97, %v480
  %v482 = vpop.f32.mrb[0].mxu0
  %v483 = vpop.f32.mrb[0].mxu0
  %v484 = vadd.f32 %v97, %v483
  %v485 = vpop.f32.mrb[0].mxu0
  %486 = vmatprep.mubr.bf16.mxu0 0
  %487 = vmatmul.mubr.bf16.gmra.mrb[0].mxu0 %v305
  %v488 = vpop.f32.mrb[0].mxu0
  %v489 = vadd.f32 %v97, %v488
  %v490 = vpop.f32.mrb[0].mxu0
  %v491 = vpop.f32.mrb[0].mxu0
  %v492 = vadd.f32 %v97, %v491
  %v493 = vpop.f32.mrb[0].mxu0
  %494 = vmatprep.mubr.bf16.mxu0 0
  %495 = vmatmul.mubr.bf16.gmra.mrb[0].mxu0 %v308
  %v496 = vpop.f32.mrb[0].mxu0
  %v497 = vadd.f32 %v97, %v496
  %v498 = vpop.f32.mrb[0].mxu0
  %v499 = vpop.f32.mrb[0].mxu0
  %v500 = vadd.f32 %v97, %v499
  %v501 = vpop.f32.mrb[0].mxu0
  %502 = vmatprep.mubr.bf16.mxu0 0
  %503 = vmatmul.mubr.bf16.gmra.mrb[0].mxu0 %v311
  %v504 = vpop.f32.mrb[0].mxu0
  %v505 = vadd.f32 %v97, %v504
  %v506 = vpop.f32.mrb[0].mxu0
  %v507 = vpop.f32.mrb[0].mxu0
  %v508 = vadd.f32 %v97, %v507
  %v509 = vpop.f32.mrb[0].mxu0
  %510 = vmatprep.mubr.bf16.mxu0 0
  %511 = vmatmul.mubr.bf16.gmra.mrb[0].mxu0 %v314
  %v512 = vpop.f32.mrb[0].mxu0
  %v513 = vadd.f32 %v97, %v512
  %v514 = vpop.f32.mrb[0].mxu0
  %v515 = vpop.f32.mrb[0].mxu0
  %v516 = vadd.f32 %v97, %v515
  %v517 = vpop.f32.mrb[0].mxu0
  %518 = vmatprep.mubr.bf16.mxu0 0
  %519 = vmatmul.mubr.bf16.gmra.mrb[0].mxu0 %v317
  %v520 = vpop.f32.mrb[0].mxu0
  %v521 = vadd.f32 %v97, %v520
  %v522 = vpop.f32.mrb[0].mxu0
  %v523 = vpop.f32.mrb[0].mxu0
  %v524 = vadd.f32 %v97, %v523
  %v525 = vpop.f32.mrb[0].mxu0
  %526 = vmatprep.mubr.bf16.mxu0 0
  %527 = vmatmul.mubr.bf16.gmra.mrb[0].mxu0 %v320
  %v528 = vpop.f32.mrb[0].mxu0
  %v529 = vadd.f32 %v97, %v528
  %v530 = vpop.f32.mrb[0].mxu0
  %v531 = vpop.f32.mrb[0].mxu0
  %v532 = vadd.f32 %v97, %v531
  %v533 = vpop.f32.mrb[0].mxu0
  %534 = vmatprep.mubr.bf16.mxu0 0
  %535 = vmatmul.mubr.bf16.gmra.mrb[0].mxu0 %v323
  %v536 = vpop.f32.mrb[0].mxu0
  %v537 = vadd.f32 %v97, %v536
  %v538 = vpop.f32.mrb[0].mxu0
  %v539 = vpop.f32.mrb[0].mxu0
  %v540 = vadd.f32 %v97, %v539
  %v541 = vpop.f32.mrb[0].mxu0
  %542 = vmatprep.mubr.bf16.mxu0 0
  %543 = vmatmul.mubr.bf16.gmra.mrb[0].mxu0 %v326
  %v544 = vpop.f32.mrb[0].mxu0
  %v545 = vadd.f32 %v97, %v544
  %v546 = vpop.f32.mrb[0].mxu0
  %v547 = vpop.f32.mrb[0].mxu0
  %v548 = vadd.f32 %v97, %v547
  %v549 = vpop.f32.mrb[0].mxu0
  %550 = vmatprep.mubr.bf16.mxu0 0
  %551 = vmatmul.mubr.bf16.gmra.mrb[0].mxu0 %v329
  %v552 = vpop.f32.mrb[0].mxu0
  %v553 = vadd.f32 %v97, %v552
  %v554 = vpop.f32.mrb[0].mxu0
  %v555 = vpop.f32.mrb[0].mxu0
  %v556 = vadd.f32 %v97, %v555
  %v557 = vpop.f32.mrb[0].mxu0
  %558 = vmatprep.mubr.bf16.mxu0 0
  %559 = vmatmul.mubr.bf16.gmra.mrb[0].mxu0 %v332
  %v560 = vpop.f32.mrb[0].mxu0
  %v561 = vadd.f32 %v97, %v560
  %v562 = vpop.f32.mrb[0].mxu0
  %v563 = vpop.f32.mrb[0].mxu0
  %v564 = vadd.f32 %v97, %v563
  %v565 = vpop.f32.mrb[0].mxu0
  %566 = vmatprep.mubr.bf16.mxu0 0
  %567 = vmatmul.mubr.bf16.gmra.mrb[0].mxu0 %v335
  %v568 = vpop.f32.mrb[0].mxu0
  %v569 = vadd.f32 %v97, %v568
  %v570 = vpop.f32.mrb[0].mxu0
  %v571 = vpop.f32.mrb[0].mxu0
  %v572 = vadd.f32 %v97, %v571
  %v573 = vpop.f32.mrb[0].mxu0
  %574 = vmatprep.mubr.bf16.mxu0 0
  %575 = vmatmul.mubr.bf16.gmra.mrb[0].mxu0 %v338
  %v576 = vpop.f32.mrb[0].mxu0
  %v577 = vadd.f32 %v97, %v576
  %v578 = vpop.f32.mrb[0].mxu0
  %v579 = vpop.f32.mrb[0].mxu0
  %v580 = vadd.f32 %v97, %v579
  %v581 = vpop.f32.mrb[0].mxu0
  %582 = vmatprep.mubr.bf16.mxu0 0
  %583 = vmatmul.mubr.bf16.gmra.mrb[0].mxu0 %v341
  %v584 = vpop.f32.mrb[0].mxu0
  %v585 = vadd.f32 %v97, %v584
  %v586 = vpop.f32.mrb[0].mxu0
  %v587 = vpop.f32.mrb[0].mxu0
  %v588 = vadd.f32 %v97, %v587
  %v589 = vpop.f32.mrb[0].mxu0
  %590 = vmatprep.mubr.bf16.mxu0 0
  %591 = vmatmul.mubr.bf16.gmra.mrb[0].mxu0 %v344
  %v592 = vpop.f32.mrb[0].mxu0
  %v593 = vadd.f32 %v97, %v592
  %v594 = vpop.f32.mrb[0].mxu0
  %v595 = vpop.f32.mrb[0].mxu0
  %v596 = vadd.f32 %v97, %v595
  %v597 = vpop.f32.mrb[0].mxu0
  %598 = vmatprep.mubr.bf16.mxu0 0
  %599 = vmatmul.mubr.bf16.gmra.mrb[0].mxu0 %v347
  %v600 = vpop.f32.mrb[0].mxu0
  %v601 = vadd.f32 %v97, %v600
  %v602 = vpop.f32.mrb[0].mxu0
  %v603 = vpop.f32.mrb[0].mxu0
  %v604 = vadd.f32 %v97, %v603
  %v605 = vpop.f32.mrb[0].mxu0
  %606 = vmatprep.mubr.bf16.mxu0 0
  %607 = vmatmul.mubr.bf16.gmra.mrb[0].mxu0 %v350
  %v608 = vpop.f32.mrb[0].mxu0
  %v609 = vadd.f32 %v97, %v608
  %v610 = vpop.f32.mrb[0].mxu0
  %v611 = vpop.f32.mrb[0].mxu0
  %v612 = vadd.f32 %v97, %v611
  %v613 = vpop.f32.mrb[0].mxu0
  %614 = vmatprep.mubr.bf16.mxu0 0
  %615 = vmatmul.mubr.bf16.gmra.mrb[0].mxu0 %v353
  %v616 = vpop.f32.mrb[0].mxu0
  %v617 = vadd.f32 %v97, %v616
  %v618 = vpop.f32.mrb[0].mxu0
  %v619 = vpop.f32.mrb[0].mxu0
  %v620 = vadd.f32 %v97, %v619
  %v621 = vpop.f32.mrb[0].mxu0
  %622 = vmatprep.mubr.bf16.mxu0 0
  %623 = vmatmul.mubr.bf16.gmra.mrb[0].mxu0 %v356
  %v624 = vpop.f32.mrb[0].mxu0
  %v625 = vadd.f32 %v97, %v624
  %v626 = vpop.f32.mrb[0].mxu0
  %v627 = vpop.f32.mrb[0].mxu0
  %v628 = vadd.f32 %v97, %v627
  %v629 = vpop.f32.mrb[0].mxu0
  %630 = vmatprep.mubr.bf16.mxu0 0
  %631 = vmatmul.mubr.bf16.gmra.mrb[0].mxu0 %v359
  %v632 = vpop.f32.mrb[0].mxu0
  %v633 = vadd.f32 %v97, %v632
  %v634 = vpop.f32.mrb[0].mxu0
  %v635 = vpop.f32.mrb[0].mxu0
  %v636 = vadd.f32 %v97, %v635
  %v637 = vpop.f32.mrb[0].mxu0
  %638 = vmatprep.mubr.bf16.mxu0 0
  %639 = vmatmul.mubr.bf16.gmra.mrb[0].mxu0 %v362
  %v640 = vpop.f32.mrb[0].mxu0
  %v641 = vadd.f32 %v97, %v640
  %v642 = vpop.f32.mrb[0].mxu0
  %v643 = vpop.f32.mrb[0].mxu0
  %v644 = vadd.f32 %v97, %v643
  %v645 = vpop.f32.mrb[0].mxu0
  %646 = vmatprep.mubr.bf16.mxu0 0
  %647 = vmatmul.mubr.bf16.gmra.mrb[0].mxu0 %v365
  %v648 = vpop.f32.mrb[0].mxu0
  %v649 = vadd.f32 %v97, %v648
  %v650 = vpop.f32.mrb[0].mxu0
  %v651 = vpop.f32.mrb[0].mxu0
  %v652 = vadd.f32 %v97, %v651
  %v653 = vpop.f32.mrb[0].mxu0
  %654 = vmatprep.mubr.bf16.mxu0 0
  %655 = vmatmul.mubr.bf16.gmra.mrb[0].mxu0 %v368
  %v656 = vpop.f32.mrb[0].mxu0
  %v657 = vadd.f32 %v97, %v656
  %v658 = vpop.f32.mrb[0].mxu0
  %v659 = vpop.f32.mrb[0].mxu0
  %v660 = vadd.f32 %v97, %v659
  %v661 = vpop.f32.mrb[0].mxu0
  %662 = vmatprep.mubr.bf16.mxu0 0
  %663 = vmatmul.mubr.bf16.gmra.mrb[0].mxu0 %v371
  %v664 = vpop.f32.mrb[0].mxu0
  %v665 = vadd.f32 %v97, %v664
  %v666 = vpop.f32.mrb[0].mxu0
  %v667 = vpop.f32.mrb[0].mxu0
  %v668 = vadd.f32 %v97, %v667
  %v669 = vpop.f32.mrb[0].mxu0
  %670 = vmatprep.mubr.bf16.mxu0 0
  %671 = vmatmul.mubr.bf16.gmra.mrb[0].mxu0 %v374
  %v672 = vpop.f32.mrb[0].mxu0
  %v673 = vadd.f32 %v97, %v672
  %v674 = vpop.f32.mrb[0].mxu0
  %v675 = vpop.f32.mrb[0].mxu0
  %v676 = vadd.f32 %v97, %v675
  %v677 = vpop.f32.mrb[0].mxu0
  %678 = vmatprep.mubr.bf16.mxu0 0
  %679 = vmatmul.mubr.bf16.gmra.mrb[0].mxu0 %v377
  %v680 = vpop.f32.mrb[0].mxu0
  %v681 = vadd.f32 %v97, %v680
  %v682 = vpop.f32.mrb[0].mxu0
  %v683 = vpop.f32.mrb[0].mxu0
  %v684 = vadd.f32 %v97, %v683
  %v685 = vpop.f32.mrb[0].mxu0
  %686 = vmatprep.mubr.bf16.mxu0 0
  %687 = vmatmul.mubr.bf16.gmra.mrb[0].mxu0 %v380
  %v688 = vpop.f32.mrb[0].mxu0
  %v689 = vadd.f32 %v97, %v688
  %v690 = vpop.f32.mrb[0].mxu0
  %v691 = vpop.f32.mrb[0].mxu0
  %v692 = vadd.f32 %v97, %v691
  %v693 = vpop.f32.mrb[0].mxu0
  %694 = vmatprep.mubr.bf16.mxu0 0
  %695 = vmatmul.mubr.bf16.gmra.mrb[0].mxu0 %v383
  %v696 = vpop.f32.mrb[0].mxu0
  %v697 = vadd.f32 %v97, %v696
  %v698 = vpop.f32.mrb[0].mxu0
  %v699 = vpop.f32.mrb[0].mxu0
  %v700 = vadd.f32 %v97, %v699
  %v701 = vpop.f32.mrb[0].mxu0
  %702 = vmatprep.mubr.bf16.mxu0 0
  %703 = vmatmul.mubr.bf16.gmra.mrb[0].mxu0 %v386
  %v704 = vpop.f32.mrb[0].mxu0
  %v705 = vadd.f32 %v97, %v704
  %v706 = vpop.f32.mrb[0].mxu0
  %v707 = vpop.f32.mrb[0].mxu0
  %v708 = vadd.f32 %v97, %v707
  %v709 = vpop.f32.mrb[0].mxu0
  %710 = vmatprep.mubr.bf16.mxu0 0
  %711 = vmatmul.mubr.bf16.gmra.mrb[0].mxu0 %v389
  %v712 = vpop.f32.mrb[0].mxu0
  %v713 = vadd.f32 %v97, %v712
  %v714 = vpop.f32.mrb[0].mxu0
  %v715 = vpop.f32.mrb[0].mxu0
  %v716 = vadd.f32 %v97, %v715
  %v717 = vpop.f32.mrb[0].mxu0
  %718 = vmatprep.mubr.bf16.mxu0 0
  %719 = vmatmul.mubr.bf16.gmra.mrb[0].mxu0 %v392
  %v720 = vpop.f32.mrb[0].mxu0
  %v721 = vadd.f32 %v97, %v720
  %v722 = vpop.f32.mrb[0].mxu0
  %v723 = vpop.f32.mrb[0].mxu0
  %v724 = vpop.f32.mrb[0].mxu0
  %725 = vdwg.mxu0
  %vm726 = vcmp.ge.f32.partialorder %v433, 0.0
  %vm727 = vcmp.ge.f32.partialorder %v436, 0.0
  %vm728 = vcmp.ge.f32.partialorder %v441, 0.0
  %vm729 = vcmp.ge.f32.partialorder %v444, 0.0
  %vm730 = vcmp.ge.f32.partialorder %v449, 0.0
  %vm731 = vcmp.ge.f32.partialorder %v452, 0.0
  %vm732 = vcmp.ge.f32.partialorder %v457, 0.0
  %vm733 = vcmp.ge.f32.partialorder %v460, 0.0
  %vm734 = vcmp.ge.f32.partialorder %v465, 0.0
  %vm735 = vcmp.ge.f32.partialorder %v468, 0.0
  %vm736 = vcmp.ge.f32.partialorder %v473, 0.0
  %vm737 = vcmp.ge.f32.partialorder %v476, 0.0
  %vm738 = vcmp.ge.f32.partialorder %v481, 0.0
  %vm739 = vcmp.ge.f32.partialorder %v484, 0.0
  %vm740 = vcmp.ge.f32.partialorder %v489, 0.0
  %vm741 = vcmp.ge.f32.partialorder %v492, 0.0
  %vm742 = vcmp.ge.f32.partialorder %v497, 0.0
  %vm743 = vcmp.ge.f32.partialorder %v500, 0.0
  %vm744 = vcmp.ge.f32.partialorder %v505, 0.0
  %vm745 = vcmp.ge.f32.partialorder %v508, 0.0
  %vm746 = vcmp.ge.f32.partialorder %v513, 0.0
  %vm747 = vcmp.ge.f32.partialorder %v516, 0.0
  %vm748 = vcmp.ge.f32.partialorder %v521, 0.0
  %vm749 = vcmp.ge.f32.partialorder %v524, 0.0
  %vm750 = vcmp.ge.f32.partialorder %v529, 0.0
  %vm751 = vcmp.ge.f32.partialorder %v532, 0.0
  %vm752 = vcmp.ge.f32.partialorder %v537, 0.0
  %vm753 = vcmp.ge.f32.partialorder %v540, 0.0
  %vm754 = vcmp.ge.f32.partialorder %v545, 0.0
  %vm755 = vcmp.ge.f32.partialorder %v548, 0.0
  %vm756 = vcmp.ge.f32.partialorder %v553, 0.0
  %vm757 = vcmp.ge.f32.partialorder %v556, 0.0
  %vm758 = vcmp.ge.f32.partialorder %v561, 0.0
  %vm759 = vcmp.ge.f32.partialorder %v564, 0.0
  %vm760 = vcmp.ge.f32.partialorder %v569, 0.0
  %vm761 = vcmp.ge.f32.partialorder %v572, 0.0
  %vm762 = vcmp.ge.f32.partialorder %v577, 0.0
  %vm763 = vcmp.ge.f32.partialorder %v580, 0.0
  %vm764 = vcmp.ge.f32.partialorder %v585, 0.0
  %vm765 = vcmp.ge.f32.partialorder %v588, 0.0
  %vm766 = vcmp.ge.f32.partialorder %v593, 0.0
  %vm767 = vcmp.ge.f32.partialorder %v596, 0.0
  %vm768 = vcmp.ge.f32.partialorder %v601, 0.0
  %vm769 = vcmp.ge.f32.partialorder %v604, 0.0
  %vm770 = vcmp.ge.f32.partialorder %v609, 0.0
  %vm771 = vcmp.ge.f32.partialorder %v612, 0.0
  %vm772 = vcmp.ge.f32.partialorder %v617, 0.0
  %vm773 = vcmp.ge.f32.partialorder %v620, 0.0
  %vm774 = vcmp.ge.f32.partialorder %v625, 0.0
  %vm775 = vcmp.ge.f32.partialorder %v628, 0.0
  %vm776 = vcmp.ge.f32.partialorder %v633, 0.0
  %vm777 = vcmp.ge.f32.partialorder %v636, 0.0
  %vm778 = vcmp.ge.f32.partialorder %v641, 0.0
  %vm779 = vcmp.ge.f32.partialorder %v644, 0.0
  %vm780 = vcmp.ge.f32.partialorder %v649, 0.0
  %vm781 = vcmp.ge.f32.partialorder %v652, 0.0
  %vm782 = vcmp.ge.f32.partialorder %v657, 0.0
  %vm783 = vcmp.ge.f32.partialorder %v660, 0.0
  %vm784 = vcmp.ge.f32.partialorder %v665, 0.0
  %vm785 = vcmp.ge.f32.partialorder %v668, 0.0
  %vm786 = vcmp.ge.f32.partialorder %v673, 0.0
  %vm787 = vcmp.ge.f32.partialorder %v676, 0.0
  %vm788 = vcmp.ge.f32.partialorder %v681, 0.0
  %vm789 = vcmp.ge.f32.partialorder %v684, 0.0
  %vm790 = vcmp.ge.f32.partialorder %v689, 0.0
  %vm791 = vcmp.ge.f32.partialorder %v692, 0.0
  %vm792 = vcmp.ge.f32.partialorder %v697, 0.0
  %vm793 = vcmp.ge.f32.partialorder %v700, 0.0
  %vm794 = vcmp.ge.f32.partialorder %v705, 0.0
  %vm795 = vcmp.ge.f32.partialorder %v708, 0.0
  %vm796 = vcmp.ge.f32.partialorder %v713, 0.0
  %vm797 = vcmp.ge.f32.partialorder %v716, 0.0
  %vm798 = vcmp.ge.f32.partialorder %v721, 0.0
  %v799 = vld [vmem:[%s3] sm:$0x1]
  %v801 = vlaneseq
  %v802 = vshrl.u32 %v801, 7
  %v803 = vsub.s32 0, %v802
  %v804 = vrot.slane %v799, %v803
  %v806 = vmul.f32 %v804, %v433
  %v807 = vmul.f32 %v804, %v436
  %v808 = vmul.f32 %v804, %v441
  %v809 = vmul.f32 %v804, %v444
  %v810 = vmul.f32 %v804, %v449
  %v811 = vmul.f32 %v804, %v452
  %v812 = vmul.f32 %v804, %v457
  %v813 = vmul.f32 %v804, %v460
  %v814 = vmul.f32 %v804, %v465
  %v815 = vmul.f32 %v804, %v468
  %v816 = vmul.f32 %v804, %v473
  %v817 = vmul.f32 %v804, %v476
  %v818 = vmul.f32 %v804, %v481
  %v819 = vmul.f32 %v804, %v484
  %v820 = vmul.f32 %v804, %v489
  %v821 = vmul.f32 %v804, %v492
  %v822 = vmul.f32 %v804, %v497
  %v823 = vmul.f32 %v804, %v500
  %v824 = vmul.f32 %v804, %v505
  %v825 = vmul.f32 %v804, %v508
  %v826 = vmul.f32 %v804, %v513
  %v827 = vmul.f32 %v804, %v516
  %v828 = vmul.f32 %v804, %v521
  %v829 = vmul.f32 %v804, %v524
  %v830 = vmul.f32 %v804, %v529
  %v831 = vmul.f32 %v804, %v532
  %v832 = vmul.f32 %v804, %v537
  %v833 = vmul.f32 %v804, %v540
  %v834 = vmul.f32 %v804, %v545
  %v835 = vmul.f32 %v804, %v548
  %v836 = vmul.f32 %v804, %v553
  %v837 = vmul.f32 %v804, %v556
  %v838 = vmul.f32 %v804, %v561
  %v839 = vmul.f32 %v804, %v564
  %v840 = vmul.f32 %v804, %v569
  %v841 = vmul.f32 %v804, %v572
  %v842 = vmul.f32 %v804, %v577
  %v843 = vmul.f32 %v804, %v580
  %v844 = vmul.f32 %v804, %v585
  %v845 = vmul.f32 %v804, %v588
  %v846 = vmul.f32 %v804, %v593
  %v847 = vmul.f32 %v804, %v596
  %v848 = vmul.f32 %v804, %v601
  %v849 = vmul.f32 %v804, %v604
  %v850 = vmul.f32 %v804, %v609
  %v851 = vmul.f32 %v804, %v612
  %v852 = vmul.f32 %v804, %v617
  %v853 = vmul.f32 %v804, %v620
  %v854 = vmul.f32 %v804, %v625
  %v855 = vmul.f32 %v804, %v628
  %v856 = vmul.f32 %v804, %v633
  %v857 = vmul.f32 %v804, %v636
  %v858 = vmul.f32 %v804, %v641
  %v859 = vmul.f32 %v804, %v644
  %v860 = vmul.f32 %v804, %v649
  %v861 = vmul.f32 %v804, %v652
  %v862 = vmul.f32 %v804, %v657
  %v863 = vmul.f32 %v804, %v660
  %v864 = vmul.f32 %v804, %v665
  %v865 = vmul.f32 %v804, %v668
  %v866 = vmul.f32 %v804, %v673
  %v867 = vmul.f32 %v804, %v676
  %v868 = vmul.f32 %v804, %v681
  %v869 = vmul.f32 %v804, %v684
  %v870 = vmul.f32 %v804, %v689
  %v871 = vmul.f32 %v804, %v692
  %v872 = vmul.f32 %v804, %v697
  %v873 = vmul.f32 %v804, %v700
  %v874 = vmul.f32 %v804, %v705
  %v875 = vmul.f32 %v804, %v708
  %v876 = vmul.f32 %v804, %v713
  %v877 = vmul.f32 %v804, %v716
  %v878 = vmul.f32 %v804, %v721
  %v879 = vsel %vm726, %v433, %v806
  %v880 = vsel %vm727, %v436, %v807
  %v881 = vsel %vm728, %v441, %v808
  %v882 = vsel %vm729, %v444, %v809
  %v883 = vsel %vm730, %v449, %v810
  %v884 = vsel %vm731, %v452, %v811
  %v885 = vsel %vm732, %v457, %v812
  %v886 = vsel %vm733, %v460, %v813
  %v887 = vsel %vm734, %v465, %v814
  %v888 = vsel %vm735, %v468, %v815
  %v889 = vsel %vm736, %v473, %v816
  %v890 = vsel %vm737, %v476, %v817
  %v891 = vsel %vm738, %v481, %v818
  %v892 = vsel %vm739, %v484, %v819
  %v893 = vsel %vm740, %v489, %v820
  %v894 = vsel %vm741, %v492, %v821
  %v895 = vsel %vm742, %v497, %v822
  %v896 = vsel %vm743, %v500, %v823
  %v897 = vsel %vm744, %v505, %v824
  %v898 = vsel %vm745, %v508, %v825
  %v899 = vsel %vm746, %v513, %v826
  %v900 = vsel %vm747, %v516, %v827
  %v901 = vsel %vm748, %v521, %v828
  %v902 = vsel %vm749, %v524, %v829
  %v903 = vsel %vm750, %v529, %v830
  %v904 = vsel %vm751, %v532, %v831
  %v905 = vsel %vm752, %v537, %v832
  %v906 = vsel %vm753, %v540, %v833
  %v907 = vsel %vm754, %v545, %v834
  %v908 = vsel %vm755, %v548, %v835
  %v909 = vsel %vm756, %v553, %v836
  %v910 = vsel %vm757, %v556, %v837
  %v911 = vsel %vm758, %v561, %v838
  %v912 = vsel %vm759, %v564, %v839
  %v913 = vsel %vm760, %v569, %v840
  %v914 = vsel %vm761, %v572, %v841
  %v915 = vsel %vm762, %v577, %v842
  %v916 = vsel %vm763, %v580, %v843
  %v917 = vsel %vm764, %v585, %v844
  %v918 = vsel %vm765, %v588, %v845
  %v919 = vsel %vm766, %v593, %v846
  %v920 = vsel %vm767, %v596, %v847
  %v921 = vsel %vm768, %v601, %v848
  %v922 = vsel %vm769, %v604, %v849
  %v923 = vsel %vm770, %v609, %v850
  %v924 = vsel %vm771, %v612, %v851
  %v925 = vsel %vm772, %v617, %v852
  %v926 = vsel %vm773, %v620, %v853
  %v927 = vsel %vm774, %v625, %v854
  %v928 = vsel %vm775, %v628, %v855
  %v929 = vsel %vm776, %v633, %v856
  %v930 = vsel %vm777, %v636, %v857
  %v931 = vsel %vm778, %v641, %v858
  %v932 = vsel %vm779, %v644, %v859
  %v933 = vsel %vm780, %v649, %v860
  %v934 = vsel %vm781, %v652, %v861
  %v935 = vsel %vm782, %v657, %v862
  %v936 = vsel %vm783, %v660, %v863
  %v937 = vsel %vm784, %v665, %v864
  %v938 = vsel %vm785, %v668, %v865
  %v939 = vsel %vm786, %v673, %v866
  %v940 = vsel %vm787, %v676, %v867
  %v941 = vsel %vm788, %v681, %v868
  %v942 = vsel %vm789, %v684, %v869
  %v943 = vsel %vm790, %v689, %v870
  %v944 = vsel %vm791, %v692, %v871
  %v945 = vsel %vm792, %v697, %v872
  %v946 = vsel %vm793, %v700, %v873
  %v947 = vsel %vm794, %v705, %v874
  %v948 = vsel %vm795, %v708, %v875
  %v949 = vsel %vm796, %v713, %v876
  %v950 = vsel %vm797, %v716, %v877
  %v951 = vsel %vm798, %v721, %v878
  %v952 = vpack.c.bf16 %v880, %v879
  %v953 = vpack.c.bf16 %v882, %v881
  %v954 = vpack.c.bf16 %v884, %v883
  %v955 = vpack.c.bf16 %v886, %v885
  %v956 = vpack.c.bf16 %v888, %v887
  %v957 = vpack.c.bf16 %v890, %v889
  %v958 = vpack.c.bf16 %v892, %v891
  %v959 = vpack.c.bf16 %v894, %v893
  %v960 = vpack.c.bf16 %v896, %v895
  %v961 = vpack.c.bf16 %v898, %v897
  %v962 = vpack.c.bf16 %v900, %v899
  %v963 = vpack.c.bf16 %v902, %v901
  %v964 = vpack.c.bf16 %v904, %v903
  %v965 = vpack.c.bf16 %v906, %v905
  %v966 = vpack.c.bf16 %v908, %v907
  %v967 = vpack.c.bf16 %v910, %v909
  %v968 = vpack.c.bf16 %v912, %v911
  %v969 = vpack.c.bf16 %v914, %v913
  %v970 = vpack.c.bf16 %v916, %v915
  %v971 = vpack.c.bf16 %v918, %v917
  %v972 = vpack.c.bf16 %v920, %v919
  %v973 = vpack.c.bf16 %v922, %v921
  %v974 = vpack.c.bf16 %v924, %v923
  %v975 = vpack.c.bf16 %v926, %v925
  %v976 = vpack.c.bf16 %v928, %v927
  %v977 = vpack.c.bf16 %v930, %v929
  %v978 = vpack.c.bf16 %v932, %v931
  %v979 = vpack.c.bf16 %v934, %v933
  %v980 = vpack.c.bf16 %v936, %v935
  %v981 = vpack.c.bf16 %v938, %v937
  %v982 = vpack.c.bf16 %v940, %v939
  %v983 = vpack.c.bf16 %v942, %v941
  %v984 = vpack.c.bf16 %v944, %v943
  %v985 = vpack.c.bf16 %v946, %v945
  %v986 = vpack.c.bf16 %v948, %v947
  %v987 = vpack.c.bf16 %v950, %v949
  %v988 = vpack.c.bf16 %v951, %v951
  %v1026 = vunpack.c.l.b16 %v952
  %v1027 = vunpack.c.h.b16 %v952
  %v1028 = vunpack.c.l.b16 %v953
  %v1029 = vunpack.c.h.b16 %v953
  %v1030 = vunpack.c.l.b16 %v954
  %v1031 = vunpack.c.h.b16 %v954
  %v1032 = vunpack.c.l.b16 %v955
  %v1033 = vunpack.c.h.b16 %v955
  %v1034 = vunpack.c.l.b16 %v956
  %v1035 = vunpack.c.h.b16 %v956
  %v1036 = vunpack.c.l.b16 %v957
  %v1037 = vunpack.c.h.b16 %v957
  %v1038 = vunpack.c.l.b16 %v958
  %v1039 = vunpack.c.h.b16 %v958
  %v1040 = vunpack.c.l.b16 %v959
  %v1041 = vunpack.c.h.b16 %v959
  %v1042 = vunpack.c.l.b16 %v960
  %v1043 = vunpack.c.h.b16 %v960
  %v1044 = vunpack.c.l.b16 %v961
  %v1045 = vunpack.c.h.b16 %v961
  %v1046 = vunpack.c.l.b16 %v962
  %v1047 = vunpack.c.h.b16 %v962
  %v1048 = vunpack.c.l.b16 %v963
  %v1049 = vunpack.c.h.b16 %v963
  %v1050 = vunpack.c.l.b16 %v964
  %v1051 = vunpack.c.h.b16 %v964
  %v1052 = vunpack.c.l.b16 %v965
  %v1053 = vunpack.c.h.b16 %v965
  %v1054 = vunpack.c.l.b16 %v966
  %v1055 = vunpack.c.h.b16 %v966
  %v1056 = vunpack.c.l.b16 %v967
  %v1057 = vunpack.c.h.b16 %v967
  %v1058 = vunpack.c.l.b16 %v968
  %v1059 = vunpack.c.h.b16 %v968
  %v1060 = vunpack.c.l.b16 %v969
  %v1061 = vunpack.c.h.b16 %v969
  %v1062 = vunpack.c.l.b16 %v970
  %v1063 = vunpack.c.h.b16 %v970
  %v1064 = vunpack.c.l.b16 %v971
  %v1065 = vunpack.c.h.b16 %v971
  %v1066 = vunpack.c.l.b16 %v972
  %v1067 = vunpack.c.h.b16 %v972
  %v1068 = vunpack.c.l.b16 %v973
  %v1069 = vunpack.c.h.b16 %v973
  %v1070 = vunpack.c.l.b16 %v974
  %v1071 = vunpack.c.h.b16 %v974
  %v1072 = vunpack.c.l.b16 %v975
  %v1073 = vunpack.c.h.b16 %v975
  %v1074 = vunpack.c.l.b16 %v976
  %v1075 = vunpack.c.h.b16 %v976
  %v1076 = vunpack.c.l.b16 %v977
  %v1077 = vunpack.c.h.b16 %v977
  %v1078 = vunpack.c.l.b16 %v978
  %v1079 = vunpack.c.h.b16 %v978
  %v1080 = vunpack.c.l.b16 %v979
  %v1081 = vunpack.c.h.b16 %v979
  %v1082 = vunpack.c.l.b16 %v980
  %v1083 = vunpack.c.h.b16 %v980
  %v1084 = vunpack.c.l.b16 %v981
  %v1085 = vunpack.c.h.b16 %v981
  %v1086 = vunpack.c.l.b16 %v982
  %v1087 = vunpack.c.h.b16 %v982
  %v1088 = vunpack.c.l.b16 %v983
  %v1089 = vunpack.c.h.b16 %v983
  %v1090 = vunpack.c.l.b16 %v984
  %v1091 = vunpack.c.h.b16 %v984
  %v1092 = vunpack.c.l.b16 %v985
  %v1093 = vunpack.c.h.b16 %v985
  %v1094 = vunpack.c.l.b16 %v986
  %v1095 = vunpack.c.h.b16 %v986
  %v1096 = vunpack.c.l.b16 %v987
  %v1097 = vunpack.c.h.b16 %v987
  %v1098 = vunpack.c.l.b16 %v988
  %v1099 = vpack.c.b16 %v1026, %v1026
  %v1100 = vpack.c.b16 %v1027, %v1027
  %v1101 = vpack.c.b16 %v1028, %v1028
  %v1102 = vpack.c.b16 %v1029, %v1029
  %v1103 = vpack.c.b16 %v1030, %v1030
  %v1104 = vpack.c.b16 %v1031, %v1031
  %v1105 = vpack.c.b16 %v1032, %v1032
  %v1106 = vpack.c.b16 %v1033, %v1033
  %v1107 = vpack.c.b16 %v1034, %v1034
  %v1108 = vpack.c.b16 %v1035, %v1035
  %v1109 = vpack.c.b16 %v1036, %v1036
  %v1110 = vpack.c.b16 %v1037, %v1037
  %v1111 = vpack.c.b16 %v1038, %v1038
  %v1112 = vpack.c.b16 %v1039, %v1039
  %v1113 = vpack.c.b16 %v1040, %v1040
  %v1114 = vpack.c.b16 %v1041, %v1041
  %v1115 = vpack.c.b16 %v1042, %v1042
  %v1116 = vpack.c.b16 %v1043, %v1043
  %v1117 = vpack.c.b16 %v1044, %v1044
  %v1118 = vpack.c.b16 %v1045, %v1045
  %v1119 = vpack.c.b16 %v1046, %v1046
  %v1120 = vpack.c.b16 %v1047, %v1047
  %v1121 = vpack.c.b16 %v1048, %v1048
  %v1122 = vpack.c.b16 %v1049, %v1049
  %v1123 = vpack.c.b16 %v1050, %v1050
  %v1124 = vpack.c.b16 %v1051, %v1051
  %v1125 = vpack.c.b16 %v1052, %v1052
  %v1126 = vpack.c.b16 %v1053, %v1053
  %v1127 = vpack.c.b16 %v1054, %v1054
  %v1128 = vpack.c.b16 %v1055, %v1055
  %v1129 = vpack.c.b16 %v1056, %v1056
  %v1130 = vpack.c.b16 %v1057, %v1057
  %v1131 = vpack.c.b16 %v1058, %v1058
  %v1132 = vpack.c.b16 %v1059, %v1059
  %v1133 = vpack.c.b16 %v1060, %v1060
  %v1134 = vpack.c.b16 %v1061, %v1061
  %v1135 = vpack.c.b16 %v1062, %v1062
  %v1136 = vpack.c.b16 %v1063, %v1063
  %v1137 = vpack.c.b16 %v1064, %v1064
  %v1138 = vpack.c.b16 %v1065, %v1065
  %v1139 = vpack.c.b16 %v1066, %v1066
  %v1140 = vpack.c.b16 %v1067, %v1067
  %v1141 = vpack.c.b16 %v1068, %v1068
  %v1142 = vpack.c.b16 %v1069, %v1069
  %v1143 = vpack.c.b16 %v1070, %v1070
  %v1144 = vpack.c.b16 %v1071, %v1071
  %v1145 = vpack.c.b16 %v1072, %v1072
  %v1146 = vpack.c.b16 %v1073, %v1073
  %v1147 = vpack.c.b16 %v1074, %v1074
  %v1148 = vpack.c.b16 %v1075, %v1075
  %v1149 = vpack.c.b16 %v1076, %v1076
  %v1150 = vpack.c.b16 %v1077, %v1077
  %v1151 = vpack.c.b16 %v1078, %v1078
  %v1152 = vpack.c.b16 %v1079, %v1079
  %v1153 = vpack.c.b16 %v1080, %v1080
  %v1154 = vpack.c.b16 %v1081, %v1081
  %v1155 = vpack.c.b16 %v1082, %v1082
  %v1156 = vpack.c.b16 %v1083, %v1083
  %v1157 = vpack.c.b16 %v1084, %v1084
  %v1158 = vpack.c.b16 %v1085, %v1085
  %v1159 = vpack.c.b16 %v1086, %v1086
  %v1160 = vpack.c.b16 %v1087, %v1087
  %v1161 = vpack.c.b16 %v1088, %v1088
  %v1162 = vpack.c.b16 %v1089, %v1089
  %v1163 = vpack.c.b16 %v1090, %v1090
  %v1164 = vpack.c.b16 %v1091, %v1091
  %v1165 = vpack.c.b16 %v1092, %v1092
  %v1166 = vpack.c.b16 %v1093, %v1093
  %v1167 = vpack.c.b16 %v1094, %v1094
  %v1168 = vpack.c.b16 %v1095, %v1095
  %v1169 = vpack.c.b16 %v1096, %v1096
  %v1170 = vpack.c.b16 %v1097, %v1097
  %v1171 = vpack.c.b16 %v1098, %v1098
  %vm1245 = vcmask 191488
  %1246 = vst.msk [vmem:[%s4] sm:$0xf] %vm1245, %v1099
  %1247 = vst.msk [vmem:[%s4 + $0x4] sm:$0xf] %vm1245, %v1100
  %1248 = vst.msk [vmem:[%s4 + $0x8] sm:$0xf] %vm1245, %v1101
  %1249 = vst.msk [vmem:[%s4 + $0xc] sm:$0xf] %vm1245, %v1102
  %1250 = vst.msk [vmem:[%s4 + $0x10] sm:$0xf] %vm1245, %v1103
  %1251 = vst.msk [vmem:[%s4 + $0x14] sm:$0xf] %vm1245, %v1104
  %1252 = vst.msk [vmem:[%s4 + $0x18] sm:$0xf] %vm1245, %v1105
  %1253 = vst.msk [vmem:[%s4 + $0x1c] sm:$0xf] %vm1245, %v1106
  %1254 = vst.msk [vmem:[%s4 + $0x20] sm:$0xf] %vm1245, %v1107
  %1255 = vst.msk [vmem:[%s4 + $0x24] sm:$0xf] %vm1245, %v1108
  %1256 = vst.msk [vmem:[%s4 + $0x28] sm:$0xf] %vm1245, %v1109
  %1257 = vst.msk [vmem:[%s4 + $0x2c] sm:$0xf] %vm1245, %v1110
  %1258 = vst.msk [vmem:[%s4 + $0x30] sm:$0xf] %vm1245, %v1111
  %1259 = vst.msk [vmem:[%s4 + $0x34] sm:$0xf] %vm1245, %v1112
  %1260 = vst.msk [vmem:[%s4 + $0x38] sm:$0xf] %vm1245, %v1113
  %1261 = vst.msk [vmem:[%s4 + $0x3c] sm:$0xf] %vm1245, %v1114
  %1262 = vst.msk [vmem:[%s4 + $0x40] sm:$0xf] %vm1245, %v1115
  %1263 = vst.msk [vmem:[%s4 + $0x44] sm:$0xf] %vm1245, %v1116
  %1264 = vst.msk [vmem:[%s4 + $0x48] sm:$0xf] %vm1245, %v1117
  %1265 = vst.msk [vmem:[%s4 + $0x4c] sm:$0xf] %vm1245, %v1118
  %1266 = vst.msk [vmem:[%s4 + $0x50] sm:$0xf] %vm1245, %v1119
  %1267 = vst.msk [vmem:[%s4 + $0x54] sm:$0xf] %vm1245, %v1120
  %1268 = vst.msk [vmem:[%s4 + $0x58] sm:$0xf] %vm1245, %v1121
  %1269 = vst.msk [vmem:[%s4 + $0x5c] sm:$0xf] %vm1245, %v1122
  %1270 = vst.msk [vmem:[%s4 + $0x60] sm:$0xf] %vm1245, %v1123
  %1271 = vst.msk [vmem:[%s4 + $0x64] sm:$0xf] %vm1245, %v1124
  %1272 = vst.msk [vmem:[%s4 + $0x68] sm:$0xf] %vm1245, %v1125
  %1273 = vst.msk [vmem:[%s4 + $0x6c] sm:$0xf] %vm1245, %v1126
  %1274 = vst.msk [vmem:[%s4 + $0x70] sm:$0xf] %vm1245, %v1127
  %1275 = vst.msk [vmem:[%s4 + $0x74] sm:$0xf] %vm1245, %v1128
  %1276 = vst.msk [vmem:[%s4 + $0x78] sm:$0xf] %vm1245, %v1129
  %1277 = vst.msk [vmem:[%s4 + $0x7c] sm:$0xf] %vm1245, %v1130
  %1278 = vst.msk [vmem:[%s4 + $0x80] sm:$0xf] %vm1245, %v1131
  %1279 = vst.msk [vmem:[%s4 + $0x84] sm:$0xf] %vm1245, %v1132
  %1280 = vst.msk [vmem:[%s4 + $0x88] sm:$0xf] %vm1245, %v1133
  %1281 = vst.msk [vmem:[%s4 + $0x8c] sm:$0xf] %vm1245, %v1134
  %1282 = vst.msk [vmem:[%s4 + $0x90] sm:$0xf] %vm1245, %v1135
  %1283 = vst.msk [vmem:[%s4 + $0x94] sm:$0xf] %vm1245, %v1136
  %1284 = vst.msk [vmem:[%s4 + $0x98] sm:$0xf] %vm1245, %v1137
  %1285 = vst.msk [vmem:[%s4 + $0x9c] sm:$0xf] %vm1245, %v1138
  %1286 = vst.msk [vmem:[%s4 + $0xa0] sm:$0xf] %vm1245, %v1139
  %1287 = vst.msk [vmem:[%s4 + $0xa4] sm:$0xf] %vm1245, %v1140
  %1288 = vst.msk [vmem:[%s4 + $0xa8] sm:$0xf] %vm1245, %v1141
  %1289 = vst.msk [vmem:[%s4 + $0xac] sm:$0xf] %vm1245, %v1142
  %1290 = vst.msk [vmem:[%s4 + $0xb0] sm:$0xf] %vm1245, %v1143
  %1291 = vst.msk [vmem:[%s4 + $0xb4] sm:$0xf] %vm1245, %v1144
  %1292 = vst.msk [vmem:[%s4 + $0xb8] sm:$0xf] %vm1245, %v1145
  %1293 = vst.msk [vmem:[%s4 + $0xbc] sm:$0xf] %vm1245, %v1146
  %1294 = vst.msk [vmem:[%s4 + $0xc0] sm:$0xf] %vm1245, %v1147
  %1295 = vst.msk [vmem:[%s4 + $0xc4] sm:$0xf] %vm1245, %v1148
  %1296 = vst.msk [vmem:[%s4 + $0xc8] sm:$0xf] %vm1245, %v1149
  %1297 = vst.msk [vmem:[%s4 + $0xcc] sm:$0xf] %vm1245, %v1150
  %1298 = vst.msk [vmem:[%s4 + $0xd0] sm:$0xf] %vm1245, %v1151
  %1299 = vst.msk [vmem:[%s4 + $0xd4] sm:$0xf] %vm1245, %v1152
  %1300 = vst.msk [vmem:[%s4 + $0xd8] sm:$0xf] %vm1245, %v1153
  %1301 = vst.msk [vmem:[%s4 + $0xdc] sm:$0xf] %vm1245, %v1154
  %1302 = vst.msk [vmem:[%s4 + $0xe0] sm:$0xf] %vm1245, %v1155
  %1303 = vst.msk [vmem:[%s4 + $0xe4] sm:$0xf] %vm1245, %v1156
  %1304 = vst.msk [vmem:[%s4 + $0xe8] sm:$0xf] %vm1245, %v1157
  %1305 = vst.msk [vmem:[%s4 + $0xec] sm:$0xf] %vm1245, %v1158
  %1306 = vst.msk [vmem:[%s4 + $0xf0] sm:$0xf] %vm1245, %v1159
  %1307 = vst.msk [vmem:[%s4 + $0xf4] sm:$0xf] %vm1245, %v1160
  %1308 = vst.msk [vmem:[%s4 + $0xf8] sm:$0xf] %vm1245, %v1161
  %1309 = vst.msk [vmem:[%s4 + $0xfc] sm:$0xf] %vm1245, %v1162
  %1310 = vst.msk [vmem:[%s4 + $0x100] sm:$0xf] %vm1245, %v1163
  %1311 = vst.msk [vmem:[%s4 + $0x104] sm:$0xf] %vm1245, %v1164
  %1312 = vst.msk [vmem:[%s4 + $0x108] sm:$0xf] %vm1245, %v1165
  %1313 = vst.msk [vmem:[%s4 + $0x10c] sm:$0xf] %vm1245, %v1166
  %1314 = vst.msk [vmem:[%s4 + $0x110] sm:$0xf] %vm1245, %v1167
  %1315 = vst.msk [vmem:[%s4 + $0x114] sm:$0xf] %vm1245, %v1168
  %1316 = vst.msk [vmem:[%s4 + $0x118] sm:$0xf] %vm1245, %v1169
  %1317 = vst.msk [vmem:[%s4 + $0x11c] sm:$0xf] %vm1245, %v1170
  %1318 = vst.msk [vmem:[%s4 + $0x120] sm:$0xf] %vm1245, %v1171
  // Predicated region
  $region18: #{tf_gridnet_forward.43} parent=0 // pred_check
    _
  $region19: #{tf_gridnet_forward.43} parent=0 // pred_check_branch
    %1320 = sbr.rel (0) target = $region21
  $region20: #{tf_gridnet_forward.43} parent=0 // pred_region
    _
  $region21: #{tf_gridnet_forward.43} parent=0 // pred_fallthru
    _
  // Predicated region
  $region22: #{tf_gridnet_forward.43} parent=0 // pred_check
    _
  $region23: #{tf_gridnet_forward.43} parent=0 // pred_check_branch
    %1322 = sbr.rel (0) target = $region25
  $region24: #{tf_gridnet_forward.43} parent=0 // pred_region
    _
  $region25: #{tf_gridnet_forward.43} parent=0 // pred_fallthru
    _

// kernel: tf_gridnet_forward.45
$region0: #{tf_gridnet_forward.45}
  #allocation0 [shape = 'u32[]', space=smem, size = 0x4, offset = 0x4, fixed_abs, tag = 'smem constant byte address 0x4 - core index']
  #allocation1 [shape = 'u32[144,128]{1,0:T(1,128)}', space=vmem, size = 0x12000, scoped, tag = 'internal scratch']
  %s0 = inlined_call_operand.vmem [shape: bf16[4,40,34], index: 0, kind: input, shape index: {}]
  %s1 = inlined_call_operand.vmem [shape: f32[4,1,34], index: 1, kind: input, shape index: {}]
  %s2 = inlined_call_operand.vmem [shape: f32[4,1,34], index: 2, kind: input, shape index: {}]
  %s3 = inlined_call_operand.vmem [shape: bf16[4,40,34], index: 3, kind: output, shape index: {}]
  %s4 = sld [smem:[#allocation0]]
  $region45: #{tf_gridnet_forward.45} parent=0
    _
  %s6 = ssub.s32 1, %s4
  %s7 = scalar_select 0, %s6, %s4
  loop: start=0, step=1, limit=6
  $region2: #{tf_gridnet_forward.45} parent=0 // loop_pre_header
    _
  $region3: #{tf_gridnet_forward.45} parent=0 // loop_header
    %s9 = sphi 0, %s13
    %p10 = scmp.ge.s32.totalorder %s9, 6
    %s16 = sphi 0, %s28
    %s17 = sphi 0, %s24
    %s18 = sphi 0, %s16
    %s19 = sphi 0, %s17
    %s20 = sphi 0, %s18
    %s21 = sphi 0, %s19
    %s33 = sphi 0, %s35
    %s36 = sphi 0, %s33
    %s37 = sphi 0, %s36
    %s53 = sphi 0, %s37
    %s59 = sphi 0, %s61
    %s62 = sphi 0, %s59
    %s63 = sphi 0, %s62
    %s79 = sphi 0, %s63
    %s85 = sphi 0, %s87
    %s88 = sphi 0, %s85
    %s89 = sphi 0, %s88
    %s105 = sphi 0, %s89
    %s113 = sphi 0, %s115
    %s116 = sphi 0, %s113
    %s117 = sphi 0, %s116
    %s133 = sphi 0, %s117
  $region4: #{tf_gridnet_forward.45} parent=0 // loop_header_branch
    %12 = sbr.rel (%p10) target = $region8
  $region5: #{tf_gridnet_forward.45} parent=0 // loop_body
    %s14 = ssub.s32 %s9, 1
    %s15 = ssub.s32 %s9, 2
    %s22 = sadd.s32 1, %s17
    %p23 = scmp.ge.s32.totalorder %s22, 1
    %s24 = scalar_select %p23, 0, %s22
    %s25 = sadd.s32 1, %s16
    %s26 = scalar_select %p23, %s25, %s16
    %p27 = scmp.ge.s32.totalorder %s26, 4
    %s28 = scalar_select %p27, 0, %s26
    %s29 = ssub.s32 %s16, %s28
    %s30 = ssub.s32 %s17, %s24
    %s31 = sor.u32 %s29, %s30
    %p32 = scmp.eq.s32.totalorder %s31, 0
    %s34 = sadd.s32 %s33, 1
    %s35 = scalar_select %p32, %s33, %s34
    %p38 = pneg %p32
    %p39 = scmp.eq.s32.totalorder %s9, 3
    %p40 = por %p38, %p39
    %p41 = scmp.ne.s32.totalorder %s33, %s36
    %p42 = scmp.eq.s32.totalorder %s9, 0
    %p43 = por %p41, %p42
    %p44 = scmp.ne.s32.totalorder %s33, %s36
    %p45 = scmp.eq.s32.totalorder %s14, 3
    %p46 = por %p44, %p45
    %p47 = scmp.ne.s32.totalorder %s36, %s37
    %p48 = scmp.eq.s32.totalorder %s14, 0
    %p49 = por %p47, %p48
    %p50 = scmp.ne.s32.totalorder %s36, %s37
    %p51 = scmp.eq.s32.totalorder %s15, 3
    %p52 = por %p50, %p51
    %p54 = scmp.ne.s32.totalorder %s37, %s53
    %p55 = scmp.eq.s32.totalorder %s15, 0
    %p56 = por %p54, %p55
    %s57 = ssub.s32 %s16, %s28
    %p58 = scmp.eq.s32.totalorder %s57, 0
    %s60 = sadd.s32 %s59, 1
    %s61 = scalar_select %p58, %s59, %s60
    %p64 = pneg %p58
    %p65 = scmp.eq.s32.totalorder %s9, 3
    %p66 = por %p64, %p65
    %p67 = scmp.ne.s32.totalorder %s59, %s62
    %p68 = scmp.eq.s32.totalorder %s9, 0
    %p69 = por %p67, %p68
    %p70 = scmp.ne.s32.totalorder %s59, %s62
    %p71 = scmp.eq.s32.totalorder %s14, 3
    %p72 = por %p70, %p71
    %p73 = scmp.ne.s32.totalorder %s62, %s63
    %p74 = scmp.eq.s32.totalorder %s14, 0
    %p75 = por %p73, %p74
    %p76 = scmp.ne.s32.totalorder %s62, %s63
    %p77 = scmp.eq.s32.totalorder %s15, 3
    %p78 = por %p76, %p77
    %p80 = scmp.ne.s32.totalorder %s63, %s79
    %p81 = scmp.eq.s32.totalorder %s15, 0
    %p82 = por %p80, %p81
    %s83 = ssub.s32 %s16, %s28
    %p84 = scmp.eq.s32.totalorder %s83, 0
    %s86 = sadd.s32 %s85, 1
    %s87 = scalar_select %p84, %s85, %s86
    %p90 = pneg %p84
    %p91 = scmp.eq.s32.totalorder %s9, 3
    %p92 = por %p90, %p91
    %p93 = scmp.ne.s32.totalorder %s85, %s88
    %p94 = scmp.eq.s32.totalorder %s9, 0
    %p95 = por %p93, %p94
    %p96 = scmp.ne.s32.totalorder %s85, %s88
    %p97 = scmp.eq.s32.totalorder %s14, 3
    %p98 = por %p96, %p97
    %p99 = scmp.ne.s32.totalorder %s88, %s89
    %p100 = scmp.eq.s32.totalorder %s14, 0
    %p101 = por %p99, %p100
    %p102 = scmp.ne.s32.totalorder %s88, %s89
    %p103 = scmp.eq.s32.totalorder %s15, 3
    %p104 = por %p102, %p103
    %p106 = scmp.ne.s32.totalorder %s89, %s105
    %p107 = scmp.eq.s32.totalorder %s15, 0
    %p108 = por %p106, %p107
    %s109 = ssub.s32 %s16, %s28
    %s110 = ssub.s32 %s17, %s24
    %s111 = sor.u32 %s109, %s110
    %p112 = scmp.eq.s32.totalorder %s111, 0
    %s114 = sadd.s32 %s113, 1
    %s115 = scalar_select %p112, %s113, %s114
    %p118 = pneg %p112
    %p119 = scmp.eq.s32.totalorder %s9, 3
    %p120 = por %p118, %p119
    %p121 = scmp.ne.s32.totalorder %s113, %s116
    %p122 = scmp.eq.s32.totalorder %s9, 0
    %p123 = por %p121, %p122
    %p124 = scmp.ne.s32.totalorder %s113, %s116
    %p125 = scmp.eq.s32.totalorder %s14, 3
    %p126 = por %p124, %p125
    %p127 = scmp.ne.s32.totalorder %s116, %s117
    %p128 = scmp.eq.s32.totalorder %s14, 0
    %p129 = por %p127, %p128
    %p130 = scmp.ne.s32.totalorder %s116, %s117
    %p131 = scmp.eq.s32.totalorder %s15, 3
    %p132 = por %p130, %p131
    %p134 = scmp.ne.s32.totalorder %s117, %s133
    %p135 = scmp.eq.s32.totalorder %s15, 0
    %p136 = por %p134, %p135
    %p137 = scmp.le.s32.totalorder 1, %s9
    %p138 = scmp.lt.s32.totalorder %s9, 5
    %p139 = pnand %p137, %p138
    %p140 = pneg %p139
    // Predicated region
    $region9: #{tf_gridnet_forward.45} parent=5 // pred_check
      _
    $region10: #{tf_gridnet_forward.45} parent=5 // pred_check_branch
      %142 = sbr.rel (%p139) target = $region12
    $region11: #{tf_gridnet_forward.45} parent=5 // pred_region
      %s143 = ssub.s32 %s9, 1
    $region12: #{tf_gridnet_forward.45} parent=5 // pred_fallthru
      _
    %p144 = scmp.lt.s32.totalorder %s9, 4
    // Predicated region
    $region13: #{tf_gridnet_forward.45} parent=5 // pred_check
      %p145 = pneg %p144
    $region14: #{tf_gridnet_forward.45} parent=5 // pred_check_branch
      %147 = sbr.rel (%p145) target = $region16
    $region15: #{tf_gridnet_forward.45} parent=5 // pred_region
      // Predicated region
      $region17: #{tf_gridnet_forward.45} parent=15 // pred_check
        %p148 = pneg %p43
      $region18: #{tf_gridnet_forward.45} parent=15 // pred_check_branch
        %150 = sbr.rel (%p148) target = $region20
      $region19: #{tf_gridnet_forward.45} parent=15 // pred_region
        %s151 = smul.u32 5, %s17
        %p152 = scmp.lt.s32.totalorder %s16, 3
        %s153 = scalar_select %p152, %s16, 3
        %p154 = scmp.lt.s32.totalorder %s151, 4
        %s155 = scalar_select %p154, %s151, 4
        %s156 = smul.addr %s153, 5
        %s157 = sadd.s32 %s155, %s156
        %s158 = smul.addr %s157, 4
        %s159 = scalar_lea.vmem %s0, %s158
        %s160 = smul.u32 5, %s17
      $region20: #{tf_gridnet_forward.45} parent=15 // pred_fallthru
        _
      // Predicated region
      $region21: #{tf_gridnet_forward.45} parent=15 // pred_check
        %p161 = pneg %p69
      $region22: #{tf_gridnet_forward.45} parent=15 // pred_check_branch
        %163 = sbr.rel (%p161) target = $region24
      $region23: #{tf_gridnet_forward.45} parent=15 // pred_region
        %p164 = scmp.lt.s32.totalorder %s16, 3
        %s165 = scalar_select %p164, %s16, 3
        %s166 = scalar_lea.vmem %s1, %s165
      $region24: #{tf_gridnet_forward.45} parent=15 // pred_fallthru
        _
      // Predicated region
      $region25: #{tf_gridnet_forward.45} parent=15 // pred_check
        %p167 = pneg %p95
      $region26: #{tf_gridnet_forward.45} parent=15 // pred_check_branch
        %169 = sbr.rel (%p167) target = $region28
      $region27: #{tf_gridnet_forward.45} parent=15 // pred_region
        %p170 = scmp.lt.s32.totalorder %s16, 3
        %s171 = scalar_select %p170, %s16, 3
        %s172 = scalar_lea.vmem %s2, %s171
      $region28: #{tf_gridnet_forward.45} parent=15 // pred_fallthru
        _
    $region16: #{tf_gridnet_forward.45} parent=5 // pred_fallthru
      _
    %p173 = scmp.le.s32.totalorder 1, %s9
    %p174 = scmp.lt.s32.totalorder %s9, 5
    %p175 = pnand %p173, %p174
    %p176 = pneg %p175
    // Predicated region
    $region29: #{tf_gridnet_forward.45} parent=5 // pred_check
      _
    $region30: #{tf_gridnet_forward.45} parent=5 // pred_check_branch
      %178 = sbr.rel (%p175) target = $region32
    $region31: #{tf_gridnet_forward.45} parent=5 // pred_region
      %s179 = ssub.s32 %s9, 1
      %s180 = smul.u32 5, %s19
      %p181 = scmp.lt.s32.totalorder %s18, 3
      %s182 = scalar_select %p181, %s18, 3
      %p183 = scmp.lt.s32.totalorder %s180, 4
      %s184 = scalar_select %p183, %s180, 4
      %s185 = smul.addr %s182, 5
      %s186 = sadd.s32 %s184, %s185
      %s187 = smul.addr %s186, 4
      %s188 = scalar_lea.vmem %s0, %s187
      %p189 = pneg %p49
      %p190 = pneg %p46
      %p191 = scmp.lt.s32.totalorder %s18, 3
      %s192 = scalar_select %p191, %s18, 3
      %s193 = scalar_lea.vmem %s1, %s192
      %p194 = pneg %p75
      %p195 = pneg %p72
      %p196 = scmp.lt.s32.totalorder %s18, 3
      %s197 = scalar_select %p196, %s18, 3
      %s198 = scalar_lea.vmem %s2, %s197
      %p199 = pneg %p101
      %p200 = pneg %p98
      %p201 = pneg %p129
      %p202 = pneg %p126
      %s203 = smul.u32 5, %s19
      %p204 = scmp.lt.s32.totalorder %s18, 3
      %s205 = scalar_select %p204, %s18, 3
      %p206 = scmp.lt.s32.totalorder %s203, 4
      %s207 = scalar_select %p206, %s203, 4
      %s208 = smul.addr %s205, 5
      %s209 = sadd.s32 %s207, %s208
      %s210 = smul.addr %s209, 4
      %s211 = scalar_lea.vmem %s3, %s210
      %s212 = smul.u32 5, %s19
      %p213 = scmp.lt.s32.totalorder %s18, 3
      %s214 = scalar_select %p213, %s18, 3
      %p215 = scmp.lt.s32.totalorder %s212, 4
      %s216 = scalar_select %p215, %s212, 4
      %s217 = smul.addr %s214, 5
      %s218 = sadd.s32 %s216, %s217
      %s219 = smul.addr %s218, 4
      %s220 = scalar_lea.vmem %s0, %s219
      %s221 = smul.u32 5, %s19
      %p222 = scmp.lt.s32.totalorder %s18, 3
      %s223 = scalar_select %p222, %s18, 3
      %s224 = scalar_lea.vmem %s1, %s223
      %p225 = scmp.lt.s32.totalorder %s18, 3
      %s226 = scalar_select %p225, %s18, 3
      %s227 = scalar_lea.vmem %s2, %s226
      %s228 = smul.u32 5, %s19
      %p229 = scmp.lt.s32.totalorder %s18, 3
      %s230 = scalar_select %p229, %s18, 3
      %p231 = scmp.lt.s32.totalorder %s228, 4
      %s232 = scalar_select %p231, %s228, 4
      %s233 = smul.addr %s230, 5
      %s234 = sadd.s32 %s232, %s233
      %s235 = smul.addr %s234, 4
      %s236 = scalar_lea.vmem %s3, %s235
      %s237 = smul.u32 5, %s19
      %v238 = vld [vmem:[%s220] sm:$0xf]
      %v239 = vld [vmem:[%s220 + $0x4] sm:$0xf]
      %v240 = vld [vmem:[%s220 + $0x8] sm:$0xf]
      %v241 = vld [vmem:[%s220 + $0xc] sm:$0xf]
      %v242 = vld [vmem:[%s220 + $0x10] sm:$0xf]
      %v243 = vunpack.c.l.bf16 %v238
      %v244 = vunpack.c.l.bf16 %v239
      %v245 = vunpack.c.l.bf16 %v240
      %v246 = vunpack.c.l.bf16 %v241
      %v247 = vunpack.c.l.bf16 %v242
      %vm248 = vcmask 277504
      %v249 = vsel %vm248, %v243, 0.0
      %250 = vadd.xlane.f32.xlu0 %v249
      %v251 = vpop.xlane.xlu0 %250
      %v252 = vsel %vm248, %v244, 0.0
      %253 = vadd.xlane.f32.xlu0 %v252
      %v254 = vpop.xlane.xlu0 %253
      %v255 = vsel %vm248, %v245, 0.0
      %256 = vadd.xlane.f32.xlu0 %v255
      %v257 = vpop.xlane.xlu0 %256
      %v258 = vsel %vm248, %v246, 0.0
      %259 = vadd.xlane.f32.xlu0 %v258
      %v260 = vpop.xlane.xlu0 %259
      %v261 = vsel %vm248, %v247, 0.0
      %262 = vadd.xlane.f32.xlu0 %v261
      %v263 = vpop.xlane.xlu0 %262
      %v264 = vrcp.pop 34.0
      %v265 = vmul.f32 %v251, %v264
      %v266 = vmul.f32 %v254, %v264
      %v267 = vmul.f32 %v257, %v264
      %v268 = vmul.f32 %v260, %v264
      %v269 = vmul.f32 %v263, %v264
      %v270 = vsub.f32 %v243, %v265
      %v271 = vsub.f32 %v244, %v266
      %v272 = vsub.f32 %v245, %v267
      %v273 = vsub.f32 %v246, %v268
      %v274 = vsub.f32 %v247, %v269
      %v275 = vmul.f32 %v270, %v270
      %v276 = vmul.f32 %v271, %v271
      %v277 = vmul.f32 %v272, %v272
      %v278 = vmul.f32 %v273, %v273
      %v279 = vmul.f32 %v274, %v274
      %v280 = vsel %vm248, %v275, 0.0
      %281 = vadd.xlane.f32.xlu0 %v280
      %v282 = vpop.xlane.xlu0 %281
      %v283 = vsel %vm248, %v276, 0.0
      %284 = vadd.xlane.f32.xlu0 %v283
      %v285 = vpop.xlane.xlu0 %284
      %v286 = vsel %vm248, %v277, 0.0
      %287 = vadd.xlane.f32.xlu0 %v286
      %v288 = vpop.xlane.xlu0 %287
      %v289 = vsel %vm248, %v278, 0.0
      %290 = vadd.xlane.f32.xlu0 %v289
      %v291 = vpop.xlane.xlu0 %290
      %v292 = vsel %vm248, %v279, 0.0
      %293 = vadd.xlane.f32.xlu0 %v292
      %v294 = vpop.xlane.xlu0 %293
      %v295 = vmul.f32 %v282, %v264
      %v296 = vmul.f32 %v285, %v264
      %v297 = vmul.f32 %v288, %v264
      %v298 = vmul.f32 %v291, %v264
      %v299 = vmul.f32 %v294, %v264
      %v300 = vadd.f32 %v295, 1e-05
      %v301 = vadd.f32 %v296, 1e-05
      %v302 = vadd.f32 %v297, 1e-05
      %v303 = vadd.f32 %v298, 1e-05
      %v304 = vadd.f32 %v299, 1e-05
      %v305 = vrsqrt.pop %v300
      %v306 = vrsqrt.pop %v301
      %v307 = vrsqrt.pop %v302
      %v308 = vrsqrt.pop %v303
      %v309 = vrsqrt.pop %v304
      %v310 = vmul.f32 %v270, %v305
      %v311 = vmul.f32 %v271, %v306
      %v312 = vmul.f32 %v272, %v307
      %v313 = vmul.f32 %v273, %v308
      %v314 = vmul.f32 %v274, %v309
      %v315 = vld [vmem:[%s224] sm:$0x1]
      %v317 = vlaneseq
      %v318 = vshrl.u32 %v317, 7
      %v319 = vsub.s32 0, %v318
      %v320 = vrot.slane %v315, %v319
      %v322 = vmul.f32 %v310, %v320
      %v323 = vmul.f32 %v311, %v320
      %v324 = vmul.f32 %v312, %v320
      %v325 = vmul.f32 %v313, %v320
      %v326 = vmul.f32 %v314, %v320
      %v327 = vld [vmem:[%s227] sm:$0x1]
      %v329 = vlaneseq
      %v330 = vshrl.u32 %v329, 7
      %v331 = vsub.s32 0, %v330
      %v332 = vrot.slane %v327, %v331
      %v334 = vadd.f32 %v322, %v332
      %v335 = vadd.f32 %v323, %v332
      %v336 = vadd.f32 %v324, %v332
      %v337 = vadd.f32 %v325, %v332
      %v338 = vadd.f32 %v326, %v332
      %v339 = vpack.c.bf16 %v335, %v334
      %v340 = vpack.c.bf16 %v337, %v336
      %v341 = vpack.c.bf16 %v338, %v338
      %v345 = vunpack.c.l.b16 %v339
      %v346 = vunpack.c.h.b16 %v339
      %v347 = vunpack.c.l.b16 %v340
      %v348 = vunpack.c.h.b16 %v340
      %v349 = vunpack.c.l.b16 %v341
      %v350 = vpack.c.b16 %v345, %v345
      %v351 = vpack.c.b16 %v346, %v346
      %v352 = vpack.c.b16 %v347, %v347
      %v353 = vpack.c.b16 %v348, %v348
      %v354 = vpack.c.b16 %v349, %v349
      %vm360 = vcmask 273408
      %361 = vst.msk [vmem:[%s236] sm:$0xf] %vm360, %v350
      %362 = vst.msk [vmem:[%s236 + $0x4] sm:$0xf] %vm360, %v351
      %363 = vst.msk [vmem:[%s236 + $0x8] sm:$0xf] %vm360, %v352
      %364 = vst.msk [vmem:[%s236 + $0xc] sm:$0xf] %vm360, %v353
      %365 = vst.msk [vmem:[%s236 + $0x10] sm:$0xf] %vm360, %v354
      %s366 = smul.u32 5, %s19
      %p367 = scmp.lt.s32.totalorder %s18, 3
      %s368 = scalar_select %p367, %s18, 3
      %p369 = scmp.lt.s32.totalorder %s366, 4
      %s370 = scalar_select %p369, %s366, 4
      %s371 = smul.addr %s368, 5
      %s372 = sadd.s32 %s370, %s371
      %s373 = smul.addr %s372, 4
      %s374 = scalar_lea.vmem %s3, %s373
      // Predicated region
      $region33: #{tf_gridnet_forward.45} parent=31 // pred_check
        %p375 = pneg %p126
      $region34: #{tf_gridnet_forward.45} parent=31 // pred_check_branch
        %377 = sbr.rel (%p375) target = $region36
      $region35: #{tf_gridnet_forward.45} parent=31 // pred_region
        %s378 = smul.u32 5, %s19
      $region36: #{tf_gridnet_forward.45} parent=31 // pred_fallthru
        _
    $region32: #{tf_gridnet_forward.45} parent=5 // pred_fallthru
      _
    %p379 = scmp.le.s32.totalorder 2, %s9
    // Predicated region
    $region37: #{tf_gridnet_forward.45} parent=5 // pred_check
      %p380 = pneg %p379
    $region38: #{tf_gridnet_forward.45} parent=5 // pred_check_branch
      %382 = sbr.rel (%p380) target = $region40
    $region39: #{tf_gridnet_forward.45} parent=5 // pred_region
      %s383 = ssub.s32 %s9, 2
      // Predicated region
      $region41: #{tf_gridnet_forward.45} parent=39 // pred_check
        %p384 = pneg %p132
      $region42: #{tf_gridnet_forward.45} parent=39 // pred_check_branch
        %386 = sbr.rel (%p384) target = $region44
      $region43: #{tf_gridnet_forward.45} parent=39 // pred_region
        %s387 = smul.u32 5, %s21
        %p388 = scmp.lt.s32.totalorder %s20, 3
        %s389 = scalar_select %p388, %s20, 3
        %p390 = scmp.lt.s32.totalorder %s387, 4
        %s391 = scalar_select %p390, %s387, 4
        %s392 = smul.addr %s389, 5
        %s393 = sadd.s32 %s391, %s392
        %s394 = smul.addr %s393, 4
        %s395 = scalar_lea.vmem %s3, %s394
      $region44: #{tf_gridnet_forward.45} parent=39 // pred_fallthru
        _
    $region40: #{tf_gridnet_forward.45} parent=5 // pred_fallthru
      _
  $region6: #{tf_gridnet_forward.45} parent=0 // loop_footer
    %s13 = sadd.s32 1, %s9
  $region7: #{tf_gridnet_forward.45} parent=0 // loop_footer_branch
    %8 = sbr.rel target = $region3
  $region8: #{tf_gridnet_forward.45} parent=0 // loop_exit
    _

// kernel: tf_gridnet_forward.47
$region0: #{tf_gridnet_forward.47}
  #allocation0 [shape = 'u32[]', space=smem, size = 0x4, offset = 0x4, fixed_abs, tag = 'smem constant byte address 0x4 - core index']
  #allocation1 [shape = 'u32[144,128]{1,0:T(1,128)}', space=vmem, size = 0x12000, scoped, tag = 'internal scratch']
  %s0 = inlined_call_operand.vmem [shape: bf16[8,17,34], index: 0, kind: input, shape index: {}]
  %s1 = inlined_call_operand.vmem [shape: bf16[8,34,17], index: 1, kind: input, shape index: {}]
  %s2 = inlined_call_operand.vmem [shape: bf16[8,17,34], index: 2, kind: input, shape index: {}]
  %s3 = inlined_call_operand.vmem [shape: bf16[8,17,34], index: 3, kind: output, shape index: {}]
  %s4 = sld [smem:[#allocation0]]
  $region45: #{tf_gridnet_forward.47} parent=0
    _
  %s6 = ssub.s32 1, %s4
  %s7 = scalar_select 0, %s6, %s4
  loop: start=0, step=1, limit=10
  $region2: #{tf_gridnet_forward.47} parent=0 // loop_pre_header
    _
  $region3: #{tf_gridnet_forward.47} parent=0 // loop_header
    %s9 = sphi 0, %s13
    %p10 = scmp.ge.s32.totalorder %s9, 10
    %s19 = sphi 0, %s21
    %s22 = sphi 0, %s19
    %s23 = sphi 0, %s22
    %s39 = sphi 0, %s23
    %s45 = sphi 0, %s47
    %s48 = sphi 0, %s45
    %s49 = sphi 0, %s48
    %s65 = sphi 0, %s49
    %s71 = sphi 0, %s73
    %s74 = sphi 0, %s71
    %s75 = sphi 0, %s74
    %s91 = sphi 0, %s75
    %s97 = sphi 0, %s99
    %s100 = sphi 0, %s97
    %s101 = sphi 0, %s100
    %s117 = sphi 0, %s101
  $region4: #{tf_gridnet_forward.47} parent=0 // loop_header_branch
    %12 = sbr.rel (%p10) target = $region8
  $region5: #{tf_gridnet_forward.47} parent=0 // loop_body
    %s14 = ssub.s32 %s9, 1
    %s15 = ssub.s32 %s9, 2
    %s16 = sadd.s32 %s9, 1
    %s17 = ssub.s32 %s9, %s16
    %p18 = scmp.eq.s32.totalorder %s17, 0
    %s20 = sadd.s32 %s19, 1
    %s21 = scalar_select %p18, %s19, %s20
    %p24 = pneg %p18
    %p25 = scmp.eq.s32.totalorder %s9, 7
    %p26 = por %p24, %p25
    %p27 = scmp.ne.s32.totalorder %s19, %s22
    %p28 = scmp.eq.s32.totalorder %s9, 0
    %p29 = por %p27, %p28
    %p30 = scmp.ne.s32.totalorder %s19, %s22
    %p31 = scmp.eq.s32.totalorder %s14, 7
    %p32 = por %p30, %p31
    %p33 = scmp.ne.s32.totalorder %s22, %s23
    %p34 = scmp.eq.s32.totalorder %s14, 0
    %p35 = por %p33, %p34
    %p36 = scmp.ne.s32.totalorder %s22, %s23
    %p37 = scmp.eq.s32.totalorder %s15, 7
    %p38 = por %p36, %p37
    %p40 = scmp.ne.s32.totalorder %s23, %s39
    %p41 = scmp.eq.s32.totalorder %s15, 0
    %p42 = por %p40, %p41
    %s43 = ssub.s32 %s9, %s16
    %p44 = scmp.eq.s32.totalorder %s43, 0
    %s46 = sadd.s32 %s45, 1
    %s47 = scalar_select %p44, %s45, %s46
    %p50 = pneg %p44
    %p51 = scmp.eq.s32.totalorder %s9, 7
    %p52 = por %p50, %p51
    %p53 = scmp.ne.s32.totalorder %s45, %s48
    %p54 = scmp.eq.s32.totalorder %s9, 0
    %p55 = por %p53, %p54
    %p56 = scmp.ne.s32.totalorder %s45, %s48
    %p57 = scmp.eq.s32.totalorder %s14, 7
    %p58 = por %p56, %p57
    %p59 = scmp.ne.s32.totalorder %s48, %s49
    %p60 = scmp.eq.s32.totalorder %s14, 0
    %p61 = por %p59, %p60
    %p62 = scmp.ne.s32.totalorder %s48, %s49
    %p63 = scmp.eq.s32.totalorder %s15, 7
    %p64 = por %p62, %p63
    %p66 = scmp.ne.s32.totalorder %s49, %s65
    %p67 = scmp.eq.s32.totalorder %s15, 0
    %p68 = por %p66, %p67
    %s69 = ssub.s32 %s9, %s16
    %p70 = scmp.eq.s32.totalorder %s69, 0
    %s72 = sadd.s32 %s71, 1
    %s73 = scalar_select %p70, %s71, %s72
    %p76 = pneg %p70
    %p77 = scmp.eq.s32.totalorder %s9, 7
    %p78 = por %p76, %p77
    %p79 = scmp.ne.s32.totalorder %s71, %s74
    %p80 = scmp.eq.s32.totalorder %s9, 0
    %p81 = por %p79, %p80
    %p82 = scmp.ne.s32.totalorder %s71, %s74
    %p83 = scmp.eq.s32.totalorder %s14, 7
    %p84 = por %p82, %p83
    %p85 = scmp.ne.s32.totalorder %s74, %s75
    %p86 = scmp.eq.s32.totalorder %s14, 0
    %p87 = por %p85, %p86
    %p88 = scmp.ne.s32.totalorder %s74, %s75
    %p89 = scmp.eq.s32.totalorder %s15, 7
    %p90 = por %p88, %p89
    %p92 = scmp.ne.s32.totalorder %s75, %s91
    %p93 = scmp.eq.s32.totalorder %s15, 0
    %p94 = por %p92, %p93
    %s95 = ssub.s32 %s9, %s16
    %p96 = scmp.eq.s32.totalorder %s95, 0
    %s98 = sadd.s32 %s97, 1
    %s99 = scalar_select %p96, %s97, %s98
    %p102 = pneg %p96
    %p103 = scmp.eq.s32.totalorder %s9, 7
    %p104 = por %p102, %p103
    %p105 = scmp.ne.s32.totalorder %s97, %s100
    %p106 = scmp.eq.s32.totalorder %s9, 0
    %p107 = por %p105, %p106
    %p108 = scmp.ne.s32.totalorder %s97, %s100
    %p109 = scmp.eq.s32.totalorder %s14, 7
    %p110 = por %p108, %p109
    %p111 = scmp.ne.s32.totalorder %s100, %s101
    %p112 = scmp.eq.s32.totalorder %s14, 0
    %p113 = por %p111, %p112
    %p114 = scmp.ne.s32.totalorder %s100, %s101
    %p115 = scmp.eq.s32.totalorder %s15, 7
    %p116 = por %p114, %p115
    %p118 = scmp.ne.s32.totalorder %s101, %s117
    %p119 = scmp.eq.s32.totalorder %s15, 0
    %p120 = por %p118, %p119
    %p121 = scmp.le.s32.totalorder 1, %s9
    %p122 = scmp.lt.s32.totalorder %s9, 9
    %p123 = pnand %p121, %p122
    %p124 = pneg %p123
    // Predicated region
    $region9: #{tf_gridnet_forward.47} parent=5 // pred_check
      _
    $region10: #{tf_gridnet_forward.47} parent=5 // pred_check_branch
      %126 = sbr.rel (%p123) target = $region12
    $region11: #{tf_gridnet_forward.47} parent=5 // pred_region
      %s127 = ssub.s32 %s9, 1
    $region12: #{tf_gridnet_forward.47} parent=5 // pred_fallthru
      _
    %p128 = scmp.lt.s32.totalorder %s9, 8
    // Predicated region
    $region13: #{tf_gridnet_forward.47} parent=5 // pred_check
      %p129 = pneg %p128
    $region14: #{tf_gridnet_forward.47} parent=5 // pred_check_branch
      %131 = sbr.rel (%p129) target = $region16
    $region15: #{tf_gridnet_forward.47} parent=5 // pred_region
      // Predicated region
      $region17: #{tf_gridnet_forward.47} parent=15 // pred_check
        %p132 = pneg %p29
      $region18: #{tf_gridnet_forward.47} parent=15 // pred_check_branch
        %134 = sbr.rel (%p132) target = $region20
      $region19: #{tf_gridnet_forward.47} parent=15 // pred_region
        %p135 = scmp.lt.s32.totalorder %s9, 7
        %s136 = scalar_select %p135, %s9, 7
        %s137 = smul.addr %s136, 3
        %s138 = smul.addr %s137, 4
        %s139 = scalar_lea.vmem %s0, %s138
      $region20: #{tf_gridnet_forward.47} parent=15 // pred_fallthru
        _
      // Predicated region
      $region21: #{tf_gridnet_forward.47} parent=15 // pred_check
        %p140 = pneg %p55
      $region22: #{tf_gridnet_forward.47} parent=15 // pred_check_branch
        %142 = sbr.rel (%p140) target = $region24
      $region23: #{tf_gridnet_forward.47} parent=15 // pred_region
        %p143 = scmp.lt.s32.totalorder %s9, 7
        %s144 = scalar_select %p143, %s9, 7
        %s145 = smul.addr %s144, 5
        %s146 = smul.addr %s145, 4
        %s147 = scalar_lea.vmem %s1, %s146
      $region24: #{tf_gridnet_forward.47} parent=15 // pred_fallthru
        _
      // Predicated region
      $region25: #{tf_gridnet_forward.47} parent=15 // pred_check
        %p148 = pneg %p81
      $region26: #{tf_gridnet_forward.47} parent=15 // pred_check_branch
        %150 = sbr.rel (%p148) target = $region28
      $region27: #{tf_gridnet_forward.47} parent=15 // pred_region
        %p151 = scmp.lt.s32.totalorder %s9, 7
        %s152 = scalar_select %p151, %s9, 7
        %s153 = smul.addr %s152, 3
        %s154 = smul.addr %s153, 4
        %s155 = scalar_lea.vmem %s2, %s154
      $region28: #{tf_gridnet_forward.47} parent=15 // pred_fallthru
        _
    $region16: #{tf_gridnet_forward.47} parent=5 // pred_fallthru
      _
    %p156 = scmp.le.s32.totalorder 1, %s9
    %p157 = scmp.lt.s32.totalorder %s9, 9
    %p158 = pnand %p156, %p157
    %p159 = pneg %p158
    // Predicated region
    $region29: #{tf_gridnet_forward.47} parent=5 // pred_check
      _
    $region30: #{tf_gridnet_forward.47} parent=5 // pred_check_branch
      %161 = sbr.rel (%p158) target = $region32
    $region31: #{tf_gridnet_forward.47} parent=5 // pred_region
      %s162 = ssub.s32 %s9, 1
      %p163 = scmp.lt.s32.totalorder %s14, 7
      %s164 = scalar_select %p163, %s14, 7
      %s165 = smul.addr %s164, 3
      %s166 = smul.addr %s165, 4
      %s167 = scalar_lea.vmem %s0, %s166
      %p168 = pneg %p35
      %p169 = pneg %p32
      %p170 = scmp.lt.s32.totalorder %s14, 7
      %s171 = scalar_select %p170, %s14, 7
      %s172 = smul.addr %s171, 5
      %s173 = smul.addr %s172, 4
      %s174 = scalar_lea.vmem %s1, %s173
      %p175 = pneg %p61
      %p176 = pneg %p58
      %p177 = scmp.lt.s32.totalorder %s14, 7
      %s178 = scalar_select %p177, %s14, 7
      %s179 = smul.addr %s178, 3
      %s180 = smul.addr %s179, 4
      %s181 = scalar_lea.vmem %s2, %s180
      %p182 = pneg %p87
      %p183 = pneg %p84
      %p184 = pneg %p113
      %p185 = pneg %p110
      %p186 = scmp.lt.s32.totalorder %s14, 7
      %s187 = scalar_select %p186, %s14, 7
      %s188 = smul.addr %s187, 3
      %s189 = smul.addr %s188, 4
      %s190 = scalar_lea.vmem %s3, %s189
      %p191 = scmp.lt.s32.totalorder %s14, 7
      %s192 = scalar_select %p191, %s14, 7
      %s193 = smul.addr %s192, 3
      %s194 = smul.addr %s193, 4
      %s195 = scalar_lea.vmem %s0, %s194
      %p196 = scmp.lt.s32.totalorder %s14, 7
      %s197 = scalar_select %p196, %s14, 7
      %s198 = smul.addr %s197, 5
      %s199 = smul.addr %s198, 4
      %s200 = scalar_lea.vmem %s1, %s199
      %p201 = scmp.lt.s32.totalorder %s14, 7
      %s202 = scalar_select %p201, %s14, 7
      %s203 = smul.addr %s202, 3
      %s204 = smul.addr %s203, 4
      %s205 = scalar_lea.vmem %s2, %s204
      %p206 = scmp.lt.s32.totalorder %s14, 7
      %s207 = scalar_select %p206, %s14, 7
      %s208 = smul.addr %s207, 3
      %s209 = smul.addr %s208, 4
      %s210 = scalar_lea.vmem %s3, %s209
      %v212 = vld [vmem:[%s195] sm:$0xf]
      %v213 = vld [vmem:[%s195 + $0x4] sm:$0xf]
      %v214 = vld [vmem:[%s195 + $0x8] sm:$0x1]
      %v215 = vld [vmem:[%s200] sm:$0xf]
      %v216 = vld [vmem:[%s200 + $0x4] sm:$0xf]
      %v217 = vld [vmem:[%s200 + $0x8] sm:$0xf]
      %v218 = vld [vmem:[%s200 + $0xc] sm:$0xf]
      %v219 = vld [vmem:[%s200 + $0x10] sm:$0x1]
      %v220 = vld [vmem:[%s205] sm:$0xf]
      %v221 = vld [vmem:[%s205 + $0x4] sm:$0xf]
      %v222 = vld [vmem:[%s205 + $0x8] sm:$0x1]
      %v226 = vunpack.c.l.b16 %v212
      %v227 = vunpack.c.l.b16 %v213
      %v228 = vunpack.c.l.b16 %v214
      %v229 = vpack.c.b16 %v227, %v226
      %v230 = vpack.c.b16 %v228, %v228
      %v236 = vunpack.c.l.b16 %v215
      %v237 = vunpack.c.l.b16 %v216
      %v238 = vunpack.c.l.b16 %v217
      %v239 = vunpack.c.l.b16 %v218
      %v240 = vunpack.c.l.b16 %v219
      %v241 = vpack.c.b16 %v237, %v236
      %v242 = vpack.c.b16 %v239, %v238
      %v243 = vpack.c.b16 %v240, %v240
      %vm246 = vcmask 277504
      %v248 = vsel %vm246, %v229, 0
      %v251 = vsel %vm246, %v230, 0
      %vm253 = vcmask 1040384
      %v255 = vsel %vm253, %v243, 0
      %257 = vmatprep.subr.bf16.mxu0 0
      %258 = vmatpush1.bf16.msra.mxu0 %v241
      %259 = vmatprep.subr.bf16.mxu0 0
      %260 = vmatpush1.bf16.msra.mxu0 %v242
      %261 = vmatprep.subr.bf16.mxu0 0
      %262 = vmatpush1.bf16.msra.mxu0 %v255
      %263 = vmatprep.subr.bf16.mxu0 0
      %264 = vmatpush1.bf16.msra.mxu0 0
      %265 = vmatprep.subr.bf16.mxu0 0
      %266 = vmatpush1.bf16.msra.mxu0 0
      %267 = vmatprep.subr.bf16.mxu0 0
      %268 = vmatpush1.bf16.msra.mxu0 0
      %269 = vmatprep.subr.bf16.mxu0 0
      %270 = vmatpush1.bf16.msra.mxu0 0
      %271 = vmatprep.subr.bf16.mxu0 0
      %272 = vmatpush1.bf16.msra.mxu0 0
      %273 = vmatprep.subr.bf16.mxu0 0
      %274 = vmatpush1.bf16.msra.mxu0 0
      %275 = vmatprep.subr.bf16.mxu0 0
      %276 = vmatpush1.bf16.msra.mxu0 0
      %277 = vmatprep.subr.bf16.mxu0 0
      %278 = vmatpush1.bf16.msra.mxu0 0
      %279 = vmatprep.subr.bf16.mxu0 0
      %280 = vmatpush1.bf16.msra.mxu0 0
      %281 = vmatprep.subr.bf16.mxu0 0
      %282 = vmatpush1.bf16.msra.mxu0 0
      %283 = vmatprep.subr.bf16.mxu0 0
      %284 = vmatpush1.bf16.msra.mxu0 0
      %285 = vmatprep.subr.bf16.mxu0 0
      %286 = vmatpush1.bf16.msra.mxu0 0
      %287 = vmatprep.subr.bf16.mxu0 0
      %288 = vmatpush1.bf16.msra.mxu0 0
      %289 = vmatprep.mubr.bf16.mxu0 0
      %290 = vmatmul.mubr.bf16.gmra.mrb[0].mxu0 %v248
      %v291 = vpop.f32.mrb[0].mxu0
      %v292 = vadd.f32 0.0, %v291
      %v293 = vpop.f32.mrb[0].mxu0
      %v294 = vpop.f32.mrb[0].mxu0
      %v295 = vadd.f32 0.0, %v294
      %v296 = vpop.f32.mrb[0].mxu0
      %297 = vmatprep.mubr.bf16.mxu0 0
      %298 = vmatmul.mubr.bf16.gmra.mrb[0].mxu0 %v251
      %v299 = vpop.f32.mrb[0].mxu0
      %v300 = vadd.f32 0.0, %v299
      %v301 = vpop.f32.mrb[0].mxu0
      %v302 = vpop.f32.mrb[0].mxu0
      %v303 = vpop.f32.mrb[0].mxu0
      %304 = vdwg.mxu0
      %v305 = vmul.f32 %v292, 0.17149858
      %v306 = vmul.f32 %v295, 0.17149858
      %v307 = vmul.f32 %v300, 0.17149858
      %vm308 = vcmask 138240
      %v309 = vsel %vm308, %v305, -inf
      %310 = vmax.xlane.f32.xlu0 %v309
      %v311 = vpop.xlane.xlu0 %310
      %v312 = vsel %vm308, %v306, -inf
      %313 = vmax.xlane.f32.xlu0 %v312
      %v314 = vpop.xlane.xlu0 %313
      %vm315 = vcmask 131072
      %v316 = vsel %vm315, %v307, -inf
      %317 = vmax.xlane.f32.xlu0 %v316
      %v318 = vpop.xlane.xlu0 %317
      %v319 = vsub.f32 %v305, %v311
      %v320 = vsub.f32 %v306, %v314
      %v321 = vsub.f32 %v307, %v318
      %v322 = vmul.f32 %v319, 1.442695
      %v323 = vpow.pop %v322
      %v324 = vmul.f32 %v320, 1.442695
      %v325 = vpow.pop %v324
      %v326 = vmul.f32 %v321, 1.442695
      %v327 = vpow.pop %v326
      %v328 = vsel %vm308, %v323, 0.0
      %329 = vadd.xlane.f32.xlu0 %v328
      %v330 = vpop.xlane.xlu0 %329
      %v331 = vsel %vm308, %v325, 0.0
      %332 = vadd.xlane.f32.xlu0 %v331
      %v333 = vpop.xlane.xlu0 %332
      %v334 = vsel %vm315, %v327, 0.0
      %335 = vadd.xlane.f32.xlu0 %v334
      %v336 = vpop.xlane.xlu0 %335
      %v337 = vpack.c.bf16 %v325, %v323
      %v338 = vpack.c.bf16 %v327, %v327
      %v342 = vunpack.c.l.b16 %v220
      %v343 = vunpack.c.l.b16 %v221
      %v344 = vunpack.c.l.b16 %v222
      %v345 = vpack.c.b16 %v343, %v342
      %v346 = vpack.c.b16 %v344, %v344
      %v349 = vsel %vm308, %v337, 0
      %v352 = vsel %vm308, %v338, 0
      %v354 = vsel 0, 4294967295, 65535
      %v355 = vsel %vm253, %v354, 0
      %v357 = vand.u32 %v346, %v355
      %359 = vmatprep.subr.bf16.mxu0 0
      %360 = vmatpush1.bf16.msra.mxu0 %v345
      %361 = vmatprep.subr.bf16.mxu0 0
      %362 = vmatpush1.bf16.msra.mxu0 %v357
      %363 = vmatprep.subr.bf16.mxu0 0
      %364 = vmatpush1.bf16.msra.mxu0 0
      %365 = vmatprep.subr.bf16.mxu0 0
      %366 = vmatpush1.bf16.msra.mxu0 0
      %367 = vmatprep.subr.bf16.mxu0 0
      %368 = vmatpush1.bf16.msra.mxu0 0
      %369 = vmatprep.subr.bf16.mxu0 0
      %370 = vmatpush1.bf16.msra.mxu0 0
      %371 = vmatprep.subr.bf16.mxu0 0
      %372 = vmatpush1.bf16.msra.mxu0 0
      %373 = vmatprep.subr.bf16.mxu0 0
      %374 = vmatpush1.bf16.msra.mxu0 0
      %375 = vmatprep.subr.bf16.mxu0 0
      %376 = vmatpush1.bf16.msra.mxu0 0
      %377 = vmatprep.subr.bf16.mxu0 0
      %378 = vmatpush1.bf16.msra.mxu0 0
      %379 = vmatprep.subr.bf16.mxu0 0
      %380 = vmatpush1.bf16.msra.mxu0 0
      %381 = vmatprep.subr.bf16.mxu0 0
      %382 = vmatpush1.bf16.msra.mxu0 0
      %383 = vmatprep.subr.bf16.mxu0 0
      %384 = vmatpush1.bf16.msra.mxu0 0
      %385 = vmatprep.subr.bf16.mxu0 0
      %386 = vmatpush1.bf16.msra.mxu0 0
      %387 = vmatprep.subr.bf16.mxu0 0
      %388 = vmatpush1.bf16.msra.mxu0 0
      %389 = vmatprep.subr.bf16.mxu0 0
      %390 = vmatpush1.bf16.msra.mxu0 0
      %391 = vmatprep.mubr.bf16.mxu0 0
      %392 = vmatmul.mubr.bf16.gmra.mrb[0].mxu0 %v349
      %v393 = vpop.f32.mrb[0].mxu0
      %v394 = vadd.f32 0.0, %v393
      %v395 = vpop.f32.mrb[0].mxu0
      %v396 = vpop.f32.mrb[0].mxu0
      %v397 = vadd.f32 0.0, %v396
      %v398 = vpop.f32.mrb[0].mxu0
      %399 = vmatprep.mubr.bf16.mxu0 0
      %400 = vmatmul.mubr.bf16.gmra.mrb[0].mxu0 %v352
      %v401 = vpop.f32.mrb[0].mxu0
      %v402 = vadd.f32 0.0, %v401
      %v403 = vpop.f32.mrb[0].mxu0
      %v404 = vpop.f32.mrb[0].mxu0
      %v405 = vpop.f32.mrb[0].mxu0
      %406 = vdwg.mxu0
      %v407 = vrcp.pop %v330
      %v408 = vrcp.pop %v333
      %v409 = vrcp.pop %v336
      %v410 = vmul.f32 %v394, %v407
      %v411 = vmul.f32 %v397, %v408
      %v412 = vmul.f32 %v402, %v409
      %v413 = vpack.c.bf16 %v411, %v410
      %v414 = vpack.c.bf16 %v412, %v412
      %v417 = vunpack.c.l.b16 %v413
      %v418 = vunpack.c.h.b16 %v413
      %v419 = vunpack.c.l.b16 %v414
      %v420 = vpack.c.b16 %v417, %v417
      %v421 = vpack.c.b16 %v418, %v418
      %v422 = vpack.c.b16 %v419, %v419
      %vm426 = vcmask 273408
      %427 = vst.msk [vmem:[%s210] sm:$0xf] %vm426, %v420
      %428 = vst.msk [vmem:[%s210 + $0x4] sm:$0xf] %vm426, %v421
      %vm429 = vcmask 270336
      %vm430 = vsmask.f32 256
      %vm431 = vmand %vm429, %vm430
      %v432 = vld [vmem:[%s210 + $0x8] sm:$0x1]
      %v433 = vsel %vm431, %v422, %v432
      %434 = vst [vmem:[%s210 + $0x8] sm:$0x1] %v433
      %p435 = scmp.lt.s32.totalorder %s14, 7
      %s436 = scalar_select %p435, %s14, 7
      %s437 = smul.addr %s436, 3
      %s438 = smul.addr %s437, 4
      %s439 = scalar_lea.vmem %s3, %s438
      // Predicated region
      $region33: #{tf_gridnet_forward.47} parent=31 // pred_check
        %p440 = pneg %p110
      $region34: #{tf_gridnet_forward.47} parent=31 // pred_check_branch
        %442 = sbr.rel (%p440) target = $region36
      $region35: #{tf_gridnet_forward.47} parent=31 // pred_region
        _
      $region36: #{tf_gridnet_forward.47} parent=31 // pred_fallthru
        _
    $region32: #{tf_gridnet_forward.47} parent=5 // pred_fallthru
      _
    %p443 = scmp.le.s32.totalorder 2, %s9
    // Predicated region
    $region37: #{tf_gridnet_forward.47} parent=5 // pred_check
      %p444 = pneg %p443
    $region38: #{tf_gridnet_forward.47} parent=5 // pred_check_branch
      %446 = sbr.rel (%p444) target = $region40
    $region39: #{tf_gridnet_forward.47} parent=5 // pred_region
      %s447 = ssub.s32 %s9, 2
      // Predicated region
      $region41: #{tf_gridnet_forward.47} parent=39 // pred_check
        %p448 = pneg %p116
      $region42: #{tf_gridnet_forward.47} parent=39 // pred_check_branch
        %450 = sbr.rel (%p448) target = $region44
      $region43: #{tf_gridnet_forward.47} parent=39 // pred_region
        %p451 = scmp.lt.s32.totalorder %s15, 7
        %s452 = scalar_select %p451, %s15, 7
        %s453 = smul.addr %s452, 3
        %s454 = smul.addr %s453, 4
        %s455 = scalar_lea.vmem %s3, %s454
      $region44: #{tf_gridnet_forward.47} parent=39 // pred_fallthru
        _
    $region40: #{tf_gridnet_forward.47} parent=5 // pred_fallthru
      _
  $region6: #{tf_gridnet_forward.47} parent=0 // loop_footer
    %s13 = sadd.s32 1, %s9
  $region7: #{tf_gridnet_forward.47} parent=0 // loop_footer_branch
    %8 = sbr.rel target = $region3
  $region8: #{tf_gridnet_forward.47} parent=0 // loop_exit
    _

// kernel: tf_gridnet_forward.49
$region0: #{tf_gridnet_forward.49}
  #allocation0 [shape = 'u32[]', space=smem, size = 0x4, offset = 0x4, fixed_abs, tag = 'smem constant byte address 0x4 - core index']
  #allocation1 [shape = 'u32[144,128]{1,0:T(1,128)}', space=vmem, size = 0x12000, scoped, tag = 'internal scratch']
  %s0 = inlined_call_operand.vmem [shape: bf16[1,40,136], index: 0, kind: input, shape index: {}]
  %s1 = inlined_call_operand.vmem [shape: f32[1,1,136], index: 1, kind: input, shape index: {}]
  %s2 = inlined_call_operand.vmem [shape: f32[1,1,136], index: 2, kind: input, shape index: {}]
  %s3 = inlined_call_operand.vmem [shape: f32[1,40,136], index: 3, kind: output, shape index: {}]
  %s4 = sld [smem:[#allocation0]]
  $region22: #{tf_gridnet_forward.49} parent=0
    _
  %s6 = ssub.s32 1, %s4
  %s7 = scalar_select 0, %s6, %s4
  // Predicated region
  $region2: #{tf_gridnet_forward.49} parent=0 // pred_check
    _
  $region3: #{tf_gridnet_forward.49} parent=0 // pred_check_branch
    %9 = sbr.rel (0) target = $region5
  $region4: #{tf_gridnet_forward.49} parent=0 // pred_region
    _
  $region5: #{tf_gridnet_forward.49} parent=0 // pred_fallthru
    _
  // Predicated region
  $region6: #{tf_gridnet_forward.49} parent=0 // pred_check
    _
  $region7: #{tf_gridnet_forward.49} parent=0 // pred_check_branch
    %11 = sbr.rel (0) target = $region9
  $region8: #{tf_gridnet_forward.49} parent=0 // pred_region
    _
  $region9: #{tf_gridnet_forward.49} parent=0 // pred_fallthru
    _
  // Predicated region
  $region10: #{tf_gridnet_forward.49} parent=0 // pred_check
    _
  $region11: #{tf_gridnet_forward.49} parent=0 // pred_check_branch
    %13 = sbr.rel (0) target = $region13
  $region12: #{tf_gridnet_forward.49} parent=0 // pred_region
    _
  $region13: #{tf_gridnet_forward.49} parent=0 // pred_fallthru
    _
  %v14 = vld [vmem:[%s0] sm:$0xff]
  %v15 = vld [vmem:[%s0 + $0x8] sm:$0xff]
  %v16 = vld [vmem:[%s0 + $0x10] sm:$0xff]
  %v17 = vld [vmem:[%s0 + $0x18] sm:$0xff]
  %v18 = vld [vmem:[%s0 + $0x20] sm:$0xff]
  %v19 = vunpack.c.l.bf16 %v14
  %v20 = vunpack.c.h.bf16 %v14
  %v21 = vunpack.c.l.bf16 %v15
  %v22 = vunpack.c.h.bf16 %v15
  %v23 = vunpack.c.l.bf16 %v16
  %v24 = vunpack.c.h.bf16 %v16
  %v25 = vunpack.c.l.bf16 %v17
  %v26 = vunpack.c.h.bf16 %v17
  %v27 = vunpack.c.l.bf16 %v18
  %v28 = vunpack.c.h.bf16 %v18
  %vm29 = vcmask 64512
  %v30 = vsel %vm29, %v20, 0.0
  %v31 = vadd.f32 %v19, %v30
  %32 = vadd.xlane.f32.xlu0 %v31
  %v33 = vpop.xlane.xlu0 %32
  %v34 = vsel %vm29, %v22, 0.0
  %v35 = vadd.f32 %v21, %v34
  %36 = vadd.xlane.f32.xlu0 %v35
  %v37 = vpop.xlane.xlu0 %36
  %v38 = vsel %vm29, %v24, 0.0
  %v39 = vadd.f32 %v23, %v38
  %40 = vadd.xlane.f32.xlu0 %v39
  %v41 = vpop.xlane.xlu0 %40
  %v42 = vsel %vm29, %v26, 0.0
  %v43 = vadd.f32 %v25, %v42
  %44 = vadd.xlane.f32.xlu0 %v43
  %v45 = vpop.xlane.xlu0 %44
  %v46 = vsel %vm29, %v28, 0.0
  %v47 = vadd.f32 %v27, %v46
  %48 = vadd.xlane.f32.xlu0 %v47
  %v49 = vpop.xlane.xlu0 %48
  %v50 = vrcp.pop 136.0
  %v51 = vmul.f32 %v33, %v50
  %v52 = vmul.f32 %v37, %v50
  %v53 = vmul.f32 %v41, %v50
  %v54 = vmul.f32 %v45, %v50
  %v55 = vmul.f32 %v49, %v50
  %v56 = vsub.f32 %v19, %v51
  %v57 = vsub.f32 %v20, %v51
  %v58 = vsub.f32 %v21, %v52
  %v59 = vsub.f32 %v22, %v52
  %v60 = vsub.f32 %v23, %v53
  %v61 = vsub.f32 %v24, %v53
  %v62 = vsub.f32 %v25, %v54
  %v63 = vsub.f32 %v26, %v54
  %v64 = vsub.f32 %v27, %v55
  %v65 = vsub.f32 %v28, %v55
  %v66 = vmul.f32 %v56, %v56
  %v67 = vmul.f32 %v57, %v57
  %v68 = vmul.f32 %v58, %v58
  %v69 = vmul.f32 %v59, %v59
  %v70 = vmul.f32 %v60, %v60
  %v71 = vmul.f32 %v61, %v61
  %v72 = vmul.f32 %v62, %v62
  %v73 = vmul.f32 %v63, %v63
  %v74 = vmul.f32 %v64, %v64
  %v75 = vmul.f32 %v65, %v65
  %v76 = vsel %vm29, %v67, 0.0
  %v77 = vadd.f32 %v66, %v76
  %78 = vadd.xlane.f32.xlu0 %v77
  %v79 = vpop.xlane.xlu0 %78
  %v80 = vsel %vm29, %v69, 0.0
  %v81 = vadd.f32 %v68, %v80
  %82 = vadd.xlane.f32.xlu0 %v81
  %v83 = vpop.xlane.xlu0 %82
  %v84 = vsel %vm29, %v71, 0.0
  %v85 = vadd.f32 %v70, %v84
  %86 = vadd.xlane.f32.xlu0 %v85
  %v87 = vpop.xlane.xlu0 %86
  %v88 = vsel %vm29, %v73, 0.0
  %v89 = vadd.f32 %v72, %v88
  %90 = vadd.xlane.f32.xlu0 %v89
  %v91 = vpop.xlane.xlu0 %90
  %v92 = vsel %vm29, %v75, 0.0
  %v93 = vadd.f32 %v74, %v92
  %94 = vadd.xlane.f32.xlu0 %v93
  %v95 = vpop.xlane.xlu0 %94
  %v96 = vmul.f32 %v79, %v50
  %v97 = vmul.f32 %v83, %v50
  %v98 = vmul.f32 %v87, %v50
  %v99 = vmul.f32 %v91, %v50
  %v100 = vmul.f32 %v95, %v50
  %v101 = vadd.f32 %v96, 1e-05
  %v102 = vadd.f32 %v97, 1e-05
  %v103 = vadd.f32 %v98, 1e-05
  %v104 = vadd.f32 %v99, 1e-05
  %v105 = vadd.f32 %v100, 1e-05
  %v106 = vrsqrt.pop %v101
  %v107 = vrsqrt.pop %v102
  %v108 = vrsqrt.pop %v103
  %v109 = vrsqrt.pop %v104
  %v110 = vrsqrt.pop %v105
  %v111 = vmul.f32 %v56, %v106
  %v112 = vmul.f32 %v57, %v106
  %v113 = vmul.f32 %v58, %v107
  %v114 = vmul.f32 %v59, %v107
  %v115 = vmul.f32 %v60, %v108
  %v116 = vmul.f32 %v61, %v108
  %v117 = vmul.f32 %v62, %v109
  %v118 = vmul.f32 %v63, %v109
  %v119 = vmul.f32 %v64, %v110
  %v120 = vmul.f32 %v65, %v110
  %v121 = vld [vmem:[%s1] sm:$0x3]
  %v123 = vlaneseq
  %v124 = vshrl.u32 %v123, 7
  %v125 = vsub.s32 0, %v124
  %v126 = vrot.slane %v121, %v125
  %v127 = vlaneseq
  %v128 = vshrl.u32 %v127, 7
  %v129 = vsub.s32 1, %v128
  %v130 = vrot.slane %v121, %v129
  %v133 = vmul.f32 %v111, %v126
  %v134 = vmul.f32 %v112, %v130
  %v135 = vmul.f32 %v113, %v126
  %v136 = vmul.f32 %v114, %v130
  %v137 = vmul.f32 %v115, %v126
  %v138 = vmul.f32 %v116, %v130
  %v139 = vmul.f32 %v117, %v126
  %v140 = vmul.f32 %v118, %v130
  %v141 = vmul.f32 %v119, %v126
  %v142 = vmul.f32 %v120, %v130
  %v143 = vld [vmem:[%s2] sm:$0x3]
  %v145 = vlaneseq
  %v146 = vshrl.u32 %v145, 7
  %v147 = vsub.s32 0, %v146
  %v148 = vrot.slane %v143, %v147
  %v149 = vlaneseq
  %v150 = vshrl.u32 %v149, 7
  %v151 = vsub.s32 1, %v150
  %v152 = vrot.slane %v143, %v151
  %v155 = vadd.f32 %v133, %v148
  %v156 = vadd.f32 %v134, %v152
  %v157 = vadd.f32 %v135, %v148
  %v158 = vadd.f32 %v136, %v152
  %v159 = vadd.f32 %v137, %v148
  %v160 = vadd.f32 %v138, %v152
  %v161 = vadd.f32 %v139, %v148
  %v162 = vadd.f32 %v140, %v152
  %v163 = vadd.f32 %v141, %v148
  %v164 = vadd.f32 %v142, %v152
  %165 = vst [vmem:[%s3] sm:$0xff] %v155
  %166 = vst.msk [vmem:[%s3 + $0x8] sm:$0xff] %vm29, %v156
  %167 = vst [vmem:[%s3 + $0x10] sm:$0xff] %v157
  %168 = vst.msk [vmem:[%s3 + $0x18] sm:$0xff] %vm29, %v158
  %169 = vst [vmem:[%s3 + $0x20] sm:$0xff] %v159
  %170 = vst.msk [vmem:[%s3 + $0x28] sm:$0xff] %vm29, %v160
  %171 = vst [vmem:[%s3 + $0x30] sm:$0xff] %v161
  %172 = vst.msk [vmem:[%s3 + $0x38] sm:$0xff] %vm29, %v162
  %173 = vst [vmem:[%s3 + $0x40] sm:$0xff] %v163
  %174 = vst.msk [vmem:[%s3 + $0x48] sm:$0xff] %vm29, %v164
  // Predicated region
  $region14: #{tf_gridnet_forward.49} parent=0 // pred_check
    _
  $region15: #{tf_gridnet_forward.49} parent=0 // pred_check_branch
    %176 = sbr.rel (0) target = $region17
  $region16: #{tf_gridnet_forward.49} parent=0 // pred_region
    _
  $region17: #{tf_gridnet_forward.49} parent=0 // pred_fallthru
    _
  // Predicated region
  $region18: #{tf_gridnet_forward.49} parent=0 // pred_check
    _
  $region19: #{tf_gridnet_forward.49} parent=0 // pred_check_branch
    %178 = sbr.rel (0) target = $region21
  $region20: #{tf_gridnet_forward.49} parent=0 // pred_region
    _
  $region21: #{tf_gridnet_forward.49} parent=0 // pred_fallthru
    _

// kernel: tf_gridnet_forward.48
$region0: #{tf_gridnet_forward.48}
  #allocation0 [shape = 'u32[]', space=smem, size = 0x4, offset = 0x4, fixed_abs, tag = 'smem constant byte address 0x4 - core index']
  #allocation1 [shape = 'u32[144,128]{1,0:T(1,128)}', space=vmem, size = 0x12000, scoped, tag = 'internal scratch']
  %s0 = inlined_call_operand.vmem [shape: bf16[584,8], index: 0, kind: input, shape index: {}]
  %s1 = inlined_call_operand.vmem [shape: bf16[8,8], index: 1, kind: input, shape index: {}]
  %s2 = inlined_call_operand.vmem [shape: f32[1,8], index: 2, kind: input, shape index: {}]
  %s3 = inlined_call_operand.vmem [shape: f32[1,8], index: 3, kind: input, shape index: {}]
  %s4 = inlined_call_operand.vmem [shape: bf16[584,8], index: 4, kind: output, shape index: {}]
  %s5 = sld [smem:[#allocation0]]
  $region26: #{tf_gridnet_forward.48} parent=0
    _
  %s7 = ssub.s32 1, %s5
  %s8 = scalar_select 0, %s7, %s5
  // Predicated region
  $region2: #{tf_gridnet_forward.48} parent=0 // pred_check
    _
  $region3: #{tf_gridnet_forward.48} parent=0 // pred_check_branch
    %10 = sbr.rel (0) target = $region5
  $region4: #{tf_gridnet_forward.48} parent=0 // pred_region
    _
  $region5: #{tf_gridnet_forward.48} parent=0 // pred_fallthru
    _
  // Predicated region
  $region6: #{tf_gridnet_forward.48} parent=0 // pred_check
    _
  $region7: #{tf_gridnet_forward.48} parent=0 // pred_check_branch
    %12 = sbr.rel (0) target = $region9
  $region8: #{tf_gridnet_forward.48} parent=0 // pred_region
    _
  $region9: #{tf_gridnet_forward.48} parent=0 // pred_fallthru
    _
  // Predicated region
  $region10: #{tf_gridnet_forward.48} parent=0 // pred_check
    _
  $region11: #{tf_gridnet_forward.48} parent=0 // pred_check_branch
    %14 = sbr.rel (0) target = $region13
  $region12: #{tf_gridnet_forward.48} parent=0 // pred_region
    _
  $region13: #{tf_gridnet_forward.48} parent=0 // pred_fallthru
    _
  // Predicated region
  $region14: #{tf_gridnet_forward.48} parent=0 // pred_check
    _
  $region15: #{tf_gridnet_forward.48} parent=0 // pred_check_branch
    %16 = sbr.rel (0) target = $region17
  $region16: #{tf_gridnet_forward.48} parent=0 // pred_region
    _
  $region17: #{tf_gridnet_forward.48} parent=0 // pred_fallthru
    _
  %v18 = vld [vmem:[%s0] sm:$0xf]
  %v19 = vld [vmem:[%s0 + $0x4] sm:$0xf]
  %v20 = vld [vmem:[%s0 + $0x8] sm:$0xf]
  %v21 = vld [vmem:[%s0 + $0xc] sm:$0xf]
  %v22 = vld [vmem:[%s0 + $0x10] sm:$0xf]
  %v23 = vld [vmem:[%s0 + $0x14] sm:$0xf]
  %v24 = vld [vmem:[%s0 + $0x18] sm:$0xf]
  %v25 = vld [vmem:[%s0 + $0x1c] sm:$0xf]
  %v26 = vld [vmem:[%s0 + $0x20] sm:$0xf]
  %v27 = vld [vmem:[%s0 + $0x24] sm:$0xf]
  %v28 = vld [vmem:[%s0 + $0x28] sm:$0xf]
  %v29 = vld [vmem:[%s0 + $0x2c] sm:$0xf]
  %v30 = vld [vmem:[%s0 + $0x30] sm:$0xf]
  %v31 = vld [vmem:[%s0 + $0x34] sm:$0xf]
  %v32 = vld [vmem:[%s0 + $0x38] sm:$0xf]
  %v33 = vld [vmem:[%s0 + $0x3c] sm:$0xf]
  %v34 = vld [vmem:[%s0 + $0x40] sm:$0xf]
  %v35 = vld [vmem:[%s0 + $0x44] sm:$0xf]
  %v36 = vld [vmem:[%s0 + $0x48] sm:$0xf]
  %v37 = vld [vmem:[%s0 + $0x4c] sm:$0xf]
  %v38 = vld [vmem:[%s0 + $0x50] sm:$0xf]
  %v39 = vld [vmem:[%s0 + $0x54] sm:$0xf]
  %v40 = vld [vmem:[%s0 + $0x58] sm:$0xf]
  %v41 = vld [vmem:[%s0 + $0x5c] sm:$0xf]
  %v42 = vld [vmem:[%s0 + $0x60] sm:$0xf]
  %v43 = vld [vmem:[%s0 + $0x64] sm:$0xf]
  %v44 = vld [vmem:[%s0 + $0x68] sm:$0xf]
  %v45 = vld [vmem:[%s0 + $0x6c] sm:$0xf]
  %v46 = vld [vmem:[%s0 + $0x70] sm:$0xf]
  %v47 = vld [vmem:[%s0 + $0x74] sm:$0xf]
  %v48 = vld [vmem:[%s0 + $0x78] sm:$0xf]
  %v49 = vld [vmem:[%s0 + $0x7c] sm:$0xf]
  %v50 = vld [vmem:[%s0 + $0x80] sm:$0xf]
  %v51 = vld [vmem:[%s0 + $0x84] sm:$0xf]
  %v52 = vld [vmem:[%s0 + $0x88] sm:$0xf]
  %v53 = vld [vmem:[%s0 + $0x8c] sm:$0xf]
  %v54 = vld [vmem:[%s0 + $0x90] sm:$0xf]
  %v55 = vld [vmem:[%s0 + $0x94] sm:$0xf]
  %v56 = vld [vmem:[%s0 + $0x98] sm:$0xf]
  %v57 = vld [vmem:[%s0 + $0x9c] sm:$0xf]
  %v58 = vld [vmem:[%s0 + $0xa0] sm:$0xf]
  %v59 = vld [vmem:[%s0 + $0xa4] sm:$0xf]
  %v60 = vld [vmem:[%s0 + $0xa8] sm:$0xf]
  %v61 = vld [vmem:[%s0 + $0xac] sm:$0xf]
  %v62 = vld [vmem:[%s0 + $0xb0] sm:$0xf]
  %v63 = vld [vmem:[%s0 + $0xb4] sm:$0xf]
  %v64 = vld [vmem:[%s0 + $0xb8] sm:$0xf]
  %v65 = vld [vmem:[%s0 + $0xbc] sm:$0xf]
  %v66 = vld [vmem:[%s0 + $0xc0] sm:$0xf]
  %v67 = vld [vmem:[%s0 + $0xc4] sm:$0xf]
  %v68 = vld [vmem:[%s0 + $0xc8] sm:$0xf]
  %v69 = vld [vmem:[%s0 + $0xcc] sm:$0xf]
  %v70 = vld [vmem:[%s0 + $0xd0] sm:$0xf]
  %v71 = vld [vmem:[%s0 + $0xd4] sm:$0xf]
  %v72 = vld [vmem:[%s0 + $0xd8] sm:$0xf]
  %v73 = vld [vmem:[%s0 + $0xdc] sm:$0xf]
  %v74 = vld [vmem:[%s0 + $0xe0] sm:$0xf]
  %v75 = vld [vmem:[%s0 + $0xe4] sm:$0xf]
  %v76 = vld [vmem:[%s0 + $0xe8] sm:$0xf]
  %v77 = vld [vmem:[%s0 + $0xec] sm:$0xf]
  %v78 = vld [vmem:[%s0 + $0xf0] sm:$0xf]
  %v79 = vld [vmem:[%s0 + $0xf4] sm:$0xf]
  %v80 = vld [vmem:[%s0 + $0xf8] sm:$0xf]
  %v81 = vld [vmem:[%s0 + $0xfc] sm:$0xf]
  %v82 = vld [vmem:[%s0 + $0x100] sm:$0xf]
  %v83 = vld [vmem:[%s0 + $0x104] sm:$0xf]
  %v84 = vld [vmem:[%s0 + $0x108] sm:$0xf]
  %v85 = vld [vmem:[%s0 + $0x10c] sm:$0xf]
  %v86 = vld [vmem:[%s0 + $0x110] sm:$0xf]
  %v87 = vld [vmem:[%s0 + $0x114] sm:$0xf]
  %v88 = vld [vmem:[%s0 + $0x118] sm:$0xf]
  %v89 = vld [vmem:[%s0 + $0x11c] sm:$0xf]
  %v90 = vld [vmem:[%s0 + $0x120] sm:$0xf]
  %v91 = vld [vmem:[%s1] sm:$0xf]
  %v92 = vld [vmem:[%s2] sm:$0x1]
  %v94 = vlaneseq
  %v95 = vshrl.u32 %v94, 7
  %v96 = vsub.s32 0, %v95
  %v97 = vrot.slane %v92, %v96
  %v172 = vunpack.c.l.b16 %v18
  %v173 = vunpack.c.l.b16 %v19
  %v174 = vunpack.c.l.b16 %v20
  %v175 = vunpack.c.l.b16 %v21
  %v176 = vunpack.c.l.b16 %v22
  %v177 = vunpack.c.l.b16 %v23
  %v178 = vunpack.c.l.b16 %v24
  %v179 = vunpack.c.l.b16 %v25
  %v180 = vunpack.c.l.b16 %v26
  %v181 = vunpack.c.l.b16 %v27
  %v182 = vunpack.c.l.b16 %v28
  %v183 = vunpack.c.l.b16 %v29
  %v184 = vunpack.c.l.b16 %v30
  %v185 = vunpack.c.l.b16 %v31
  %v186 = vunpack.c.l.b16 %v32
  %v187 = vunpack.c.l.b16 %v33
  %v188 = vunpack.c.l.b16 %v34
  %v189 = vunpack.c.l.b16 %v35
  %v190 = vunpack.c.l.b16 %v36
  %v191 = vunpack.c.l.b16 %v37
  %v192 = vunpack.c.l.b16 %v38
  %v193 = vunpack.c.l.b16 %v39
  %v194 = vunpack.c.l.b16 %v40
  %v195 = vunpack.c.l.b16 %v41
  %v196 = vunpack.c.l.b16 %v42
  %v197 = vunpack.c.l.b16 %v43
  %v198 = vunpack.c.l.b16 %v44
  %v199 = vunpack.c.l.b16 %v45
  %v200 = vunpack.c.l.b16 %v46
  %v201 = vunpack.c.l.b16 %v47
  %v202 = vunpack.c.l.b16 %v48
  %v203 = vunpack.c.l.b16 %v49
  %v204 = vunpack.c.l.b16 %v50
  %v205 = vunpack.c.l.b16 %v51
  %v206 = vunpack.c.l.b16 %v52
  %v207 = vunpack.c.l.b16 %v53
  %v208 = vunpack.c.l.b16 %v54
  %v209 = vunpack.c.l.b16 %v55
  %v210 = vunpack.c.l.b16 %v56
  %v211 = vunpack.c.l.b16 %v57
  %v212 = vunpack.c.l.b16 %v58
  %v213 = vunpack.c.l.b16 %v59
  %v214 = vunpack.c.l.b16 %v60
  %v215 = vunpack.c.l.b16 %v61
  %v216 = vunpack.c.l.b16 %v62
  %v217 = vunpack.c.l.b16 %v63
  %v218 = vunpack.c.l.b16 %v64
  %v219 = vunpack.c.l.b16 %v65
  %v220 = vunpack.c.l.b16 %v66
  %v221 = vunpack.c.l.b16 %v67
  %v222 = vunpack.c.l.b16 %v68
  %v223 = vunpack.c.l.b16 %v69
  %v224 = vunpack.c.l.b16 %v70
  %v225 = vunpack.c.l.b16 %v71
  %v226 = vunpack.c.l.b16 %v72
  %v227 = vunpack.c.l.b16 %v73
  %v228 = vunpack.c.l.b16 %v74
  %v229 = vunpack.c.l.b16 %v75
  %v230 = vunpack.c.l.b16 %v76
  %v231 = vunpack.c.l.b16 %v77
  %v232 = vunpack.c.l.b16 %v78
  %v233 = vunpack.c.l.b16 %v79
  %v234 = vunpack.c.l.b16 %v80
  %v235 = vunpack.c.l.b16 %v81
  %v236 = vunpack.c.l.b16 %v82
  %v237 = vunpack.c.l.b16 %v83
  %v238 = vunpack.c.l.b16 %v84
  %v239 = vunpack.c.l.b16 %v85
  %v240 = vunpack.c.l.b16 %v86
  %v241 = vunpack.c.l.b16 %v87
  %v242 = vunpack.c.l.b16 %v88
  %v243 = vunpack.c.l.b16 %v89
  %v244 = vunpack.c.l.b16 %v90
  %v245 = vpack.c.b16 %v173, %v172
  %v246 = vpack.c.b16 %v175, %v174
  %v247 = vpack.c.b16 %v177, %v176
  %v248 = vpack.c.b16 %v179, %v178
  %v249 = vpack.c.b16 %v181, %v180
  %v250 = vpack.c.b16 %v183, %v182
  %v251 = vpack.c.b16 %v185, %v184
  %v252 = vpack.c.b16 %v187, %v186
  %v253 = vpack.c.b16 %v189, %v188
  %v254 = vpack.c.b16 %v191, %v190
  %v255 = vpack.c.b16 %v193, %v192
  %v256 = vpack.c.b16 %v195, %v194
  %v257 = vpack.c.b16 %v197, %v196
  %v258 = vpack.c.b16 %v199, %v198
  %v259 = vpack.c.b16 %v201, %v200
  %v260 = vpack.c.b16 %v203, %v202
  %v261 = vpack.c.b16 %v205, %v204
  %v262 = vpack.c.b16 %v207, %v206
  %v263 = vpack.c.b16 %v209, %v208
  %v264 = vpack.c.b16 %v211, %v210
  %v265 = vpack.c.b16 %v213, %v212
  %v266 = vpack.c.b16 %v215, %v214
  %v267 = vpack.c.b16 %v217, %v216
  %v268 = vpack.c.b16 %v219, %v218
  %v269 = vpack.c.b16 %v221, %v220
  %v270 = vpack.c.b16 %v223, %v222
  %v271 = vpack.c.b16 %v225, %v224
  %v272 = vpack.c.b16 %v227, %v226
  %v273 = vpack.c.b16 %v229, %v228
  %v274 = vpack.c.b16 %v231, %v230
  %v275 = vpack.c.b16 %v233, %v232
  %v276 = vpack.c.b16 %v235, %v234
  %v277 = vpack.c.b16 %v237, %v236
  %v278 = vpack.c.b16 %v239, %v238
  %v279 = vpack.c.b16 %v241, %v240
  %v280 = vpack.c.b16 %v243, %v242
  %v281 = vpack.c.b16 %v244, %v244
  %vm282 = vcmask 64512
  %v284 = vsel %vm282, %v245, 0
  %v287 = vsel %vm282, %v246, 0
  %v290 = vsel %vm282, %v247, 0
  %v293 = vsel %vm282, %v248, 0
  %v296 = vsel %vm282, %v249, 0
  %v299 = vsel %vm282, %v250, 0
  %v302 = vsel %vm282, %v251, 0
  %v305 = vsel %vm282, %v252, 0
  %v308 = vsel %vm282, %v253, 0
  %v311 = vsel %vm282, %v254, 0
  %v314 = vsel %vm282, %v255, 0
  %v317 = vsel %vm282, %v256, 0
  %v320 = vsel %vm282, %v257, 0
  %v323 = vsel %vm282, %v258, 0
  %v326 = vsel %vm282, %v259, 0
  %v329 = vsel %vm282, %v260, 0
  %v332 = vsel %vm282, %v261, 0
  %v335 = vsel %vm282, %v262, 0
  %v338 = vsel %vm282, %v263, 0
  %v341 = vsel %vm282, %v264, 0
  %v344 = vsel %vm282, %v265, 0
  %v347 = vsel %vm282, %v266, 0
  %v350 = vsel %vm282, %v267, 0
  %v353 = vsel %vm282, %v268, 0
  %v356 = vsel %vm282, %v269, 0
  %v359 = vsel %vm282, %v270, 0
  %v362 = vsel %vm282, %v271, 0
  %v365 = vsel %vm282, %v272, 0
  %v368 = vsel %vm282, %v273, 0
  %v371 = vsel %vm282, %v274, 0
  %v374 = vsel %vm282, %v275, 0
  %v377 = vsel %vm282, %v276, 0
  %v380 = vsel %vm282, %v277, 0
  %v383 = vsel %vm282, %v278, 0
  %v386 = vsel %vm282, %v279, 0
  %v389 = vsel %vm282, %v280, 0
  %v392 = vsel %vm282, %v281, 0
  %vm394 = vcmask 1043456
  %v396 = vsel %vm394, %v91, 0
  %398 = vmatprep.subr.bf16.mxu0 0
  %399 = vmatpush1.bf16.msra.mxu0 %v396
  %400 = vmatprep.subr.bf16.mxu0 0
  %401 = vmatpush1.bf16.msra.mxu0 0
  %402 = vmatprep.subr.bf16.mxu0 0
  %403 = vmatpush1.bf16.msra.mxu0 0
  %404 = vmatprep.subr.bf16.mxu0 0
  %405 = vmatpush1.bf16.msra.mxu0 0
  %406 = vmatprep.subr.bf16.mxu0 0
  %407 = vmatpush1.bf16.msra.mxu0 0
  %408 = vmatprep.subr.bf16.mxu0 0
  %409 = vmatpush1.bf16.msra.mxu0 0
  %410 = vmatprep.subr.bf16.mxu0 0
  %411 = vmatpush1.bf16.msra.mxu0 0
  %412 = vmatprep.subr.bf16.mxu0 0
  %413 = vmatpush1.bf16.msra.mxu0 0
  %414 = vmatprep.subr.bf16.mxu0 0
  %415 = vmatpush1.bf16.msra.mxu0 0
  %416 = vmatprep.subr.bf16.mxu0 0
  %417 = vmatpush1.bf16.msra.mxu0 0
  %418 = vmatprep.subr.bf16.mxu0 0
  %419 = vmatpush1.bf16.msra.mxu0 0
  %420 = vmatprep.subr.bf16.mxu0 0
  %421 = vmatpush1.bf16.msra.mxu0 0
  %422 = vmatprep.subr.bf16.mxu0 0
  %423 = vmatpush1.bf16.msra.mxu0 0
  %424 = vmatprep.subr.bf16.mxu0 0
  %425 = vmatpush1.bf16.msra.mxu0 0
  %426 = vmatprep.subr.bf16.mxu0 0
  %427 = vmatpush1.bf16.msra.mxu0 0
  %428 = vmatprep.subr.bf16.mxu0 0
  %429 = vmatpush1.bf16.msra.mxu0 0
  %430 = vmatprep.mubr.bf16.mxu0 0
  %431 = vmatmul.mubr.bf16.gmra.mrb[0].mxu0 %v284
  %v432 = vpop.f32.mrb[0].mxu0
  %v433 = vadd.f32 %v97, %v432
  %v434 = vpop.f32.mrb[0].mxu0
  %v435 = vpop.f32.mrb[0].mxu0
  %v436 = vadd.f32 %v97, %v435
  %v437 = vpop.f32.mrb[0].mxu0
  %438 = vmatprep.mubr.bf16.mxu0 0
  %439 = vmatmul.mubr.bf16.gmra.mrb[0].mxu0 %v287
  %v440 = vpop.f32.mrb[0].mxu0
  %v441 = vadd.f32 %v97, %v440
  %v442 = vpop.f32.mrb[0].mxu0
  %v443 = vpop.f32.mrb[0].mxu0
  %v444 = vadd.f32 %v97, %v443
  %v445 = vpop.f32.mrb[0].mxu0
  %446 = vmatprep.mubr.bf16.mxu0 0
  %447 = vmatmul.mubr.bf16.gmra.mrb[0].mxu0 %v290
  %v448 = vpop.f32.mrb[0].mxu0
  %v449 = vadd.f32 %v97, %v448
  %v450 = vpop.f32.mrb[0].mxu0
  %v451 = vpop.f32.mrb[0].mxu0
  %v452 = vadd.f32 %v97, %v451
  %v453 = vpop.f32.mrb[0].mxu0
  %454 = vmatprep.mubr.bf16.mxu0 0
  %455 = vmatmul.mubr.bf16.gmra.mrb[0].mxu0 %v293
  %v456 = vpop.f32.mrb[0].mxu0
  %v457 = vadd.f32 %v97, %v456
  %v458 = vpop.f32.mrb[0].mxu0
  %v459 = vpop.f32.mrb[0].mxu0
  %v460 = vadd.f32 %v97, %v459
  %v461 = vpop.f32.mrb[0].mxu0
  %462 = vmatprep.mubr.bf16.mxu0 0
  %463 = vmatmul.mubr.bf16.gmra.mrb[0].mxu0 %v296
  %v464 = vpop.f32.mrb[0].mxu0
  %v465 = vadd.f32 %v97, %v464
  %v466 = vpop.f32.mrb[0].mxu0
  %v467 = vpop.f32.mrb[0].mxu0
  %v468 = vadd.f32 %v97, %v467
  %v469 = vpop.f32.mrb[0].mxu0
  %470 = vmatprep.mubr.bf16.mxu0 0
  %471 = vmatmul.mubr.bf16.gmra.mrb[0].mxu0 %v299
  %v472 = vpop.f32.mrb[0].mxu0
  %v473 = vadd.f32 %v97, %v472
  %v474 = vpop.f32.mrb[0].mxu0
  %v475 = vpop.f32.mrb[0].mxu0
  %v476 = vadd.f32 %v97, %v475
  %v477 = vpop.f32.mrb[0].mxu0
  %478 = vmatprep.mubr.bf16.mxu0 0
  %479 = vmatmul.mubr.bf16.gmra.mrb[0].mxu0 %v302
  %v480 = vpop.f32.mrb[0].mxu0
  %v481 = vadd.f32 %v97, %v480
  %v482 = vpop.f32.mrb[0].mxu0
  %v483 = vpop.f32.mrb[0].mxu0
  %v484 = vadd.f32 %v97, %v483
  %v485 = vpop.f32.mrb[0].mxu0
  %486 = vmatprep.mubr.bf16.mxu0 0
  %487 = vmatmul.mubr.bf16.gmra.mrb[0].mxu0 %v305
  %v488 = vpop.f32.mrb[0].mxu0
  %v489 = vadd.f32 %v97, %v488
  %v490 = vpop.f32.mrb[0].mxu0
  %v491 = vpop.f32.mrb[0].mxu0
  %v492 = vadd.f32 %v97, %v491
  %v493 = vpop.f32.mrb[0].mxu0
  %494 = vmatprep.mubr.bf16.mxu0 0
  %495 = vmatmul.mubr.bf16.gmra.mrb[0].mxu0 %v308
  %v496 = vpop.f32.mrb[0].mxu0
  %v497 = vadd.f32 %v97, %v496
  %v498 = vpop.f32.mrb[0].mxu0
  %v499 = vpop.f32.mrb[0].mxu0
  %v500 = vadd.f32 %v97, %v499
  %v501 = vpop.f32.mrb[0].mxu0
  %502 = vmatprep.mubr.bf16.mxu0 0
  %503 = vmatmul.mubr.bf16.gmra.mrb[0].mxu0 %v311
  %v504 = vpop.f32.mrb[0].mxu0
  %v505 = vadd.f32 %v97, %v504
  %v506 = vpop.f32.mrb[0].mxu0
  %v507 = vpop.f32.mrb[0].mxu0
  %v508 = vadd.f32 %v97, %v507
  %v509 = vpop.f32.mrb[0].mxu0
  %510 = vmatprep.mubr.bf16.mxu0 0
  %511 = vmatmul.mubr.bf16.gmra.mrb[0].mxu0 %v314
  %v512 = vpop.f32.mrb[0].mxu0
  %v513 = vadd.f32 %v97, %v512
  %v514 = vpop.f32.mrb[0].mxu0
  %v515 = vpop.f32.mrb[0].mxu0
  %v516 = vadd.f32 %v97, %v515
  %v517 = vpop.f32.mrb[0].mxu0
  %518 = vmatprep.mubr.bf16.mxu0 0
  %519 = vmatmul.mubr.bf16.gmra.mrb[0].mxu0 %v317
  %v520 = vpop.f32.mrb[0].mxu0
  %v521 = vadd.f32 %v97, %v520
  %v522 = vpop.f32.mrb[0].mxu0
  %v523 = vpop.f32.mrb[0].mxu0
  %v524 = vadd.f32 %v97, %v523
  %v525 = vpop.f32.mrb[0].mxu0
  %526 = vmatprep.mubr.bf16.mxu0 0
  %527 = vmatmul.mubr.bf16.gmra.mrb[0].mxu0 %v320
  %v528 = vpop.f32.mrb[0].mxu0
  %v529 = vadd.f32 %v97, %v528
  %v530 = vpop.f32.mrb[0].mxu0
  %v531 = vpop.f32.mrb[0].mxu0
  %v532 = vadd.f32 %v97, %v531
  %v533 = vpop.f32.mrb[0].mxu0
  %534 = vmatprep.mubr.bf16.mxu0 0
  %535 = vmatmul.mubr.bf16.gmra.mrb[0].mxu0 %v323
  %v536 = vpop.f32.mrb[0].mxu0
  %v537 = vadd.f32 %v97, %v536
  %v538 = vpop.f32.mrb[0].mxu0
  %v539 = vpop.f32.mrb[0].mxu0
  %v540 = vadd.f32 %v97, %v539
  %v541 = vpop.f32.mrb[0].mxu0
  %542 = vmatprep.mubr.bf16.mxu0 0
  %543 = vmatmul.mubr.bf16.gmra.mrb[0].mxu0 %v326
  %v544 = vpop.f32.mrb[0].mxu0
  %v545 = vadd.f32 %v97, %v544
  %v546 = vpop.f32.mrb[0].mxu0
  %v547 = vpop.f32.mrb[0].mxu0
  %v548 = vadd.f32 %v97, %v547
  %v549 = vpop.f32.mrb[0].mxu0
  %550 = vmatprep.mubr.bf16.mxu0 0
  %551 = vmatmul.mubr.bf16.gmra.mrb[0].mxu0 %v329
  %v552 = vpop.f32.mrb[0].mxu0
  %v553 = vadd.f32 %v97, %v552
  %v554 = vpop.f32.mrb[0].mxu0
  %v555 = vpop.f32.mrb[0].mxu0
  %v556 = vadd.f32 %v97, %v555
  %v557 = vpop.f32.mrb[0].mxu0
  %558 = vmatprep.mubr.bf16.mxu0 0
  %559 = vmatmul.mubr.bf16.gmra.mrb[0].mxu0 %v332
  %v560 = vpop.f32.mrb[0].mxu0
  %v561 = vadd.f32 %v97, %v560
  %v562 = vpop.f32.mrb[0].mxu0
  %v563 = vpop.f32.mrb[0].mxu0
  %v564 = vadd.f32 %v97, %v563
  %v565 = vpop.f32.mrb[0].mxu0
  %566 = vmatprep.mubr.bf16.mxu0 0
  %567 = vmatmul.mubr.bf16.gmra.mrb[0].mxu0 %v335
  %v568 = vpop.f32.mrb[0].mxu0
  %v569 = vadd.f32 %v97, %v568
  %v570 = vpop.f32.mrb[0].mxu0
  %v571 = vpop.f32.mrb[0].mxu0
  %v572 = vadd.f32 %v97, %v571
  %v573 = vpop.f32.mrb[0].mxu0
  %574 = vmatprep.mubr.bf16.mxu0 0
  %575 = vmatmul.mubr.bf16.gmra.mrb[0].mxu0 %v338
  %v576 = vpop.f32.mrb[0].mxu0
  %v577 = vadd.f32 %v97, %v576
  %v578 = vpop.f32.mrb[0].mxu0
  %v579 = vpop.f32.mrb[0].mxu0
  %v580 = vadd.f32 %v97, %v579
  %v581 = vpop.f32.mrb[0].mxu0
  %582 = vmatprep.mubr.bf16.mxu0 0
  %583 = vmatmul.mubr.bf16.gmra.mrb[0].mxu0 %v341
  %v584 = vpop.f32.mrb[0].mxu0
  %v585 = vadd.f32 %v97, %v584
  %v586 = vpop.f32.mrb[0].mxu0
  %v587 = vpop.f32.mrb[0].mxu0
  %v588 = vadd.f32 %v97, %v587
  %v589 = vpop.f32.mrb[0].mxu0
  %590 = vmatprep.mubr.bf16.mxu0 0
  %591 = vmatmul.mubr.bf16.gmra.mrb[0].mxu0 %v344
  %v592 = vpop.f32.mrb[0].mxu0
  %v593 = vadd.f32 %v97, %v592
  %v594 = vpop.f32.mrb[0].mxu0
  %v595 = vpop.f32.mrb[0].mxu0
  %v596 = vadd.f32 %v97, %v595
  %v597 = vpop.f32.mrb[0].mxu0
  %598 = vmatprep.mubr.bf16.mxu0 0
  %599 = vmatmul.mubr.bf16.gmra.mrb[0].mxu0 %v347
  %v600 = vpop.f32.mrb[0].mxu0
  %v601 = vadd.f32 %v97, %v600
  %v602 = vpop.f32.mrb[0].mxu0
  %v603 = vpop.f32.mrb[0].mxu0
  %v604 = vadd.f32 %v97, %v603
  %v605 = vpop.f32.mrb[0].mxu0
  %606 = vmatprep.mubr.bf16.mxu0 0
  %607 = vmatmul.mubr.bf16.gmra.mrb[0].mxu0 %v350
  %v608 = vpop.f32.mrb[0].mxu0
  %v609 = vadd.f32 %v97, %v608
  %v610 = vpop.f32.mrb[0].mxu0
  %v611 = vpop.f32.mrb[0].mxu0
  %v612 = vadd.f32 %v97, %v611
  %v613 = vpop.f32.mrb[0].mxu0
  %614 = vmatprep.mubr.bf16.mxu0 0
  %615 = vmatmul.mubr.bf16.gmra.mrb[0].mxu0 %v353
  %v616 = vpop.f32.mrb[0].mxu0
  %v617 = vadd.f32 %v97, %v616
  %v618 = vpop.f32.mrb[0].mxu0
  %v619 = vpop.f32.mrb[0].mxu0
  %v620 = vadd.f32 %v97, %v619
  %v621 = vpop.f32.mrb[0].mxu0
  %622 = vmatprep.mubr.bf16.mxu0 0
  %623 = vmatmul.mubr.bf16.gmra.mrb[0].mxu0 %v356
  %v624 = vpop.f32.mrb[0].mxu0
  %v625 = vadd.f32 %v97, %v624
  %v626 = vpop.f32.mrb[0].mxu0
  %v627 = vpop.f32.mrb[0].mxu0
  %v628 = vadd.f32 %v97, %v627
  %v629 = vpop.f32.mrb[0].mxu0
  %630 = vmatprep.mubr.bf16.mxu0 0
  %631 = vmatmul.mubr.bf16.gmra.mrb[0].mxu0 %v359
  %v632 = vpop.f32.mrb[0].mxu0
  %v633 = vadd.f32 %v97, %v632
  %v634 = vpop.f32.mrb[0].mxu0
  %v635 = vpop.f32.mrb[0].mxu0
  %v636 = vadd.f32 %v97, %v635
  %v637 = vpop.f32.mrb[0].mxu0
  %638 = vmatprep.mubr.bf16.mxu0 0
  %639 = vmatmul.mubr.bf16.gmra.mrb[0].mxu0 %v362
  %v640 = vpop.f32.mrb[0].mxu0
  %v641 = vadd.f32 %v97, %v640
  %v642 = vpop.f32.mrb[0].mxu0
  %v643 = vpop.f32.mrb[0].mxu0
  %v644 = vadd.f32 %v97, %v643
  %v645 = vpop.f32.mrb[0].mxu0
  %646 = vmatprep.mubr.bf16.mxu0 0
  %647 = vmatmul.mubr.bf16.gmra.mrb[0].mxu0 %v365
  %v648 = vpop.f32.mrb[0].mxu0
  %v649 = vadd.f32 %v97, %v648
  %v650 = vpop.f32.mrb[0].mxu0
  %v651 = vpop.f32.mrb[0].mxu0
  %v652 = vadd.f32 %v97, %v651
  %v653 = vpop.f32.mrb[0].mxu0
  %654 = vmatprep.mubr.bf16.mxu0 0
  %655 = vmatmul.mubr.bf16.gmra.mrb[0].mxu0 %v368
  %v656 = vpop.f32.mrb[0].mxu0
  %v657 = vadd.f32 %v97, %v656
  %v658 = vpop.f32.mrb[0].mxu0
  %v659 = vpop.f32.mrb[0].mxu0
  %v660 = vadd.f32 %v97, %v659
  %v661 = vpop.f32.mrb[0].mxu0
  %662 = vmatprep.mubr.bf16.mxu0 0
  %663 = vmatmul.mubr.bf16.gmra.mrb[0].mxu0 %v371
  %v664 = vpop.f32.mrb[0].mxu0
  %v665 = vadd.f32 %v97, %v664
  %v666 = vpop.f32.mrb[0].mxu0
  %v667 = vpop.f32.mrb[0].mxu0
  %v668 = vadd.f32 %v97, %v667
  %v669 = vpop.f32.mrb[0].mxu0
  %670 = vmatprep.mubr.bf16.mxu0 0
  %671 = vmatmul.mubr.bf16.gmra.mrb[0].mxu0 %v374
  %v672 = vpop.f32.mrb[0].mxu0
  %v673 = vadd.f32 %v97, %v672
  %v674 = vpop.f32.mrb[0].mxu0
  %v675 = vpop.f32.mrb[0].mxu0
  %v676 = vadd.f32 %v97, %v675
  %v677 = vpop.f32.mrb[0].mxu0
  %678 = vmatprep.mubr.bf16.mxu0 0
  %679 = vmatmul.mubr.bf16.gmra.mrb[0].mxu0 %v377
  %v680 = vpop.f32.mrb[0].mxu0
  %v681 = vadd.f32 %v97, %v680
  %v682 = vpop.f32.mrb[0].mxu0
  %v683 = vpop.f32.mrb[0].mxu0
  %v684 = vadd.f32 %v97, %v683
  %v685 = vpop.f32.mrb[0].mxu0
  %686 = vmatprep.mubr.bf16.mxu0 0
  %687 = vmatmul.mubr.bf16.gmra.mrb[0].mxu0 %v380
  %v688 = vpop.f32.mrb[0].mxu0
  %v689 = vadd.f32 %v97, %v688
  %v690 = vpop.f32.mrb[0].mxu0
  %v691 = vpop.f32.mrb[0].mxu0
  %v692 = vadd.f32 %v97, %v691
  %v693 = vpop.f32.mrb[0].mxu0
  %694 = vmatprep.mubr.bf16.mxu0 0
  %695 = vmatmul.mubr.bf16.gmra.mrb[0].mxu0 %v383
  %v696 = vpop.f32.mrb[0].mxu0
  %v697 = vadd.f32 %v97, %v696
  %v698 = vpop.f32.mrb[0].mxu0
  %v699 = vpop.f32.mrb[0].mxu0
  %v700 = vadd.f32 %v97, %v699
  %v701 = vpop.f32.mrb[0].mxu0
  %702 = vmatprep.mubr.bf16.mxu0 0
  %703 = vmatmul.mubr.bf16.gmra.mrb[0].mxu0 %v386
  %v704 = vpop.f32.mrb[0].mxu0
  %v705 = vadd.f32 %v97, %v704
  %v706 = vpop.f32.mrb[0].mxu0
  %v707 = vpop.f32.mrb[0].mxu0
  %v708 = vadd.f32 %v97, %v707
  %v709 = vpop.f32.mrb[0].mxu0
  %710 = vmatprep.mubr.bf16.mxu0 0
  %711 = vmatmul.mubr.bf16.gmra.mrb[0].mxu0 %v389
  %v712 = vpop.f32.mrb[0].mxu0
  %v713 = vadd.f32 %v97, %v712
  %v714 = vpop.f32.mrb[0].mxu0
  %v715 = vpop.f32.mrb[0].mxu0
  %v716 = vadd.f32 %v97, %v715
  %v717 = vpop.f32.mrb[0].mxu0
  %718 = vmatprep.mubr.bf16.mxu0 0
  %719 = vmatmul.mubr.bf16.gmra.mrb[0].mxu0 %v392
  %v720 = vpop.f32.mrb[0].mxu0
  %v721 = vadd.f32 %v97, %v720
  %v722 = vpop.f32.mrb[0].mxu0
  %v723 = vpop.f32.mrb[0].mxu0
  %v724 = vpop.f32.mrb[0].mxu0
  %725 = vdwg.mxu0
  %vm726 = vcmp.ge.f32.partialorder %v433, 0.0
  %vm727 = vcmp.ge.f32.partialorder %v436, 0.0
  %vm728 = vcmp.ge.f32.partialorder %v441, 0.0
  %vm729 = vcmp.ge.f32.partialorder %v444, 0.0
  %vm730 = vcmp.ge.f32.partialorder %v449, 0.0
  %vm731 = vcmp.ge.f32.partialorder %v452, 0.0
  %vm732 = vcmp.ge.f32.partialorder %v457, 0.0
  %vm733 = vcmp.ge.f32.partialorder %v460, 0.0
  %vm734 = vcmp.ge.f32.partialorder %v465, 0.0
  %vm735 = vcmp.ge.f32.partialorder %v468, 0.0
  %vm736 = vcmp.ge.f32.partialorder %v473, 0.0
  %vm737 = vcmp.ge.f32.partialorder %v476, 0.0
  %vm738 = vcmp.ge.f32.partialorder %v481, 0.0
  %vm739 = vcmp.ge.f32.partialorder %v484, 0.0
  %vm740 = vcmp.ge.f32.partialorder %v489, 0.0
  %vm741 = vcmp.ge.f32.partialorder %v492, 0.0
  %vm742 = vcmp.ge.f32.partialorder %v497, 0.0
  %vm743 = vcmp.ge.f32.partialorder %v500, 0.0
  %vm744 = vcmp.ge.f32.partialorder %v505, 0.0
  %vm745 = vcmp.ge.f32.partialorder %v508, 0.0
  %vm746 = vcmp.ge.f32.partialorder %v513, 0.0
  %vm747 = vcmp.ge.f32.partialorder %v516, 0.0
  %vm748 = vcmp.ge.f32.partialorder %v521, 0.0
  %vm749 = vcmp.ge.f32.partialorder %v524, 0.0
  %vm750 = vcmp.ge.f32.partialorder %v529, 0.0
  %vm751 = vcmp.ge.f32.partialorder %v532, 0.0
  %vm752 = vcmp.ge.f32.partialorder %v537, 0.0
  %vm753 = vcmp.ge.f32.partialorder %v540, 0.0
  %vm754 = vcmp.ge.f32.partialorder %v545, 0.0
  %vm755 = vcmp.ge.f32.partialorder %v548, 0.0
  %vm756 = vcmp.ge.f32.partialorder %v553, 0.0
  %vm757 = vcmp.ge.f32.partialorder %v556, 0.0
  %vm758 = vcmp.ge.f32.partialorder %v561, 0.0
  %vm759 = vcmp.ge.f32.partialorder %v564, 0.0
  %vm760 = vcmp.ge.f32.partialorder %v569, 0.0
  %vm761 = vcmp.ge.f32.partialorder %v572, 0.0
  %vm762 = vcmp.ge.f32.partialorder %v577, 0.0
  %vm763 = vcmp.ge.f32.partialorder %v580, 0.0
  %vm764 = vcmp.ge.f32.partialorder %v585, 0.0
  %vm765 = vcmp.ge.f32.partialorder %v588, 0.0
  %vm766 = vcmp.ge.f32.partialorder %v593, 0.0
  %vm767 = vcmp.ge.f32.partialorder %v596, 0.0
  %vm768 = vcmp.ge.f32.partialorder %v601, 0.0
  %vm769 = vcmp.ge.f32.partialorder %v604, 0.0
  %vm770 = vcmp.ge.f32.partialorder %v609, 0.0
  %vm771 = vcmp.ge.f32.partialorder %v612, 0.0
  %vm772 = vcmp.ge.f32.partialorder %v617, 0.0
  %vm773 = vcmp.ge.f32.partialorder %v620, 0.0
  %vm774 = vcmp.ge.f32.partialorder %v625, 0.0
  %vm775 = vcmp.ge.f32.partialorder %v628, 0.0
  %vm776 = vcmp.ge.f32.partialorder %v633, 0.0
  %vm777 = vcmp.ge.f32.partialorder %v636, 0.0
  %vm778 = vcmp.ge.f32.partialorder %v641, 0.0
  %vm779 = vcmp.ge.f32.partialorder %v644, 0.0
  %vm780 = vcmp.ge.f32.partialorder %v649, 0.0
  %vm781 = vcmp.ge.f32.partialorder %v652, 0.0
  %vm782 = vcmp.ge.f32.partialorder %v657, 0.0
  %vm783 = vcmp.ge.f32.partialorder %v660, 0.0
  %vm784 = vcmp.ge.f32.partialorder %v665, 0.0
  %vm785 = vcmp.ge.f32.partialorder %v668, 0.0
  %vm786 = vcmp.ge.f32.partialorder %v673, 0.0
  %vm787 = vcmp.ge.f32.partialorder %v676, 0.0
  %vm788 = vcmp.ge.f32.partialorder %v681, 0.0
  %vm789 = vcmp.ge.f32.partialorder %v684, 0.0
  %vm790 = vcmp.ge.f32.partialorder %v689, 0.0
  %vm791 = vcmp.ge.f32.partialorder %v692, 0.0
  %vm792 = vcmp.ge.f32.partialorder %v697, 0.0
  %vm793 = vcmp.ge.f32.partialorder %v700, 0.0
  %vm794 = vcmp.ge.f32.partialorder %v705, 0.0
  %vm795 = vcmp.ge.f32.partialorder %v708, 0.0
  %vm796 = vcmp.ge.f32.partialorder %v713, 0.0
  %vm797 = vcmp.ge.f32.partialorder %v716, 0.0
  %vm798 = vcmp.ge.f32.partialorder %v721, 0.0
  %v799 = vld [vmem:[%s3] sm:$0x1]
  %v801 = vlaneseq
  %v802 = vshrl.u32 %v801, 7
  %v803 = vsub.s32 0, %v802
  %v804 = vrot.slane %v799, %v803
  %v806 = vmul.f32 %v804, %v433
  %v807 = vmul.f32 %v804, %v436
  %v808 = vmul.f32 %v804, %v441
  %v809 = vmul.f32 %v804, %v444
  %v810 = vmul.f32 %v804, %v449
  %v811 = vmul.f32 %v804, %v452
  %v812 = vmul.f32 %v804, %v457
  %v813 = vmul.f32 %v804, %v460
  %v814 = vmul.f32 %v804, %v465
  %v815 = vmul.f32 %v804, %v468
  %v816 = vmul.f32 %v804, %v473
  %v817 = vmul.f32 %v804, %v476
  %v818 = vmul.f32 %v804, %v481
  %v819 = vmul.f32 %v804, %v484
  %v820 = vmul.f32 %v804, %v489
  %v821 = vmul.f32 %v804, %v492
  %v822 = vmul.f32 %v804, %v497
  %v823 = vmul.f32 %v804, %v500
  %v824 = vmul.f32 %v804, %v505
  %v825 = vmul.f32 %v804, %v508
  %v826 = vmul.f32 %v804, %v513
  %v827 = vmul.f32 %v804, %v516
  %v828 = vmul.f32 %v804, %v521
  %v829 = vmul.f32 %v804, %v524
  %v830 = vmul.f32 %v804, %v529
  %v831 = vmul.f32 %v804, %v532
  %v832 = vmul.f32 %v804, %v537
  %v833 = vmul.f32 %v804, %v540
  %v834 = vmul.f32 %v804, %v545
  %v835 = vmul.f32 %v804, %v548
  %v836 = vmul.f32 %v804, %v553
  %v837 = vmul.f32 %v804, %v556
  %v838 = vmul.f32 %v804, %v561
  %v839 = vmul.f32 %v804, %v564
  %v840 = vmul.f32 %v804, %v569
  %v841 = vmul.f32 %v804, %v572
  %v842 = vmul.f32 %v804, %v577
  %v843 = vmul.f32 %v804, %v580
  %v844 = vmul.f32 %v804, %v585
  %v845 = vmul.f32 %v804, %v588
  %v846 = vmul.f32 %v804, %v593
  %v847 = vmul.f32 %v804, %v596
  %v848 = vmul.f32 %v804, %v601
  %v849 = vmul.f32 %v804, %v604
  %v850 = vmul.f32 %v804, %v609
  %v851 = vmul.f32 %v804, %v612
  %v852 = vmul.f32 %v804, %v617
  %v853 = vmul.f32 %v804, %v620
  %v854 = vmul.f32 %v804, %v625
  %v855 = vmul.f32 %v804, %v628
  %v856 = vmul.f32 %v804, %v633
  %v857 = vmul.f32 %v804, %v636
  %v858 = vmul.f32 %v804, %v641
  %v859 = vmul.f32 %v804, %v644
  %v860 = vmul.f32 %v804, %v649
  %v861 = vmul.f32 %v804, %v652
  %v862 = vmul.f32 %v804, %v657
  %v863 = vmul.f32 %v804, %v660
  %v864 = vmul.f32 %v804, %v665
  %v865 = vmul.f32 %v804, %v668
  %v866 = vmul.f32 %v804, %v673
  %v867 = vmul.f32 %v804, %v676
  %v868 = vmul.f32 %v804, %v681
  %v869 = vmul.f32 %v804, %v684
  %v870 = vmul.f32 %v804, %v689
  %v871 = vmul.f32 %v804, %v692
  %v872 = vmul.f32 %v804, %v697
  %v873 = vmul.f32 %v804, %v700
  %v874 = vmul.f32 %v804, %v705
  %v875 = vmul.f32 %v804, %v708
  %v876 = vmul.f32 %v804, %v713
  %v877 = vmul.f32 %v804, %v716
  %v878 = vmul.f32 %v804, %v721
  %v879 = vsel %vm726, %v433, %v806
  %v880 = vsel %vm727, %v436, %v807
  %v881 = vsel %vm728, %v441, %v808
  %v882 = vsel %vm729, %v444, %v809
  %v883 = vsel %vm730, %v449, %v810
  %v884 = vsel %vm731, %v452, %v811
  %v885 = vsel %vm732, %v457, %v812
  %v886 = vsel %vm733, %v460, %v813
  %v887 = vsel %vm734, %v465, %v814
  %v888 = vsel %vm735, %v468, %v815
  %v889 = vsel %vm736, %v473, %v816
  %v890 = vsel %vm737, %v476, %v817
  %v891 = vsel %vm738, %v481, %v818
  %v892 = vsel %vm739, %v484, %v819
  %v893 = vsel %vm740, %v489, %v820
  %v894 = vsel %vm741, %v492, %v821
  %v895 = vsel %vm742, %v497, %v822
  %v896 = vsel %vm743, %v500, %v823
  %v897 = vsel %vm744, %v505, %v824
  %v898 = vsel %vm745, %v508, %v825
  %v899 = vsel %vm746, %v513, %v826
  %v900 = vsel %vm747, %v516, %v827
  %v901 = vsel %vm748, %v521, %v828
  %v902 = vsel %vm749, %v524, %v829
  %v903 = vsel %vm750, %v529, %v830
  %v904 = vsel %vm751, %v532, %v831
  %v905 = vsel %vm752, %v537, %v832
  %v906 = vsel %vm753, %v540, %v833
  %v907 = vsel %vm754, %v545, %v834
  %v908 = vsel %vm755, %v548, %v835
  %v909 = vsel %vm756, %v553, %v836
  %v910 = vsel %vm757, %v556, %v837
  %v911 = vsel %vm758, %v561, %v838
  %v912 = vsel %vm759, %v564, %v839
  %v913 = vsel %vm760, %v569, %v840
  %v914 = vsel %vm761, %v572, %v841
  %v915 = vsel %vm762, %v577, %v842
  %v916 = vsel %vm763, %v580, %v843
  %v917 = vsel %vm764, %v585, %v844
  %v918 = vsel %vm765, %v588, %v845
  %v919 = vsel %vm766, %v593, %v846
  %v920 = vsel %vm767, %v596, %v847
  %v921 = vsel %vm768, %v601, %v848
  %v922 = vsel %vm769, %v604, %v849
  %v923 = vsel %vm770, %v609, %v850
  %v924 = vsel %vm771, %v612, %v851
  %v925 = vsel %vm772, %v617, %v852
  %v926 = vsel %vm773, %v620, %v853
  %v927 = vsel %vm774, %v625, %v854
  %v928 = vsel %vm775, %v628, %v855
  %v929 = vsel %vm776, %v633, %v856
  %v930 = vsel %vm777, %v636, %v857
  %v931 = vsel %vm778, %v641, %v858
  %v932 = vsel %vm779, %v644, %v859
  %v933 = vsel %vm780, %v649, %v860
  %v934 = vsel %vm781, %v652, %v861
  %v935 = vsel %vm782, %v657, %v862
  %v936 = vsel %vm783, %v660, %v863
  %v937 = vsel %vm784, %v665, %v864
  %v938 = vsel %vm785, %v668, %v865
  %v939 = vsel %vm786, %v673, %v866
  %v940 = vsel %vm787, %v676, %v867
  %v941 = vsel %vm788, %v681, %v868
  %v942 = vsel %vm789, %v684, %v869
  %v943 = vsel %vm790, %v689, %v870
  %v944 = vsel %vm791, %v692, %v871
  %v945 = vsel %vm792, %v697, %v872
  %v946 = vsel %vm793, %v700, %v873
  %v947 = vsel %vm794, %v705, %v874
  %v948 = vsel %vm795, %v708, %v875
  %v949 = vsel %vm796, %v713, %v876
  %v950 = vsel %vm797, %v716, %v877
  %v951 = vsel %vm798, %v721, %v878
  %v952 = vpack.c.bf16 %v880, %v879
  %v953 = vpack.c.bf16 %v882, %v881
  %v954 = vpack.c.bf16 %v884, %v883
  %v955 = vpack.c.bf16 %v886, %v885
  %v956 = vpack.c.bf16 %v888, %v887
  %v957 = vpack.c.bf16 %v890, %v889
  %v958 = vpack.c.bf16 %v892, %v891
  %v959 = vpack.c.bf16 %v894, %v893
  %v960 = vpack.c.bf16 %v896, %v895
  %v961 = vpack.c.bf16 %v898, %v897
  %v962 = vpack.c.bf16 %v900, %v899
  %v963 = vpack.c.bf16 %v902, %v901
  %v964 = vpack.c.bf16 %v904, %v903
  %v965 = vpack.c.bf16 %v906, %v905
  %v966 = vpack.c.bf16 %v908, %v907
  %v967 = vpack.c.bf16 %v910, %v909
  %v968 = vpack.c.bf16 %v912, %v911
  %v969 = vpack.c.bf16 %v914, %v913
  %v970 = vpack.c.bf16 %v916, %v915
  %v971 = vpack.c.bf16 %v918, %v917
  %v972 = vpack.c.bf16 %v920, %v919
  %v973 = vpack.c.bf16 %v922, %v921
  %v974 = vpack.c.bf16 %v924, %v923
  %v975 = vpack.c.bf16 %v926, %v925
  %v976 = vpack.c.bf16 %v928, %v927
  %v977 = vpack.c.bf16 %v930, %v929
  %v978 = vpack.c.bf16 %v932, %v931
  %v979 = vpack.c.bf16 %v934, %v933
  %v980 = vpack.c.bf16 %v936, %v935
  %v981 = vpack.c.bf16 %v938, %v937
  %v982 = vpack.c.bf16 %v940, %v939
  %v983 = vpack.c.bf16 %v942, %v941
  %v984 = vpack.c.bf16 %v944, %v943
  %v985 = vpack.c.bf16 %v946, %v945
  %v986 = vpack.c.bf16 %v948, %v947
  %v987 = vpack.c.bf16 %v950, %v949
  %v988 = vpack.c.bf16 %v951, %v951
  %v1026 = vunpack.c.l.b16 %v952
  %v1027 = vunpack.c.h.b16 %v952
  %v1028 = vunpack.c.l.b16 %v953
  %v1029 = vunpack.c.h.b16 %v953
  %v1030 = vunpack.c.l.b16 %v954
  %v1031 = vunpack.c.h.b16 %v954
  %v1032 = vunpack.c.l.b16 %v955
  %v1033 = vunpack.c.h.b16 %v955
  %v1034 = vunpack.c.l.b16 %v956
  %v1035 = vunpack.c.h.b16 %v956
  %v1036 = vunpack.c.l.b16 %v957
  %v1037 = vunpack.c.h.b16 %v957
  %v1038 = vunpack.c.l.b16 %v958
  %v1039 = vunpack.c.h.b16 %v958
  %v1040 = vunpack.c.l.b16 %v959
  %v1041 = vunpack.c.h.b16 %v959
  %v1042 = vunpack.c.l.b16 %v960
  %v1043 = vunpack.c.h.b16 %v960
  %v1044 = vunpack.c.l.b16 %v961
  %v1045 = vunpack.c.h.b16 %v961
  %v1046 = vunpack.c.l.b16 %v962
  %v1047 = vunpack.c.h.b16 %v962
  %v1048 = vunpack.c.l.b16 %v963
  %v1049 = vunpack.c.h.b16 %v963
  %v1050 = vunpack.c.l.b16 %v964
  %v1051 = vunpack.c.h.b16 %v964
  %v1052 = vunpack.c.l.b16 %v965
  %v1053 = vunpack.c.h.b16 %v965
  %v1054 = vunpack.c.l.b16 %v966
  %v1055 = vunpack.c.h.b16 %v966
  %v1056 = vunpack.c.l.b16 %v967
  %v1057 = vunpack.c.h.b16 %v967
  %v1058 = vunpack.c.l.b16 %v968
  %v1059 = vunpack.c.h.b16 %v968
  %v1060 = vunpack.c.l.b16 %v969
  %v1061 = vunpack.c.h.b16 %v969
  %v1062 = vunpack.c.l.b16 %v970
  %v1063 = vunpack.c.h.b16 %v970
  %v1064 = vunpack.c.l.b16 %v971
  %v1065 = vunpack.c.h.b16 %v971
  %v1066 = vunpack.c.l.b16 %v972
  %v1067 = vunpack.c.h.b16 %v972
  %v1068 = vunpack.c.l.b16 %v973
  %v1069 = vunpack.c.h.b16 %v973
  %v1070 = vunpack.c.l.b16 %v974
  %v1071 = vunpack.c.h.b16 %v974
  %v1072 = vunpack.c.l.b16 %v975
  %v1073 = vunpack.c.h.b16 %v975
  %v1074 = vunpack.c.l.b16 %v976
  %v1075 = vunpack.c.h.b16 %v976
  %v1076 = vunpack.c.l.b16 %v977
  %v1077 = vunpack.c.h.b16 %v977
  %v1078 = vunpack.c.l.b16 %v978
  %v1079 = vunpack.c.h.b16 %v978
  %v1080 = vunpack.c.l.b16 %v979
  %v1081 = vunpack.c.h.b16 %v979
  %v1082 = vunpack.c.l.b16 %v980
  %v1083 = vunpack.c.h.b16 %v980
  %v1084 = vunpack.c.l.b16 %v981
  %v1085 = vunpack.c.h.b16 %v981
  %v1086 = vunpack.c.l.b16 %v982
  %v1087 = vunpack.c.h.b16 %v982
  %v1088 = vunpack.c.l.b16 %v983
  %v1089 = vunpack.c.h.b16 %v983
  %v1090 = vunpack.c.l.b16 %v984
  %v1091 = vunpack.c.h.b16 %v984
  %v1092 = vunpack.c.l.b16 %v985
  %v1093 = vunpack.c.h.b16 %v985
  %v1094 = vunpack.c.l.b16 %v986
  %v1095 = vunpack.c.h.b16 %v986
  %v1096 = vunpack.c.l.b16 %v987
  %v1097 = vunpack.c.h.b16 %v987
  %v1098 = vunpack.c.l.b16 %v988
  %v1099 = vpack.c.b16 %v1026, %v1026
  %v1100 = vpack.c.b16 %v1027, %v1027
  %v1101 = vpack.c.b16 %v1028, %v1028
  %v1102 = vpack.c.b16 %v1029, %v1029
  %v1103 = vpack.c.b16 %v1030, %v1030
  %v1104 = vpack.c.b16 %v1031, %v1031
  %v1105 = vpack.c.b16 %v1032, %v1032
  %v1106 = vpack.c.b16 %v1033, %v1033
  %v1107 = vpack.c.b16 %v1034, %v1034
  %v1108 = vpack.c.b16 %v1035, %v1035
  %v1109 = vpack.c.b16 %v1036, %v1036
  %v1110 = vpack.c.b16 %v1037, %v1037
  %v1111 = vpack.c.b16 %v1038, %v1038
  %v1112 = vpack.c.b16 %v1039, %v1039
  %v1113 = vpack.c.b16 %v1040, %v1040
  %v1114 = vpack.c.b16 %v1041, %v1041
  %v1115 = vpack.c.b16 %v1042, %v1042
  %v1116 = vpack.c.b16 %v1043, %v1043
  %v1117 = vpack.c.b16 %v1044, %v1044
  %v1118 = vpack.c.b16 %v1045, %v1045
  %v1119 = vpack.c.b16 %v1046, %v1046
  %v1120 = vpack.c.b16 %v1047, %v1047
  %v1121 = vpack.c.b16 %v1048, %v1048
  %v1122 = vpack.c.b16 %v1049, %v1049
  %v1123 = vpack.c.b16 %v1050, %v1050
  %v1124 = vpack.c.b16 %v1051, %v1051
  %v1125 = vpack.c.b16 %v1052, %v1052
  %v1126 = vpack.c.b16 %v1053, %v1053
  %v1127 = vpack.c.b16 %v1054, %v1054
  %v1128 = vpack.c.b16 %v1055, %v1055
  %v1129 = vpack.c.b16 %v1056, %v1056
  %v1130 = vpack.c.b16 %v1057, %v1057
  %v1131 = vpack.c.b16 %v1058, %v1058
  %v1132 = vpack.c.b16 %v1059, %v1059
  %v1133 = vpack.c.b16 %v1060, %v1060
  %v1134 = vpack.c.b16 %v1061, %v1061
  %v1135 = vpack.c.b16 %v1062, %v1062
  %v1136 = vpack.c.b16 %v1063, %v1063
  %v1137 = vpack.c.b16 %v1064, %v1064
  %v1138 = vpack.c.b16 %v1065, %v1065
  %v1139 = vpack.c.b16 %v1066, %v1066
  %v1140 = vpack.c.b16 %v1067, %v1067
  %v1141 = vpack.c.b16 %v1068, %v1068
  %v1142 = vpack.c.b16 %v1069, %v1069
  %v1143 = vpack.c.b16 %v1070, %v1070
  %v1144 = vpack.c.b16 %v1071, %v1071
  %v1145 = vpack.c.b16 %v1072, %v1072
  %v1146 = vpack.c.b16 %v1073, %v1073
  %v1147 = vpack.c.b16 %v1074, %v1074
  %v1148 = vpack.c.b16 %v1075, %v1075
  %v1149 = vpack.c.b16 %v1076, %v1076
  %v1150 = vpack.c.b16 %v1077, %v1077
  %v1151 = vpack.c.b16 %v1078, %v1078
  %v1152 = vpack.c.b16 %v1079, %v1079
  %v1153 = vpack.c.b16 %v1080, %v1080
  %v1154 = vpack.c.b16 %v1081, %v1081
  %v1155 = vpack.c.b16 %v1082, %v1082
  %v1156 = vpack.c.b16 %v1083, %v1083
  %v1157 = vpack.c.b16 %v1084, %v1084
  %v1158 = vpack.c.b16 %v1085, %v1085
  %v1159 = vpack.c.b16 %v1086, %v1086
  %v1160 = vpack.c.b16 %v1087, %v1087
  %v1161 = vpack.c.b16 %v1088, %v1088
  %v1162 = vpack.c.b16 %v1089, %v1089
  %v1163 = vpack.c.b16 %v1090, %v1090
  %v1164 = vpack.c.b16 %v1091, %v1091
  %v1165 = vpack.c.b16 %v1092, %v1092
  %v1166 = vpack.c.b16 %v1093, %v1093
  %v1167 = vpack.c.b16 %v1094, %v1094
  %v1168 = vpack.c.b16 %v1095, %v1095
  %v1169 = vpack.c.b16 %v1096, %v1096
  %v1170 = vpack.c.b16 %v1097, %v1097
  %v1171 = vpack.c.b16 %v1098, %v1098
  %vm1245 = vcmask 60416
  %1246 = vst.msk [vmem:[%s4] sm:$0xf] %vm1245, %v1099
  %1247 = vst.msk [vmem:[%s4 + $0x4] sm:$0xf] %vm1245, %v1100
  %1248 = vst.msk [vmem:[%s4 + $0x8] sm:$0xf] %vm1245, %v1101
  %1249 = vst.msk [vmem:[%s4 + $0xc] sm:$0xf] %vm1245, %v1102
  %1250 = vst.msk [vmem:[%s4 + $0x10] sm:$0xf] %vm1245, %v1103
  %1251 = vst.msk [vmem:[%s4 + $0x14] sm:$0xf] %vm1245, %v1104
  %1252 = vst.msk [vmem:[%s4 + $0x18] sm:$0xf] %vm1245, %v1105
  %1253 = vst.msk [vmem:[%s4 + $0x1c] sm:$0xf] %vm1245, %v1106
  %1254 = vst.msk [vmem:[%s4 + $0x20] sm:$0xf] %vm1245, %v1107
  %1255 = vst.msk [vmem:[%s4 + $0x24] sm:$0xf] %vm1245, %v1108
  %1256 = vst.msk [vmem:[%s4 + $0x28] sm:$0xf] %vm1245, %v1109
  %1257 = vst.msk [vmem:[%s4 + $0x2c] sm:$0xf] %vm1245, %v1110
  %1258 = vst.msk [vmem:[%s4 + $0x30] sm:$0xf] %vm1245, %v1111
  %1259 = vst.msk [vmem:[%s4 + $0x34] sm:$0xf] %vm1245, %v1112
  %1260 = vst.msk [vmem:[%s4 + $0x38] sm:$0xf] %vm1245, %v1113
  %1261 = vst.msk [vmem:[%s4 + $0x3c] sm:$0xf] %vm1245, %v1114
  %1262 = vst.msk [vmem:[%s4 + $0x40] sm:$0xf] %vm1245, %v1115
  %1263 = vst.msk [vmem:[%s4 + $0x44] sm:$0xf] %vm1245, %v1116
  %1264 = vst.msk [vmem:[%s4 + $0x48] sm:$0xf] %vm1245, %v1117
  %1265 = vst.msk [vmem:[%s4 + $0x4c] sm:$0xf] %vm1245, %v1118
  %1266 = vst.msk [vmem:[%s4 + $0x50] sm:$0xf] %vm1245, %v1119
  %1267 = vst.msk [vmem:[%s4 + $0x54] sm:$0xf] %vm1245, %v1120
  %1268 = vst.msk [vmem:[%s4 + $0x58] sm:$0xf] %vm1245, %v1121
  %1269 = vst.msk [vmem:[%s4 + $0x5c] sm:$0xf] %vm1245, %v1122
  %1270 = vst.msk [vmem:[%s4 + $0x60] sm:$0xf] %vm1245, %v1123
  %1271 = vst.msk [vmem:[%s4 + $0x64] sm:$0xf] %vm1245, %v1124
  %1272 = vst.msk [vmem:[%s4 + $0x68] sm:$0xf] %vm1245, %v1125
  %1273 = vst.msk [vmem:[%s4 + $0x6c] sm:$0xf] %vm1245, %v1126
  %1274 = vst.msk [vmem:[%s4 + $0x70] sm:$0xf] %vm1245, %v1127
  %1275 = vst.msk [vmem:[%s4 + $0x74] sm:$0xf] %vm1245, %v1128
  %1276 = vst.msk [vmem:[%s4 + $0x78] sm:$0xf] %vm1245, %v1129
  %1277 = vst.msk [vmem:[%s4 + $0x7c] sm:$0xf] %vm1245, %v1130
  %1278 = vst.msk [vmem:[%s4 + $0x80] sm:$0xf] %vm1245, %v1131
  %1279 = vst.msk [vmem:[%s4 + $0x84] sm:$0xf] %vm1245, %v1132
  %1280 = vst.msk [vmem:[%s4 + $0x88] sm:$0xf] %vm1245, %v1133
  %1281 = vst.msk [vmem:[%s4 + $0x8c] sm:$0xf] %vm1245, %v1134
  %1282 = vst.msk [vmem:[%s4 + $0x90] sm:$0xf] %vm1245, %v1135
  %1283 = vst.msk [vmem:[%s4 + $0x94] sm:$0xf] %vm1245, %v1136
  %1284 = vst.msk [vmem:[%s4 + $0x98] sm:$0xf] %vm1245, %v1137
  %1285 = vst.msk [vmem:[%s4 + $0x9c] sm:$0xf] %vm1245, %v1138
  %1286 = vst.msk [vmem:[%s4 + $0xa0] sm:$0xf] %vm1245, %v1139
  %1287 = vst.msk [vmem:[%s4 + $0xa4] sm:$0xf] %vm1245, %v1140
  %1288 = vst.msk [vmem:[%s4 + $0xa8] sm:$0xf] %vm1245, %v1141
  %1289 = vst.msk [vmem:[%s4 + $0xac] sm:$0xf] %vm1245, %v1142
  %1290 = vst.msk [vmem:[%s4 + $0xb0] sm:$0xf] %vm1245, %v1143
  %1291 = vst.msk [vmem:[%s4 + $0xb4] sm:$0xf] %vm1245, %v1144
  %1292 = vst.msk [vmem:[%s4 + $0xb8] sm:$0xf] %vm1245, %v1145
  %1293 = vst.msk [vmem:[%s4 + $0xbc] sm:$0xf] %vm1245, %v1146
  %1294 = vst.msk [vmem:[%s4 + $0xc0] sm:$0xf] %vm1245, %v1147
  %1295 = vst.msk [vmem:[%s4 + $0xc4] sm:$0xf] %vm1245, %v1148
  %1296 = vst.msk [vmem:[%s4 + $0xc8] sm:$0xf] %vm1245, %v1149
  %1297 = vst.msk [vmem:[%s4 + $0xcc] sm:$0xf] %vm1245, %v1150
  %1298 = vst.msk [vmem:[%s4 + $0xd0] sm:$0xf] %vm1245, %v1151
  %1299 = vst.msk [vmem:[%s4 + $0xd4] sm:$0xf] %vm1245, %v1152
  %1300 = vst.msk [vmem:[%s4 + $0xd8] sm:$0xf] %vm1245, %v1153
  %1301 = vst.msk [vmem:[%s4 + $0xdc] sm:$0xf] %vm1245, %v1154
  %1302 = vst.msk [vmem:[%s4 + $0xe0] sm:$0xf] %vm1245, %v1155
  %1303 = vst.msk [vmem:[%s4 + $0xe4] sm:$0xf] %vm1245, %v1156
  %1304 = vst.msk [vmem:[%s4 + $0xe8] sm:$0xf] %vm1245, %v1157
  %1305 = vst.msk [vmem:[%s4 + $0xec] sm:$0xf] %vm1245, %v1158
  %1306 = vst.msk [vmem:[%s4 + $0xf0] sm:$0xf] %vm1245, %v1159
  %1307 = vst.msk [vmem:[%s4 + $0xf4] sm:$0xf] %vm1245, %v1160
  %1308 = vst.msk [vmem:[%s4 + $0xf8] sm:$0xf] %vm1245, %v1161
  %1309 = vst.msk [vmem:[%s4 + $0xfc] sm:$0xf] %vm1245, %v1162
  %1310 = vst.msk [vmem:[%s4 + $0x100] sm:$0xf] %vm1245, %v1163
  %1311 = vst.msk [vmem:[%s4 + $0x104] sm:$0xf] %vm1245, %v1164
  %1312 = vst.msk [vmem:[%s4 + $0x108] sm:$0xf] %vm1245, %v1165
  %1313 = vst.msk [vmem:[%s4 + $0x10c] sm:$0xf] %vm1245, %v1166
  %1314 = vst.msk [vmem:[%s4 + $0x110] sm:$0xf] %vm1245, %v1167
  %1315 = vst.msk [vmem:[%s4 + $0x114] sm:$0xf] %vm1245, %v1168
  %1316 = vst.msk [vmem:[%s4 + $0x118] sm:$0xf] %vm1245, %v1169
  %1317 = vst.msk [vmem:[%s4 + $0x11c] sm:$0xf] %vm1245, %v1170
  %1318 = vst.msk [vmem:[%s4 + $0x120] sm:$0xf] %vm1245, %v1171
  // Predicated region
  $region18: #{tf_gridnet_forward.48} parent=0 // pred_check
    _
  $region19: #{tf_gridnet_forward.48} parent=0 // pred_check_branch
    %1320 = sbr.rel (0) target = $region21
  $region20: #{tf_gridnet_forward.48} parent=0 // pred_region
    _
  $region21: #{tf_gridnet_forward.48} parent=0 // pred_fallthru
    _
  // Predicated region
  $region22: #{tf_gridnet_forward.48} parent=0 // pred_check
    _
  $region23: #{tf_gridnet_forward.48} parent=0 // pred_check_branch
    %1322 = sbr.rel (0) target = $region25
  $region24: #{tf_gridnet_forward.48} parent=0 // pred_region
    _
  $region25: #{tf_gridnet_forward.48} parent=0 // pred_fallthru
    _

// kernel: reverse.7
$region0: #{reverse.7}
  %s0 = inlined_call_operand.vmem [shape: f32[2,17,15], index: 0, kind: input, shape index: {}]
  %s1 = inlined_call_operand.vmem [shape: f32[2,17,15], index: 1, kind: output, shape index: {}]
  %v2 = vlaneseq
  %v3 = vsub.s32 14, %v2
  %4 = vset.pattern.permute.xlu0 %v3
  $region1: #{reverse.7} parent=0
    #allocation0 [shape = 'u8[24576]{0}', space=vmem, size = 0x6000, scoped, tag = 'operand span for operand 0']
    #allocation1 [shape = 'u8[24576]{0}', space=vmem, size = 0x6000, scoped, tag = 'operand span for operand 1']
    // Predicated region
    $region2: #{reverse.7} parent=1 // pred_check
      _
    $region3: #{reverse.7} parent=1 // pred_check_branch
      %6 = sbr.rel (0) target = $region5
    $region4: #{reverse.7} parent=1 // pred_region
      // Predicated region
      $region6: #{reverse.7} parent=4 // pred_check
        _
      $region7: #{reverse.7} parent=4 // pred_check_branch
        %8 = sbr.rel (0) target = $region9
      $region8: #{reverse.7} parent=4 // pred_region
        // Predicated region
        $region21: #{reverse.7} parent=8 // pred_check
          _
        $region22: #{reverse.7} parent=8 // pred_check_branch
          %33 = sbr.rel (0) target = $region24
        $region23: #{reverse.7} parent=8 // pred_region
          loop: start=0, step=1, limit=1
          $region25: #{reverse.7} parent=23 // loop_pre_header
            _
          $region26: #{reverse.7} parent=23 // loop_header
            %s35 = sphi 0, %s39
            %p36 = scmp.ge.s32.totalorder %s35, 1
            %s40 = sphi %s0, %s0
            %s41 = sphi [#allocation0], [#allocation0]
          $region27: #{reverse.7} parent=23 // loop_header_branch
            %38 = sbr.rel (%p36) target = $region31
          $region28: #{reverse.7} parent=23 // loop_body
            %v42 = vld [vmem:[%s40] sm:$0xff]
            %43 = vst [vmem:[%s41] sm:$0xff] %v42
            %v44 = vld [vmem:[%s40 + $0x8] sm:$0xff]
            %45 = vst [vmem:[%s41 + $0x8] sm:$0xff] %v44
            %v46 = vld [vmem:[%s40 + $0x10] sm:$0xff]
            %47 = vst [vmem:[%s41 + $0x10] sm:$0xff] %v46
            %v48 = vld [vmem:[%s40 + $0x18] sm:$0xff]
            %49 = vst [vmem:[%s41 + $0x18] sm:$0xff] %v48
            %v50 = vld [vmem:[%s40 + $0x20] sm:$0xff]
            %51 = vst [vmem:[%s41 + $0x20] sm:$0xff] %v50
            %v52 = vld [vmem:[%s40 + $0x28] sm:$0xff]
            %53 = vst [vmem:[%s41 + $0x28] sm:$0xff] %v52
          $region29: #{reverse.7} parent=23 // loop_footer
            %s39 = sadd.s32 1, %s35
          $region30: #{reverse.7} parent=23 // loop_footer_branch
            %34 = sbr.rel target = $region26
          $region31: #{reverse.7} parent=23 // loop_exit
            _
        $region24: #{reverse.7} parent=8 // pred_fallthru
          _
        // Predicated region
        $region32: #{reverse.7} parent=8 // pred_check
          _
        $region33: #{reverse.7} parent=8 // pred_check_branch
          %55 = sbr.rel target = $region35
        $region34: #{reverse.7} parent=8 // pred_region
          _
        $region35: #{reverse.7} parent=8 // pred_fallthru
          _
      $region9: #{reverse.7} parent=4 // pred_fallthru
        _
      // Predicated region
      $region10: #{reverse.7} parent=4 // pred_check
        _
      $region11: #{reverse.7} parent=4 // pred_check_branch
        %10 = sbr.rel target = $region13
      $region12: #{reverse.7} parent=4 // pred_region
        loop: start=0, step=1, limit=1
        $region14: #{reverse.7} parent=12 // loop_pre_header
          _
        $region15: #{reverse.7} parent=12 // loop_header
          %s13 = sphi 0, %s17
          %p14 = scmp.ge.s32.totalorder %s13, 1
          %s18 = sphi %s0, %s0
          %s19 = sphi [#allocation0], [#allocation0]
        $region16: #{reverse.7} parent=12 // loop_header_branch
          %16 = sbr.rel (%p14) target = $region20
        $region17: #{reverse.7} parent=12 // loop_body
          %v20 = vld [vmem:[%s18] sm:$0xff]
          %21 = vst [vmem:[%s19] sm:$0xff] %v20
          %v22 = vld [vmem:[%s18 + $0x8] sm:$0xff]
          %23 = vst [vmem:[%s19 + $0x8] sm:$0xff] %v22
          %v24 = vld [vmem:[%s18 + $0x10] sm:$0xff]
          %25 = vst [vmem:[%s19 + $0x10] sm:$0xff] %v24
          %v26 = vld [vmem:[%s18 + $0x18] sm:$0xff]
          %27 = vst [vmem:[%s19 + $0x18] sm:$0xff] %v26
          %v28 = vld [vmem:[%s18 + $0x20] sm:$0xff]
          %29 = vst [vmem:[%s19 + $0x20] sm:$0xff] %v28
          %v30 = vld [vmem:[%s18 + $0x28] sm:$0xff]
          %31 = vst [vmem:[%s19 + $0x28] sm:$0xff] %v30
        $region18: #{reverse.7} parent=12 // loop_footer
          %s17 = sadd.s32 1, %s13
        $region19: #{reverse.7} parent=12 // loop_footer_branch
          %12 = sbr.rel target = $region15
        $region20: #{reverse.7} parent=12 // loop_exit
          _
      $region13: #{reverse.7} parent=4 // pred_fallthru
        _
    $region5: #{reverse.7} parent=1 // pred_fallthru
      _
    %56 = vnop
    %v57 = vld [vmem:[#allocation0] sm:$0xff]
    %58 = vperm.xlu0 %4, %v57
    %v59 = vpop.permute.xlu0 %58
    %60 = vst [vmem:[#allocation1] sm:$0xff] %v59
    %s61 = scalar_lea.vmem [#allocation1], 8
    %s62 = scalar_lea.vmem [#allocation0], 8
    %v63 = vld [vmem:[%s62] sm:$0xff]
    %64 = vperm.xlu0 %4, %v63
    %v65 = vpop.permute.xlu0 %64
    %66 = vst [vmem:[%s61] sm:$0xff] %v65
    %s67 = scalar_lea.vmem [#allocation1], 16
    %s68 = scalar_lea.vmem [#allocation0], 16
    %v69 = vld [vmem:[%s68] sm:$0xff]
    %70 = vperm.xlu0 %4, %v69
    %v71 = vpop.permute.xlu0 %70
    %72 = vst [vmem:[%s67] sm:$0xff] %v71
    %s73 = scalar_lea.vmem [#allocation1], 24
    %s74 = scalar_lea.vmem [#allocation0], 24
    %v75 = vld [vmem:[%s74] sm:$0xff]
    %76 = vperm.xlu0 %4, %v75
    %v77 = vpop.permute.xlu0 %76
    %78 = vst [vmem:[%s73] sm:$0xff] %v77
    %s79 = scalar_lea.vmem %s73, 8 [#allocation1]
    %s80 = scalar_lea.vmem %s74, 8 [#allocation0]
    %v81 = vld [vmem:[%s80] sm:$0xff]
    %82 = vperm.xlu0 %4, %v81
    %v83 = vpop.permute.xlu0 %82
    %84 = vst [vmem:[%s79] sm:$0xff] %v83
    %s85 = scalar_lea.vmem %s73, 16 [#allocation1]
    %s86 = scalar_lea.vmem %s74, 16 [#allocation0]
    %v87 = vld [vmem:[%s86] sm:$0xff]
    %88 = vperm.xlu0 %4, %v87
    %v89 = vpop.permute.xlu0 %88
    %90 = vst [vmem:[%s85] sm:$0xff] %v89
    // Predicated region
    $region36: #{reverse.7} parent=1 // pred_check
      _
    $region37: #{reverse.7} parent=1 // pred_check_branch
      %92 = sbr.rel (0) target = $region39
    $region38: #{reverse.7} parent=1 // pred_region
      // Predicated region
      $region40: #{reverse.7} parent=38 // pred_check
        _
      $region41: #{reverse.7} parent=38 // pred_check_branch
        %94 = sbr.rel (0) target = $region43
      $region42: #{reverse.7} parent=38 // pred_region
        // Predicated region
        $region55: #{reverse.7} parent=42 // pred_check
          _
        $region56: #{reverse.7} parent=42 // pred_check_branch
          %119 = sbr.rel (0) target = $region58
        $region57: #{reverse.7} parent=42 // pred_region
          loop: start=0, step=1, limit=1
          $region59: #{reverse.7} parent=57 // loop_pre_header
            _
          $region60: #{reverse.7} parent=57 // loop_header
            %s121 = sphi 0, %s125
            %p122 = scmp.ge.s32.totalorder %s121, 1
            %s126 = sphi [#allocation1], [#allocation1]
            %s127 = sphi %s1, %s1
          $region61: #{reverse.7} parent=57 // loop_header_branch
            %124 = sbr.rel (%p122) target = $region65
          $region62: #{reverse.7} parent=57 // loop_body
            %v128 = vld [vmem:[%s126] sm:$0xff]
            %129 = vst [vmem:[%s127] sm:$0xff] %v128
            %v130 = vld [vmem:[%s126 + $0x8] sm:$0xff]
            %131 = vst [vmem:[%s127 + $0x8] sm:$0xff] %v130
            %v132 = vld [vmem:[%s126 + $0x10] sm:$0xff]
            %133 = vst [vmem:[%s127 + $0x10] sm:$0xff] %v132
            %v134 = vld [vmem:[%s126 + $0x18] sm:$0xff]
            %135 = vst [vmem:[%s127 + $0x18] sm:$0xff] %v134
            %v136 = vld [vmem:[%s126 + $0x20] sm:$0xff]
            %137 = vst [vmem:[%s127 + $0x20] sm:$0xff] %v136
            %v138 = vld [vmem:[%s126 + $0x28] sm:$0xff]
            %139 = vst [vmem:[%s127 + $0x28] sm:$0xff] %v138
          $region63: #{reverse.7} parent=57 // loop_footer
            %s125 = sadd.s32 1, %s121
          $region64: #{reverse.7} parent=57 // loop_footer_branch
            %120 = sbr.rel target = $region60
          $region65: #{reverse.7} parent=57 // loop_exit
            _
        $region58: #{reverse.7} parent=42 // pred_fallthru
          _
        // Predicated region
        $region66: #{reverse.7} parent=42 // pred_check
          _
        $region67: #{reverse.7} parent=42 // pred_check_branch
          %141 = sbr.rel target = $region69
        $region68: #{reverse.7} parent=42 // pred_region
          _
        $region69: #{reverse.7} parent=42 // pred_fallthru
          _
      $region43: #{reverse.7} parent=38 // pred_fallthru
        _
      // Predicated region
      $region44: #{reverse.7} parent=38 // pred_check
        _
      $region45: #{reverse.7} parent=38 // pred_check_branch
        %96 = sbr.rel target = $region47
      $region46: #{reverse.7} parent=38 // pred_region
        loop: start=0, step=1, limit=1
        $region48: #{reverse.7} parent=46 // loop_pre_header
          _
        $region49: #{reverse.7} parent=46 // loop_header
          %s99 = sphi 0, %s103
          %p100 = scmp.ge.s32.totalorder %s99, 1
          %s104 = sphi [#allocation1], [#allocation1]
          %s105 = sphi %s1, %s1
        $region50: #{reverse.7} parent=46 // loop_header_branch
          %102 = sbr.rel (%p100) target = $region54
        $region51: #{reverse.7} parent=46 // loop_body
          %v106 = vld [vmem:[%s104] sm:$0xff]
          %107 = vst [vmem:[%s105] sm:$0xff] %v106
          %v108 = vld [vmem:[%s104 + $0x8] sm:$0xff]
          %109 = vst [vmem:[%s105 + $0x8] sm:$0xff] %v108
          %v110 = vld [vmem:[%s104 + $0x10] sm:$0xff]
          %111 = vst [vmem:[%s105 + $0x10] sm:$0xff] %v110
          %v112 = vld [vmem:[%s104 + $0x18] sm:$0xff]
          %113 = vst [vmem:[%s105 + $0x18] sm:$0xff] %v112
          %v114 = vld [vmem:[%s104 + $0x20] sm:$0xff]
          %115 = vst [vmem:[%s105 + $0x20] sm:$0xff] %v114
          %v116 = vld [vmem:[%s104 + $0x28] sm:$0xff]
          %117 = vst [vmem:[%s105 + $0x28] sm:$0xff] %v116
        $region52: #{reverse.7} parent=46 // loop_footer
          %s103 = sadd.s32 1, %s99
        $region53: #{reverse.7} parent=46 // loop_footer_branch
          %98 = sbr.rel target = $region49
        $region54: #{reverse.7} parent=46 // loop_exit
          _
      $region47: #{reverse.7} parent=38 // pred_fallthru
        _
    $region39: #{reverse.7} parent=1 // pred_fallthru
      _
    %142 = vnop

// kernel: tf_gridnet_forward.65
$region0: #{tf_gridnet_forward.65}
  #allocation0 [shape = 'u32[]', space=smem, size = 0x4, offset = 0x4, fixed_abs, tag = 'smem constant byte address 0x4 - core index']
  #allocation1 [shape = 'u32[144,128]{1,0:T(1,128)}', space=vmem, size = 0x12000, scoped, tag = 'internal scratch']
  %s0 = inlined_call_operand.vmem [shape: bf16[584,72], index: 0, kind: input, shape index: {}]
  %s1 = inlined_call_operand.vmem [shape: bf16[72,4], index: 1, kind: input, shape index: {}]
  %s2 = inlined_call_operand.vmem [shape: f32[1,4], index: 2, kind: input, shape index: {}]
  %s3 = inlined_call_operand.vmem [shape: f32[1,4], index: 3, kind: input, shape index: {}]
  %s4 = inlined_call_operand.vmem [shape: f32[584,4], index: 4, kind: output, shape index: {}]
  %s5 = sld [smem:[#allocation0]]
  $region26: #{tf_gridnet_forward.65} parent=0
    _
  %s7 = ssub.s32 1, %s5
  %s8 = scalar_select 0, %s7, %s5
  // Predicated region
  $region2: #{tf_gridnet_forward.65} parent=0 // pred_check
    _
  $region3: #{tf_gridnet_forward.65} parent=0 // pred_check_branch
    %10 = sbr.rel (0) target = $region5
  $region4: #{tf_gridnet_forward.65} parent=0 // pred_region
    _
  $region5: #{tf_gridnet_forward.65} parent=0 // pred_fallthru
    _
  // Predicated region
  $region6: #{tf_gridnet_forward.65} parent=0 // pred_check
    _
  $region7: #{tf_gridnet_forward.65} parent=0 // pred_check_branch
    %12 = sbr.rel (0) target = $region9
  $region8: #{tf_gridnet_forward.65} parent=0 // pred_region
    _
  $region9: #{tf_gridnet_forward.65} parent=0 // pred_fallthru
    _
  // Predicated region
  $region10: #{tf_gridnet_forward.65} parent=0 // pred_check
    _
  $region11: #{tf_gridnet_forward.65} parent=0 // pred_check_branch
    %14 = sbr.rel (0) target = $region13
  $region12: #{tf_gridnet_forward.65} parent=0 // pred_region
    _
  $region13: #{tf_gridnet_forward.65} parent=0 // pred_fallthru
    _
  // Predicated region
  $region14: #{tf_gridnet_forward.65} parent=0 // pred_check
    _
  $region15: #{tf_gridnet_forward.65} parent=0 // pred_check_branch
    %16 = sbr.rel (0) target = $region17
  $region16: #{tf_gridnet_forward.65} parent=0 // pred_region
    _
  $region17: #{tf_gridnet_forward.65} parent=0 // pred_fallthru
    _
  %v18 = vld [vmem:[%s0] sm:$0xf]
  %v19 = vld [vmem:[%s0 + $0x4] sm:$0xf]
  %v20 = vld [vmem:[%s0 + $0x8] sm:$0xf]
  %v21 = vld [vmem:[%s0 + $0xc] sm:$0xf]
  %v22 = vld [vmem:[%s0 + $0x10] sm:$0xf]
  %v23 = vld [vmem:[%s0 + $0x14] sm:$0xf]
  %v24 = vld [vmem:[%s0 + $0x18] sm:$0xf]
  %v25 = vld [vmem:[%s0 + $0x1c] sm:$0xf]
  %v26 = vld [vmem:[%s0 + $0x20] sm:$0xf]
  %v27 = vld [vmem:[%s0 + $0x24] sm:$0xf]
  %v28 = vld [vmem:[%s0 + $0x28] sm:$0xf]
  %v29 = vld [vmem:[%s0 + $0x2c] sm:$0xf]
  %v30 = vld [vmem:[%s0 + $0x30] sm:$0xf]
  %v31 = vld [vmem:[%s0 + $0x34] sm:$0xf]
  %v32 = vld [vmem:[%s0 + $0x38] sm:$0xf]
  %v33 = vld [vmem:[%s0 + $0x3c] sm:$0xf]
  %v34 = vld [vmem:[%s0 + $0x40] sm:$0xf]
  %v35 = vld [vmem:[%s0 + $0x44] sm:$0xf]
  %v36 = vld [vmem:[%s0 + $0x48] sm:$0xf]
  %v37 = vld [vmem:[%s0 + $0x4c] sm:$0xf]
  %v38 = vld [vmem:[%s0 + $0x50] sm:$0xf]
  %v39 = vld [vmem:[%s0 + $0x54] sm:$0xf]
  %v40 = vld [vmem:[%s0 + $0x58] sm:$0xf]
  %v41 = vld [vmem:[%s0 + $0x5c] sm:$0xf]
  %v42 = vld [vmem:[%s0 + $0x60] sm:$0xf]
  %v43 = vld [vmem:[%s0 + $0x64] sm:$0xf]
  %v44 = vld [vmem:[%s0 + $0x68] sm:$0xf]
  %v45 = vld [vmem:[%s0 + $0x6c] sm:$0xf]
  %v46 = vld [vmem:[%s0 + $0x70] sm:$0xf]
  %v47 = vld [vmem:[%s0 + $0x74] sm:$0xf]
  %v48 = vld [vmem:[%s0 + $0x78] sm:$0xf]
  %v49 = vld [vmem:[%s0 + $0x7c] sm:$0xf]
  %v50 = vld [vmem:[%s0 + $0x80] sm:$0xf]
  %v51 = vld [vmem:[%s0 + $0x84] sm:$0xf]
  %v52 = vld [vmem:[%s0 + $0x88] sm:$0xf]
  %v53 = vld [vmem:[%s0 + $0x8c] sm:$0xf]
  %v54 = vld [vmem:[%s0 + $0x90] sm:$0xf]
  %v55 = vld [vmem:[%s0 + $0x94] sm:$0xf]
  %v56 = vld [vmem:[%s0 + $0x98] sm:$0xf]
  %v57 = vld [vmem:[%s0 + $0x9c] sm:$0xf]
  %v58 = vld [vmem:[%s0 + $0xa0] sm:$0xf]
  %v59 = vld [vmem:[%s0 + $0xa4] sm:$0xf]
  %v60 = vld [vmem:[%s0 + $0xa8] sm:$0xf]
  %v61 = vld [vmem:[%s0 + $0xac] sm:$0xf]
  %v62 = vld [vmem:[%s0 + $0xb0] sm:$0xf]
  %v63 = vld [vmem:[%s0 + $0xb4] sm:$0xf]
  %v64 = vld [vmem:[%s0 + $0xb8] sm:$0xf]
  %v65 = vld [vmem:[%s0 + $0xbc] sm:$0xf]
  %v66 = vld [vmem:[%s0 + $0xc0] sm:$0xf]
  %v67 = vld [vmem:[%s0 + $0xc4] sm:$0xf]
  %v68 = vld [vmem:[%s0 + $0xc8] sm:$0xf]
  %v69 = vld [vmem:[%s0 + $0xcc] sm:$0xf]
  %v70 = vld [vmem:[%s0 + $0xd0] sm:$0xf]
  %v71 = vld [vmem:[%s0 + $0xd4] sm:$0xf]
  %v72 = vld [vmem:[%s0 + $0xd8] sm:$0xf]
  %v73 = vld [vmem:[%s0 + $0xdc] sm:$0xf]
  %v74 = vld [vmem:[%s0 + $0xe0] sm:$0xf]
  %v75 = vld [vmem:[%s0 + $0xe4] sm:$0xf]
  %v76 = vld [vmem:[%s0 + $0xe8] sm:$0xf]
  %v77 = vld [vmem:[%s0 + $0xec] sm:$0xf]
  %v78 = vld [vmem:[%s0 + $0xf0] sm:$0xf]
  %v79 = vld [vmem:[%s0 + $0xf4] sm:$0xf]
  %v80 = vld [vmem:[%s0 + $0xf8] sm:$0xf]
  %v81 = vld [vmem:[%s0 + $0xfc] sm:$0xf]
  %v82 = vld [vmem:[%s0 + $0x100] sm:$0xf]
  %v83 = vld [vmem:[%s0 + $0x104] sm:$0xf]
  %v84 = vld [vmem:[%s0 + $0x108] sm:$0xf]
  %v85 = vld [vmem:[%s0 + $0x10c] sm:$0xf]
  %v86 = vld [vmem:[%s0 + $0x110] sm:$0xf]
  %v87 = vld [vmem:[%s0 + $0x114] sm:$0xf]
  %v88 = vld [vmem:[%s0 + $0x118] sm:$0xf]
  %v89 = vld [vmem:[%s0 + $0x11c] sm:$0xf]
  %v90 = vld [vmem:[%s0 + $0x120] sm:$0xf]
  %v91 = vld [vmem:[%s1] sm:$0xf]
  %v92 = vld [vmem:[%s1 + $0x4] sm:$0xf]
  %v93 = vld [vmem:[%s1 + $0x8] sm:$0xf]
  %v94 = vld [vmem:[%s1 + $0xc] sm:$0xf]
  %v95 = vld [vmem:[%s1 + $0x10] sm:$0xf]
  %v96 = vld [vmem:[%s1 + $0x14] sm:$0xf]
  %v97 = vld [vmem:[%s1 + $0x18] sm:$0xf]
  %v98 = vld [vmem:[%s1 + $0x1c] sm:$0xf]
  %v99 = vld [vmem:[%s1 + $0x20] sm:$0xf]
  %v100 = vld [vmem:[%s2] sm:$0x1]
  %v102 = vlaneseq
  %v103 = vshrl.u32 %v102, 7
  %v104 = vsub.s32 0, %v103
  %v105 = vrot.slane %v100, %v104
  %v180 = vunpack.c.l.b16 %v18
  %v181 = vunpack.c.l.b16 %v19
  %v182 = vunpack.c.l.b16 %v20
  %v183 = vunpack.c.l.b16 %v21
  %v184 = vunpack.c.l.b16 %v22
  %v185 = vunpack.c.l.b16 %v23
  %v186 = vunpack.c.l.b16 %v24
  %v187 = vunpack.c.l.b16 %v25
  %v188 = vunpack.c.l.b16 %v26
  %v189 = vunpack.c.l.b16 %v27
  %v190 = vunpack.c.l.b16 %v28
  %v191 = vunpack.c.l.b16 %v29
  %v192 = vunpack.c.l.b16 %v30
  %v193 = vunpack.c.l.b16 %v31
  %v194 = vunpack.c.l.b16 %v32
  %v195 = vunpack.c.l.b16 %v33
  %v196 = vunpack.c.l.b16 %v34
  %v197 = vunpack.c.l.b16 %v35
  %v198 = vunpack.c.l.b16 %v36
  %v199 = vunpack.c.l.b16 %v37
  %v200 = vunpack.c.l.b16 %v38
  %v201 = vunpack.c.l.b16 %v39
  %v202 = vunpack.c.l.b16 %v40
  %v203 = vunpack.c.l.b16 %v41
  %v204 = vunpack.c.l.b16 %v42
  %v205 = vunpack.c.l.b16 %v43
  %v206 = vunpack.c.l.b16 %v44
  %v207 = vunpack.c.l.b16 %v45
  %v208 = vunpack.c.l.b16 %v46
  %v209 = vunpack.c.l.b16 %v47
  %v210 = vunpack.c.l.b16 %v48
  %v211 = vunpack.c.l.b16 %v49
  %v212 = vunpack.c.l.b16 %v50
  %v213 = vunpack.c.l.b16 %v51
  %v214 = vunpack.c.l.b16 %v52
  %v215 = vunpack.c.l.b16 %v53
  %v216 = vunpack.c.l.b16 %v54
  %v217 = vunpack.c.l.b16 %v55
  %v218 = vunpack.c.l.b16 %v56
  %v219 = vunpack.c.l.b16 %v57
  %v220 = vunpack.c.l.b16 %v58
  %v221 = vunpack.c.l.b16 %v59
  %v222 = vunpack.c.l.b16 %v60
  %v223 = vunpack.c.l.b16 %v61
  %v224 = vunpack.c.l.b16 %v62
  %v225 = vunpack.c.l.b16 %v63
  %v226 = vunpack.c.l.b16 %v64
  %v227 = vunpack.c.l.b16 %v65
  %v228 = vunpack.c.l.b16 %v66
  %v229 = vunpack.c.l.b16 %v67
  %v230 = vunpack.c.l.b16 %v68
  %v231 = vunpack.c.l.b16 %v69
  %v232 = vunpack.c.l.b16 %v70
  %v233 = vunpack.c.l.b16 %v71
  %v234 = vunpack.c.l.b16 %v72
  %v235 = vunpack.c.l.b16 %v73
  %v236 = vunpack.c.l.b16 %v74
  %v237 = vunpack.c.l.b16 %v75
  %v238 = vunpack.c.l.b16 %v76
  %v239 = vunpack.c.l.b16 %v77
  %v240 = vunpack.c.l.b16 %v78
  %v241 = vunpack.c.l.b16 %v79
  %v242 = vunpack.c.l.b16 %v80
  %v243 = vunpack.c.l.b16 %v81
  %v244 = vunpack.c.l.b16 %v82
  %v245 = vunpack.c.l.b16 %v83
  %v246 = vunpack.c.l.b16 %v84
  %v247 = vunpack.c.l.b16 %v85
  %v248 = vunpack.c.l.b16 %v86
  %v249 = vunpack.c.l.b16 %v87
  %v250 = vunpack.c.l.b16 %v88
  %v251 = vunpack.c.l.b16 %v89
  %v252 = vunpack.c.l.b16 %v90
  %v253 = vpack.c.b16 %v181, %v180
  %v254 = vpack.c.b16 %v183, %v182
  %v255 = vpack.c.b16 %v185, %v184
  %v256 = vpack.c.b16 %v187, %v186
  %v257 = vpack.c.b16 %v189, %v188
  %v258 = vpack.c.b16 %v191, %v190
  %v259 = vpack.c.b16 %v193, %v192
  %v260 = vpack.c.b16 %v195, %v194
  %v261 = vpack.c.b16 %v197, %v196
  %v262 = vpack.c.b16 %v199, %v198
  %v263 = vpack.c.b16 %v201, %v200
  %v264 = vpack.c.b16 %v203, %v202
  %v265 = vpack.c.b16 %v205, %v204
  %v266 = vpack.c.b16 %v207, %v206
  %v267 = vpack.c.b16 %v209, %v208
  %v268 = vpack.c.b16 %v211, %v210
  %v269 = vpack.c.b16 %v213, %v212
  %v270 = vpack.c.b16 %v215, %v214
  %v271 = vpack.c.b16 %v217, %v216
  %v272 = vpack.c.b16 %v219, %v218
  %v273 = vpack.c.b16 %v221, %v220
  %v274 = vpack.c.b16 %v223, %v222
  %v275 = vpack.c.b16 %v225, %v224
  %v276 = vpack.c.b16 %v227, %v226
  %v277 = vpack.c.b16 %v229, %v228
  %v278 = vpack.c.b16 %v231, %v230
  %v279 = vpack.c.b16 %v233, %v232
  %v280 = vpack.c.b16 %v235, %v234
  %v281 = vpack.c.b16 %v237, %v236
  %v282 = vpack.c.b16 %v239, %v238
  %v283 = vpack.c.b16 %v241, %v240
  %v284 = vpack.c.b16 %v243, %v242
  %v285 = vpack.c.b16 %v245, %v244
  %v286 = vpack.c.b16 %v247, %v246
  %v287 = vpack.c.b16 %v249, %v248
  %v288 = vpack.c.b16 %v251, %v250
  %v289 = vpack.c.b16 %v252, %v252
  %v299 = vunpack.c.l.b16 %v91
  %v300 = vunpack.c.l.b16 %v92
  %v301 = vunpack.c.l.b16 %v93
  %v302 = vunpack.c.l.b16 %v94
  %v303 = vunpack.c.l.b16 %v95
  %v304 = vunpack.c.l.b16 %v96
  %v305 = vunpack.c.l.b16 %v97
  %v306 = vunpack.c.l.b16 %v98
  %v307 = vunpack.c.l.b16 %v99
  %v308 = vpack.c.b16 %v300, %v299
  %v309 = vpack.c.b16 %v302, %v301
  %v310 = vpack.c.b16 %v304, %v303
  %v311 = vpack.c.b16 %v306, %v305
  %v312 = vpack.c.b16 %v307, %v307
  %vm317 = vcmask 588800
  %v319 = vsel %vm317, %v253, 0
  %v322 = vsel %vm317, %v254, 0
  %v325 = vsel %vm317, %v255, 0
  %v328 = vsel %vm317, %v256, 0
  %v331 = vsel %vm317, %v257, 0
  %v334 = vsel %vm317, %v258, 0
  %v337 = vsel %vm317, %v259, 0
  %v340 = vsel %vm317, %v260, 0
  %v343 = vsel %vm317, %v261, 0
  %v346 = vsel %vm317, %v262, 0
  %v349 = vsel %vm317, %v263, 0
  %v352 = vsel %vm317, %v264, 0
  %v355 = vsel %vm317, %v265, 0
  %v358 = vsel %vm317, %v266, 0
  %v361 = vsel %vm317, %v267, 0
  %v364 = vsel %vm317, %v268, 0
  %v367 = vsel %vm317, %v269, 0
  %v370 = vsel %vm317, %v270, 0
  %v373 = vsel %vm317, %v271, 0
  %v376 = vsel %vm317, %v272, 0
  %v379 = vsel %vm317, %v273, 0
  %v382 = vsel %vm317, %v274, 0
  %v385 = vsel %vm317, %v275, 0
  %v388 = vsel %vm317, %v276, 0
  %v391 = vsel %vm317, %v277, 0
  %v394 = vsel %vm317, %v278, 0
  %v397 = vsel %vm317, %v279, 0
  %v400 = vsel %vm317, %v280, 0
  %v403 = vsel %vm317, %v281, 0
  %v406 = vsel %vm317, %v282, 0
  %v409 = vsel %vm317, %v283, 0
  %v412 = vsel %vm317, %v284, 0
  %v415 = vsel %vm317, %v285, 0
  %v418 = vsel %vm317, %v286, 0
  %v421 = vsel %vm317, %v287, 0
  %v424 = vsel %vm317, %v288, 0
  %v427 = vsel %vm317, %v289, 0
  %vm429 = vcmask 1043456
  %v431 = vsel %vm429, %v312, 0
  %433 = vmatprep.subr.bf16.mxu0 0
  %434 = vmatpush1.bf16.msra.mxu0 %v308
  %435 = vmatprep.subr.bf16.mxu0 0
  %436 = vmatpush1.bf16.msra.mxu0 %v309
  %437 = vmatprep.subr.bf16.mxu0 0
  %438 = vmatpush1.bf16.msra.mxu0 %v310
  %439 = vmatprep.subr.bf16.mxu0 0
  %440 = vmatpush1.bf16.msra.mxu0 %v311
  %441 = vmatprep.subr.bf16.mxu0 0
  %442 = vmatpush1.bf16.msra.mxu0 %v431
  %443 = vmatprep.subr.bf16.mxu0 0
  %444 = vmatpush1.bf16.msra.mxu0 0
  %445 = vmatprep.subr.bf16.mxu0 0
  %446 = vmatpush1.bf16.msra.mxu0 0
  %447 = vmatprep.subr.bf16.mxu0 0
  %448 = vmatpush1.bf16.msra.mxu0 0
  %449 = vmatprep.subr.bf16.mxu0 0
  %450 = vmatpush1.bf16.msra.mxu0 0
  %451 = vmatprep.subr.bf16.mxu0 0
  %452 = vmatpush1.bf16.msra.mxu0 0
  %453 = vmatprep.subr.bf16.mxu0 0
  %454 = vmatpush1.bf16.msra.mxu0 0
  %455 = vmatprep.subr.bf16.mxu0 0
  %456 = vmatpush1.bf16.msra.mxu0 0
  %457 = vmatprep.subr.bf16.mxu0 0
  %458 = vmatpush1.bf16.msra.mxu0 0
  %459 = vmatprep.subr.bf16.mxu0 0
  %460 = vmatpush1.bf16.msra.mxu0 0
  %461 = vmatprep.subr.bf16.mxu0 0
  %462 = vmatpush1.bf16.msra.mxu0 0
  %463 = vmatprep.subr.bf16.mxu0 0
  %464 = vmatpush1.bf16.msra.mxu0 0
  %465 = vmatprep.mubr.bf16.mxu0 0
  %466 = vmatmul.mubr.bf16.gmra.mrb[0].mxu0 %v319
  %v467 = vpop.f32.mrb[0].mxu0
  %v468 = vadd.f32 %v105, %v467
  %v469 = vpop.f32.mrb[0].mxu0
  %v470 = vpop.f32.mrb[0].mxu0
  %v471 = vadd.f32 %v105, %v470
  %v472 = vpop.f32.mrb[0].mxu0
  %473 = vmatprep.mubr.bf16.mxu0 0
  %474 = vmatmul.mubr.bf16.gmra.mrb[0].mxu0 %v322
  %v475 = vpop.f32.mrb[0].mxu0
  %v476 = vadd.f32 %v105, %v475
  %v477 = vpop.f32.mrb[0].mxu0
  %v478 = vpop.f32.mrb[0].mxu0
  %v479 = vadd.f32 %v105, %v478
  %v480 = vpop.f32.mrb[0].mxu0
  %481 = vmatprep.mubr.bf16.mxu0 0
  %482 = vmatmul.mubr.bf16.gmra.mrb[0].mxu0 %v325
  %v483 = vpop.f32.mrb[0].mxu0
  %v484 = vadd.f32 %v105, %v483
  %v485 = vpop.f32.mrb[0].mxu0
  %v486 = vpop.f32.mrb[0].mxu0
  %v487 = vadd.f32 %v105, %v486
  %v488 = vpop.f32.mrb[0].mxu0
  %489 = vmatprep.mubr.bf16.mxu0 0
  %490 = vmatmul.mubr.bf16.gmra.mrb[0].mxu0 %v328
  %v491 = vpop.f32.mrb[0].mxu0
  %v492 = vadd.f32 %v105, %v491
  %v493 = vpop.f32.mrb[0].mxu0
  %v494 = vpop.f32.mrb[0].mxu0
  %v495 = vadd.f32 %v105, %v494
  %v496 = vpop.f32.mrb[0].mxu0
  %497 = vmatprep.mubr.bf16.mxu0 0
  %498 = vmatmul.mubr.bf16.gmra.mrb[0].mxu0 %v331
  %v499 = vpop.f32.mrb[0].mxu0
  %v500 = vadd.f32 %v105, %v499
  %v501 = vpop.f32.mrb[0].mxu0
  %v502 = vpop.f32.mrb[0].mxu0
  %v503 = vadd.f32 %v105, %v502
  %v504 = vpop.f32.mrb[0].mxu0
  %505 = vmatprep.mubr.bf16.mxu0 0
  %506 = vmatmul.mubr.bf16.gmra.mrb[0].mxu0 %v334
  %v507 = vpop.f32.mrb[0].mxu0
  %v508 = vadd.f32 %v105, %v507
  %v509 = vpop.f32.mrb[0].mxu0
  %v510 = vpop.f32.mrb[0].mxu0
  %v511 = vadd.f32 %v105, %v510
  %v512 = vpop.f32.mrb[0].mxu0
  %513 = vmatprep.mubr.bf16.mxu0 0
  %514 = vmatmul.mubr.bf16.gmra.mrb[0].mxu0 %v337
  %v515 = vpop.f32.mrb[0].mxu0
  %v516 = vadd.f32 %v105, %v515
  %v517 = vpop.f32.mrb[0].mxu0
  %v518 = vpop.f32.mrb[0].mxu0
  %v519 = vadd.f32 %v105, %v518
  %v520 = vpop.f32.mrb[0].mxu0
  %521 = vmatprep.mubr.bf16.mxu0 0
  %522 = vmatmul.mubr.bf16.gmra.mrb[0].mxu0 %v340
  %v523 = vpop.f32.mrb[0].mxu0
  %v524 = vadd.f32 %v105, %v523
  %v525 = vpop.f32.mrb[0].mxu0
  %v526 = vpop.f32.mrb[0].mxu0
  %v527 = vadd.f32 %v105, %v526
  %v528 = vpop.f32.mrb[0].mxu0
  %529 = vmatprep.mubr.bf16.mxu0 0
  %530 = vmatmul.mubr.bf16.gmra.mrb[0].mxu0 %v343
  %v531 = vpop.f32.mrb[0].mxu0
  %v532 = vadd.f32 %v105, %v531
  %v533 = vpop.f32.mrb[0].mxu0
  %v534 = vpop.f32.mrb[0].mxu0
  %v535 = vadd.f32 %v105, %v534
  %v536 = vpop.f32.mrb[0].mxu0
  %537 = vmatprep.mubr.bf16.mxu0 0
  %538 = vmatmul.mubr.bf16.gmra.mrb[0].mxu0 %v346
  %v539 = vpop.f32.mrb[0].mxu0
  %v540 = vadd.f32 %v105, %v539
  %v541 = vpop.f32.mrb[0].mxu0
  %v542 = vpop.f32.mrb[0].mxu0
  %v543 = vadd.f32 %v105, %v542
  %v544 = vpop.f32.mrb[0].mxu0
  %545 = vmatprep.mubr.bf16.mxu0 0
  %546 = vmatmul.mubr.bf16.gmra.mrb[0].mxu0 %v349
  %v547 = vpop.f32.mrb[0].mxu0
  %v548 = vadd.f32 %v105, %v547
  %v549 = vpop.f32.mrb[0].mxu0
  %v550 = vpop.f32.mrb[0].mxu0
  %v551 = vadd.f32 %v105, %v550
  %v552 = vpop.f32.mrb[0].mxu0
  %553 = vmatprep.mubr.bf16.mxu0 0
  %554 = vmatmul.mubr.bf16.gmra.mrb[0].mxu0 %v352
  %v555 = vpop.f32.mrb[0].mxu0
  %v556 = vadd.f32 %v105, %v555
  %v557 = vpop.f32.mrb[0].mxu0
  %v558 = vpop.f32.mrb[0].mxu0
  %v559 = vadd.f32 %v105, %v558
  %v560 = vpop.f32.mrb[0].mxu0
  %561 = vmatprep.mubr.bf16.mxu0 0
  %562 = vmatmul.mubr.bf16.gmra.mrb[0].mxu0 %v355
  %v563 = vpop.f32.mrb[0].mxu0
  %v564 = vadd.f32 %v105, %v563
  %v565 = vpop.f32.mrb[0].mxu0
  %v566 = vpop.f32.mrb[0].mxu0
  %v567 = vadd.f32 %v105, %v566
  %v568 = vpop.f32.mrb[0].mxu0
  %569 = vmatprep.mubr.bf16.mxu0 0
  %570 = vmatmul.mubr.bf16.gmra.mrb[0].mxu0 %v358
  %v571 = vpop.f32.mrb[0].mxu0
  %v572 = vadd.f32 %v105, %v571
  %v573 = vpop.f32.mrb[0].mxu0
  %v574 = vpop.f32.mrb[0].mxu0
  %v575 = vadd.f32 %v105, %v574
  %v576 = vpop.f32.mrb[0].mxu0
  %577 = vmatprep.mubr.bf16.mxu0 0
  %578 = vmatmul.mubr.bf16.gmra.mrb[0].mxu0 %v361
  %v579 = vpop.f32.mrb[0].mxu0
  %v580 = vadd.f32 %v105, %v579
  %v581 = vpop.f32.mrb[0].mxu0
  %v582 = vpop.f32.mrb[0].mxu0
  %v583 = vadd.f32 %v105, %v582
  %v584 = vpop.f32.mrb[0].mxu0
  %585 = vmatprep.mubr.bf16.mxu0 0
  %586 = vmatmul.mubr.bf16.gmra.mrb[0].mxu0 %v364
  %v587 = vpop.f32.mrb[0].mxu0
  %v588 = vadd.f32 %v105, %v587
  %v589 = vpop.f32.mrb[0].mxu0
  %v590 = vpop.f32.mrb[0].mxu0
  %v591 = vadd.f32 %v105, %v590
  %v592 = vpop.f32.mrb[0].mxu0
  %593 = vmatprep.mubr.bf16.mxu0 0
  %594 = vmatmul.mubr.bf16.gmra.mrb[0].mxu0 %v367
  %v595 = vpop.f32.mrb[0].mxu0
  %v596 = vadd.f32 %v105, %v595
  %v597 = vpop.f32.mrb[0].mxu0
  %v598 = vpop.f32.mrb[0].mxu0
  %v599 = vadd.f32 %v105, %v598
  %v600 = vpop.f32.mrb[0].mxu0
  %601 = vmatprep.mubr.bf16.mxu0 0
  %602 = vmatmul.mubr.bf16.gmra.mrb[0].mxu0 %v370
  %v603 = vpop.f32.mrb[0].mxu0
  %v604 = vadd.f32 %v105, %v603
  %v605 = vpop.f32.mrb[0].mxu0
  %v606 = vpop.f32.mrb[0].mxu0
  %v607 = vadd.f32 %v105, %v606
  %v608 = vpop.f32.mrb[0].mxu0
  %609 = vmatprep.mubr.bf16.mxu0 0
  %610 = vmatmul.mubr.bf16.gmra.mrb[0].mxu0 %v373
  %v611 = vpop.f32.mrb[0].mxu0
  %v612 = vadd.f32 %v105, %v611
  %v613 = vpop.f32.mrb[0].mxu0
  %v614 = vpop.f32.mrb[0].mxu0
  %v615 = vadd.f32 %v105, %v614
  %v616 = vpop.f32.mrb[0].mxu0
  %617 = vmatprep.mubr.bf16.mxu0 0
  %618 = vmatmul.mubr.bf16.gmra.mrb[0].mxu0 %v376
  %v619 = vpop.f32.mrb[0].mxu0
  %v620 = vadd.f32 %v105, %v619
  %v621 = vpop.f32.mrb[0].mxu0
  %v622 = vpop.f32.mrb[0].mxu0
  %v623 = vadd.f32 %v105, %v622
  %v624 = vpop.f32.mrb[0].mxu0
  %625 = vmatprep.mubr.bf16.mxu0 0
  %626 = vmatmul.mubr.bf16.gmra.mrb[0].mxu0 %v379
  %v627 = vpop.f32.mrb[0].mxu0
  %v628 = vadd.f32 %v105, %v627
  %v629 = vpop.f32.mrb[0].mxu0
  %v630 = vpop.f32.mrb[0].mxu0
  %v631 = vadd.f32 %v105, %v630
  %v632 = vpop.f32.mrb[0].mxu0
  %633 = vmatprep.mubr.bf16.mxu0 0
  %634 = vmatmul.mubr.bf16.gmra.mrb[0].mxu0 %v382
  %v635 = vpop.f32.mrb[0].mxu0
  %v636 = vadd.f32 %v105, %v635
  %v637 = vpop.f32.mrb[0].mxu0
  %v638 = vpop.f32.mrb[0].mxu0
  %v639 = vadd.f32 %v105, %v638
  %v640 = vpop.f32.mrb[0].mxu0
  %641 = vmatprep.mubr.bf16.mxu0 0
  %642 = vmatmul.mubr.bf16.gmra.mrb[0].mxu0 %v385
  %v643 = vpop.f32.mrb[0].mxu0
  %v644 = vadd.f32 %v105, %v643
  %v645 = vpop.f32.mrb[0].mxu0
  %v646 = vpop.f32.mrb[0].mxu0
  %v647 = vadd.f32 %v105, %v646
  %v648 = vpop.f32.mrb[0].mxu0
  %649 = vmatprep.mubr.bf16.mxu0 0
  %650 = vmatmul.mubr.bf16.gmra.mrb[0].mxu0 %v388
  %v651 = vpop.f32.mrb[0].mxu0
  %v652 = vadd.f32 %v105, %v651
  %v653 = vpop.f32.mrb[0].mxu0
  %v654 = vpop.f32.mrb[0].mxu0
  %v655 = vadd.f32 %v105, %v654
  %v656 = vpop.f32.mrb[0].mxu0
  %657 = vmatprep.mubr.bf16.mxu0 0
  %658 = vmatmul.mubr.bf16.gmra.mrb[0].mxu0 %v391
  %v659 = vpop.f32.mrb[0].mxu0
  %v660 = vadd.f32 %v105, %v659
  %v661 = vpop.f32.mrb[0].mxu0
  %v662 = vpop.f32.mrb[0].mxu0
  %v663 = vadd.f32 %v105, %v662
  %v664 = vpop.f32.mrb[0].mxu0
  %665 = vmatprep.mubr.bf16.mxu0 0
  %666 = vmatmul.mubr.bf16.gmra.mrb[0].mxu0 %v394
  %v667 = vpop.f32.mrb[0].mxu0
  %v668 = vadd.f32 %v105, %v667
  %v669 = vpop.f32.mrb[0].mxu0
  %v670 = vpop.f32.mrb[0].mxu0
  %v671 = vadd.f32 %v105, %v670
  %v672 = vpop.f32.mrb[0].mxu0
  %673 = vmatprep.mubr.bf16.mxu0 0
  %674 = vmatmul.mubr.bf16.gmra.mrb[0].mxu0 %v397
  %v675 = vpop.f32.mrb[0].mxu0
  %v676 = vadd.f32 %v105, %v675
  %v677 = vpop.f32.mrb[0].mxu0
  %v678 = vpop.f32.mrb[0].mxu0
  %v679 = vadd.f32 %v105, %v678
  %v680 = vpop.f32.mrb[0].mxu0
  %681 = vmatprep.mubr.bf16.mxu0 0
  %682 = vmatmul.mubr.bf16.gmra.mrb[0].mxu0 %v400
  %v683 = vpop.f32.mrb[0].mxu0
  %v684 = vadd.f32 %v105, %v683
  %v685 = vpop.f32.mrb[0].mxu0
  %v686 = vpop.f32.mrb[0].mxu0
  %v687 = vadd.f32 %v105, %v686
  %v688 = vpop.f32.mrb[0].mxu0
  %689 = vmatprep.mubr.bf16.mxu0 0
  %690 = vmatmul.mubr.bf16.gmra.mrb[0].mxu0 %v403
  %v691 = vpop.f32.mrb[0].mxu0
  %v692 = vadd.f32 %v105, %v691
  %v693 = vpop.f32.mrb[0].mxu0
  %v694 = vpop.f32.mrb[0].mxu0
  %v695 = vadd.f32 %v105, %v694
  %v696 = vpop.f32.mrb[0].mxu0
  %697 = vmatprep.mubr.bf16.mxu0 0
  %698 = vmatmul.mubr.bf16.gmra.mrb[0].mxu0 %v406
  %v699 = vpop.f32.mrb[0].mxu0
  %v700 = vadd.f32 %v105, %v699
  %v701 = vpop.f32.mrb[0].mxu0
  %v702 = vpop.f32.mrb[0].mxu0
  %v703 = vadd.f32 %v105, %v702
  %v704 = vpop.f32.mrb[0].mxu0
  %705 = vmatprep.mubr.bf16.mxu0 0
  %706 = vmatmul.mubr.bf16.gmra.mrb[0].mxu0 %v409
  %v707 = vpop.f32.mrb[0].mxu0
  %v708 = vadd.f32 %v105, %v707
  %v709 = vpop.f32.mrb[0].mxu0
  %v710 = vpop.f32.mrb[0].mxu0
  %v711 = vadd.f32 %v105, %v710
  %v712 = vpop.f32.mrb[0].mxu0
  %713 = vmatprep.mubr.bf16.mxu0 0
  %714 = vmatmul.mubr.bf16.gmra.mrb[0].mxu0 %v412
  %v715 = vpop.f32.mrb[0].mxu0
  %v716 = vadd.f32 %v105, %v715
  %v717 = vpop.f32.mrb[0].mxu0
  %v718 = vpop.f32.mrb[0].mxu0
  %v719 = vadd.f32 %v105, %v718
  %v720 = vpop.f32.mrb[0].mxu0
  %721 = vmatprep.mubr.bf16.mxu0 0
  %722 = vmatmul.mubr.bf16.gmra.mrb[0].mxu0 %v415
  %v723 = vpop.f32.mrb[0].mxu0
  %v724 = vadd.f32 %v105, %v723
  %v725 = vpop.f32.mrb[0].mxu0
  %v726 = vpop.f32.mrb[0].mxu0
  %v727 = vadd.f32 %v105, %v726
  %v728 = vpop.f32.mrb[0].mxu0
  %729 = vmatprep.mubr.bf16.mxu0 0
  %730 = vmatmul.mubr.bf16.gmra.mrb[0].mxu0 %v418
  %v731 = vpop.f32.mrb[0].mxu0
  %v732 = vadd.f32 %v105, %v731
  %v733 = vpop.f32.mrb[0].mxu0
  %v734 = vpop.f32.mrb[0].mxu0
  %v735 = vadd.f32 %v105, %v734
  %v736 = vpop.f32.mrb[0].mxu0
  %737 = vmatprep.mubr.bf16.mxu0 0
  %738 = vmatmul.mubr.bf16.gmra.mrb[0].mxu0 %v421
  %v739 = vpop.f32.mrb[0].mxu0
  %v740 = vadd.f32 %v105, %v739
  %v741 = vpop.f32.mrb[0].mxu0
  %v742 = vpop.f32.mrb[0].mxu0
  %v743 = vadd.f32 %v105, %v742
  %v744 = vpop.f32.mrb[0].mxu0
  %745 = vmatprep.mubr.bf16.mxu0 0
  %746 = vmatmul.mubr.bf16.gmra.mrb[0].mxu0 %v424
  %v747 = vpop.f32.mrb[0].mxu0
  %v748 = vadd.f32 %v105, %v747
  %v749 = vpop.f32.mrb[0].mxu0
  %v750 = vpop.f32.mrb[0].mxu0
  %v751 = vadd.f32 %v105, %v750
  %v752 = vpop.f32.mrb[0].mxu0
  %753 = vmatprep.mubr.bf16.mxu0 0
  %754 = vmatmul.mubr.bf16.gmra.mrb[0].mxu0 %v427
  %v755 = vpop.f32.mrb[0].mxu0
  %v756 = vadd.f32 %v105, %v755
  %v757 = vpop.f32.mrb[0].mxu0
  %v758 = vpop.f32.mrb[0].mxu0
  %v759 = vpop.f32.mrb[0].mxu0
  %760 = vdwg.mxu0
  %vm761 = vcmp.ge.f32.partialorder %v468, 0.0
  %vm762 = vcmp.ge.f32.partialorder %v471, 0.0
  %vm763 = vcmp.ge.f32.partialorder %v476, 0.0
  %vm764 = vcmp.ge.f32.partialorder %v479, 0.0
  %vm765 = vcmp.ge.f32.partialorder %v484, 0.0
  %vm766 = vcmp.ge.f32.partialorder %v487, 0.0
  %vm767 = vcmp.ge.f32.partialorder %v492, 0.0
  %vm768 = vcmp.ge.f32.partialorder %v495, 0.0
  %vm769 = vcmp.ge.f32.partialorder %v500, 0.0
  %vm770 = vcmp.ge.f32.partialorder %v503, 0.0
  %vm771 = vcmp.ge.f32.partialorder %v508, 0.0
  %vm772 = vcmp.ge.f32.partialorder %v511, 0.0
  %vm773 = vcmp.ge.f32.partialorder %v516, 0.0
  %vm774 = vcmp.ge.f32.partialorder %v519, 0.0
  %vm775 = vcmp.ge.f32.partialorder %v524, 0.0
  %vm776 = vcmp.ge.f32.partialorder %v527, 0.0
  %vm777 = vcmp.ge.f32.partialorder %v532, 0.0
  %vm778 = vcmp.ge.f32.partialorder %v535, 0.0
  %vm779 = vcmp.ge.f32.partialorder %v540, 0.0
  %vm780 = vcmp.ge.f32.partialorder %v543, 0.0
  %vm781 = vcmp.ge.f32.partialorder %v548, 0.0
  %vm782 = vcmp.ge.f32.partialorder %v551, 0.0
  %vm783 = vcmp.ge.f32.partialorder %v556, 0.0
  %vm784 = vcmp.ge.f32.partialorder %v559, 0.0
  %vm785 = vcmp.ge.f32.partialorder %v564, 0.0
  %vm786 = vcmp.ge.f32.partialorder %v567, 0.0
  %vm787 = vcmp.ge.f32.partialorder %v572, 0.0
  %vm788 = vcmp.ge.f32.partialorder %v575, 0.0
  %vm789 = vcmp.ge.f32.partialorder %v580, 0.0
  %vm790 = vcmp.ge.f32.partialorder %v583, 0.0
  %vm791 = vcmp.ge.f32.partialorder %v588, 0.0
  %vm792 = vcmp.ge.f32.partialorder %v591, 0.0
  %vm793 = vcmp.ge.f32.partialorder %v596, 0.0
  %vm794 = vcmp.ge.f32.partialorder %v599, 0.0
  %vm795 = vcmp.ge.f32.partialorder %v604, 0.0
  %vm796 = vcmp.ge.f32.partialorder %v607, 0.0
  %vm797 = vcmp.ge.f32.partialorder %v612, 0.0
  %vm798 = vcmp.ge.f32.partialorder %v615, 0.0
  %vm799 = vcmp.ge.f32.partialorder %v620, 0.0
  %vm800 = vcmp.ge.f32.partialorder %v623, 0.0
  %vm801 = vcmp.ge.f32.partialorder %v628, 0.0
  %vm802 = vcmp.ge.f32.partialorder %v631, 0.0
  %vm803 = vcmp.ge.f32.partialorder %v636, 0.0
  %vm804 = vcmp.ge.f32.partialorder %v639, 0.0
  %vm805 = vcmp.ge.f32.partialorder %v644, 0.0
  %vm806 = vcmp.ge.f32.partialorder %v647, 0.0
  %vm807 = vcmp.ge.f32.partialorder %v652, 0.0
  %vm808 = vcmp.ge.f32.partialorder %v655, 0.0
  %vm809 = vcmp.ge.f32.partialorder %v660, 0.0
  %vm810 = vcmp.ge.f32.partialorder %v663, 0.0
  %vm811 = vcmp.ge.f32.partialorder %v668, 0.0
  %vm812 = vcmp.ge.f32.partialorder %v671, 0.0
  %vm813 = vcmp.ge.f32.partialorder %v676, 0.0
  %vm814 = vcmp.ge.f32.partialorder %v679, 0.0
  %vm815 = vcmp.ge.f32.partialorder %v684, 0.0
  %vm816 = vcmp.ge.f32.partialorder %v687, 0.0
  %vm817 = vcmp.ge.f32.partialorder %v692, 0.0
  %vm818 = vcmp.ge.f32.partialorder %v695, 0.0
  %vm819 = vcmp.ge.f32.partialorder %v700, 0.0
  %vm820 = vcmp.ge.f32.partialorder %v703, 0.0
  %vm821 = vcmp.ge.f32.partialorder %v708, 0.0
  %vm822 = vcmp.ge.f32.partialorder %v711, 0.0
  %vm823 = vcmp.ge.f32.partialorder %v716, 0.0
  %vm824 = vcmp.ge.f32.partialorder %v719, 0.0
  %vm825 = vcmp.ge.f32.partialorder %v724, 0.0
  %vm826 = vcmp.ge.f32.partialorder %v727, 0.0
  %vm827 = vcmp.ge.f32.partialorder %v732, 0.0
  %vm828 = vcmp.ge.f32.partialorder %v735, 0.0
  %vm829 = vcmp.ge.f32.partialorder %v740, 0.0
  %vm830 = vcmp.ge.f32.partialorder %v743, 0.0
  %vm831 = vcmp.ge.f32.partialorder %v748, 0.0
  %vm832 = vcmp.ge.f32.partialorder %v751, 0.0
  %vm833 = vcmp.ge.f32.partialorder %v756, 0.0
  %v834 = vld [vmem:[%s3] sm:$0x1]
  %v836 = vlaneseq
  %v837 = vshrl.u32 %v836, 7
  %v838 = vsub.s32 0, %v837
  %v839 = vrot.slane %v834, %v838
  %v841 = vmul.f32 %v839, %v468
  %v842 = vmul.f32 %v839, %v471
  %v843 = vmul.f32 %v839, %v476
  %v844 = vmul.f32 %v839, %v479
  %v845 = vmul.f32 %v839, %v484
  %v846 = vmul.f32 %v839, %v487
  %v847 = vmul.f32 %v839, %v492
  %v848 = vmul.f32 %v839, %v495
  %v849 = vmul.f32 %v839, %v500
  %v850 = vmul.f32 %v839, %v503
  %v851 = vmul.f32 %v839, %v508
  %v852 = vmul.f32 %v839, %v511
  %v853 = vmul.f32 %v839, %v516
  %v854 = vmul.f32 %v839, %v519
  %v855 = vmul.f32 %v839, %v524
  %v856 = vmul.f32 %v839, %v527
  %v857 = vmul.f32 %v839, %v532
  %v858 = vmul.f32 %v839, %v535
  %v859 = vmul.f32 %v839, %v540
  %v860 = vmul.f32 %v839, %v543
  %v861 = vmul.f32 %v839, %v548
  %v862 = vmul.f32 %v839, %v551
  %v863 = vmul.f32 %v839, %v556
  %v864 = vmul.f32 %v839, %v559
  %v865 = vmul.f32 %v839, %v564
  %v866 = vmul.f32 %v839, %v567
  %v867 = vmul.f32 %v839, %v572
  %v868 = vmul.f32 %v839, %v575
  %v869 = vmul.f32 %v839, %v580
  %v870 = vmul.f32 %v839, %v583
  %v871 = vmul.f32 %v839, %v588
  %v872 = vmul.f32 %v839, %v591
  %v873 = vmul.f32 %v839, %v596
  %v874 = vmul.f32 %v839, %v599
  %v875 = vmul.f32 %v839, %v604
  %v876 = vmul.f32 %v839, %v607
  %v877 = vmul.f32 %v839, %v612
  %v878 = vmul.f32 %v839, %v615
  %v879 = vmul.f32 %v839, %v620
  %v880 = vmul.f32 %v839, %v623
  %v881 = vmul.f32 %v839, %v628
  %v882 = vmul.f32 %v839, %v631
  %v883 = vmul.f32 %v839, %v636
  %v884 = vmul.f32 %v839, %v639
  %v885 = vmul.f32 %v839, %v644
  %v886 = vmul.f32 %v839, %v647
  %v887 = vmul.f32 %v839, %v652
  %v888 = vmul.f32 %v839, %v655
  %v889 = vmul.f32 %v839, %v660
  %v890 = vmul.f32 %v839, %v663
  %v891 = vmul.f32 %v839, %v668
  %v892 = vmul.f32 %v839, %v671
  %v893 = vmul.f32 %v839, %v676
  %v894 = vmul.f32 %v839, %v679
  %v895 = vmul.f32 %v839, %v684
  %v896 = vmul.f32 %v839, %v687
  %v897 = vmul.f32 %v839, %v692
  %v898 = vmul.f32 %v839, %v695
  %v899 = vmul.f32 %v839, %v700
  %v900 = vmul.f32 %v839, %v703
  %v901 = vmul.f32 %v839, %v708
  %v902 = vmul.f32 %v839, %v711
  %v903 = vmul.f32 %v839, %v716
  %v904 = vmul.f32 %v839, %v719
  %v905 = vmul.f32 %v839, %v724
  %v906 = vmul.f32 %v839, %v727
  %v907 = vmul.f32 %v839, %v732
  %v908 = vmul.f32 %v839, %v735
  %v909 = vmul.f32 %v839, %v740
  %v910 = vmul.f32 %v839, %v743
  %v911 = vmul.f32 %v839, %v748
  %v912 = vmul.f32 %v839, %v751
  %v913 = vmul.f32 %v839, %v756
  %v914 = vsel %vm761, %v468, %v841
  %v915 = vsel %vm762, %v471, %v842
  %v916 = vsel %vm763, %v476, %v843
  %v917 = vsel %vm764, %v479, %v844
  %v918 = vsel %vm765, %v484, %v845
  %v919 = vsel %vm766, %v487, %v846
  %v920 = vsel %vm767, %v492, %v847
  %v921 = vsel %vm768, %v495, %v848
  %v922 = vsel %vm769, %v500, %v849
  %v923 = vsel %vm770, %v503, %v850
  %v924 = vsel %vm771, %v508, %v851
  %v925 = vsel %vm772, %v511, %v852
  %v926 = vsel %vm773, %v516, %v853
  %v927 = vsel %vm774, %v519, %v854
  %v928 = vsel %vm775, %v524, %v855
  %v929 = vsel %vm776, %v527, %v856
  %v930 = vsel %vm777, %v532, %v857
  %v931 = vsel %vm778, %v535, %v858
  %v932 = vsel %vm779, %v540, %v859
  %v933 = vsel %vm780, %v543, %v860
  %v934 = vsel %vm781, %v548, %v861
  %v935 = vsel %vm782, %v551, %v862
  %v936 = vsel %vm783, %v556, %v863
  %v937 = vsel %vm784, %v559, %v864
  %v938 = vsel %vm785, %v564, %v865
  %v939 = vsel %vm786, %v567, %v866
  %v940 = vsel %vm787, %v572, %v867
  %v941 = vsel %vm788, %v575, %v868
  %v942 = vsel %vm789, %v580, %v869
  %v943 = vsel %vm790, %v583, %v870
  %v944 = vsel %vm791, %v588, %v871
  %v945 = vsel %vm792, %v591, %v872
  %v946 = vsel %vm793, %v596, %v873
  %v947 = vsel %vm794, %v599, %v874
  %v948 = vsel %vm795, %v604, %v875
  %v949 = vsel %vm796, %v607, %v876
  %v950 = vsel %vm797, %v612, %v877
  %v951 = vsel %vm798, %v615, %v878
  %v952 = vsel %vm799, %v620, %v879
  %v953 = vsel %vm800, %v623, %v880
  %v954 = vsel %vm801, %v628, %v881
  %v955 = vsel %vm802, %v631, %v882
  %v956 = vsel %vm803, %v636, %v883
  %v957 = vsel %vm804, %v639, %v884
  %v958 = vsel %vm805, %v644, %v885
  %v959 = vsel %vm806, %v647, %v886
  %v960 = vsel %vm807, %v652, %v887
  %v961 = vsel %vm808, %v655, %v888
  %v962 = vsel %vm809, %v660, %v889
  %v963 = vsel %vm810, %v663, %v890
  %v964 = vsel %vm811, %v668, %v891
  %v965 = vsel %vm812, %v671, %v892
  %v966 = vsel %vm813, %v676, %v893
  %v967 = vsel %vm814, %v679, %v894
  %v968 = vsel %vm815, %v684, %v895
  %v969 = vsel %vm816, %v687, %v896
  %v970 = vsel %vm817, %v692, %v897
  %v971 = vsel %vm818, %v695, %v898
  %v972 = vsel %vm819, %v700, %v899
  %v973 = vsel %vm820, %v703, %v900
  %v974 = vsel %vm821, %v708, %v901
  %v975 = vsel %vm822, %v711, %v902
  %v976 = vsel %vm823, %v716, %v903
  %v977 = vsel %vm824, %v719, %v904
  %v978 = vsel %vm825, %v724, %v905
  %v979 = vsel %vm826, %v727, %v906
  %v980 = vsel %vm827, %v732, %v907
  %v981 = vsel %vm828, %v735, %v908
  %v982 = vsel %vm829, %v740, %v909
  %v983 = vsel %vm830, %v743, %v910
  %v984 = vsel %vm831, %v748, %v911
  %v985 = vsel %vm832, %v751, %v912
  %v986 = vsel %vm833, %v756, %v913
  %vm987 = vcmask 31744
  %988 = vst.msk [vmem:[%s4] sm:$0xff] %vm987, %v914
  %989 = vst.msk [vmem:[%s4 + $0x8] sm:$0xff] %vm987, %v915
  %990 = vst.msk [vmem:[%s4 + $0x10] sm:$0xff] %vm987, %v916
  %991 = vst.msk [vmem:[%s4 + $0x18] sm:$0xff] %vm987, %v917
  %992 = vst.msk [vmem:[%s4 + $0x20] sm:$0xff] %vm987, %v918
  %993 = vst.msk [vmem:[%s4 + $0x28] sm:$0xff] %vm987, %v919
  %994 = vst.msk [vmem:[%s4 + $0x30] sm:$0xff] %vm987, %v920
  %995 = vst.msk [vmem:[%s4 + $0x38] sm:$0xff] %vm987, %v921
  %996 = vst.msk [vmem:[%s4 + $0x40] sm:$0xff] %vm987, %v922
  %997 = vst.msk [vmem:[%s4 + $0x48] sm:$0xff] %vm987, %v923
  %998 = vst.msk [vmem:[%s4 + $0x50] sm:$0xff] %vm987, %v924
  %999 = vst.msk [vmem:[%s4 + $0x58] sm:$0xff] %vm987, %v925
  %1000 = vst.msk [vmem:[%s4 + $0x60] sm:$0xff] %vm987, %v926
  %1001 = vst.msk [vmem:[%s4 + $0x68] sm:$0xff] %vm987, %v927
  %1002 = vst.msk [vmem:[%s4 + $0x70] sm:$0xff] %vm987, %v928
  %1003 = vst.msk [vmem:[%s4 + $0x78] sm:$0xff] %vm987, %v929
  %1004 = vst.msk [vmem:[%s4 + $0x80] sm:$0xff] %vm987, %v930
  %1005 = vst.msk [vmem:[%s4 + $0x88] sm:$0xff] %vm987, %v931
  %1006 = vst.msk [vmem:[%s4 + $0x90] sm:$0xff] %vm987, %v932
  %1007 = vst.msk [vmem:[%s4 + $0x98] sm:$0xff] %vm987, %v933
  %1008 = vst.msk [vmem:[%s4 + $0xa0] sm:$0xff] %vm987, %v934
  %1009 = vst.msk [vmem:[%s4 + $0xa8] sm:$0xff] %vm987, %v935
  %1010 = vst.msk [vmem:[%s4 + $0xb0] sm:$0xff] %vm987, %v936
  %1011 = vst.msk [vmem:[%s4 + $0xb8] sm:$0xff] %vm987, %v937
  %1012 = vst.msk [vmem:[%s4 + $0xc0] sm:$0xff] %vm987, %v938
  %1013 = vst.msk [vmem:[%s4 + $0xc8] sm:$0xff] %vm987, %v939
  %1014 = vst.msk [vmem:[%s4 + $0xd0] sm:$0xff] %vm987, %v940
  %1015 = vst.msk [vmem:[%s4 + $0xd8] sm:$0xff] %vm987, %v941
  %1016 = vst.msk [vmem:[%s4 + $0xe0] sm:$0xff] %vm987, %v942
  %1017 = vst.msk [vmem:[%s4 + $0xe8] sm:$0xff] %vm987, %v943
  %1018 = vst.msk [vmem:[%s4 + $0xf0] sm:$0xff] %vm987, %v944
  %1019 = vst.msk [vmem:[%s4 + $0xf8] sm:$0xff] %vm987, %v945
  %1020 = vst.msk [vmem:[%s4 + $0x100] sm:$0xff] %vm987, %v946
  %1021 = vst.msk [vmem:[%s4 + $0x108] sm:$0xff] %vm987, %v947
  %1022 = vst.msk [vmem:[%s4 + $0x110] sm:$0xff] %vm987, %v948
  %1023 = vst.msk [vmem:[%s4 + $0x118] sm:$0xff] %vm987, %v949
  %1024 = vst.msk [vmem:[%s4 + $0x120] sm:$0xff] %vm987, %v950
  %1025 = vst.msk [vmem:[%s4 + $0x128] sm:$0xff] %vm987, %v951
  %1026 = vst.msk [vmem:[%s4 + $0x130] sm:$0xff] %vm987, %v952
  %1027 = vst.msk [vmem:[%s4 + $0x138] sm:$0xff] %vm987, %v953
  %1028 = vst.msk [vmem:[%s4 + $0x140] sm:$0xff] %vm987, %v954
  %1029 = vst.msk [vmem:[%s4 + $0x148] sm:$0xff] %vm987, %v955
  %1030 = vst.msk [vmem:[%s4 + $0x150] sm:$0xff] %vm987, %v956
  %1031 = vst.msk [vmem:[%s4 + $0x158] sm:$0xff] %vm987, %v957
  %1032 = vst.msk [vmem:[%s4 + $0x160] sm:$0xff] %vm987, %v958
  %1033 = vst.msk [vmem:[%s4 + $0x168] sm:$0xff] %vm987, %v959
  %1034 = vst.msk [vmem:[%s4 + $0x170] sm:$0xff] %vm987, %v960
  %1035 = vst.msk [vmem:[%s4 + $0x178] sm:$0xff] %vm987, %v961
  %1036 = vst.msk [vmem:[%s4 + $0x180] sm:$0xff] %vm987, %v962
  %1037 = vst.msk [vmem:[%s4 + $0x188] sm:$0xff] %vm987, %v963
  %1038 = vst.msk [vmem:[%s4 + $0x190] sm:$0xff] %vm987, %v964
  %1039 = vst.msk [vmem:[%s4 + $0x198] sm:$0xff] %vm987, %v965
  %1040 = vst.msk [vmem:[%s4 + $0x1a0] sm:$0xff] %vm987, %v966
  %1041 = vst.msk [vmem:[%s4 + $0x1a8] sm:$0xff] %vm987, %v967
  %1042 = vst.msk [vmem:[%s4 + $0x1b0] sm:$0xff] %vm987, %v968
  %1043 = vst.msk [vmem:[%s4 + $0x1b8] sm:$0xff] %vm987, %v969
  %1044 = vst.msk [vmem:[%s4 + $0x1c0] sm:$0xff] %vm987, %v970
  %1045 = vst.msk [vmem:[%s4 + $0x1c8] sm:$0xff] %vm987, %v971
  %1046 = vst.msk [vmem:[%s4 + $0x1d0] sm:$0xff] %vm987, %v972
  %1047 = vst.msk [vmem:[%s4 + $0x1d8] sm:$0xff] %vm987, %v973
  %1048 = vst.msk [vmem:[%s4 + $0x1e0] sm:$0xff] %vm987, %v974
  %1049 = vst.msk [vmem:[%s4 + $0x1e8] sm:$0xff] %vm987, %v975
  %1050 = vst.msk [vmem:[%s4 + $0x1f0] sm:$0xff] %vm987, %v976
  %1051 = vst.msk [vmem:[%s4 + $0x1f8] sm:$0xff] %vm987, %v977
  %1052 = vst.msk [vmem:[%s4 + $0x200] sm:$0xff] %vm987, %v978
  %1053 = vst.msk [vmem:[%s4 + $0x208] sm:$0xff] %vm987, %v979
  %1054 = vst.msk [vmem:[%s4 + $0x210] sm:$0xff] %vm987, %v980
  %1055 = vst.msk [vmem:[%s4 + $0x218] sm:$0xff] %vm987, %v981
  %1056 = vst.msk [vmem:[%s4 + $0x220] sm:$0xff] %vm987, %v982
  %1057 = vst.msk [vmem:[%s4 + $0x228] sm:$0xff] %vm987, %v983
  %1058 = vst.msk [vmem:[%s4 + $0x230] sm:$0xff] %vm987, %v984
  %1059 = vst.msk [vmem:[%s4 + $0x238] sm:$0xff] %vm987, %v985
  %1060 = vst.msk [vmem:[%s4 + $0x240] sm:$0xff] %vm987, %v986
  // Predicated region
  $region18: #{tf_gridnet_forward.65} parent=0 // pred_check
    _
  $region19: #{tf_gridnet_forward.65} parent=0 // pred_check_branch
    %1062 = sbr.rel (0) target = $region21
  $region20: #{tf_gridnet_forward.65} parent=0 // pred_region
    _
  $region21: #{tf_gridnet_forward.65} parent=0 // pred_fallthru
    _
  // Predicated region
  $region22: #{tf_gridnet_forward.65} parent=0 // pred_check
    _
  $region23: #{tf_gridnet_forward.65} parent=0 // pred_check_branch
    %1064 = sbr.rel (0) target = $region25
  $region24: #{tf_gridnet_forward.65} parent=0 // pred_region
    _
  $region25: #{tf_gridnet_forward.65} parent=0 // pred_fallthru
    _

</llo_original>
